<compile_context>
chip_gen: v7x
topology: tpu7x:2x2x1
jax: 0.10.0
libtpu: 0.0.40
codegen_flags: <defaults>
</compile_context>

<pallas_src>
import functools

import jax
import jax.numpy as jnp
from jax.experimental import pallas as pl
from jax.experimental.pallas import tpu as pltpu

COMPUTE_DTYPE = jnp.bfloat16  # MXU operand / activation storage dtype (accum is f32)


# -----------------------------------------------------------------------------
# Pallas kernels
# -----------------------------------------------------------------------------
def _mm_bias_act_kernel(a_ref, b_ref, bias_ref, o_ref, acc_ref, *, post_act):
    """Grid (gm, gn, gk): K-tiled matmul, f32 accumulator, bias(+tanh) epilogue."""
    k = pl.program_id(2)

    @pl.when(k == 0)
    def _():
        acc_ref[...] = jnp.zeros_like(acc_ref)

    acc_ref[...] += jnp.dot(a_ref[...], b_ref[...],
                            preferred_element_type=jnp.float32)

    @pl.when(k == pl.num_programs(2) - 1)
    def _():
        r = acc_ref[...] + bias_ref[...]
        if post_act == "tanh":
            r = jnp.tanh(r)
        o_ref[...] = r.astype(o_ref.dtype)


def _choose_tk(K, tk_max=512):
    """Largest K-tile <= tk_max that divides K and is a multiple of 128 (else full K)."""
    if K <= tk_max or K % 128 != 0:
        return K
    tk = tk_max - (tk_max % 128)
    while K % tk != 0:
        tk -= 128
    return tk


def matmul_bias_act(a, b, bias, post_act="none", out_dtype=COMPUTE_DTYPE):
    """out = post_act(a @ b + bias); a:(M,K), b:(K,N), bias:(N,)."""
    M, K = a.shape
    K2, N = b.shape
    assert K == K2
    # Adaptive tiles: single full M-block for modest M (no padding / slicing copies),
    # otherwise 256-row tiles (fits comfortably in VMEM incl. v7x's 64 MiB budget).
    tm = M if M <= 1024 else 256
    tn = N if N <= 512 else 512
    tk = _choose_tk(K)
    gm, gn, gk = pl.cdiv(M, tm), pl.cdiv(N, tn), K // tk

    return pl.pallas_call(
        functools.partial(_mm_bias_act_kernel, post_act=post_act),
        out_shape=jax.ShapeDtypeStruct((M, N), out_dtype),
        grid=(gm, gn, gk),
        in_specs=[
            pl.BlockSpec((tm, tk), lambda i, j, k: (i, k)),
            pl.BlockSpec((tk, tn), lambda i, j, k: (k, j)),
            pl.BlockSpec((1, tn), lambda i, j, k: (0, j)),
        ],
        out_specs=pl.BlockSpec((tm, tn), lambda i, j, k: (i, j)),
        scratch_shapes=[pltpu.VMEM((tm, tn), jnp.float32)],
        compiler_params=pltpu.CompilerParams(
            dimension_semantics=("parallel", "parallel", "arbitrary")),
    )(a.astype(COMPUTE_DTYPE), b.astype(COMPUTE_DTYPE),
      bias.reshape(1, N).astype(jnp.float32))


def _bn_stats_kernel(x_ref, sum_ref, sq_ref, *, tr, n_rows):
    i = pl.program_id(0)

    @pl.when(i == 0)
    def _():
        sum_ref[...] = jnp.zeros_like(sum_ref)
        sq_ref[...] = jnp.zeros_like(sq_ref)

    x = x_ref[...].astype(jnp.float32)
    rows = i * tr + jax.lax.broadcasted_iota(jnp.int32, x.shape, 0)
    x = jnp.where(rows < n_rows, x, 0.0)          # mask any out-of-bounds tail rows
    sum_ref[...] += jnp.sum(x, axis=0, keepdims=True)
    sq_ref[...] += jnp.sum(x * x, axis=0, keepdims=True)


def _bn_apply_kernel(x_ref, scale_ref, shift_ref, o_ref):
    o_ref[...] = (x_ref[...].astype(jnp.float32) * scale_ref[...]
                  + shift_ref[...]).astype(o_ref.dtype)


def batchnorm2d(x, gamma, beta, eps=1e-5):
    """Training-mode BatchNorm2d on NHWC (biased batch stats, like torch .train())."""
    Nb, H, W, C = x.shape
    M = Nb * H * W
    xm = x.reshape(M, C)
    tr = M if M <= 1024 else 1024
    grid = (pl.cdiv(M, tr),)

    s, sq = pl.pallas_call(
        functools.partial(_bn_stats_kernel, tr=tr, n_rows=M),
        out_shape=(jax.ShapeDtypeStruct((1, C), jnp.float32),
                   jax.ShapeDtypeStruct((1, C), jnp.float32)),
        grid=grid,
        in_specs=[pl.BlockSpec((tr, C), lambda i: (i, 0))],
        out_specs=(pl.BlockSpec((1, C), lambda i: (0, 0)),
                   pl.BlockSpec((1, C), lambda i: (0, 0))),
        compiler_params=pltpu.CompilerParams(dimension_semantics=("arbitrary",)),
    )(xm)

    mean = s / M
    var = jnp.maximum(sq / M - mean * mean, 0.0)  # biased variance (torch training mode)
    inv = jax.lax.rsqrt(var + eps)
    scale = gamma.reshape(1, C) * inv
    shift = beta.reshape(1, C) - mean * scale

    out = pl.pallas_call(
        _bn_apply_kernel,
        out_shape=jax.ShapeDtypeStruct((M, C), x.dtype),
        grid=grid,
        in_specs=[pl.BlockSpec((tr, C), lambda i: (i, 0)),
                  pl.BlockSpec((1, C), lambda i: (0, 0)),
                  pl.BlockSpec((1, C), lambda i: (0, 0))],
        out_specs=pl.BlockSpec((tr, C), lambda i: (i, 0)),
        compiler_params=pltpu.CompilerParams(dimension_semantics=("parallel",)),
    )(xm, scale, shift)
    return out.reshape(Nb, H, W, C)


# -----------------------------------------------------------------------------
# Conv helpers (im2col / phase glue in plain JAX, matmul in Pallas)
# -----------------------------------------------------------------------------
def _act(x, kind):
    if kind == "leaky_relu":
        return jnp.where(x > 0, x, 0.2 * x)
    if kind == "relu":
        return jnp.maximum(x, 0.0)
    return x


def _im2col(x, k, stride, pad):
    N, H, W, C = x.shape
    xp = jnp.pad(x, ((0, 0), (pad, pad), (pad, pad), (0, 0)))
    Ho = (H + 2 * pad - k) // stride + 1
    Wo = (W + 2 * pad - k) // stride + 1
    patches = []
    for kh in range(k):
        for kw in range(k):
            patches.append(
                xp[:, kh:kh + Ho * stride:stride, kw:kw + Wo * stride:stride, :])
    cols = jnp.stack(patches, axis=3)             # (N, Ho, Wo, k*k, C)
    return cols.reshape(N * Ho * Wo, k * k * C), Ho, Wo


def conv2d(x, W, bias, stride, pad, pre_act="none"):
    """x NHWC, W in torch Conv2d layout (Cout, Cin, kh, kw)."""
    Cout, Cin, k, _ = W.shape
    # activation in f32 (v5e VPU has no bf16), then cast; fuses into the im2col gather
    xa = _act(x.astype(jnp.float32), pre_act).astype(COMPUTE_DTYPE)
    cols, Ho, Wo = _im2col(xa, k, stride, pad)
    Wm = jnp.transpose(W, (2, 3, 1, 0)).reshape(k * k * Cin, Cout)
    out = matmul_bias_act(cols, Wm, bias)
    return out.reshape(x.shape[0], Ho, Wo, Cout)


def _convT_phase_weight(Wt):
    """torch ConvTranspose2d weight (Cin, Cout, 4, 4) -> (4*Cin, 4*Cout) phase matrix.

    Output phase ph = 2*rh + rw produces pixels (2m+rh, 2n+rw) from the 2x2 window of the
    1-padded input at window position (m+rh, n+rw); tap (dh, dw) of that window uses
    W[:, :, (3-rh)-2*dh, (3-rw)-2*dw].
    """
    Cin, Cout = Wt.shape[0], Wt.shape[1]
    phases = []
    for rh in (0, 1):
        for rw in (0, 1):
            taps = [Wt[:, :, (3 - rh) - 2 * dh, (3 - rw) - 2 * dw]
                    for dh in (0, 1) for dw in (0, 1)]
            phases.append(jnp.stack(taps, axis=0).reshape(2, 2, Cin, Cout))
    W4 = jnp.stack(phases, axis=3)                # (dh, dw, ci, ph, co)
    return W4.reshape(4 * Cin, 4 * Cout)


def conv_transpose2d(x, Wt, bias, pre_act="relu", post_act="none"):
    """Phase-decomposed ConvTranspose2d(k=4, s=2, p=1): a single
    (M, 4*Cin) @ (4*Cin, 4*Cout) matmul on the undilated input, then phase interleave.
    Mathematically identical to torch's ConvTranspose2d (no 75%-zero dilated work)."""
    N, H, W, Cin = x.shape
    Cout = Wt.shape[1]
    xa = _act(x.astype(jnp.float32), pre_act).astype(COMPUTE_DTYPE)
    cols, Ho, Wo = _im2col(xa, k=2, stride=1, pad=1)   # Ho = H+1, Wo = W+1
    Wm = _convT_phase_weight(Wt)
    bias4 = jnp.tile(bias, 4)
    out_dtype = jnp.float32 if post_act == "tanh" else COMPUTE_DTYPE
    out = matmul_bias_act(cols, Wm, bias4, post_act=post_act, out_dtype=out_dtype)
    O = out.reshape(N, Ho, Wo, 4, Cout)
    o00 = O[:, 0:H,     0:W,     0]
    o01 = O[:, 0:H,     1:W + 1, 1]
    o10 = O[:, 1:H + 1, 0:W,     2]
    o11 = O[:, 1:H + 1, 1:W + 1, 3]
    row0 = jnp.stack([o00, o01], axis=3).reshape(N, H, 2 * W, Cout)
    row1 = jnp.stack([o10, o11], axis=3).reshape(N, H, 2 * W, Cout)
    return jnp.stack([row0, row1], axis=2).reshape(N, 2 * H, 2 * W, Cout)


# -----------------------------------------------------------------------------
# Parameter construction (deterministic, mirrors torch module shapes; the given spec
# uses default bias=True on all convs, so biases are kept everywhere)
# -----------------------------------------------------------------------------
def _conv_params(key, cin, cout, k=4):
    k1, k2 = jax.random.split(key)
    bound = 1.0 / float(cin * k * k) ** 0.5
    W = jax.random.uniform(k1, (cout, cin, k, k), jnp.float32, -bound, bound)
    b = jax.random.uniform(k2, (cout,), jnp.float32, -bound, bound)
    return W, b


def _convT_params(key, cin, cout, k=4):
    k1, k2 = jax.random.split(key)
    bound = 1.0 / float(cout * k * k) ** 0.5
    W = jax.random.uniform(k1, (cin, cout, k, k), jnp.float32, -bound, bound)
    b = jax.random.uniform(k2, (cout,), jnp.float32, -bound, bound)
    return W, b


def _bn_params(c):
    return jnp.ones((c,), jnp.float32), jnp.zeros((c,), jnp.float32)


def _make_block(key, outer_nc, inner_nc, input_nc=None, submodule=None,
                outermost=False, innermost=False):
    if input_nc is None:
        input_nc = outer_nc
    kd, ku = jax.random.split(key)
    p = {"outermost": outermost, "innermost": innermost, "submodule": submodule}
    p["downconv"] = _conv_params(kd, input_nc, inner_nc)
    if outermost:
        p["upconv"] = _convT_params(ku, inner_nc * 2, outer_nc)
    elif innermost:
        p["upconv"] = _convT_params(ku, inner_nc, outer_nc)
        p["upnorm"] = _bn_params(outer_nc)
    else:
        p["downnorm"] = _bn_params(inner_nc)
        p["upconv"] = _convT_params(ku, inner_nc * 2, outer_nc)
        p["upnorm"] = _bn_params(outer_nc)
    return p


def build_unet_params(key, input_nc, output_nc, num_downs, ngf):
    def nk(i):
        return jax.random.fold_in(key, i)

    blk = _make_block(nk(0), ngf * 8, ngf * 8, innermost=True)
    idx = 1
    for _ in range(num_downs - 5):
        blk = _make_block(nk(idx), ngf * 8, ngf * 8, submodule=blk)
        idx += 1
    blk = _make_block(nk(idx), ngf * 4, ngf * 8, submodule=blk); idx += 1
    blk = _make_block(nk(idx), ngf * 2, ngf * 4, submodule=blk); idx += 1
    blk = _make_block(nk(idx), ngf, ngf * 2, submodule=blk); idx += 1
    blk = _make_block(nk(idx), output_nc, ngf, input_nc=input_nc, submodule=blk,
                      outermost=True)
    return blk


# -----------------------------------------------------------------------------
# Forward pass (mirrors UnetSkipConnectionBlock.forward semantics)
# -----------------------------------------------------------------------------
def apply_block(p, x):
    outermost, innermost = p["outermost"], p["innermost"]
    # ---- down path: outermost=[downconv]; else [downrelu, downconv, (downnorm)] ----
    pre = "none" if outermost else "leaky_relu"
    Wd, bd = p["downconv"]
    y = conv2d(x, Wd, bd, stride=2, pad=1, pre_act=pre)
    if (not outermost) and (not innermost):
        g, b = p["downnorm"]
        y = batchnorm2d(y, g, b)
    # ---- submodule ----
    if p["submodule"] is not None:
        y = apply_block(p["submodule"], y)
    # ---- up path: [uprelu, upconv, (tanh | upnorm)] ----
    Wu, bu = p["upconv"]
    post = "tanh" if outermost else "none"
    y = conv_transpose2d(y, Wu, bu, pre_act="relu", post_act=post)
    if outermost:
        return y
    g, b = p["upnorm"]
    y = batchnorm2d(y, g, b)
    # TODO(synk): skip-concat could write directly into a preallocated channel-offset
    # buffer via out_specs/input_output_aliases to save one HBM pass per block.
    return jnp.concatenate([x, y], axis=-1)   # torch.cat([x, model(x)], dim=1) in NHWC


def unet_generator_forward(params, x_nchw):
    x = jnp.transpose(x_nchw, (0, 2, 3, 1))          # NCHW -> NHWC
    y = apply_block(params, x)
    return jnp.transpose(y, (0, 3, 1, 2)).astype(jnp.float32)   # NHWC -> NCHW


# -----------------------------------------------------------------------------
if __name__ == "__main__":
    key = jax.random.PRNGKey(0)
    kp, kx = jax.random.split(key)

    # Small configuration consistent with the module: num_downs=5 needs spatial >= 32.
    input_nc, output_nc, num_downs, ngf = 3, 3, 5, 8
    batch, H, W = 2, 32, 32

    params = build_unet_params(kp, input_nc, output_nc, num_downs, ngf)
    x = jax.random.normal(kx, (batch, input_nc, H, W), jnp.float32)  # NCHW like PyTorch

    fwd = jax.jit(lambda a: unet_generator_forward(params, a))
    out = fwd(x)
    jax.block_until_ready(out)

    assert out.shape == (batch, output_nc, H, W), out.shape
    assert bool(jnp.all(jnp.isfinite(out)))
    print("KERNEL_OK")
</pallas_src>

<mosaic_0001>
module attributes {stable_mosaic.version = 11 : i64} {
  func.func @_mm_bias_act_kernel(%arg0: i32, %arg1: i32, %arg2: i32, %arg3: memref<512x48xbf16, #tpu.memory_space<vmem>>, %arg4: memref<48x8xbf16, #tpu.memory_space<vmem>>, %arg5: memref<1x8xf32, #tpu.memory_space<vmem>>, %arg6: memref<512x8xbf16, #tpu.memory_space<vmem>>, %arg7: memref<512x8xf32, #tpu.memory_space<vmem>>) attributes {dimension_semantics = [#tpu.dimension_semantics<parallel>, #tpu.dimension_semantics<parallel>, #tpu.dimension_semantics<arbitrary>], iteration_bounds = array<i64: 1, 1, 1>, scalar_prefetch = 0 : i64, scratch_operands = 1 : i64, tpu.core_type = #tpu.core_type<tc>, window_params = [{transform_indices = @transform_0, window_bounds = array<i64: 512, 48>}, {transform_indices = @transform_1, window_bounds = array<i64: 48, 8>}, {transform_indices = @transform_2, window_bounds = array<i64: 1, 8>}, {transform_indices = @transform_3, window_bounds = array<i64: 512, 8>}]} {
    %c0_i32 = arith.constant 0 : i32
    %0 = arith.cmpi eq, %arg2, %c0_i32 : i32
    %1 = arith.extui %0 : i1 to i32
    %c0_i32_0 = arith.constant 0 : i32
    %2 = arith.cmpi ne, %1, %c0_i32_0 : i32
    scf.if %2 {
      %cst_10 = arith.constant 0.000000e+00 : f32
      %12 = vector.broadcast %cst_10 : f32 to vector<512x8xf32>
      %c0_11 = arith.constant 0 : index
      %c0_12 = arith.constant 0 : index
      %13 = vector.load %arg7[%c0_11, %c0_12] : memref<512x8xf32, #tpu.memory_space<vmem>>, vector<512x8xf32>
      tpu.vector_store %arg7[%c0_11, %c0_12], %12 {strides = array<i32>} : memref<512x8xf32, #tpu.memory_space<vmem>>, vector<512x8xf32>,
    } else {
    }
    %c0 = arith.constant 0 : index
    %c0_1 = arith.constant 0 : index
    %3 = vector.load %arg7[%c0, %c0_1] : memref<512x8xf32, #tpu.memory_space<vmem>>, vector<512x8xf32>
    %c0_2 = arith.constant 0 : index
    %c0_3 = arith.constant 0 : index
    %4 = vector.load %arg3[%c0_2, %c0_3] : memref<512x48xbf16, #tpu.memory_space<vmem>>, vector<512x48xbf16>
    %c0_4 = arith.constant 0 : index
    %c0_5 = arith.constant 0 : index
    %5 = vector.load %arg4[%c0_4, %c0_5] : memref<48x8xbf16, #tpu.memory_space<vmem>>, vector<48x8xbf16>
    %cst = arith.constant dense<0.000000e+00> : vector<512x8xf32>
    %6 = tpu.matmul %4, %5, %cst {dimension_numbers = #tpu.dot_dimension_numbers<[1], [0], [0], [1], [0, 0, 1, 1], [], []>} : vector<512x48xbf16>, vector<48x8xbf16>, vector<512x8xf32> -> vector<512x8xf32>
    %7 = arith.addf %3, %6 : vector<512x8xf32>
    %c0_6 = arith.constant 0 : index
    %c0_7 = arith.constant 0 : index
    %8 = vector.load %arg7[%c0_6, %c0_7] : memref<512x8xf32, #tpu.memory_space<vmem>>, vector<512x8xf32>
    tpu.vector_store %arg7[%c0_6, %c0_7], %7 {strides = array<i32>} : memref<512x8xf32, #tpu.memory_space<vmem>>, vector<512x8xf32>,
    %c0_i32_8 = arith.constant 0 : i32
    %9 = arith.cmpi eq, %arg2, %c0_i32_8 : i32
    %10 = arith.extui %9 : i1 to i32
    %c0_i32_9 = arith.constant 0 : i32
    %11 = arith.cmpi ne, %10, %c0_i32_9 : i32
    scf.if %11 {
      %c0_10 = arith.constant 0 : index
      %c0_11 = arith.constant 0 : index
      %12 = vector.load %arg7[%c0_10, %c0_11] : memref<512x8xf32, #tpu.memory_space<vmem>>, vector<512x8xf32>
      %c0_12 = arith.constant 0 : index
      %c0_13 = arith.constant 0 : index
      %13 = vector.load %arg5[%c0_12, %c0_13] : memref<1x8xf32, #tpu.memory_space<vmem>>, vector<1x8xf32>
      %14 = vector.broadcast %13 : vector<1x8xf32> to vector<512x8xf32>
      %15 = arith.addf %12, %14 : vector<512x8xf32>
      %16 = arith.truncf %15 : vector<512x8xf32> to vector<512x8xbf16>
      %c0_14 = arith.constant 0 : index
      %c0_15 = arith.constant 0 : index
      %17 = vector.load %arg6[%c0_14, %c0_15] : memref<512x8xbf16, #tpu.memory_space<vmem>>, vector<512x8xbf16>
      tpu.vector_store %arg6[%c0_14, %c0_15], %16 {strides = array<i32>} : memref<512x8xbf16, #tpu.memory_space<vmem>>, vector<512x8xbf16>,
    } else {
    }
    return
  }
  func.func @transform_0(%arg0: i32, %arg1: i32, %arg2: i32) -> (i32, i32) {
    %c0_i32 = arith.constant 0 : i32
    return %arg0, %arg2 : i32, i32
  }
  func.func @transform_1(%arg0: i32, %arg1: i32, %arg2: i32) -> (i32, i32) {
    %c0_i32 = arith.constant 0 : i32
    return %arg2, %arg1 : i32, i32
  }
  func.func @transform_2(%arg0: i32, %arg1: i32, %arg2: i32) -> (i32, i32) {
    %c0_i32 = arith.constant 0 : i32
    %c0_i32_0 = arith.constant 0 : i32
    return %c0_i32, %arg1 : i32, i32
  }
  func.func @transform_3(%arg0: i32, %arg1: i32, %arg2: i32) -> (i32, i32) {
    %c0_i32 = arith.constant 0 : i32
    return %arg0, %arg1 : i32, i32
  }
}

module attributes {stable_mosaic.version = 11 : i64} {
  func.func @_mm_bias_act_kernel(%arg0: i32, %arg1: i32, %arg2: i32, %arg3: memref<128x128xbf16, #tpu.memory_space<vmem>>, %arg4: memref<128x16xbf16, #tpu.memory_space<vmem>>, %arg5: memref<1x16xf32, #tpu.memory_space<vmem>>, %arg6: memref<128x16xbf16, #tpu.memory_space<vmem>>, %arg7: memref<128x16xf32, #tpu.memory_space<vmem>>) attributes {dimension_semantics = [#tpu.dimension_semantics<parallel>, #tpu.dimension_semantics<parallel>, #tpu.dimension_semantics<arbitrary>], iteration_bounds = array<i64: 1, 1, 1>, scalar_prefetch = 0 : i64, scratch_operands = 1 : i64, tpu.core_type = #tpu.core_type<tc>, window_params = [{transform_indices = @transform_0, window_bounds = array<i64: 128, 128>}, {transform_indices = @transform_1, window_bounds = array<i64: 128, 16>}, {transform_indices = @transform_2, window_bounds = array<i64: 1, 16>}, {transform_indices = @transform_3, window_bounds = array<i64: 128, 16>}]} {
    %c0_i32 = arith.constant 0 : i32
    %0 = arith.cmpi eq, %arg2, %c0_i32 : i32
    %1 = arith.extui %0 : i1 to i32
    %c0_i32_0 = arith.constant 0 : i32
    %2 = arith.cmpi ne, %1, %c0_i32_0 : i32
    scf.if %2 {
      %cst_10 = arith.constant 0.000000e+00 : f32
      %12 = vector.broadcast %cst_10 : f32 to vector<128x16xf32>
      %c0_11 = arith.constant 0 : index
      %c0_12 = arith.constant 0 : index
      %13 = vector.load %arg7[%c0_11, %c0_12] : memref<128x16xf32, #tpu.memory_space<vmem>>, vector<128x16xf32>
      tpu.vector_store %arg7[%c0_11, %c0_12], %12 {strides = array<i32>} : memref<128x16xf32, #tpu.memory_space<vmem>>, vector<128x16xf32>,
    } else {
    }
    %c0 = arith.constant 0 : index
    %c0_1 = arith.constant 0 : index
    %3 = vector.load %arg7[%c0, %c0_1] : memref<128x16xf32, #tpu.memory_space<vmem>>, vector<128x16xf32>
    %c0_2 = arith.constant 0 : index
    %c0_3 = arith.constant 0 : index
    %4 = vector.load %arg3[%c0_2, %c0_3] : memref<128x128xbf16, #tpu.memory_space<vmem>>, vector<128x128xbf16>
    %c0_4 = arith.constant 0 : index
    %c0_5 = arith.constant 0 : index
    %5 = vector.load %arg4[%c0_4, %c0_5] : memref<128x16xbf16, #tpu.memory_space<vmem>>, vector<128x16xbf16>
    %cst = arith.constant dense<0.000000e+00> : vector<128x16xf32>
    %6 = tpu.matmul %4, %5, %cst {dimension_numbers = #tpu.dot_dimension_numbers<[1], [0], [0], [1], [0, 0, 1, 1], [], []>} : vector<128x128xbf16>, vector<128x16xbf16>, vector<128x16xf32> -> vector<128x16xf32>
    %7 = arith.addf %3, %6 : vector<128x16xf32>
    %c0_6 = arith.constant 0 : index
    %c0_7 = arith.constant 0 : index
    %8 = vector.load %arg7[%c0_6, %c0_7] : memref<128x16xf32, #tpu.memory_space<vmem>>, vector<128x16xf32>
    tpu.vector_store %arg7[%c0_6, %c0_7], %7 {strides = array<i32>} : memref<128x16xf32, #tpu.memory_space<vmem>>, vector<128x16xf32>,
    %c0_i32_8 = arith.constant 0 : i32
    %9 = arith.cmpi eq, %arg2, %c0_i32_8 : i32
    %10 = arith.extui %9 : i1 to i32
    %c0_i32_9 = arith.constant 0 : i32
    %11 = arith.cmpi ne, %10, %c0_i32_9 : i32
    scf.if %11 {
      %c0_10 = arith.constant 0 : index
      %c0_11 = arith.constant 0 : index
      %12 = vector.load %arg7[%c0_10, %c0_11] : memref<128x16xf32, #tpu.memory_space<vmem>>, vector<128x16xf32>
      %c0_12 = arith.constant 0 : index
      %c0_13 = arith.constant 0 : index
      %13 = vector.load %arg5[%c0_12, %c0_13] : memref<1x16xf32, #tpu.memory_space<vmem>>, vector<1x16xf32>
      %14 = vector.broadcast %13 : vector<1x16xf32> to vector<128x16xf32>
      %15 = arith.addf %12, %14 : vector<128x16xf32>
      %16 = arith.truncf %15 : vector<128x16xf32> to vector<128x16xbf16>
      %c0_14 = arith.constant 0 : index
      %c0_15 = arith.constant 0 : index
      %17 = vector.load %arg6[%c0_14, %c0_15] : memref<128x16xbf16, #tpu.memory_space<vmem>>, vector<128x16xbf16>
      tpu.vector_store %arg6[%c0_14, %c0_15], %16 {strides = array<i32>} : memref<128x16xbf16, #tpu.memory_space<vmem>>, vector<128x16xbf16>,
    } else {
    }
    return
  }
  func.func @transform_0(%arg0: i32, %arg1: i32, %arg2: i32) -> (i32, i32) {
    %c0_i32 = arith.constant 0 : i32
    return %arg0, %arg2 : i32, i32
  }
  func.func @transform_1(%arg0: i32, %arg1: i32, %arg2: i32) -> (i32, i32) {
    %c0_i32 = arith.constant 0 : i32
    return %arg2, %arg1 : i32, i32
  }
  func.func @transform_2(%arg0: i32, %arg1: i32, %arg2: i32) -> (i32, i32) {
    %c0_i32 = arith.constant 0 : i32
    %c0_i32_0 = arith.constant 0 : i32
    return %c0_i32, %arg1 : i32, i32
  }
  func.func @transform_3(%arg0: i32, %arg1: i32, %arg2: i32) -> (i32, i32) {
    %c0_i32 = arith.constant 0 : i32
    return %arg0, %arg1 : i32, i32
  }
}

module attributes {stable_mosaic.version = 11 : i64} {
  func.func @_bn_stats_kernel(%arg0: i32, %arg1: memref<128x16xbf16, #tpu.memory_space<vmem>>, %arg2: memref<1x16xf32, #tpu.memory_space<vmem>>, %arg3: memref<1x16xf32, #tpu.memory_space<vmem>>) attributes {dimension_semantics = [#tpu.dimension_semantics<arbitrary>], iteration_bounds = array<i64: 1>, scalar_prefetch = 0 : i64, scratch_operands = 0 : i64, tpu.core_type = #tpu.core_type<tc>, window_params = [{transform_indices = @transform_0, window_bounds = array<i64: 128, 16>}, {pipeline_mode = #tpu.pipeline_mode<synchronous>, transform_indices = @transform_1, window_bounds = array<i64: 1, 16>}, {pipeline_mode = #tpu.pipeline_mode<synchronous>, transform_indices = @transform_2, window_bounds = array<i64: 1, 16>}]} {
    %c0_i32 = arith.constant 0 : i32
    %0 = arith.cmpi eq, %arg0, %c0_i32 : i32
    %1 = arith.extui %0 : i1 to i32
    %c0_i32_0 = arith.constant 0 : i32
    %2 = arith.cmpi ne, %1, %c0_i32_0 : i32
    scf.if %2 {
      %cst_13 = arith.constant 0.000000e+00 : f32
      %24 = vector.broadcast %cst_13 : f32 to vector<1x16xf32>
      %c0_14 = arith.constant 0 : index
      %c0_15 = arith.constant 0 : index
      %25 = vector.load %arg2[%c0_14, %c0_15] : memref<1x16xf32, #tpu.memory_space<vmem>>, vector<1x16xf32>
      tpu.vector_store %arg2[%c0_14, %c0_15], %24 {strides = array<i32>} : memref<1x16xf32, #tpu.memory_space<vmem>>, vector<1x16xf32>,
      %cst_16 = arith.constant 0.000000e+00 : f32
      %26 = vector.broadcast %cst_16 : f32 to vector<1x16xf32>
      %c0_17 = arith.constant 0 : index
      %c0_18 = arith.constant 0 : index
      %27 = vector.load %arg3[%c0_17, %c0_18] : memref<1x16xf32, #tpu.memory_space<vmem>>, vector<1x16xf32>
      tpu.vector_store %arg3[%c0_17, %c0_18], %26 {strides = array<i32>} : memref<1x16xf32, #tpu.memory_space<vmem>>, vector<1x16xf32>,
    } else {
    }
    %c0 = arith.constant 0 : index
    %c0_1 = arith.constant 0 : index
    %3 = vector.load %arg1[%c0, %c0_1] : memref<128x16xbf16, #tpu.memory_space<vmem>>, vector<128x16xbf16>
    %4 = arith.extf %3 : vector<128x16xbf16> to vector<128x16xf32>
    %c128_i32 = arith.constant 128 : i32
    %5 = arith.muli %arg0, %c128_i32 : i32
    %6 = tpu.iota {dimensions = array<i32: 0>} : vector<128x16xi32>
    %7 = vector.broadcast %5 : i32 to vector<128x16xi32>
    %8 = arith.addi %7, %6 : vector<128x16xi32>
    %c128_i32_2 = arith.constant 128 : i32
    %9 = vector.broadcast %c128_i32_2 : i32 to vector<128x16xi32>
    %10 = arith.cmpi slt, %8, %9 : vector<128x16xi32>
    %cst = arith.constant 0.000000e+00 : f32
    %11 = vector.broadcast %cst : f32 to vector<128x16xf32>
    %12 = arith.select %10, %4, %11 : vector<128x16xi1>, vector<128x16xf32>
    %c0_3 = arith.constant 0 : index
    %c0_4 = arith.constant 0 : index
    %13 = vector.load %arg2[%c0_3, %c0_4] : memref<1x16xf32, #tpu.memory_space<vmem>>, vector<1x16xf32>
    %cst_5 = arith.constant dense<0.000000e+00> : vector<16xf32>
    %14 = vector.multi_reduction <add>, %12, %cst_5 [0] : vector<128x16xf32> to vector<16xf32>
    %15 = vector.shape_cast %14 : vector<16xf32> to vector<1x16xf32>
    %16 = arith.addf %13, %15 : vector<1x16xf32>
    %c0_6 = arith.constant 0 : index
    %c0_7 = arith.constant 0 : index
    %17 = vector.load %arg2[%c0_6, %c0_7] : memref<1x16xf32, #tpu.memory_space<vmem>>, vector<1x16xf32>
    tpu.vector_store %arg2[%c0_6, %c0_7], %16 {strides = array<i32>} : memref<1x16xf32, #tpu.memory_space<vmem>>, vector<1x16xf32>,
    %c0_8 = arith.constant 0 : index
    %c0_9 = arith.constant 0 : index
    %18 = vector.load %arg3[%c0_8, %c0_9] : memref<1x16xf32, #tpu.memory_space<vmem>>, vector<1x16xf32>
    %19 = arith.mulf %12, %12 : vector<128x16xf32>
    %cst_10 = arith.constant dense<0.000000e+00> : vector<16xf32>
    %20 = vector.multi_reduction <add>, %19, %cst_10 [0] : vector<128x16xf32> to vector<16xf32>
    %21 = vector.shape_cast %20 : vector<16xf32> to vector<1x16xf32>
    %22 = arith.addf %18, %21 : vector<1x16xf32>
    %c0_11 = arith.constant 0 : index
    %c0_12 = arith.constant 0 : index
    %23 = vector.load %arg3[%c0_11, %c0_12] : memref<1x16xf32, #tpu.memory_space<vmem>>, vector<1x16xf32>
    tpu.vector_store %arg3[%c0_11, %c0_12], %22 {strides = array<i32>} : memref<1x16xf32, #tpu.memory_space<vmem>>, vector<1x16xf32>,
    return
  }
  func.func @transform_0(%arg0: i32) -> (i32, i32) {
    %c0_i32 = arith.constant 0 : i32
    %c0_i32_0 = arith.constant 0 : i32
    return %arg0, %c0_i32 : i32, i32
  }
  func.func @transform_1(%arg0: i32) -> (i32, i32) {
    %c0_i32 = arith.constant 0 : i32
    %c0_i32_0 = arith.constant 0 : i32
    %c0_i32_1 = arith.constant 0 : i32
    return %c0_i32, %c0_i32_0 : i32, i32
  }
  func.func @transform_2(%arg0: i32) -> (i32, i32) {
    %c0_i32 = arith.constant 0 : i32
    %c0_i32_0 = arith.constant 0 : i32
    %c0_i32_1 = arith.constant 0 : i32
    return %c0_i32, %c0_i32_0 : i32, i32
  }
}

module attributes {stable_mosaic.version = 11 : i64} {
  func.func @_bn_apply_kernel(%arg0: i32, %arg1: memref<128x16xbf16, #tpu.memory_space<vmem>>, %arg2: memref<1x16xf32, #tpu.memory_space<vmem>>, %arg3: memref<1x16xf32, #tpu.memory_space<vmem>>, %arg4: memref<128x16xbf16, #tpu.memory_space<vmem>>) attributes {dimension_semantics = [#tpu.dimension_semantics<parallel>], iteration_bounds = array<i64: 1>, scalar_prefetch = 0 : i64, scratch_operands = 0 : i64, tpu.core_type = #tpu.core_type<tc>, window_params = [{transform_indices = @transform_0, window_bounds = array<i64: 128, 16>}, {pipeline_mode = #tpu.pipeline_mode<synchronous>, transform_indices = @transform_1, window_bounds = array<i64: 1, 16>}, {pipeline_mode = #tpu.pipeline_mode<synchronous>, transform_indices = @transform_2, window_bounds = array<i64: 1, 16>}, {transform_indices = @transform_3, window_bounds = array<i64: 128, 16>}]} {
    %c0 = arith.constant 0 : index
    %c0_0 = arith.constant 0 : index
    %0 = vector.load %arg1[%c0, %c0_0] : memref<128x16xbf16, #tpu.memory_space<vmem>>, vector<128x16xbf16>
    %1 = arith.extf %0 : vector<128x16xbf16> to vector<128x16xf32>
    %c0_1 = arith.constant 0 : index
    %c0_2 = arith.constant 0 : index
    %2 = vector.load %arg2[%c0_1, %c0_2] : memref<1x16xf32, #tpu.memory_space<vmem>>, vector<1x16xf32>
    %3 = vector.broadcast %2 : vector<1x16xf32> to vector<128x16xf32>
    %4 = arith.mulf %1, %3 : vector<128x16xf32>
    %c0_3 = arith.constant 0 : index
    %c0_4 = arith.constant 0 : index
    %5 = vector.load %arg3[%c0_3, %c0_4] : memref<1x16xf32, #tpu.memory_space<vmem>>, vector<1x16xf32>
    %6 = vector.broadcast %5 : vector<1x16xf32> to vector<128x16xf32>
    %7 = arith.addf %4, %6 : vector<128x16xf32>
    %8 = arith.truncf %7 : vector<128x16xf32> to vector<128x16xbf16>
    %c0_5 = arith.constant 0 : index
    %c0_6 = arith.constant 0 : index
    %9 = vector.load %arg4[%c0_5, %c0_6] : memref<128x16xbf16, #tpu.memory_space<vmem>>, vector<128x16xbf16>
    tpu.vector_store %arg4[%c0_5, %c0_6], %8 {strides = array<i32>} : memref<128x16xbf16, #tpu.memory_space<vmem>>, vector<128x16xbf16>,
    return
  }
  func.func @transform_0(%arg0: i32) -> (i32, i32) {
    %c0_i32 = arith.constant 0 : i32
    %c0_i32_0 = arith.constant 0 : i32
    return %arg0, %c0_i32 : i32, i32
  }
  func.func @transform_1(%arg0: i32) -> (i32, i32) {
    %c0_i32 = arith.constant 0 : i32
    %c0_i32_0 = arith.constant 0 : i32
    %c0_i32_1 = arith.constant 0 : i32
    return %c0_i32, %c0_i32_0 : i32, i32
  }
  func.func @transform_2(%arg0: i32) -> (i32, i32) {
    %c0_i32 = arith.constant 0 : i32
    %c0_i32_0 = arith.constant 0 : i32
    %c0_i32_1 = arith.constant 0 : i32
    return %c0_i32, %c0_i32_0 : i32, i32
  }
  func.func @transform_3(%arg0: i32) -> (i32, i32) {
    %c0_i32 = arith.constant 0 : i32
    %c0_i32_0 = arith.constant 0 : i32
    return %arg0, %c0_i32 : i32, i32
  }
}

module attributes {stable_mosaic.version = 11 : i64} {
  func.func @_mm_bias_act_kernel(%arg0: i32, %arg1: i32, %arg2: i32, %arg3: memref<32x256xbf16, #tpu.memory_space<vmem>>, %arg4: memref<256x32xbf16, #tpu.memory_space<vmem>>, %arg5: memref<1x32xf32, #tpu.memory_space<vmem>>, %arg6: memref<32x32xbf16, #tpu.memory_space<vmem>>, %arg7: memref<32x32xf32, #tpu.memory_space<vmem>>) attributes {dimension_semantics = [#tpu.dimension_semantics<parallel>, #tpu.dimension_semantics<parallel>, #tpu.dimension_semantics<arbitrary>], iteration_bounds = array<i64: 1, 1, 1>, scalar_prefetch = 0 : i64, scratch_operands = 1 : i64, tpu.core_type = #tpu.core_type<tc>, window_params = [{transform_indices = @transform_0, window_bounds = array<i64: 32, 256>}, {transform_indices = @transform_1, window_bounds = array<i64: 256, 32>}, {transform_indices = @transform_2, window_bounds = array<i64: 1, 32>}, {transform_indices = @transform_3, window_bounds = array<i64: 32, 32>}]} {
    %c0_i32 = arith.constant 0 : i32
    %0 = arith.cmpi eq, %arg2, %c0_i32 : i32
    %1 = arith.extui %0 : i1 to i32
    %c0_i32_0 = arith.constant 0 : i32
    %2 = arith.cmpi ne, %1, %c0_i32_0 : i32
    scf.if %2 {
      %cst_10 = arith.constant 0.000000e+00 : f32
      %12 = vector.broadcast %cst_10 : f32 to vector<32x32xf32>
      %c0_11 = arith.constant 0 : index
      %c0_12 = arith.constant 0 : index
      %13 = vector.load %arg7[%c0_11, %c0_12] : memref<32x32xf32, #tpu.memory_space<vmem>>, vector<32x32xf32>
      tpu.vector_store %arg7[%c0_11, %c0_12], %12 {strides = array<i32>} : memref<32x32xf32, #tpu.memory_space<vmem>>, vector<32x32xf32>,
    } else {
    }
    %c0 = arith.constant 0 : index
    %c0_1 = arith.constant 0 : index
    %3 = vector.load %arg7[%c0, %c0_1] : memref<32x32xf32, #tpu.memory_space<vmem>>, vector<32x32xf32>
    %c0_2 = arith.constant 0 : index
    %c0_3 = arith.constant 0 : index
    %4 = vector.load %arg3[%c0_2, %c0_3] : memref<32x256xbf16, #tpu.memory_space<vmem>>, vector<32x256xbf16>
    %c0_4 = arith.constant 0 : index
    %c0_5 = arith.constant 0 : index
    %5 = vector.load %arg4[%c0_4, %c0_5] : memref<256x32xbf16, #tpu.memory_space<vmem>>, vector<256x32xbf16>
    %cst = arith.constant dense<0.000000e+00> : vector<32x32xf32>
    %6 = tpu.matmul %4, %5, %cst {dimension_numbers = #tpu.dot_dimension_numbers<[1], [0], [0], [1], [0, 0, 1, 1], [], []>} : vector<32x256xbf16>, vector<256x32xbf16>, vector<32x32xf32> -> vector<32x32xf32>
    %7 = arith.addf %3, %6 : vector<32x32xf32>
    %c0_6 = arith.constant 0 : index
    %c0_7 = arith.constant 0 : index
    %8 = vector.load %arg7[%c0_6, %c0_7] : memref<32x32xf32, #tpu.memory_space<vmem>>, vector<32x32xf32>
    tpu.vector_store %arg7[%c0_6, %c0_7], %7 {strides = array<i32>} : memref<32x32xf32, #tpu.memory_space<vmem>>, vector<32x32xf32>,
    %c0_i32_8 = arith.constant 0 : i32
    %9 = arith.cmpi eq, %arg2, %c0_i32_8 : i32
    %10 = arith.extui %9 : i1 to i32
    %c0_i32_9 = arith.constant 0 : i32
    %11 = arith.cmpi ne, %10, %c0_i32_9 : i32
    scf.if %11 {
      %c0_10 = arith.constant 0 : index
      %c0_11 = arith.constant 0 : index
      %12 = vector.load %arg7[%c0_10, %c0_11] : memref<32x32xf32, #tpu.memory_space<vmem>>, vector<32x32xf32>
      %c0_12 = arith.constant 0 : index
      %c0_13 = arith.constant 0 : index
      %13 = vector.load %arg5[%c0_12, %c0_13] : memref<1x32xf32, #tpu.memory_space<vmem>>, vector<1x32xf32>
      %14 = vector.broadcast %13 : vector<1x32xf32> to vector<32x32xf32>
      %15 = arith.addf %12, %14 : vector<32x32xf32>
      %16 = arith.truncf %15 : vector<32x32xf32> to vector<32x32xbf16>
      %c0_14 = arith.constant 0 : index
      %c0_15 = arith.constant 0 : index
      %17 = vector.load %arg6[%c0_14, %c0_15] : memref<32x32xbf16, #tpu.memory_space<vmem>>, vector<32x32xbf16>
      tpu.vector_store %arg6[%c0_14, %c0_15], %16 {strides = array<i32>} : memref<32x32xbf16, #tpu.memory_space<vmem>>, vector<32x32xbf16>,
    } else {
    }
    return
  }
  func.func @transform_0(%arg0: i32, %arg1: i32, %arg2: i32) -> (i32, i32) {
    %c0_i32 = arith.constant 0 : i32
    return %arg0, %arg2 : i32, i32
  }
  func.func @transform_1(%arg0: i32, %arg1: i32, %arg2: i32) -> (i32, i32) {
    %c0_i32 = arith.constant 0 : i32
    return %arg2, %arg1 : i32, i32
  }
  func.func @transform_2(%arg0: i32, %arg1: i32, %arg2: i32) -> (i32, i32) {
    %c0_i32 = arith.constant 0 : i32
    %c0_i32_0 = arith.constant 0 : i32
    return %c0_i32, %arg1 : i32, i32
  }
  func.func @transform_3(%arg0: i32, %arg1: i32, %arg2: i32) -> (i32, i32) {
    %c0_i32 = arith.constant 0 : i32
    return %arg0, %arg1 : i32, i32
  }
}

module attributes {stable_mosaic.version = 11 : i64} {
  func.func @_bn_stats_kernel(%arg0: i32, %arg1: memref<32x32xbf16, #tpu.memory_space<vmem>>, %arg2: memref<1x32xf32, #tpu.memory_space<vmem>>, %arg3: memref<1x32xf32, #tpu.memory_space<vmem>>) attributes {dimension_semantics = [#tpu.dimension_semantics<arbitrary>], iteration_bounds = array<i64: 1>, scalar_prefetch = 0 : i64, scratch_operands = 0 : i64, tpu.core_type = #tpu.core_type<tc>, window_params = [{transform_indices = @transform_0, window_bounds = array<i64: 32, 32>}, {pipeline_mode = #tpu.pipeline_mode<synchronous>, transform_indices = @transform_1, window_bounds = array<i64: 1, 32>}, {pipeline_mode = #tpu.pipeline_mode<synchronous>, transform_indices = @transform_2, window_bounds = array<i64: 1, 32>}]} {
    %c0_i32 = arith.constant 0 : i32
    %0 = arith.cmpi eq, %arg0, %c0_i32 : i32
    %1 = arith.extui %0 : i1 to i32
    %c0_i32_0 = arith.constant 0 : i32
    %2 = arith.cmpi ne, %1, %c0_i32_0 : i32
    scf.if %2 {
      %cst_13 = arith.constant 0.000000e+00 : f32
      %24 = vector.broadcast %cst_13 : f32 to vector<1x32xf32>
      %c0_14 = arith.constant 0 : index
      %c0_15 = arith.constant 0 : index
      %25 = vector.load %arg2[%c0_14, %c0_15] : memref<1x32xf32, #tpu.memory_space<vmem>>, vector<1x32xf32>
      tpu.vector_store %arg2[%c0_14, %c0_15], %24 {strides = array<i32>} : memref<1x32xf32, #tpu.memory_space<vmem>>, vector<1x32xf32>,
      %cst_16 = arith.constant 0.000000e+00 : f32
      %26 = vector.broadcast %cst_16 : f32 to vector<1x32xf32>
      %c0_17 = arith.constant 0 : index
      %c0_18 = arith.constant 0 : index
      %27 = vector.load %arg3[%c0_17, %c0_18] : memref<1x32xf32, #tpu.memory_space<vmem>>, vector<1x32xf32>
      tpu.vector_store %arg3[%c0_17, %c0_18], %26 {strides = array<i32>} : memref<1x32xf32, #tpu.memory_space<vmem>>, vector<1x32xf32>,
    } else {
    }
    %c0 = arith.constant 0 : index
    %c0_1 = arith.constant 0 : index
    %3 = vector.load %arg1[%c0, %c0_1] : memref<32x32xbf16, #tpu.memory_space<vmem>>, vector<32x32xbf16>
    %4 = arith.extf %3 : vector<32x32xbf16> to vector<32x32xf32>
    %c32_i32 = arith.constant 32 : i32
    %5 = arith.muli %arg0, %c32_i32 : i32
    %6 = tpu.iota {dimensions = array<i32: 0>} : vector<32x32xi32>
    %7 = vector.broadcast %5 : i32 to vector<32x32xi32>
    %8 = arith.addi %7, %6 : vector<32x32xi32>
    %c32_i32_2 = arith.constant 32 : i32
    %9 = vector.broadcast %c32_i32_2 : i32 to vector<32x32xi32>
    %10 = arith.cmpi slt, %8, %9 : vector<32x32xi32>
    %cst = arith.constant 0.000000e+00 : f32
    %11 = vector.broadcast %cst : f32 to vector<32x32xf32>
    %12 = arith.select %10, %4, %11 : vector<32x32xi1>, vector<32x32xf32>
    %c0_3 = arith.constant 0 : index
    %c0_4 = arith.constant 0 : index
    %13 = vector.load %arg2[%c0_3, %c0_4] : memref<1x32xf32, #tpu.memory_space<vmem>>, vector<1x32xf32>
    %cst_5 = arith.constant dense<0.000000e+00> : vector<32xf32>
    %14 = vector.multi_reduction <add>, %12, %cst_5 [0] : vector<32x32xf32> to vector<32xf32>
    %15 = vector.shape_cast %14 : vector<32xf32> to vector<1x32xf32>
    %16 = arith.addf %13, %15 : vector<1x32xf32>
    %c0_6 = arith.constant 0 : index
    %c0_7 = arith.constant 0 : index
    %17 = vector.load %arg2[%c0_6, %c0_7] : memref<1x32xf32, #tpu.memory_space<vmem>>, vector<1x32xf32>
    tpu.vector_store %arg2[%c0_6, %c0_7], %16 {strides = array<i32>} : memref<1x32xf32, #tpu.memory_space<vmem>>, vector<1x32xf32>,
    %c0_8 = arith.constant 0 : index
    %c0_9 = arith.constant 0 : index
    %18 = vector.load %arg3[%c0_8, %c0_9] : memref<1x32xf32, #tpu.memory_space<vmem>>, vector<1x32xf32>
    %19 = arith.mulf %12, %12 : vector<32x32xf32>
    %cst_10 = arith.constant dense<0.000000e+00> : vector<32xf32>
    %20 = vector.multi_reduction <add>, %19, %cst_10 [0] : vector<32x32xf32> to vector<32xf32>
    %21 = vector.shape_cast %20 : vector<32xf32> to vector<1x32xf32>
    %22 = arith.addf %18, %21 : vector<1x32xf32>
    %c0_11 = arith.constant 0 : index
    %c0_12 = arith.constant 0 : index
    %23 = vector.load %arg3[%c0_11, %c0_12] : memref<1x32xf32, #tpu.memory_space<vmem>>, vector<1x32xf32>
    tpu.vector_store %arg3[%c0_11, %c0_12], %22 {strides = array<i32>} : memref<1x32xf32, #tpu.memory_space<vmem>>, vector<1x32xf32>,
    return
  }
  func.func @transform_0(%arg0: i32) -> (i32, i32) {
    %c0_i32 = arith.constant 0 : i32
    %c0_i32_0 = arith.constant 0 : i32
    return %arg0, %c0_i32 : i32, i32
  }
  func.func @transform_1(%arg0: i32) -> (i32, i32) {
    %c0_i32 = arith.constant 0 : i32
    %c0_i32_0 = arith.constant 0 : i32
    %c0_i32_1 = arith.constant 0 : i32
    return %c0_i32, %c0_i32_0 : i32, i32
  }
  func.func @transform_2(%arg0: i32) -> (i32, i32) {
    %c0_i32 = arith.constant 0 : i32
    %c0_i32_0 = arith.constant 0 : i32
    %c0_i32_1 = arith.constant 0 : i32
    return %c0_i32, %c0_i32_0 : i32, i32
  }
}

module attributes {stable_mosaic.version = 11 : i64} {
  func.func @_bn_apply_kernel(%arg0: i32, %arg1: memref<32x32xbf16, #tpu.memory_space<vmem>>, %arg2: memref<1x32xf32, #tpu.memory_space<vmem>>, %arg3: memref<1x32xf32, #tpu.memory_space<vmem>>, %arg4: memref<32x32xbf16, #tpu.memory_space<vmem>>) attributes {dimension_semantics = [#tpu.dimension_semantics<parallel>], iteration_bounds = array<i64: 1>, scalar_prefetch = 0 : i64, scratch_operands = 0 : i64, tpu.core_type = #tpu.core_type<tc>, window_params = [{transform_indices = @transform_0, window_bounds = array<i64: 32, 32>}, {pipeline_mode = #tpu.pipeline_mode<synchronous>, transform_indices = @transform_1, window_bounds = array<i64: 1, 32>}, {pipeline_mode = #tpu.pipeline_mode<synchronous>, transform_indices = @transform_2, window_bounds = array<i64: 1, 32>}, {transform_indices = @transform_3, window_bounds = array<i64: 32, 32>}]} {
    %c0 = arith.constant 0 : index
    %c0_0 = arith.constant 0 : index
    %0 = vector.load %arg1[%c0, %c0_0] : memref<32x32xbf16, #tpu.memory_space<vmem>>, vector<32x32xbf16>
    %1 = arith.extf %0 : vector<32x32xbf16> to vector<32x32xf32>
    %c0_1 = arith.constant 0 : index
    %c0_2 = arith.constant 0 : index
    %2 = vector.load %arg2[%c0_1, %c0_2] : memref<1x32xf32, #tpu.memory_space<vmem>>, vector<1x32xf32>
    %3 = vector.broadcast %2 : vector<1x32xf32> to vector<32x32xf32>
    %4 = arith.mulf %1, %3 : vector<32x32xf32>
    %c0_3 = arith.constant 0 : index
    %c0_4 = arith.constant 0 : index
    %5 = vector.load %arg3[%c0_3, %c0_4] : memref<1x32xf32, #tpu.memory_space<vmem>>, vector<1x32xf32>
    %6 = vector.broadcast %5 : vector<1x32xf32> to vector<32x32xf32>
    %7 = arith.addf %4, %6 : vector<32x32xf32>
    %8 = arith.truncf %7 : vector<32x32xf32> to vector<32x32xbf16>
    %c0_5 = arith.constant 0 : index
    %c0_6 = arith.constant 0 : index
    %9 = vector.load %arg4[%c0_5, %c0_6] : memref<32x32xbf16, #tpu.memory_space<vmem>>, vector<32x32xbf16>
    tpu.vector_store %arg4[%c0_5, %c0_6], %8 {strides = array<i32>} : memref<32x32xbf16, #tpu.memory_space<vmem>>, vector<32x32xbf16>,
    return
  }
  func.func @transform_0(%arg0: i32) -> (i32, i32) {
    %c0_i32 = arith.constant 0 : i32
    %c0_i32_0 = arith.constant 0 : i32
    return %arg0, %c0_i32 : i32, i32
  }
  func.func @transform_1(%arg0: i32) -> (i32, i32) {
    %c0_i32 = arith.constant 0 : i32
    %c0_i32_0 = arith.constant 0 : i32
    %c0_i32_1 = arith.constant 0 : i32
    return %c0_i32, %c0_i32_0 : i32, i32
  }
  func.func @transform_2(%arg0: i32) -> (i32, i32) {
    %c0_i32 = arith.constant 0 : i32
    %c0_i32_0 = arith.constant 0 : i32
    %c0_i32_1 = arith.constant 0 : i32
    return %c0_i32, %c0_i32_0 : i32, i32
  }
  func.func @transform_3(%arg0: i32) -> (i32, i32) {
    %c0_i32 = arith.constant 0 : i32
    %c0_i32_0 = arith.constant 0 : i32
    return %arg0, %c0_i32 : i32, i32
  }
}

module attributes {stable_mosaic.version = 11 : i64} {
  func.func @_bn_stats_kernel(%arg0: i32, %arg1: memref<8x64xbf16, #tpu.memory_space<vmem>>, %arg2: memref<1x64xf32, #tpu.memory_space<vmem>>, %arg3: memref<1x64xf32, #tpu.memory_space<vmem>>) attributes {dimension_semantics = [#tpu.dimension_semantics<arbitrary>], iteration_bounds = array<i64: 1>, scalar_prefetch = 0 : i64, scratch_operands = 0 : i64, tpu.core_type = #tpu.core_type<tc>, window_params = [{transform_indices = @transform_0, window_bounds = array<i64: 8, 64>}, {pipeline_mode = #tpu.pipeline_mode<synchronous>, transform_indices = @transform_1, window_bounds = array<i64: 1, 64>}, {pipeline_mode = #tpu.pipeline_mode<synchronous>, transform_indices = @transform_2, window_bounds = array<i64: 1, 64>}]} {
    %c0_i32 = arith.constant 0 : i32
    %0 = arith.cmpi eq, %arg0, %c0_i32 : i32
    %1 = arith.extui %0 : i1 to i32
    %c0_i32_0 = arith.constant 0 : i32
    %2 = arith.cmpi ne, %1, %c0_i32_0 : i32
    scf.if %2 {
      %cst_13 = arith.constant 0.000000e+00 : f32
      %24 = vector.broadcast %cst_13 : f32 to vector<1x64xf32>
      %c0_14 = arith.constant 0 : index
      %c0_15 = arith.constant 0 : index
      %25 = vector.load %arg2[%c0_14, %c0_15] : memref<1x64xf32, #tpu.memory_space<vmem>>, vector<1x64xf32>
      tpu.vector_store %arg2[%c0_14, %c0_15], %24 {strides = array<i32>} : memref<1x64xf32, #tpu.memory_space<vmem>>, vector<1x64xf32>,
      %cst_16 = arith.constant 0.000000e+00 : f32
      %26 = vector.broadcast %cst_16 : f32 to vector<1x64xf32>
      %c0_17 = arith.constant 0 : index
      %c0_18 = arith.constant 0 : index
      %27 = vector.load %arg3[%c0_17, %c0_18] : memref<1x64xf32, #tpu.memory_space<vmem>>, vector<1x64xf32>
      tpu.vector_store %arg3[%c0_17, %c0_18], %26 {strides = array<i32>} : memref<1x64xf32, #tpu.memory_space<vmem>>, vector<1x64xf32>,
    } else {
    }
    %c0 = arith.constant 0 : index
    %c0_1 = arith.constant 0 : index
    %3 = vector.load %arg1[%c0, %c0_1] : memref<8x64xbf16, #tpu.memory_space<vmem>>, vector<8x64xbf16>
    %4 = arith.extf %3 : vector<8x64xbf16> to vector<8x64xf32>
    %c8_i32 = arith.constant 8 : i32
    %5 = arith.muli %arg0, %c8_i32 : i32
    %6 = tpu.iota {dimensions = array<i32: 0>} : vector<8x64xi32>
    %7 = vector.broadcast %5 : i32 to vector<8x64xi32>
    %8 = arith.addi %7, %6 : vector<8x64xi32>
    %c8_i32_2 = arith.constant 8 : i32
    %9 = vector.broadcast %c8_i32_2 : i32 to vector<8x64xi32>
    %10 = arith.cmpi slt, %8, %9 : vector<8x64xi32>
    %cst = arith.constant 0.000000e+00 : f32
    %11 = vector.broadcast %cst : f32 to vector<8x64xf32>
    %12 = arith.select %10, %4, %11 : vector<8x64xi1>, vector<8x64xf32>
    %c0_3 = arith.constant 0 : index
    %c0_4 = arith.constant 0 : index
    %13 = vector.load %arg2[%c0_3, %c0_4] : memref<1x64xf32, #tpu.memory_space<vmem>>, vector<1x64xf32>
    %cst_5 = arith.constant dense<0.000000e+00> : vector<64xf32>
    %14 = vector.multi_reduction <add>, %12, %cst_5 [0] : vector<8x64xf32> to vector<64xf32>
    %15 = vector.shape_cast %14 : vector<64xf32> to vector<1x64xf32>
    %16 = arith.addf %13, %15 : vector<1x64xf32>
    %c0_6 = arith.constant 0 : index
    %c0_7 = arith.constant 0 : index
    %17 = vector.load %arg2[%c0_6, %c0_7] : memref<1x64xf32, #tpu.memory_space<vmem>>, vector<1x64xf32>
    tpu.vector_store %arg2[%c0_6, %c0_7], %16 {strides = array<i32>} : memref<1x64xf32, #tpu.memory_space<vmem>>, vector<1x64xf32>,
    %c0_8 = arith.constant 0 : index
    %c0_9 = arith.constant 0 : index
    %18 = vector.load %arg3[%c0_8, %c0_9] : memref<1x64xf32, #tpu.memory_space<vmem>>, vector<1x64xf32>
    %19 = arith.mulf %12, %12 : vector<8x64xf32>
    %cst_10 = arith.constant dense<0.000000e+00> : vector<64xf32>
    %20 = vector.multi_reduction <add>, %19, %cst_10 [0] : vector<8x64xf32> to vector<64xf32>
    %21 = vector.shape_cast %20 : vector<64xf32> to vector<1x64xf32>
    %22 = arith.addf %18, %21 : vector<1x64xf32>
    %c0_11 = arith.constant 0 : index
    %c0_12 = arith.constant 0 : index
    %23 = vector.load %arg3[%c0_11, %c0_12] : memref<1x64xf32, #tpu.memory_space<vmem>>, vector<1x64xf32>
    tpu.vector_store %arg3[%c0_11, %c0_12], %22 {strides = array<i32>} : memref<1x64xf32, #tpu.memory_space<vmem>>, vector<1x64xf32>,
    return
  }
  func.func @transform_0(%arg0: i32) -> (i32, i32) {
    %c0_i32 = arith.constant 0 : i32
    %c0_i32_0 = arith.constant 0 : i32
    return %arg0, %c0_i32 : i32, i32
  }
  func.func @transform_1(%arg0: i32) -> (i32, i32) {
    %c0_i32 = arith.constant 0 : i32
    %c0_i32_0 = arith.constant 0 : i32
    %c0_i32_1 = arith.constant 0 : i32
    return %c0_i32, %c0_i32_0 : i32, i32
  }
  func.func @transform_2(%arg0: i32) -> (i32, i32) {
    %c0_i32 = arith.constant 0 : i32
    %c0_i32_0 = arith.constant 0 : i32
    %c0_i32_1 = arith.constant 0 : i32
    return %c0_i32, %c0_i32_0 : i32, i32
  }
}

module attributes {stable_mosaic.version = 11 : i64} {
  func.func @_mm_bias_act_kernel(%arg0: i32, %arg1: i32, %arg2: i32, %arg3: memref<8x512xbf16, #tpu.memory_space<vmem>>, %arg4: memref<512x64xbf16, #tpu.memory_space<vmem>>, %arg5: memref<1x64xf32, #tpu.memory_space<vmem>>, %arg6: memref<8x64xbf16, #tpu.memory_space<vmem>>, %arg7: memref<8x64xf32, #tpu.memory_space<vmem>>) attributes {dimension_semantics = [#tpu.dimension_semantics<parallel>, #tpu.dimension_semantics<parallel>, #tpu.dimension_semantics<arbitrary>], iteration_bounds = array<i64: 1, 1, 1>, scalar_prefetch = 0 : i64, scratch_operands = 1 : i64, tpu.core_type = #tpu.core_type<tc>, window_params = [{transform_indices = @transform_0, window_bounds = array<i64: 8, 512>}, {transform_indices = @transform_1, window_bounds = array<i64: 512, 64>}, {transform_indices = @transform_2, window_bounds = array<i64: 1, 64>}, {transform_indices = @transform_3, window_bounds = array<i64: 8, 64>}]} {
    %c0_i32 = arith.constant 0 : i32
    %0 = arith.cmpi eq, %arg2, %c0_i32 : i32
    %1 = arith.extui %0 : i1 to i32
    %c0_i32_0 = arith.constant 0 : i32
    %2 = arith.cmpi ne, %1, %c0_i32_0 : i32
    scf.if %2 {
      %cst_10 = arith.constant 0.000000e+00 : f32
      %12 = vector.broadcast %cst_10 : f32 to vector<8x64xf32>
      %c0_11 = arith.constant 0 : index
      %c0_12 = arith.constant 0 : index
      %13 = vector.load %arg7[%c0_11, %c0_12] : memref<8x64xf32, #tpu.memory_space<vmem>>, vector<8x64xf32>
      tpu.vector_store %arg7[%c0_11, %c0_12], %12 {strides = array<i32>} : memref<8x64xf32, #tpu.memory_space<vmem>>, vector<8x64xf32>,
    } else {
    }
    %c0 = arith.constant 0 : index
    %c0_1 = arith.constant 0 : index
    %3 = vector.load %arg7[%c0, %c0_1] : memref<8x64xf32, #tpu.memory_space<vmem>>, vector<8x64xf32>
    %c0_2 = arith.constant 0 : index
    %c0_3 = arith.constant 0 : index
    %4 = vector.load %arg3[%c0_2, %c0_3] : memref<8x512xbf16, #tpu.memory_space<vmem>>, vector<8x512xbf16>
    %c0_4 = arith.constant 0 : index
    %c0_5 = arith.constant 0 : index
    %5 = vector.load %arg4[%c0_4, %c0_5] : memref<512x64xbf16, #tpu.memory_space<vmem>>, vector<512x64xbf16>
    %cst = arith.constant dense<0.000000e+00> : vector<8x64xf32>
    %6 = tpu.matmul %4, %5, %cst {dimension_numbers = #tpu.dot_dimension_numbers<[1], [0], [0], [1], [0, 0, 1, 1], [], []>} : vector<8x512xbf16>, vector<512x64xbf16>, vector<8x64xf32> -> vector<8x64xf32>
    %7 = arith.addf %3, %6 : vector<8x64xf32>
    %c0_6 = arith.constant 0 : index
    %c0_7 = arith.constant 0 : index
    %8 = vector.load %arg7[%c0_6, %c0_7] : memref<8x64xf32, #tpu.memory_space<vmem>>, vector<8x64xf32>
    tpu.vector_store %arg7[%c0_6, %c0_7], %7 {strides = array<i32>} : memref<8x64xf32, #tpu.memory_space<vmem>>, vector<8x64xf32>,
    %c0_i32_8 = arith.constant 0 : i32
    %9 = arith.cmpi eq, %arg2, %c0_i32_8 : i32
    %10 = arith.extui %9 : i1 to i32
    %c0_i32_9 = arith.constant 0 : i32
    %11 = arith.cmpi ne, %10, %c0_i32_9 : i32
    scf.if %11 {
      %c0_10 = arith.constant 0 : index
      %c0_11 = arith.constant 0 : index
      %12 = vector.load %arg7[%c0_10, %c0_11] : memref<8x64xf32, #tpu.memory_space<vmem>>, vector<8x64xf32>
      %c0_12 = arith.constant 0 : index
      %c0_13 = arith.constant 0 : index
      %13 = vector.load %arg5[%c0_12, %c0_13] : memref<1x64xf32, #tpu.memory_space<vmem>>, vector<1x64xf32>
      %14 = vector.broadcast %13 : vector<1x64xf32> to vector<8x64xf32>
      %15 = arith.addf %12, %14 : vector<8x64xf32>
      %16 = arith.truncf %15 : vector<8x64xf32> to vector<8x64xbf16>
      %c0_14 = arith.constant 0 : index
      %c0_15 = arith.constant 0 : index
      %17 = vector.load %arg6[%c0_14, %c0_15] : memref<8x64xbf16, #tpu.memory_space<vmem>>, vector<8x64xbf16>
      tpu.vector_store %arg6[%c0_14, %c0_15], %16 {strides = array<i32>} : memref<8x64xbf16, #tpu.memory_space<vmem>>, vector<8x64xbf16>,
    } else {
    }
    return
  }
  func.func @transform_0(%arg0: i32, %arg1: i32, %arg2: i32) -> (i32, i32) {
    %c0_i32 = arith.constant 0 : i32
    return %arg0, %arg2 : i32, i32
  }
  func.func @transform_1(%arg0: i32, %arg1: i32, %arg2: i32) -> (i32, i32) {
    %c0_i32 = arith.constant 0 : i32
    return %arg2, %arg1 : i32, i32
  }
  func.func @transform_2(%arg0: i32, %arg1: i32, %arg2: i32) -> (i32, i32) {
    %c0_i32 = arith.constant 0 : i32
    %c0_i32_0 = arith.constant 0 : i32
    return %c0_i32, %arg1 : i32, i32
  }
  func.func @transform_3(%arg0: i32, %arg1: i32, %arg2: i32) -> (i32, i32) {
    %c0_i32 = arith.constant 0 : i32
    return %arg0, %arg1 : i32, i32
  }
}

module attributes {stable_mosaic.version = 11 : i64} {
  func.func @_bn_apply_kernel(%arg0: i32, %arg1: memref<8x64xbf16, #tpu.memory_space<vmem>>, %arg2: memref<1x64xf32, #tpu.memory_space<vmem>>, %arg3: memref<1x64xf32, #tpu.memory_space<vmem>>, %arg4: memref<8x64xbf16, #tpu.memory_space<vmem>>) attributes {dimension_semantics = [#tpu.dimension_semantics<parallel>], iteration_bounds = array<i64: 1>, scalar_prefetch = 0 : i64, scratch_operands = 0 : i64, tpu.core_type = #tpu.core_type<tc>, window_params = [{transform_indices = @transform_0, window_bounds = array<i64: 8, 64>}, {pipeline_mode = #tpu.pipeline_mode<synchronous>, transform_indices = @transform_1, window_bounds = array<i64: 1, 64>}, {pipeline_mode = #tpu.pipeline_mode<synchronous>, transform_indices = @transform_2, window_bounds = array<i64: 1, 64>}, {transform_indices = @transform_3, window_bounds = array<i64: 8, 64>}]} {
    %c0 = arith.constant 0 : index
    %c0_0 = arith.constant 0 : index
    %0 = vector.load %arg1[%c0, %c0_0] : memref<8x64xbf16, #tpu.memory_space<vmem>>, vector<8x64xbf16>
    %1 = arith.extf %0 : vector<8x64xbf16> to vector<8x64xf32>
    %c0_1 = arith.constant 0 : index
    %c0_2 = arith.constant 0 : index
    %2 = vector.load %arg2[%c0_1, %c0_2] : memref<1x64xf32, #tpu.memory_space<vmem>>, vector<1x64xf32>
    %3 = vector.broadcast %2 : vector<1x64xf32> to vector<8x64xf32>
    %4 = arith.mulf %1, %3 : vector<8x64xf32>
    %c0_3 = arith.constant 0 : index
    %c0_4 = arith.constant 0 : index
    %5 = vector.load %arg3[%c0_3, %c0_4] : memref<1x64xf32, #tpu.memory_space<vmem>>, vector<1x64xf32>
    %6 = vector.broadcast %5 : vector<1x64xf32> to vector<8x64xf32>
    %7 = arith.addf %4, %6 : vector<8x64xf32>
    %8 = arith.truncf %7 : vector<8x64xf32> to vector<8x64xbf16>
    %c0_5 = arith.constant 0 : index
    %c0_6 = arith.constant 0 : index
    %9 = vector.load %arg4[%c0_5, %c0_6] : memref<8x64xbf16, #tpu.memory_space<vmem>>, vector<8x64xbf16>
    tpu.vector_store %arg4[%c0_5, %c0_6], %8 {strides = array<i32>} : memref<8x64xbf16, #tpu.memory_space<vmem>>, vector<8x64xbf16>,
    return
  }
  func.func @transform_0(%arg0: i32) -> (i32, i32) {
    %c0_i32 = arith.constant 0 : i32
    %c0_i32_0 = arith.constant 0 : i32
    return %arg0, %c0_i32 : i32, i32
  }
  func.func @transform_1(%arg0: i32) -> (i32, i32) {
    %c0_i32 = arith.constant 0 : i32
    %c0_i32_0 = arith.constant 0 : i32
    %c0_i32_1 = arith.constant 0 : i32
    return %c0_i32, %c0_i32_0 : i32, i32
  }
  func.func @transform_2(%arg0: i32) -> (i32, i32) {
    %c0_i32 = arith.constant 0 : i32
    %c0_i32_0 = arith.constant 0 : i32
    %c0_i32_1 = arith.constant 0 : i32
    return %c0_i32, %c0_i32_0 : i32, i32
  }
  func.func @transform_3(%arg0: i32) -> (i32, i32) {
    %c0_i32 = arith.constant 0 : i32
    %c0_i32_0 = arith.constant 0 : i32
    return %arg0, %c0_i32 : i32, i32
  }
}

module attributes {stable_mosaic.version = 11 : i64} {
  func.func @_mm_bias_act_kernel(%arg0: i32, %arg1: i32, %arg2: i32, %arg3: memref<2x512xbf16, #tpu.memory_space<vmem>>, %arg4: memref<512x64xbf16, #tpu.memory_space<vmem>>, %arg5: memref<1x64xf32, #tpu.memory_space<vmem>>, %arg6: memref<2x64xbf16, #tpu.memory_space<vmem>>, %arg7: memref<2x64xf32, #tpu.memory_space<vmem>>) attributes {dimension_semantics = [#tpu.dimension_semantics<parallel>, #tpu.dimension_semantics<parallel>, #tpu.dimension_semantics<arbitrary>], iteration_bounds = array<i64: 1, 1, 2>, scalar_prefetch = 0 : i64, scratch_operands = 1 : i64, tpu.core_type = #tpu.core_type<tc>, window_params = [{transform_indices = @transform_0, window_bounds = array<i64: 2, 512>}, {transform_indices = @transform_1, window_bounds = array<i64: 512, 64>}, {transform_indices = @transform_2, window_bounds = array<i64: 1, 64>}, {transform_indices = @transform_3, window_bounds = array<i64: 2, 64>}]} {
    %c0_i32 = arith.constant 0 : i32
    %0 = arith.cmpi eq, %arg2, %c0_i32 : i32
    %1 = arith.extui %0 : i1 to i32
    %c0_i32_0 = arith.constant 0 : i32
    %2 = arith.cmpi ne, %1, %c0_i32_0 : i32
    scf.if %2 {
      %cst_9 = arith.constant 0.000000e+00 : f32
      %12 = vector.broadcast %cst_9 : f32 to vector<2x64xf32>
      %c0_10 = arith.constant 0 : index
      %c0_11 = arith.constant 0 : index
      %13 = vector.load %arg7[%c0_10, %c0_11] : memref<2x64xf32, #tpu.memory_space<vmem>>, vector<2x64xf32>
      tpu.vector_store %arg7[%c0_10, %c0_11], %12 {strides = array<i32>} : memref<2x64xf32, #tpu.memory_space<vmem>>, vector<2x64xf32>,
    } else {
    }
    %c0 = arith.constant 0 : index
    %c0_1 = arith.constant 0 : index
    %3 = vector.load %arg7[%c0, %c0_1] : memref<2x64xf32, #tpu.memory_space<vmem>>, vector<2x64xf32>
    %c0_2 = arith.constant 0 : index
    %c0_3 = arith.constant 0 : index
    %4 = vector.load %arg3[%c0_2, %c0_3] : memref<2x512xbf16, #tpu.memory_space<vmem>>, vector<2x512xbf16>
    %c0_4 = arith.constant 0 : index
    %c0_5 = arith.constant 0 : index
    %5 = vector.load %arg4[%c0_4, %c0_5] : memref<512x64xbf16, #tpu.memory_space<vmem>>, vector<512x64xbf16>
    %cst = arith.constant dense<0.000000e+00> : vector<2x64xf32>
    %6 = tpu.matmul %4, %5, %cst {dimension_numbers = #tpu.dot_dimension_numbers<[1], [0], [0], [1], [0, 0, 1, 1], [], []>} : vector<2x512xbf16>, vector<512x64xbf16>, vector<2x64xf32> -> vector<2x64xf32>
    %7 = arith.addf %3, %6 : vector<2x64xf32>
    %c0_6 = arith.constant 0 : index
    %c0_7 = arith.constant 0 : index
    %8 = vector.load %arg7[%c0_6, %c0_7] : memref<2x64xf32, #tpu.memory_space<vmem>>, vector<2x64xf32>
    tpu.vector_store %arg7[%c0_6, %c0_7], %7 {strides = array<i32>} : memref<2x64xf32, #tpu.memory_space<vmem>>, vector<2x64xf32>,
    %c1_i32 = arith.constant 1 : i32
    %9 = arith.cmpi eq, %arg2, %c1_i32 : i32
    %10 = arith.extui %9 : i1 to i32
    %c0_i32_8 = arith.constant 0 : i32
    %11 = arith.cmpi ne, %10, %c0_i32_8 : i32
    scf.if %11 {
      %c0_9 = arith.constant 0 : index
      %c0_10 = arith.constant 0 : index
      %12 = vector.load %arg7[%c0_9, %c0_10] : memref<2x64xf32, #tpu.memory_space<vmem>>, vector<2x64xf32>
      %c0_11 = arith.constant 0 : index
      %c0_12 = arith.constant 0 : index
      %13 = vector.load %arg5[%c0_11, %c0_12] : memref<1x64xf32, #tpu.memory_space<vmem>>, vector<1x64xf32>
      %14 = vector.broadcast %13 : vector<1x64xf32> to vector<2x64xf32>
      %15 = arith.addf %12, %14 : vector<2x64xf32>
      %16 = arith.truncf %15 : vector<2x64xf32> to vector<2x64xbf16>
      %c0_13 = arith.constant 0 : index
      %c0_14 = arith.constant 0 : index
      %17 = vector.load %arg6[%c0_13, %c0_14] : memref<2x64xbf16, #tpu.memory_space<vmem>>, vector<2x64xbf16>
      tpu.vector_store %arg6[%c0_13, %c0_14], %16 {strides = array<i32>} : memref<2x64xbf16, #tpu.memory_space<vmem>>, vector<2x64xbf16>,
    } else {
    }
    return
  }
  func.func @transform_0(%arg0: i32, %arg1: i32, %arg2: i32) -> (i32, i32) {
    %c0_i32 = arith.constant 0 : i32
    return %arg0, %arg2 : i32, i32
  }
  func.func @transform_1(%arg0: i32, %arg1: i32, %arg2: i32) -> (i32, i32) {
    %c0_i32 = arith.constant 0 : i32
    return %arg2, %arg1 : i32, i32
  }
  func.func @transform_2(%arg0: i32, %arg1: i32, %arg2: i32) -> (i32, i32) {
    %c0_i32 = arith.constant 0 : i32
    %c0_i32_0 = arith.constant 0 : i32
    return %c0_i32, %arg1 : i32, i32
  }
  func.func @transform_3(%arg0: i32, %arg1: i32, %arg2: i32) -> (i32, i32) {
    %c0_i32 = arith.constant 0 : i32
    return %arg0, %arg1 : i32, i32
  }
}

module attributes {stable_mosaic.version = 11 : i64} {
  func.func @_mm_bias_act_kernel(%arg0: i32, %arg1: i32, %arg2: i32, %arg3: memref<8x256xbf16, #tpu.memory_space<vmem>>, %arg4: memref<256x256xbf16, #tpu.memory_space<vmem>>, %arg5: memref<1x256xf32, #tpu.memory_space<vmem>>, %arg6: memref<8x256xbf16, #tpu.memory_space<vmem>>, %arg7: memref<8x256xf32, #tpu.memory_space<vmem>>) attributes {dimension_semantics = [#tpu.dimension_semantics<parallel>, #tpu.dimension_semantics<parallel>, #tpu.dimension_semantics<arbitrary>], iteration_bounds = array<i64: 1, 1, 1>, scalar_prefetch = 0 : i64, scratch_operands = 1 : i64, tpu.core_type = #tpu.core_type<tc>, window_params = [{transform_indices = @transform_0, window_bounds = array<i64: 8, 256>}, {transform_indices = @transform_1, window_bounds = array<i64: 256, 256>}, {transform_indices = @transform_2, window_bounds = array<i64: 1, 256>}, {transform_indices = @transform_3, window_bounds = array<i64: 8, 256>}]} {
    %c0_i32 = arith.constant 0 : i32
    %0 = arith.cmpi eq, %arg2, %c0_i32 : i32
    %1 = arith.extui %0 : i1 to i32
    %c0_i32_0 = arith.constant 0 : i32
    %2 = arith.cmpi ne, %1, %c0_i32_0 : i32
    scf.if %2 {
      %cst_10 = arith.constant 0.000000e+00 : f32
      %12 = vector.broadcast %cst_10 : f32 to vector<8x256xf32>
      %c0_11 = arith.constant 0 : index
      %c0_12 = arith.constant 0 : index
      %13 = vector.load %arg7[%c0_11, %c0_12] : memref<8x256xf32, #tpu.memory_space<vmem>>, vector<8x256xf32>
      tpu.vector_store %arg7[%c0_11, %c0_12], %12 {strides = array<i32>} : memref<8x256xf32, #tpu.memory_space<vmem>>, vector<8x256xf32>,
    } else {
    }
    %c0 = arith.constant 0 : index
    %c0_1 = arith.constant 0 : index
    %3 = vector.load %arg7[%c0, %c0_1] : memref<8x256xf32, #tpu.memory_space<vmem>>, vector<8x256xf32>
    %c0_2 = arith.constant 0 : index
    %c0_3 = arith.constant 0 : index
    %4 = vector.load %arg3[%c0_2, %c0_3] : memref<8x256xbf16, #tpu.memory_space<vmem>>, vector<8x256xbf16>
    %c0_4 = arith.constant 0 : index
    %c0_5 = arith.constant 0 : index
    %5 = vector.load %arg4[%c0_4, %c0_5] : memref<256x256xbf16, #tpu.memory_space<vmem>>, vector<256x256xbf16>
    %cst = arith.constant dense<0.000000e+00> : vector<8x256xf32>
    %6 = tpu.matmul %4, %5, %cst {dimension_numbers = #tpu.dot_dimension_numbers<[1], [0], [0], [1], [0, 0, 1, 1], [], []>} : vector<8x256xbf16>, vector<256x256xbf16>, vector<8x256xf32> -> vector<8x256xf32>
    %7 = arith.addf %3, %6 : vector<8x256xf32>
    %c0_6 = arith.constant 0 : index
    %c0_7 = arith.constant 0 : index
    %8 = vector.load %arg7[%c0_6, %c0_7] : memref<8x256xf32, #tpu.memory_space<vmem>>, vector<8x256xf32>
    tpu.vector_store %arg7[%c0_6, %c0_7], %7 {strides = array<i32>} : memref<8x256xf32, #tpu.memory_space<vmem>>, vector<8x256xf32>,
    %c0_i32_8 = arith.constant 0 : i32
    %9 = arith.cmpi eq, %arg2, %c0_i32_8 : i32
    %10 = arith.extui %9 : i1 to i32
    %c0_i32_9 = arith.constant 0 : i32
    %11 = arith.cmpi ne, %10, %c0_i32_9 : i32
    scf.if %11 {
      %c0_10 = arith.constant 0 : index
      %c0_11 = arith.constant 0 : index
      %12 = vector.load %arg7[%c0_10, %c0_11] : memref<8x256xf32, #tpu.memory_space<vmem>>, vector<8x256xf32>
      %c0_12 = arith.constant 0 : index
      %c0_13 = arith.constant 0 : index
      %13 = vector.load %arg5[%c0_12, %c0_13] : memref<1x256xf32, #tpu.memory_space<vmem>>, vector<1x256xf32>
      %14 = vector.broadcast %13 : vector<1x256xf32> to vector<8x256xf32>
      %15 = arith.addf %12, %14 : vector<8x256xf32>
      %16 = arith.truncf %15 : vector<8x256xf32> to vector<8x256xbf16>
      %c0_14 = arith.constant 0 : index
      %c0_15 = arith.constant 0 : index
      %17 = vector.load %arg6[%c0_14, %c0_15] : memref<8x256xbf16, #tpu.memory_space<vmem>>, vector<8x256xbf16>
      tpu.vector_store %arg6[%c0_14, %c0_15], %16 {strides = array<i32>} : memref<8x256xbf16, #tpu.memory_space<vmem>>, vector<8x256xbf16>,
    } else {
    }
    return
  }
  func.func @transform_0(%arg0: i32, %arg1: i32, %arg2: i32) -> (i32, i32) {
    %c0_i32 = arith.constant 0 : i32
    return %arg0, %arg2 : i32, i32
  }
  func.func @transform_1(%arg0: i32, %arg1: i32, %arg2: i32) -> (i32, i32) {
    %c0_i32 = arith.constant 0 : i32
    return %arg2, %arg1 : i32, i32
  }
  func.func @transform_2(%arg0: i32, %arg1: i32, %arg2: i32) -> (i32, i32) {
    %c0_i32 = arith.constant 0 : i32
    %c0_i32_0 = arith.constant 0 : i32
    return %c0_i32, %arg1 : i32, i32
  }
  func.func @transform_3(%arg0: i32, %arg1: i32, %arg2: i32) -> (i32, i32) {
    %c0_i32 = arith.constant 0 : i32
    return %arg0, %arg1 : i32, i32
  }
}

module attributes {stable_mosaic.version = 11 : i64} {
  func.func @_mm_bias_act_kernel(%arg0: i32, %arg1: i32, %arg2: i32, %arg3: memref<18x512xbf16, #tpu.memory_space<vmem>>, %arg4: memref<512x128xbf16, #tpu.memory_space<vmem>>, %arg5: memref<1x128xf32, #tpu.memory_space<vmem>>, %arg6: memref<18x128xbf16, #tpu.memory_space<vmem>>, %arg7: memref<18x128xf32, #tpu.memory_space<vmem>>) attributes {dimension_semantics = [#tpu.dimension_semantics<parallel>, #tpu.dimension_semantics<parallel>, #tpu.dimension_semantics<arbitrary>], iteration_bounds = array<i64: 1, 1, 1>, scalar_prefetch = 0 : i64, scratch_operands = 1 : i64, tpu.core_type = #tpu.core_type<tc>, window_params = [{transform_indices = @transform_0, window_bounds = array<i64: 18, 512>}, {transform_indices = @transform_1, window_bounds = array<i64: 512, 128>}, {transform_indices = @transform_2, window_bounds = array<i64: 1, 128>}, {transform_indices = @transform_3, window_bounds = array<i64: 18, 128>}]} {
    %c0_i32 = arith.constant 0 : i32
    %0 = arith.cmpi eq, %arg2, %c0_i32 : i32
    %1 = arith.extui %0 : i1 to i32
    %c0_i32_0 = arith.constant 0 : i32
    %2 = arith.cmpi ne, %1, %c0_i32_0 : i32
    scf.if %2 {
      %cst_10 = arith.constant 0.000000e+00 : f32
      %12 = vector.broadcast %cst_10 : f32 to vector<18x128xf32>
      %c0_11 = arith.constant 0 : index
      %c0_12 = arith.constant 0 : index
      %13 = vector.load %arg7[%c0_11, %c0_12] : memref<18x128xf32, #tpu.memory_space<vmem>>, vector<18x128xf32>
      tpu.vector_store %arg7[%c0_11, %c0_12], %12 {strides = array<i32>} : memref<18x128xf32, #tpu.memory_space<vmem>>, vector<18x128xf32>,
    } else {
    }
    %c0 = arith.constant 0 : index
    %c0_1 = arith.constant 0 : index
    %3 = vector.load %arg7[%c0, %c0_1] : memref<18x128xf32, #tpu.memory_space<vmem>>, vector<18x128xf32>
    %c0_2 = arith.constant 0 : index
    %c0_3 = arith.constant 0 : index
    %4 = vector.load %arg3[%c0_2, %c0_3] : memref<18x512xbf16, #tpu.memory_space<vmem>>, vector<18x512xbf16>
    %c0_4 = arith.constant 0 : index
    %c0_5 = arith.constant 0 : index
    %5 = vector.load %arg4[%c0_4, %c0_5] : memref<512x128xbf16, #tpu.memory_space<vmem>>, vector<512x128xbf16>
    %cst = arith.constant dense<0.000000e+00> : vector<18x128xf32>
    %6 = tpu.matmul %4, %5, %cst {dimension_numbers = #tpu.dot_dimension_numbers<[1], [0], [0], [1], [0, 0, 1, 1], [], []>} : vector<18x512xbf16>, vector<512x128xbf16>, vector<18x128xf32> -> vector<18x128xf32>
    %7 = arith.addf %3, %6 : vector<18x128xf32>
    %c0_6 = arith.constant 0 : index
    %c0_7 = arith.constant 0 : index
    %8 = vector.load %arg7[%c0_6, %c0_7] : memref<18x128xf32, #tpu.memory_space<vmem>>, vector<18x128xf32>
    tpu.vector_store %arg7[%c0_6, %c0_7], %7 {strides = array<i32>} : memref<18x128xf32, #tpu.memory_space<vmem>>, vector<18x128xf32>,
    %c0_i32_8 = arith.constant 0 : i32
    %9 = arith.cmpi eq, %arg2, %c0_i32_8 : i32
    %10 = arith.extui %9 : i1 to i32
    %c0_i32_9 = arith.constant 0 : i32
    %11 = arith.cmpi ne, %10, %c0_i32_9 : i32
    scf.if %11 {
      %c0_10 = arith.constant 0 : index
      %c0_11 = arith.constant 0 : index
      %12 = vector.load %arg7[%c0_10, %c0_11] : memref<18x128xf32, #tpu.memory_space<vmem>>, vector<18x128xf32>
      %c0_12 = arith.constant 0 : index
      %c0_13 = arith.constant 0 : index
      %13 = vector.load %arg5[%c0_12, %c0_13] : memref<1x128xf32, #tpu.memory_space<vmem>>, vector<1x128xf32>
      %14 = vector.broadcast %13 : vector<1x128xf32> to vector<18x128xf32>
      %15 = arith.addf %12, %14 : vector<18x128xf32>
      %16 = arith.truncf %15 : vector<18x128xf32> to vector<18x128xbf16>
      %c0_14 = arith.constant 0 : index
      %c0_15 = arith.constant 0 : index
      %17 = vector.load %arg6[%c0_14, %c0_15] : memref<18x128xbf16, #tpu.memory_space<vmem>>, vector<18x128xbf16>
      tpu.vector_store %arg6[%c0_14, %c0_15], %16 {strides = array<i32>} : memref<18x128xbf16, #tpu.memory_space<vmem>>, vector<18x128xbf16>,
    } else {
    }
    return
  }
  func.func @transform_0(%arg0: i32, %arg1: i32, %arg2: i32) -> (i32, i32) {
    %c0_i32 = arith.constant 0 : i32
    return %arg0, %arg2 : i32, i32
  }
  func.func @transform_1(%arg0: i32, %arg1: i32, %arg2: i32) -> (i32, i32) {
    %c0_i32 = arith.constant 0 : i32
    return %arg2, %arg1 : i32, i32
  }
  func.func @transform_2(%arg0: i32, %arg1: i32, %arg2: i32) -> (i32, i32) {
    %c0_i32 = arith.constant 0 : i32
    %c0_i32_0 = arith.constant 0 : i32
    return %c0_i32, %arg1 : i32, i32
  }
  func.func @transform_3(%arg0: i32, %arg1: i32, %arg2: i32) -> (i32, i32) {
    %c0_i32 = arith.constant 0 : i32
    return %arg0, %arg1 : i32, i32
  }
}

module attributes {stable_mosaic.version = 11 : i64} {
  func.func @_mm_bias_act_kernel(%arg0: i32, %arg1: i32, %arg2: i32, %arg3: memref<50x256xbf16, #tpu.memory_space<vmem>>, %arg4: memref<256x64xbf16, #tpu.memory_space<vmem>>, %arg5: memref<1x64xf32, #tpu.memory_space<vmem>>, %arg6: memref<50x64xbf16, #tpu.memory_space<vmem>>, %arg7: memref<50x64xf32, #tpu.memory_space<vmem>>) attributes {dimension_semantics = [#tpu.dimension_semantics<parallel>, #tpu.dimension_semantics<parallel>, #tpu.dimension_semantics<arbitrary>], iteration_bounds = array<i64: 1, 1, 1>, scalar_prefetch = 0 : i64, scratch_operands = 1 : i64, tpu.core_type = #tpu.core_type<tc>, window_params = [{transform_indices = @transform_0, window_bounds = array<i64: 50, 256>}, {transform_indices = @transform_1, window_bounds = array<i64: 256, 64>}, {transform_indices = @transform_2, window_bounds = array<i64: 1, 64>}, {transform_indices = @transform_3, window_bounds = array<i64: 50, 64>}]} {
    %c0_i32 = arith.constant 0 : i32
    %0 = arith.cmpi eq, %arg2, %c0_i32 : i32
    %1 = arith.extui %0 : i1 to i32
    %c0_i32_0 = arith.constant 0 : i32
    %2 = arith.cmpi ne, %1, %c0_i32_0 : i32
    scf.if %2 {
      %cst_10 = arith.constant 0.000000e+00 : f32
      %12 = vector.broadcast %cst_10 : f32 to vector<50x64xf32>
      %c0_11 = arith.constant 0 : index
      %c0_12 = arith.constant 0 : index
      %13 = vector.load %arg7[%c0_11, %c0_12] : memref<50x64xf32, #tpu.memory_space<vmem>>, vector<50x64xf32>
      tpu.vector_store %arg7[%c0_11, %c0_12], %12 {strides = array<i32>} : memref<50x64xf32, #tpu.memory_space<vmem>>, vector<50x64xf32>,
    } else {
    }
    %c0 = arith.constant 0 : index
    %c0_1 = arith.constant 0 : index
    %3 = vector.load %arg7[%c0, %c0_1] : memref<50x64xf32, #tpu.memory_space<vmem>>, vector<50x64xf32>
    %c0_2 = arith.constant 0 : index
    %c0_3 = arith.constant 0 : index
    %4 = vector.load %arg3[%c0_2, %c0_3] : memref<50x256xbf16, #tpu.memory_space<vmem>>, vector<50x256xbf16>
    %c0_4 = arith.constant 0 : index
    %c0_5 = arith.constant 0 : index
    %5 = vector.load %arg4[%c0_4, %c0_5] : memref<256x64xbf16, #tpu.memory_space<vmem>>, vector<256x64xbf16>
    %cst = arith.constant dense<0.000000e+00> : vector<50x64xf32>
    %6 = tpu.matmul %4, %5, %cst {dimension_numbers = #tpu.dot_dimension_numbers<[1], [0], [0], [1], [0, 0, 1, 1], [], []>} : vector<50x256xbf16>, vector<256x64xbf16>, vector<50x64xf32> -> vector<50x64xf32>
    %7 = arith.addf %3, %6 : vector<50x64xf32>
    %c0_6 = arith.constant 0 : index
    %c0_7 = arith.constant 0 : index
    %8 = vector.load %arg7[%c0_6, %c0_7] : memref<50x64xf32, #tpu.memory_space<vmem>>, vector<50x64xf32>
    tpu.vector_store %arg7[%c0_6, %c0_7], %7 {strides = array<i32>} : memref<50x64xf32, #tpu.memory_space<vmem>>, vector<50x64xf32>,
    %c0_i32_8 = arith.constant 0 : i32
    %9 = arith.cmpi eq, %arg2, %c0_i32_8 : i32
    %10 = arith.extui %9 : i1 to i32
    %c0_i32_9 = arith.constant 0 : i32
    %11 = arith.cmpi ne, %10, %c0_i32_9 : i32
    scf.if %11 {
      %c0_10 = arith.constant 0 : index
      %c0_11 = arith.constant 0 : index
      %12 = vector.load %arg7[%c0_10, %c0_11] : memref<50x64xf32, #tpu.memory_space<vmem>>, vector<50x64xf32>
      %c0_12 = arith.constant 0 : index
      %c0_13 = arith.constant 0 : index
      %13 = vector.load %arg5[%c0_12, %c0_13] : memref<1x64xf32, #tpu.memory_space<vmem>>, vector<1x64xf32>
      %14 = vector.broadcast %13 : vector<1x64xf32> to vector<50x64xf32>
      %15 = arith.addf %12, %14 : vector<50x64xf32>
      %16 = arith.truncf %15 : vector<50x64xf32> to vector<50x64xbf16>
      %c0_14 = arith.constant 0 : index
      %c0_15 = arith.constant 0 : index
      %17 = vector.load %arg6[%c0_14, %c0_15] : memref<50x64xbf16, #tpu.memory_space<vmem>>, vector<50x64xbf16>
      tpu.vector_store %arg6[%c0_14, %c0_15], %16 {strides = array<i32>} : memref<50x64xbf16, #tpu.memory_space<vmem>>, vector<50x64xbf16>,
    } else {
    }
    return
  }
  func.func @transform_0(%arg0: i32, %arg1: i32, %arg2: i32) -> (i32, i32) {
    %c0_i32 = arith.constant 0 : i32
    return %arg0, %arg2 : i32, i32
  }
  func.func @transform_1(%arg0: i32, %arg1: i32, %arg2: i32) -> (i32, i32) {
    %c0_i32 = arith.constant 0 : i32
    return %arg2, %arg1 : i32, i32
  }
  func.func @transform_2(%arg0: i32, %arg1: i32, %arg2: i32) -> (i32, i32) {
    %c0_i32 = arith.constant 0 : i32
    %c0_i32_0 = arith.constant 0 : i32
    return %c0_i32, %arg1 : i32, i32
  }
  func.func @transform_3(%arg0: i32, %arg1: i32, %arg2: i32) -> (i32, i32) {
    %c0_i32 = arith.constant 0 : i32
    return %arg0, %arg1 : i32, i32
  }
}

module attributes {stable_mosaic.version = 11 : i64} {
  func.func @_mm_bias_act_kernel(%arg0: i32, %arg1: i32, %arg2: i32, %arg3: memref<162x128xbf16, #tpu.memory_space<vmem>>, %arg4: memref<128x32xbf16, #tpu.memory_space<vmem>>, %arg5: memref<1x32xf32, #tpu.memory_space<vmem>>, %arg6: memref<162x32xbf16, #tpu.memory_space<vmem>>, %arg7: memref<162x32xf32, #tpu.memory_space<vmem>>) attributes {dimension_semantics = [#tpu.dimension_semantics<parallel>, #tpu.dimension_semantics<parallel>, #tpu.dimension_semantics<arbitrary>], iteration_bounds = array<i64: 1, 1, 1>, scalar_prefetch = 0 : i64, scratch_operands = 1 : i64, tpu.core_type = #tpu.core_type<tc>, window_params = [{transform_indices = @transform_0, window_bounds = array<i64: 162, 128>}, {transform_indices = @transform_1, window_bounds = array<i64: 128, 32>}, {transform_indices = @transform_2, window_bounds = array<i64: 1, 32>}, {transform_indices = @transform_3, window_bounds = array<i64: 162, 32>}]} {
    %c0_i32 = arith.constant 0 : i32
    %0 = arith.cmpi eq, %arg2, %c0_i32 : i32
    %1 = arith.extui %0 : i1 to i32
    %c0_i32_0 = arith.constant 0 : i32
    %2 = arith.cmpi ne, %1, %c0_i32_0 : i32
    scf.if %2 {
      %cst_10 = arith.constant 0.000000e+00 : f32
      %12 = vector.broadcast %cst_10 : f32 to vector<162x32xf32>
      %c0_11 = arith.constant 0 : index
      %c0_12 = arith.constant 0 : index
      %13 = vector.load %arg7[%c0_11, %c0_12] : memref<162x32xf32, #tpu.memory_space<vmem>>, vector<162x32xf32>
      tpu.vector_store %arg7[%c0_11, %c0_12], %12 {strides = array<i32>} : memref<162x32xf32, #tpu.memory_space<vmem>>, vector<162x32xf32>,
    } else {
    }
    %c0 = arith.constant 0 : index
    %c0_1 = arith.constant 0 : index
    %3 = vector.load %arg7[%c0, %c0_1] : memref<162x32xf32, #tpu.memory_space<vmem>>, vector<162x32xf32>
    %c0_2 = arith.constant 0 : index
    %c0_3 = arith.constant 0 : index
    %4 = vector.load %arg3[%c0_2, %c0_3] : memref<162x128xbf16, #tpu.memory_space<vmem>>, vector<162x128xbf16>
    %c0_4 = arith.constant 0 : index
    %c0_5 = arith.constant 0 : index
    %5 = vector.load %arg4[%c0_4, %c0_5] : memref<128x32xbf16, #tpu.memory_space<vmem>>, vector<128x32xbf16>
    %cst = arith.constant dense<0.000000e+00> : vector<162x32xf32>
    %6 = tpu.matmul %4, %5, %cst {dimension_numbers = #tpu.dot_dimension_numbers<[1], [0], [0], [1], [0, 0, 1, 1], [], []>} : vector<162x128xbf16>, vector<128x32xbf16>, vector<162x32xf32> -> vector<162x32xf32>
    %7 = arith.addf %3, %6 : vector<162x32xf32>
    %c0_6 = arith.constant 0 : index
    %c0_7 = arith.constant 0 : index
    %8 = vector.load %arg7[%c0_6, %c0_7] : memref<162x32xf32, #tpu.memory_space<vmem>>, vector<162x32xf32>
    tpu.vector_store %arg7[%c0_6, %c0_7], %7 {strides = array<i32>} : memref<162x32xf32, #tpu.memory_space<vmem>>, vector<162x32xf32>,
    %c0_i32_8 = arith.constant 0 : i32
    %9 = arith.cmpi eq, %arg2, %c0_i32_8 : i32
    %10 = arith.extui %9 : i1 to i32
    %c0_i32_9 = arith.constant 0 : i32
    %11 = arith.cmpi ne, %10, %c0_i32_9 : i32
    scf.if %11 {
      %c0_10 = arith.constant 0 : index
      %c0_11 = arith.constant 0 : index
      %12 = vector.load %arg7[%c0_10, %c0_11] : memref<162x32xf32, #tpu.memory_space<vmem>>, vector<162x32xf32>
      %c0_12 = arith.constant 0 : index
      %c0_13 = arith.constant 0 : index
      %13 = vector.load %arg5[%c0_12, %c0_13] : memref<1x32xf32, #tpu.memory_space<vmem>>, vector<1x32xf32>
      %14 = vector.broadcast %13 : vector<1x32xf32> to vector<162x32xf32>
      %15 = arith.addf %12, %14 : vector<162x32xf32>
      %16 = arith.truncf %15 : vector<162x32xf32> to vector<162x32xbf16>
      %c0_14 = arith.constant 0 : index
      %c0_15 = arith.constant 0 : index
      %17 = vector.load %arg6[%c0_14, %c0_15] : memref<162x32xbf16, #tpu.memory_space<vmem>>, vector<162x32xbf16>
      tpu.vector_store %arg6[%c0_14, %c0_15], %16 {strides = array<i32>} : memref<162x32xbf16, #tpu.memory_space<vmem>>, vector<162x32xbf16>,
    } else {
    }
    return
  }
  func.func @transform_0(%arg0: i32, %arg1: i32, %arg2: i32) -> (i32, i32) {
    %c0_i32 = arith.constant 0 : i32
    return %arg0, %arg2 : i32, i32
  }
  func.func @transform_1(%arg0: i32, %arg1: i32, %arg2: i32) -> (i32, i32) {
    %c0_i32 = arith.constant 0 : i32
    return %arg2, %arg1 : i32, i32
  }
  func.func @transform_2(%arg0: i32, %arg1: i32, %arg2: i32) -> (i32, i32) {
    %c0_i32 = arith.constant 0 : i32
    %c0_i32_0 = arith.constant 0 : i32
    return %c0_i32, %arg1 : i32, i32
  }
  func.func @transform_3(%arg0: i32, %arg1: i32, %arg2: i32) -> (i32, i32) {
    %c0_i32 = arith.constant 0 : i32
    return %arg0, %arg1 : i32, i32
  }
}

module attributes {stable_mosaic.version = 11 : i64} {
  func.func @_bn_stats_kernel(%arg0: i32, %arg1: memref<512x8xbf16, #tpu.memory_space<vmem>>, %arg2: memref<1x8xf32, #tpu.memory_space<vmem>>, %arg3: memref<1x8xf32, #tpu.memory_space<vmem>>) attributes {dimension_semantics = [#tpu.dimension_semantics<arbitrary>], iteration_bounds = array<i64: 1>, scalar_prefetch = 0 : i64, scratch_operands = 0 : i64, tpu.core_type = #tpu.core_type<tc>, window_params = [{transform_indices = @transform_0, window_bounds = array<i64: 512, 8>}, {pipeline_mode = #tpu.pipeline_mode<synchronous>, transform_indices = @transform_1, window_bounds = array<i64: 1, 8>}, {pipeline_mode = #tpu.pipeline_mode<synchronous>, transform_indices = @transform_2, window_bounds = array<i64: 1, 8>}]} {
    %c0_i32 = arith.constant 0 : i32
    %0 = arith.cmpi eq, %arg0, %c0_i32 : i32
    %1 = arith.extui %0 : i1 to i32
    %c0_i32_0 = arith.constant 0 : i32
    %2 = arith.cmpi ne, %1, %c0_i32_0 : i32
    scf.if %2 {
      %cst_13 = arith.constant 0.000000e+00 : f32
      %24 = vector.broadcast %cst_13 : f32 to vector<1x8xf32>
      %c0_14 = arith.constant 0 : index
      %c0_15 = arith.constant 0 : index
      %25 = vector.load %arg2[%c0_14, %c0_15] : memref<1x8xf32, #tpu.memory_space<vmem>>, vector<1x8xf32>
      tpu.vector_store %arg2[%c0_14, %c0_15], %24 {strides = array<i32>} : memref<1x8xf32, #tpu.memory_space<vmem>>, vector<1x8xf32>,
      %cst_16 = arith.constant 0.000000e+00 : f32
      %26 = vector.broadcast %cst_16 : f32 to vector<1x8xf32>
      %c0_17 = arith.constant 0 : index
      %c0_18 = arith.constant 0 : index
      %27 = vector.load %arg3[%c0_17, %c0_18] : memref<1x8xf32, #tpu.memory_space<vmem>>, vector<1x8xf32>
      tpu.vector_store %arg3[%c0_17, %c0_18], %26 {strides = array<i32>} : memref<1x8xf32, #tpu.memory_space<vmem>>, vector<1x8xf32>,
    } else {
    }
    %c0 = arith.constant 0 : index
    %c0_1 = arith.constant 0 : index
    %3 = vector.load %arg1[%c0, %c0_1] : memref<512x8xbf16, #tpu.memory_space<vmem>>, vector<512x8xbf16>
    %4 = arith.extf %3 : vector<512x8xbf16> to vector<512x8xf32>
    %c512_i32 = arith.constant 512 : i32
    %5 = arith.muli %arg0, %c512_i32 : i32
    %6 = tpu.iota {dimensions = array<i32: 0>} : vector<512x8xi32>
    %7 = vector.broadcast %5 : i32 to vector<512x8xi32>
    %8 = arith.addi %7, %6 : vector<512x8xi32>
    %c512_i32_2 = arith.constant 512 : i32
    %9 = vector.broadcast %c512_i32_2 : i32 to vector<512x8xi32>
    %10 = arith.cmpi slt, %8, %9 : vector<512x8xi32>
    %cst = arith.constant 0.000000e+00 : f32
    %11 = vector.broadcast %cst : f32 to vector<512x8xf32>
    %12 = arith.select %10, %4, %11 : vector<512x8xi1>, vector<512x8xf32>
    %c0_3 = arith.constant 0 : index
    %c0_4 = arith.constant 0 : index
    %13 = vector.load %arg2[%c0_3, %c0_4] : memref<1x8xf32, #tpu.memory_space<vmem>>, vector<1x8xf32>
    %cst_5 = arith.constant dense<0.000000e+00> : vector<8xf32>
    %14 = vector.multi_reduction <add>, %12, %cst_5 [0] : vector<512x8xf32> to vector<8xf32>
    %15 = vector.shape_cast %14 : vector<8xf32> to vector<1x8xf32>
    %16 = arith.addf %13, %15 : vector<1x8xf32>
    %c0_6 = arith.constant 0 : index
    %c0_7 = arith.constant 0 : index
    %17 = vector.load %arg2[%c0_6, %c0_7] : memref<1x8xf32, #tpu.memory_space<vmem>>, vector<1x8xf32>
    tpu.vector_store %arg2[%c0_6, %c0_7], %16 {strides = array<i32>} : memref<1x8xf32, #tpu.memory_space<vmem>>, vector<1x8xf32>,
    %c0_8 = arith.constant 0 : index
    %c0_9 = arith.constant 0 : index
    %18 = vector.load %arg3[%c0_8, %c0_9] : memref<1x8xf32, #tpu.memory_space<vmem>>, vector<1x8xf32>
    %19 = arith.mulf %12, %12 : vector<512x8xf32>
    %cst_10 = arith.constant dense<0.000000e+00> : vector<8xf32>
    %20 = vector.multi_reduction <add>, %19, %cst_10 [0] : vector<512x8xf32> to vector<8xf32>
    %21 = vector.shape_cast %20 : vector<8xf32> to vector<1x8xf32>
    %22 = arith.addf %18, %21 : vector<1x8xf32>
    %c0_11 = arith.constant 0 : index
    %c0_12 = arith.constant 0 : index
    %23 = vector.load %arg3[%c0_11, %c0_12] : memref<1x8xf32, #tpu.memory_space<vmem>>, vector<1x8xf32>
    tpu.vector_store %arg3[%c0_11, %c0_12], %22 {strides = array<i32>} : memref<1x8xf32, #tpu.memory_space<vmem>>, vector<1x8xf32>,
    return
  }
  func.func @transform_0(%arg0: i32) -> (i32, i32) {
    %c0_i32 = arith.constant 0 : i32
    %c0_i32_0 = arith.constant 0 : i32
    return %arg0, %c0_i32 : i32, i32
  }
  func.func @transform_1(%arg0: i32) -> (i32, i32) {
    %c0_i32 = arith.constant 0 : i32
    %c0_i32_0 = arith.constant 0 : i32
    %c0_i32_1 = arith.constant 0 : i32
    return %c0_i32, %c0_i32_0 : i32, i32
  }
  func.func @transform_2(%arg0: i32) -> (i32, i32) {
    %c0_i32 = arith.constant 0 : i32
    %c0_i32_0 = arith.constant 0 : i32
    %c0_i32_1 = arith.constant 0 : i32
    return %c0_i32, %c0_i32_0 : i32, i32
  }
}

module attributes {stable_mosaic.version = 11 : i64} {
  func.func @_bn_apply_kernel(%arg0: i32, %arg1: memref<512x8xbf16, #tpu.memory_space<vmem>>, %arg2: memref<1x8xf32, #tpu.memory_space<vmem>>, %arg3: memref<1x8xf32, #tpu.memory_space<vmem>>, %arg4: memref<512x8xbf16, #tpu.memory_space<vmem>>) attributes {dimension_semantics = [#tpu.dimension_semantics<parallel>], iteration_bounds = array<i64: 1>, scalar_prefetch = 0 : i64, scratch_operands = 0 : i64, tpu.core_type = #tpu.core_type<tc>, window_params = [{transform_indices = @transform_0, window_bounds = array<i64: 512, 8>}, {pipeline_mode = #tpu.pipeline_mode<synchronous>, transform_indices = @transform_1, window_bounds = array<i64: 1, 8>}, {pipeline_mode = #tpu.pipeline_mode<synchronous>, transform_indices = @transform_2, window_bounds = array<i64: 1, 8>}, {transform_indices = @transform_3, window_bounds = array<i64: 512, 8>}]} {
    %c0 = arith.constant 0 : index
    %c0_0 = arith.constant 0 : index
    %0 = vector.load %arg1[%c0, %c0_0] : memref<512x8xbf16, #tpu.memory_space<vmem>>, vector<512x8xbf16>
    %1 = arith.extf %0 : vector<512x8xbf16> to vector<512x8xf32>
    %c0_1 = arith.constant 0 : index
    %c0_2 = arith.constant 0 : index
    %2 = vector.load %arg2[%c0_1, %c0_2] : memref<1x8xf32, #tpu.memory_space<vmem>>, vector<1x8xf32>
    %3 = vector.broadcast %2 : vector<1x8xf32> to vector<512x8xf32>
    %4 = arith.mulf %1, %3 : vector<512x8xf32>
    %c0_3 = arith.constant 0 : index
    %c0_4 = arith.constant 0 : index
    %5 = vector.load %arg3[%c0_3, %c0_4] : memref<1x8xf32, #tpu.memory_space<vmem>>, vector<1x8xf32>
    %6 = vector.broadcast %5 : vector<1x8xf32> to vector<512x8xf32>
    %7 = arith.addf %4, %6 : vector<512x8xf32>
    %8 = arith.truncf %7 : vector<512x8xf32> to vector<512x8xbf16>
    %c0_5 = arith.constant 0 : index
    %c0_6 = arith.constant 0 : index
    %9 = vector.load %arg4[%c0_5, %c0_6] : memref<512x8xbf16, #tpu.memory_space<vmem>>, vector<512x8xbf16>
    tpu.vector_store %arg4[%c0_5, %c0_6], %8 {strides = array<i32>} : memref<512x8xbf16, #tpu.memory_space<vmem>>, vector<512x8xbf16>,
    return
  }
  func.func @transform_0(%arg0: i32) -> (i32, i32) {
    %c0_i32 = arith.constant 0 : i32
    %c0_i32_0 = arith.constant 0 : i32
    return %arg0, %c0_i32 : i32, i32
  }
  func.func @transform_1(%arg0: i32) -> (i32, i32) {
    %c0_i32 = arith.constant 0 : i32
    %c0_i32_0 = arith.constant 0 : i32
    %c0_i32_1 = arith.constant 0 : i32
    return %c0_i32, %c0_i32_0 : i32, i32
  }
  func.func @transform_2(%arg0: i32) -> (i32, i32) {
    %c0_i32 = arith.constant 0 : i32
    %c0_i32_0 = arith.constant 0 : i32
    %c0_i32_1 = arith.constant 0 : i32
    return %c0_i32, %c0_i32_0 : i32, i32
  }
  func.func @transform_3(%arg0: i32) -> (i32, i32) {
    %c0_i32 = arith.constant 0 : i32
    %c0_i32_0 = arith.constant 0 : i32
    return %arg0, %c0_i32 : i32, i32
  }
}

module attributes {stable_mosaic.version = 11 : i64} {
  func.func @_mm_bias_act_kernel(%arg0: i32, %arg1: i32, %arg2: i32, %arg3: memref<578x64xbf16, #tpu.memory_space<vmem>>, %arg4: memref<64x12xbf16, #tpu.memory_space<vmem>>, %arg5: memref<1x12xf32, #tpu.memory_space<vmem>>, %arg6: memref<578x12xf32, #tpu.memory_space<vmem>>, %arg7: memref<578x12xf32, #tpu.memory_space<vmem>>) attributes {dimension_semantics = [#tpu.dimension_semantics<parallel>, #tpu.dimension_semantics<parallel>, #tpu.dimension_semantics<arbitrary>], iteration_bounds = array<i64: 1, 1, 1>, scalar_prefetch = 0 : i64, scratch_operands = 1 : i64, tpu.core_type = #tpu.core_type<tc>, window_params = [{transform_indices = @transform_0, window_bounds = array<i64: 578, 64>}, {transform_indices = @transform_1, window_bounds = array<i64: 64, 12>}, {transform_indices = @transform_2, window_bounds = array<i64: 1, 12>}, {transform_indices = @transform_3, window_bounds = array<i64: 578, 12>}]} {
    %c0_i32 = arith.constant 0 : i32
    %0 = arith.cmpi eq, %arg2, %c0_i32 : i32
    %1 = arith.extui %0 : i1 to i32
    %c0_i32_0 = arith.constant 0 : i32
    %2 = arith.cmpi ne, %1, %c0_i32_0 : i32
    scf.if %2 {
      %cst_10 = arith.constant 0.000000e+00 : f32
      %12 = vector.broadcast %cst_10 : f32 to vector<578x12xf32>
      %c0_11 = arith.constant 0 : index
      %c0_12 = arith.constant 0 : index
      %13 = vector.load %arg7[%c0_11, %c0_12] : memref<578x12xf32, #tpu.memory_space<vmem>>, vector<578x12xf32>
      tpu.vector_store %arg7[%c0_11, %c0_12], %12 {strides = array<i32>} : memref<578x12xf32, #tpu.memory_space<vmem>>, vector<578x12xf32>,
    } else {
    }
    %c0 = arith.constant 0 : index
    %c0_1 = arith.constant 0 : index
    %3 = vector.load %arg7[%c0, %c0_1] : memref<578x12xf32, #tpu.memory_space<vmem>>, vector<578x12xf32>
    %c0_2 = arith.constant 0 : index
    %c0_3 = arith.constant 0 : index
    %4 = vector.load %arg3[%c0_2, %c0_3] : memref<578x64xbf16, #tpu.memory_space<vmem>>, vector<578x64xbf16>
    %c0_4 = arith.constant 0 : index
    %c0_5 = arith.constant 0 : index
    %5 = vector.load %arg4[%c0_4, %c0_5] : memref<64x12xbf16, #tpu.memory_space<vmem>>, vector<64x12xbf16>
    %cst = arith.constant dense<0.000000e+00> : vector<578x12xf32>
    %6 = tpu.matmul %4, %5, %cst {dimension_numbers = #tpu.dot_dimension_numbers<[1], [0], [0], [1], [0, 0, 1, 1], [], []>} : vector<578x64xbf16>, vector<64x12xbf16>, vector<578x12xf32> -> vector<578x12xf32>
    %7 = arith.addf %3, %6 : vector<578x12xf32>
    %c0_6 = arith.constant 0 : index
    %c0_7 = arith.constant 0 : index
    %8 = vector.load %arg7[%c0_6, %c0_7] : memref<578x12xf32, #tpu.memory_space<vmem>>, vector<578x12xf32>
    tpu.vector_store %arg7[%c0_6, %c0_7], %7 {strides = array<i32>} : memref<578x12xf32, #tpu.memory_space<vmem>>, vector<578x12xf32>,
    %c0_i32_8 = arith.constant 0 : i32
    %9 = arith.cmpi eq, %arg2, %c0_i32_8 : i32
    %10 = arith.extui %9 : i1 to i32
    %c0_i32_9 = arith.constant 0 : i32
    %11 = arith.cmpi ne, %10, %c0_i32_9 : i32
    scf.if %11 {
      %c0_10 = arith.constant 0 : index
      %c0_11 = arith.constant 0 : index
      %12 = vector.load %arg7[%c0_10, %c0_11] : memref<578x12xf32, #tpu.memory_space<vmem>>, vector<578x12xf32>
      %c0_12 = arith.constant 0 : index
      %c0_13 = arith.constant 0 : index
      %13 = vector.load %arg5[%c0_12, %c0_13] : memref<1x12xf32, #tpu.memory_space<vmem>>, vector<1x12xf32>
      %14 = vector.broadcast %13 : vector<1x12xf32> to vector<578x12xf32>
      %15 = arith.addf %12, %14 : vector<578x12xf32>
      %16 = math.tanh %15 : vector<578x12xf32>
      %c0_14 = arith.constant 0 : index
      %c0_15 = arith.constant 0 : index
      %17 = vector.load %arg6[%c0_14, %c0_15] : memref<578x12xf32, #tpu.memory_space<vmem>>, vector<578x12xf32>
      tpu.vector_store %arg6[%c0_14, %c0_15], %16 {strides = array<i32>} : memref<578x12xf32, #tpu.memory_space<vmem>>, vector<578x12xf32>,
    } else {
    }
    return
  }
  func.func @transform_0(%arg0: i32, %arg1: i32, %arg2: i32) -> (i32, i32) {
    %c0_i32 = arith.constant 0 : i32
    return %arg0, %arg2 : i32, i32
  }
  func.func @transform_1(%arg0: i32, %arg1: i32, %arg2: i32) -> (i32, i32) {
    %c0_i32 = arith.constant 0 : i32
    return %arg2, %arg1 : i32, i32
  }
  func.func @transform_2(%arg0: i32, %arg1: i32, %arg2: i32) -> (i32, i32) {
    %c0_i32 = arith.constant 0 : i32
    %c0_i32_0 = arith.constant 0 : i32
    return %c0_i32, %arg1 : i32, i32
  }
  func.func @transform_3(%arg0: i32, %arg1: i32, %arg2: i32) -> (i32, i32) {
    %c0_i32 = arith.constant 0 : i32
    return %arg0, %arg1 : i32, i32
  }
}

</mosaic_0001>

<llo_original>
// kernel: _lambda_.24
$region0: #{_lambda_.24}
  #allocation0 [shape = 'u32[]', space=smem, size = 0x4, offset = 0x4, fixed_abs, tag = 'smem constant byte address 0x4 - core index']
  #allocation1 [shape = 'u32[144,128]{1,0:T(1,128)}', space=vmem, size = 0x12000, scoped, tag = 'internal scratch']
  #allocation2 [shape = 'f32[512,8]{1,0:T(8,128)}', space=vmem, size = 0x40000, scoped, tag = 'scratch operand']
  %s0 = inlined_call_operand.vmem [shape: bf16[512,48], index: 0, kind: input, shape index: {}]
  %s1 = inlined_call_operand.vmem [shape: bf16[48,8], index: 1, kind: input, shape index: {}]
  %s2 = inlined_call_operand.vmem [shape: f32[1,8], index: 2, kind: input, shape index: {}]
  %s3 = inlined_call_operand.vmem [shape: bf16[512,8], index: 3, kind: output, shape index: {}]
  %s4 = sld [smem:[#allocation0]]
  $region30: #{_lambda_.24} parent=0
    _
  %s6 = ssub.s32 1, %s4
  %s7 = scalar_select 0, %s6, %s4
  // Predicated region
  $region2: #{_lambda_.24} parent=0 // pred_check
    _
  $region3: #{_lambda_.24} parent=0 // pred_check_branch
    %9 = sbr.rel (0) target = $region5
  $region4: #{_lambda_.24} parent=0 // pred_region
    _
  $region5: #{_lambda_.24} parent=0 // pred_fallthru
    _
  // Predicated region
  $region6: #{_lambda_.24} parent=0 // pred_check
    _
  $region7: #{_lambda_.24} parent=0 // pred_check_branch
    %11 = sbr.rel (0) target = $region9
  $region8: #{_lambda_.24} parent=0 // pred_region
    _
  $region9: #{_lambda_.24} parent=0 // pred_fallthru
    _
  // Predicated region
  $region10: #{_lambda_.24} parent=0 // pred_check
    _
  $region11: #{_lambda_.24} parent=0 // pred_check_branch
    %13 = sbr.rel (0) target = $region13
  $region12: #{_lambda_.24} parent=0 // pred_region
    _
  $region13: #{_lambda_.24} parent=0 // pred_fallthru
    _
  %p15 = scmp.eq.s32.totalorder 0, 0
  // Predicated region
  $region14: #{_lambda_.24} parent=0 // pred_check
    %p16 = pneg %p15
  $region15: #{_lambda_.24} parent=0 // pred_check_branch
    %18 = sbr.rel (%p16) target = $region17
  $region16: #{_lambda_.24} parent=0 // pred_region
    %vm19 = vcmask 64512
    %20 = vst.msk [vmem:[#allocation2] sm:$0xff] %vm19, 0.0
    %21 = vst.msk [vmem:[#allocation2 + $0x8] sm:$0xff] %vm19, 0.0
    %22 = vst.msk [vmem:[#allocation2 + $0x10] sm:$0xff] %vm19, 0.0
    %23 = vst.msk [vmem:[#allocation2 + $0x18] sm:$0xff] %vm19, 0.0
    %24 = vst.msk [vmem:[#allocation2 + $0x20] sm:$0xff] %vm19, 0.0
    %25 = vst.msk [vmem:[#allocation2 + $0x28] sm:$0xff] %vm19, 0.0
    %26 = vst.msk [vmem:[#allocation2 + $0x30] sm:$0xff] %vm19, 0.0
    %27 = vst.msk [vmem:[#allocation2 + $0x38] sm:$0xff] %vm19, 0.0
    %28 = vst.msk [vmem:[#allocation2 + $0x40] sm:$0xff] %vm19, 0.0
    %29 = vst.msk [vmem:[#allocation2 + $0x48] sm:$0xff] %vm19, 0.0
    %30 = vst.msk [vmem:[#allocation2 + $0x50] sm:$0xff] %vm19, 0.0
    %31 = vst.msk [vmem:[#allocation2 + $0x58] sm:$0xff] %vm19, 0.0
    %32 = vst.msk [vmem:[#allocation2 + $0x60] sm:$0xff] %vm19, 0.0
    %33 = vst.msk [vmem:[#allocation2 + $0x68] sm:$0xff] %vm19, 0.0
    %34 = vst.msk [vmem:[#allocation2 + $0x70] sm:$0xff] %vm19, 0.0
    %35 = vst.msk [vmem:[#allocation2 + $0x78] sm:$0xff] %vm19, 0.0
    %36 = vst.msk [vmem:[#allocation2 + $0x80] sm:$0xff] %vm19, 0.0
    %37 = vst.msk [vmem:[#allocation2 + $0x88] sm:$0xff] %vm19, 0.0
    %38 = vst.msk [vmem:[#allocation2 + $0x90] sm:$0xff] %vm19, 0.0
    %39 = vst.msk [vmem:[#allocation2 + $0x98] sm:$0xff] %vm19, 0.0
    %40 = vst.msk [vmem:[#allocation2 + $0xa0] sm:$0xff] %vm19, 0.0
    %41 = vst.msk [vmem:[#allocation2 + $0xa8] sm:$0xff] %vm19, 0.0
    %42 = vst.msk [vmem:[#allocation2 + $0xb0] sm:$0xff] %vm19, 0.0
    %43 = vst.msk [vmem:[#allocation2 + $0xb8] sm:$0xff] %vm19, 0.0
    %44 = vst.msk [vmem:[#allocation2 + $0xc0] sm:$0xff] %vm19, 0.0
    %45 = vst.msk [vmem:[#allocation2 + $0xc8] sm:$0xff] %vm19, 0.0
    %46 = vst.msk [vmem:[#allocation2 + $0xd0] sm:$0xff] %vm19, 0.0
    %47 = vst.msk [vmem:[#allocation2 + $0xd8] sm:$0xff] %vm19, 0.0
    %48 = vst.msk [vmem:[#allocation2 + $0xe0] sm:$0xff] %vm19, 0.0
    %49 = vst.msk [vmem:[#allocation2 + $0xe8] sm:$0xff] %vm19, 0.0
    %50 = vst.msk [vmem:[#allocation2 + $0xf0] sm:$0xff] %vm19, 0.0
    %51 = vst.msk [vmem:[#allocation2 + $0xf8] sm:$0xff] %vm19, 0.0
    %52 = vst.msk [vmem:[#allocation2 + $0x100] sm:$0xff] %vm19, 0.0
    %53 = vst.msk [vmem:[#allocation2 + $0x108] sm:$0xff] %vm19, 0.0
    %54 = vst.msk [vmem:[#allocation2 + $0x110] sm:$0xff] %vm19, 0.0
    %55 = vst.msk [vmem:[#allocation2 + $0x118] sm:$0xff] %vm19, 0.0
    %56 = vst.msk [vmem:[#allocation2 + $0x120] sm:$0xff] %vm19, 0.0
    %57 = vst.msk [vmem:[#allocation2 + $0x128] sm:$0xff] %vm19, 0.0
    %58 = vst.msk [vmem:[#allocation2 + $0x130] sm:$0xff] %vm19, 0.0
    %59 = vst.msk [vmem:[#allocation2 + $0x138] sm:$0xff] %vm19, 0.0
    %60 = vst.msk [vmem:[#allocation2 + $0x140] sm:$0xff] %vm19, 0.0
    %61 = vst.msk [vmem:[#allocation2 + $0x148] sm:$0xff] %vm19, 0.0
    %62 = vst.msk [vmem:[#allocation2 + $0x150] sm:$0xff] %vm19, 0.0
    %63 = vst.msk [vmem:[#allocation2 + $0x158] sm:$0xff] %vm19, 0.0
    %64 = vst.msk [vmem:[#allocation2 + $0x160] sm:$0xff] %vm19, 0.0
    %65 = vst.msk [vmem:[#allocation2 + $0x168] sm:$0xff] %vm19, 0.0
    %66 = vst.msk [vmem:[#allocation2 + $0x170] sm:$0xff] %vm19, 0.0
    %67 = vst.msk [vmem:[#allocation2 + $0x178] sm:$0xff] %vm19, 0.0
    %68 = vst.msk [vmem:[#allocation2 + $0x180] sm:$0xff] %vm19, 0.0
    %69 = vst.msk [vmem:[#allocation2 + $0x188] sm:$0xff] %vm19, 0.0
    %70 = vst.msk [vmem:[#allocation2 + $0x190] sm:$0xff] %vm19, 0.0
    %71 = vst.msk [vmem:[#allocation2 + $0x198] sm:$0xff] %vm19, 0.0
    %72 = vst.msk [vmem:[#allocation2 + $0x1a0] sm:$0xff] %vm19, 0.0
    %73 = vst.msk [vmem:[#allocation2 + $0x1a8] sm:$0xff] %vm19, 0.0
    %74 = vst.msk [vmem:[#allocation2 + $0x1b0] sm:$0xff] %vm19, 0.0
    %75 = vst.msk [vmem:[#allocation2 + $0x1b8] sm:$0xff] %vm19, 0.0
    %76 = vst.msk [vmem:[#allocation2 + $0x1c0] sm:$0xff] %vm19, 0.0
    %77 = vst.msk [vmem:[#allocation2 + $0x1c8] sm:$0xff] %vm19, 0.0
    %78 = vst.msk [vmem:[#allocation2 + $0x1d0] sm:$0xff] %vm19, 0.0
    %79 = vst.msk [vmem:[#allocation2 + $0x1d8] sm:$0xff] %vm19, 0.0
    %80 = vst.msk [vmem:[#allocation2 + $0x1e0] sm:$0xff] %vm19, 0.0
    %81 = vst.msk [vmem:[#allocation2 + $0x1e8] sm:$0xff] %vm19, 0.0
    %82 = vst.msk [vmem:[#allocation2 + $0x1f0] sm:$0xff] %vm19, 0.0
    %83 = vst.msk [vmem:[#allocation2 + $0x1f8] sm:$0xff] %vm19, 0.0
  $region17: #{_lambda_.24} parent=0 // pred_fallthru
    _
  %v84 = vld [vmem:[#allocation2] sm:$0xff]
  %v85 = vld [vmem:[#allocation2 + $0x8] sm:$0xff]
  %v86 = vld [vmem:[#allocation2 + $0x10] sm:$0xff]
  %v87 = vld [vmem:[#allocation2 + $0x18] sm:$0xff]
  %v88 = vld [vmem:[#allocation2 + $0x20] sm:$0xff]
  %v89 = vld [vmem:[#allocation2 + $0x28] sm:$0xff]
  %v90 = vld [vmem:[#allocation2 + $0x30] sm:$0xff]
  %v91 = vld [vmem:[#allocation2 + $0x38] sm:$0xff]
  %v92 = vld [vmem:[#allocation2 + $0x40] sm:$0xff]
  %v93 = vld [vmem:[#allocation2 + $0x48] sm:$0xff]
  %v94 = vld [vmem:[#allocation2 + $0x50] sm:$0xff]
  %v95 = vld [vmem:[#allocation2 + $0x58] sm:$0xff]
  %v96 = vld [vmem:[#allocation2 + $0x60] sm:$0xff]
  %v97 = vld [vmem:[#allocation2 + $0x68] sm:$0xff]
  %v98 = vld [vmem:[#allocation2 + $0x70] sm:$0xff]
  %v99 = vld [vmem:[#allocation2 + $0x78] sm:$0xff]
  %v100 = vld [vmem:[#allocation2 + $0x80] sm:$0xff]
  %v101 = vld [vmem:[#allocation2 + $0x88] sm:$0xff]
  %v102 = vld [vmem:[#allocation2 + $0x90] sm:$0xff]
  %v103 = vld [vmem:[#allocation2 + $0x98] sm:$0xff]
  %v104 = vld [vmem:[#allocation2 + $0xa0] sm:$0xff]
  %v105 = vld [vmem:[#allocation2 + $0xa8] sm:$0xff]
  %v106 = vld [vmem:[#allocation2 + $0xb0] sm:$0xff]
  %v107 = vld [vmem:[#allocation2 + $0xb8] sm:$0xff]
  %v108 = vld [vmem:[#allocation2 + $0xc0] sm:$0xff]
  %v109 = vld [vmem:[#allocation2 + $0xc8] sm:$0xff]
  %v110 = vld [vmem:[#allocation2 + $0xd0] sm:$0xff]
  %v111 = vld [vmem:[#allocation2 + $0xd8] sm:$0xff]
  %v112 = vld [vmem:[#allocation2 + $0xe0] sm:$0xff]
  %v113 = vld [vmem:[#allocation2 + $0xe8] sm:$0xff]
  %v114 = vld [vmem:[#allocation2 + $0xf0] sm:$0xff]
  %v115 = vld [vmem:[#allocation2 + $0xf8] sm:$0xff]
  %v116 = vld [vmem:[#allocation2 + $0x100] sm:$0xff]
  %v117 = vld [vmem:[#allocation2 + $0x108] sm:$0xff]
  %v118 = vld [vmem:[#allocation2 + $0x110] sm:$0xff]
  %v119 = vld [vmem:[#allocation2 + $0x118] sm:$0xff]
  %v120 = vld [vmem:[#allocation2 + $0x120] sm:$0xff]
  %v121 = vld [vmem:[#allocation2 + $0x128] sm:$0xff]
  %v122 = vld [vmem:[#allocation2 + $0x130] sm:$0xff]
  %v123 = vld [vmem:[#allocation2 + $0x138] sm:$0xff]
  %v124 = vld [vmem:[#allocation2 + $0x140] sm:$0xff]
  %v125 = vld [vmem:[#allocation2 + $0x148] sm:$0xff]
  %v126 = vld [vmem:[#allocation2 + $0x150] sm:$0xff]
  %v127 = vld [vmem:[#allocation2 + $0x158] sm:$0xff]
  %v128 = vld [vmem:[#allocation2 + $0x160] sm:$0xff]
  %v129 = vld [vmem:[#allocation2 + $0x168] sm:$0xff]
  %v130 = vld [vmem:[#allocation2 + $0x170] sm:$0xff]
  %v131 = vld [vmem:[#allocation2 + $0x178] sm:$0xff]
  %v132 = vld [vmem:[#allocation2 + $0x180] sm:$0xff]
  %v133 = vld [vmem:[#allocation2 + $0x188] sm:$0xff]
  %v134 = vld [vmem:[#allocation2 + $0x190] sm:$0xff]
  %v135 = vld [vmem:[#allocation2 + $0x198] sm:$0xff]
  %v136 = vld [vmem:[#allocation2 + $0x1a0] sm:$0xff]
  %v137 = vld [vmem:[#allocation2 + $0x1a8] sm:$0xff]
  %v138 = vld [vmem:[#allocation2 + $0x1b0] sm:$0xff]
  %v139 = vld [vmem:[#allocation2 + $0x1b8] sm:$0xff]
  %v140 = vld [vmem:[#allocation2 + $0x1c0] sm:$0xff]
  %v141 = vld [vmem:[#allocation2 + $0x1c8] sm:$0xff]
  %v142 = vld [vmem:[#allocation2 + $0x1d0] sm:$0xff]
  %v143 = vld [vmem:[#allocation2 + $0x1d8] sm:$0xff]
  %v144 = vld [vmem:[#allocation2 + $0x1e0] sm:$0xff]
  %v145 = vld [vmem:[#allocation2 + $0x1e8] sm:$0xff]
  %v146 = vld [vmem:[#allocation2 + $0x1f0] sm:$0xff]
  %v147 = vld [vmem:[#allocation2 + $0x1f8] sm:$0xff]
  %v148 = vld [vmem:[%s0] sm:$0xf]
  %v149 = vld [vmem:[%s0 + $0x4] sm:$0xf]
  %v150 = vld [vmem:[%s0 + $0x8] sm:$0xf]
  %v151 = vld [vmem:[%s0 + $0xc] sm:$0xf]
  %v152 = vld [vmem:[%s0 + $0x10] sm:$0xf]
  %v153 = vld [vmem:[%s0 + $0x14] sm:$0xf]
  %v154 = vld [vmem:[%s0 + $0x18] sm:$0xf]
  %v155 = vld [vmem:[%s0 + $0x1c] sm:$0xf]
  %v156 = vld [vmem:[%s0 + $0x20] sm:$0xf]
  %v157 = vld [vmem:[%s0 + $0x24] sm:$0xf]
  %v158 = vld [vmem:[%s0 + $0x28] sm:$0xf]
  %v159 = vld [vmem:[%s0 + $0x2c] sm:$0xf]
  %v160 = vld [vmem:[%s0 + $0x30] sm:$0xf]
  %v161 = vld [vmem:[%s0 + $0x34] sm:$0xf]
  %v162 = vld [vmem:[%s0 + $0x38] sm:$0xf]
  %v163 = vld [vmem:[%s0 + $0x3c] sm:$0xf]
  %v164 = vld [vmem:[%s0 + $0x40] sm:$0xf]
  %v165 = vld [vmem:[%s0 + $0x44] sm:$0xf]
  %v166 = vld [vmem:[%s0 + $0x48] sm:$0xf]
  %v167 = vld [vmem:[%s0 + $0x4c] sm:$0xf]
  %v168 = vld [vmem:[%s0 + $0x50] sm:$0xf]
  %v169 = vld [vmem:[%s0 + $0x54] sm:$0xf]
  %v170 = vld [vmem:[%s0 + $0x58] sm:$0xf]
  %v171 = vld [vmem:[%s0 + $0x5c] sm:$0xf]
  %v172 = vld [vmem:[%s0 + $0x60] sm:$0xf]
  %v173 = vld [vmem:[%s0 + $0x64] sm:$0xf]
  %v174 = vld [vmem:[%s0 + $0x68] sm:$0xf]
  %v175 = vld [vmem:[%s0 + $0x6c] sm:$0xf]
  %v176 = vld [vmem:[%s0 + $0x70] sm:$0xf]
  %v177 = vld [vmem:[%s0 + $0x74] sm:$0xf]
  %v178 = vld [vmem:[%s0 + $0x78] sm:$0xf]
  %v179 = vld [vmem:[%s0 + $0x7c] sm:$0xf]
  %v180 = vld [vmem:[%s0 + $0x80] sm:$0xf]
  %v181 = vld [vmem:[%s0 + $0x84] sm:$0xf]
  %v182 = vld [vmem:[%s0 + $0x88] sm:$0xf]
  %v183 = vld [vmem:[%s0 + $0x8c] sm:$0xf]
  %v184 = vld [vmem:[%s0 + $0x90] sm:$0xf]
  %v185 = vld [vmem:[%s0 + $0x94] sm:$0xf]
  %v186 = vld [vmem:[%s0 + $0x98] sm:$0xf]
  %v187 = vld [vmem:[%s0 + $0x9c] sm:$0xf]
  %v188 = vld [vmem:[%s0 + $0xa0] sm:$0xf]
  %v189 = vld [vmem:[%s0 + $0xa4] sm:$0xf]
  %v190 = vld [vmem:[%s0 + $0xa8] sm:$0xf]
  %v191 = vld [vmem:[%s0 + $0xac] sm:$0xf]
  %v192 = vld [vmem:[%s0 + $0xb0] sm:$0xf]
  %v193 = vld [vmem:[%s0 + $0xb4] sm:$0xf]
  %v194 = vld [vmem:[%s0 + $0xb8] sm:$0xf]
  %v195 = vld [vmem:[%s0 + $0xbc] sm:$0xf]
  %v196 = vld [vmem:[%s0 + $0xc0] sm:$0xf]
  %v197 = vld [vmem:[%s0 + $0xc4] sm:$0xf]
  %v198 = vld [vmem:[%s0 + $0xc8] sm:$0xf]
  %v199 = vld [vmem:[%s0 + $0xcc] sm:$0xf]
  %v200 = vld [vmem:[%s0 + $0xd0] sm:$0xf]
  %v201 = vld [vmem:[%s0 + $0xd4] sm:$0xf]
  %v202 = vld [vmem:[%s0 + $0xd8] sm:$0xf]
  %v203 = vld [vmem:[%s0 + $0xdc] sm:$0xf]
  %v204 = vld [vmem:[%s0 + $0xe0] sm:$0xf]
  %v205 = vld [vmem:[%s0 + $0xe4] sm:$0xf]
  %v206 = vld [vmem:[%s0 + $0xe8] sm:$0xf]
  %v207 = vld [vmem:[%s0 + $0xec] sm:$0xf]
  %v208 = vld [vmem:[%s0 + $0xf0] sm:$0xf]
  %v209 = vld [vmem:[%s0 + $0xf4] sm:$0xf]
  %v210 = vld [vmem:[%s0 + $0xf8] sm:$0xf]
  %v211 = vld [vmem:[%s0 + $0xfc] sm:$0xf]
  %v212 = vld [vmem:[%s1] sm:$0xf]
  %v213 = vld [vmem:[%s1 + $0x4] sm:$0xf]
  %v214 = vld [vmem:[%s1 + $0x8] sm:$0xf]
  %v215 = vld [vmem:[%s1 + $0xc] sm:$0xf]
  %v216 = vld [vmem:[%s1 + $0x10] sm:$0xf]
  %v217 = vld [vmem:[%s1 + $0x14] sm:$0xf]
  %v282 = vunpack.c.l.b16 %v148
  %v283 = vunpack.c.l.b16 %v149
  %v284 = vunpack.c.l.b16 %v150
  %v285 = vunpack.c.l.b16 %v151
  %v286 = vunpack.c.l.b16 %v152
  %v287 = vunpack.c.l.b16 %v153
  %v288 = vunpack.c.l.b16 %v154
  %v289 = vunpack.c.l.b16 %v155
  %v290 = vunpack.c.l.b16 %v156
  %v291 = vunpack.c.l.b16 %v157
  %v292 = vunpack.c.l.b16 %v158
  %v293 = vunpack.c.l.b16 %v159
  %v294 = vunpack.c.l.b16 %v160
  %v295 = vunpack.c.l.b16 %v161
  %v296 = vunpack.c.l.b16 %v162
  %v297 = vunpack.c.l.b16 %v163
  %v298 = vunpack.c.l.b16 %v164
  %v299 = vunpack.c.l.b16 %v165
  %v300 = vunpack.c.l.b16 %v166
  %v301 = vunpack.c.l.b16 %v167
  %v302 = vunpack.c.l.b16 %v168
  %v303 = vunpack.c.l.b16 %v169
  %v304 = vunpack.c.l.b16 %v170
  %v305 = vunpack.c.l.b16 %v171
  %v306 = vunpack.c.l.b16 %v172
  %v307 = vunpack.c.l.b16 %v173
  %v308 = vunpack.c.l.b16 %v174
  %v309 = vunpack.c.l.b16 %v175
  %v310 = vunpack.c.l.b16 %v176
  %v311 = vunpack.c.l.b16 %v177
  %v312 = vunpack.c.l.b16 %v178
  %v313 = vunpack.c.l.b16 %v179
  %v314 = vunpack.c.l.b16 %v180
  %v315 = vunpack.c.l.b16 %v181
  %v316 = vunpack.c.l.b16 %v182
  %v317 = vunpack.c.l.b16 %v183
  %v318 = vunpack.c.l.b16 %v184
  %v319 = vunpack.c.l.b16 %v185
  %v320 = vunpack.c.l.b16 %v186
  %v321 = vunpack.c.l.b16 %v187
  %v322 = vunpack.c.l.b16 %v188
  %v323 = vunpack.c.l.b16 %v189
  %v324 = vunpack.c.l.b16 %v190
  %v325 = vunpack.c.l.b16 %v191
  %v326 = vunpack.c.l.b16 %v192
  %v327 = vunpack.c.l.b16 %v193
  %v328 = vunpack.c.l.b16 %v194
  %v329 = vunpack.c.l.b16 %v195
  %v330 = vunpack.c.l.b16 %v196
  %v331 = vunpack.c.l.b16 %v197
  %v332 = vunpack.c.l.b16 %v198
  %v333 = vunpack.c.l.b16 %v199
  %v334 = vunpack.c.l.b16 %v200
  %v335 = vunpack.c.l.b16 %v201
  %v336 = vunpack.c.l.b16 %v202
  %v337 = vunpack.c.l.b16 %v203
  %v338 = vunpack.c.l.b16 %v204
  %v339 = vunpack.c.l.b16 %v205
  %v340 = vunpack.c.l.b16 %v206
  %v341 = vunpack.c.l.b16 %v207
  %v342 = vunpack.c.l.b16 %v208
  %v343 = vunpack.c.l.b16 %v209
  %v344 = vunpack.c.l.b16 %v210
  %v345 = vunpack.c.l.b16 %v211
  %v346 = vpack.c.b16 %v283, %v282
  %v347 = vpack.c.b16 %v285, %v284
  %v348 = vpack.c.b16 %v287, %v286
  %v349 = vpack.c.b16 %v289, %v288
  %v350 = vpack.c.b16 %v291, %v290
  %v351 = vpack.c.b16 %v293, %v292
  %v352 = vpack.c.b16 %v295, %v294
  %v353 = vpack.c.b16 %v297, %v296
  %v354 = vpack.c.b16 %v299, %v298
  %v355 = vpack.c.b16 %v301, %v300
  %v356 = vpack.c.b16 %v303, %v302
  %v357 = vpack.c.b16 %v305, %v304
  %v358 = vpack.c.b16 %v307, %v306
  %v359 = vpack.c.b16 %v309, %v308
  %v360 = vpack.c.b16 %v311, %v310
  %v361 = vpack.c.b16 %v313, %v312
  %v362 = vpack.c.b16 %v315, %v314
  %v363 = vpack.c.b16 %v317, %v316
  %v364 = vpack.c.b16 %v319, %v318
  %v365 = vpack.c.b16 %v321, %v320
  %v366 = vpack.c.b16 %v323, %v322
  %v367 = vpack.c.b16 %v325, %v324
  %v368 = vpack.c.b16 %v327, %v326
  %v369 = vpack.c.b16 %v329, %v328
  %v370 = vpack.c.b16 %v331, %v330
  %v371 = vpack.c.b16 %v333, %v332
  %v372 = vpack.c.b16 %v335, %v334
  %v373 = vpack.c.b16 %v337, %v336
  %v374 = vpack.c.b16 %v339, %v338
  %v375 = vpack.c.b16 %v341, %v340
  %v376 = vpack.c.b16 %v343, %v342
  %v377 = vpack.c.b16 %v345, %v344
  %v384 = vunpack.c.l.b16 %v212
  %v385 = vunpack.c.l.b16 %v213
  %v386 = vunpack.c.l.b16 %v214
  %v387 = vunpack.c.l.b16 %v215
  %v388 = vunpack.c.l.b16 %v216
  %v389 = vunpack.c.l.b16 %v217
  %v390 = vpack.c.b16 %v385, %v384
  %v391 = vpack.c.b16 %v387, %v386
  %v392 = vpack.c.b16 %v389, %v388
  %vm396 = vcmask 392192
  %v398 = vsel %vm396, %v346, 0
  %v401 = vsel %vm396, %v347, 0
  %v404 = vsel %vm396, %v348, 0
  %v407 = vsel %vm396, %v349, 0
  %v410 = vsel %vm396, %v350, 0
  %v413 = vsel %vm396, %v351, 0
  %v416 = vsel %vm396, %v352, 0
  %v419 = vsel %vm396, %v353, 0
  %v422 = vsel %vm396, %v354, 0
  %v425 = vsel %vm396, %v355, 0
  %v428 = vsel %vm396, %v356, 0
  %v431 = vsel %vm396, %v357, 0
  %v434 = vsel %vm396, %v358, 0
  %v437 = vsel %vm396, %v359, 0
  %v440 = vsel %vm396, %v360, 0
  %v443 = vsel %vm396, %v361, 0
  %v446 = vsel %vm396, %v362, 0
  %v449 = vsel %vm396, %v363, 0
  %v452 = vsel %vm396, %v364, 0
  %v455 = vsel %vm396, %v365, 0
  %v458 = vsel %vm396, %v366, 0
  %v461 = vsel %vm396, %v367, 0
  %v464 = vsel %vm396, %v368, 0
  %v467 = vsel %vm396, %v369, 0
  %v470 = vsel %vm396, %v370, 0
  %v473 = vsel %vm396, %v371, 0
  %v476 = vsel %vm396, %v372, 0
  %v479 = vsel %vm396, %v373, 0
  %v482 = vsel %vm396, %v374, 0
  %v485 = vsel %vm396, %v375, 0
  %v488 = vsel %vm396, %v376, 0
  %v491 = vsel %vm396, %v377, 0
  %493 = vmatprep.subr.bf16.mxu0 0
  %494 = vmatpush1.bf16.msra.mxu0 %v390
  %495 = vmatprep.subr.bf16.mxu0 0
  %496 = vmatpush1.bf16.msra.mxu0 %v391
  %497 = vmatprep.subr.bf16.mxu0 0
  %498 = vmatpush1.bf16.msra.mxu0 %v392
  %499 = vmatprep.subr.bf16.mxu0 0
  %500 = vmatpush1.bf16.msra.mxu0 0
  %501 = vmatprep.subr.bf16.mxu0 0
  %502 = vmatpush1.bf16.msra.mxu0 0
  %503 = vmatprep.subr.bf16.mxu0 0
  %504 = vmatpush1.bf16.msra.mxu0 0
  %505 = vmatprep.subr.bf16.mxu0 0
  %506 = vmatpush1.bf16.msra.mxu0 0
  %507 = vmatprep.subr.bf16.mxu0 0
  %508 = vmatpush1.bf16.msra.mxu0 0
  %509 = vmatprep.subr.bf16.mxu0 0
  %510 = vmatpush1.bf16.msra.mxu0 0
  %511 = vmatprep.subr.bf16.mxu0 0
  %512 = vmatpush1.bf16.msra.mxu0 0
  %513 = vmatprep.subr.bf16.mxu0 0
  %514 = vmatpush1.bf16.msra.mxu0 0
  %515 = vmatprep.subr.bf16.mxu0 0
  %516 = vmatpush1.bf16.msra.mxu0 0
  %517 = vmatprep.subr.bf16.mxu0 0
  %518 = vmatpush1.bf16.msra.mxu0 0
  %519 = vmatprep.subr.bf16.mxu0 0
  %520 = vmatpush1.bf16.msra.mxu0 0
  %521 = vmatprep.subr.bf16.mxu0 0
  %522 = vmatpush1.bf16.msra.mxu0 0
  %523 = vmatprep.subr.bf16.mxu0 0
  %524 = vmatpush1.bf16.msra.mxu0 0
  %525 = vmatprep.mubr.bf16.mxu0 0
  %526 = vmatmul.mubr.bf16.gmra.mrb[0].mxu0 %v398
  %v527 = vpop.f32.mrb[0].mxu0
  %v528 = vadd.f32 0.0, %v527
  %v529 = vpop.f32.mrb[0].mxu0
  %v530 = vpop.f32.mrb[0].mxu0
  %v531 = vadd.f32 0.0, %v530
  %v532 = vpop.f32.mrb[0].mxu0
  %533 = vmatprep.mubr.bf16.mxu0 0
  %534 = vmatmul.mubr.bf16.gmra.mrb[0].mxu0 %v401
  %v535 = vpop.f32.mrb[0].mxu0
  %v536 = vadd.f32 0.0, %v535
  %v537 = vpop.f32.mrb[0].mxu0
  %v538 = vpop.f32.mrb[0].mxu0
  %v539 = vadd.f32 0.0, %v538
  %v540 = vpop.f32.mrb[0].mxu0
  %541 = vmatprep.mubr.bf16.mxu0 0
  %542 = vmatmul.mubr.bf16.gmra.mrb[0].mxu0 %v404
  %v543 = vpop.f32.mrb[0].mxu0
  %v544 = vadd.f32 0.0, %v543
  %v545 = vpop.f32.mrb[0].mxu0
  %v546 = vpop.f32.mrb[0].mxu0
  %v547 = vadd.f32 0.0, %v546
  %v548 = vpop.f32.mrb[0].mxu0
  %549 = vmatprep.mubr.bf16.mxu0 0
  %550 = vmatmul.mubr.bf16.gmra.mrb[0].mxu0 %v407
  %v551 = vpop.f32.mrb[0].mxu0
  %v552 = vadd.f32 0.0, %v551
  %v553 = vpop.f32.mrb[0].mxu0
  %v554 = vpop.f32.mrb[0].mxu0
  %v555 = vadd.f32 0.0, %v554
  %v556 = vpop.f32.mrb[0].mxu0
  %557 = vmatprep.mubr.bf16.mxu0 0
  %558 = vmatmul.mubr.bf16.gmra.mrb[0].mxu0 %v410
  %v559 = vpop.f32.mrb[0].mxu0
  %v560 = vadd.f32 0.0, %v559
  %v561 = vpop.f32.mrb[0].mxu0
  %v562 = vpop.f32.mrb[0].mxu0
  %v563 = vadd.f32 0.0, %v562
  %v564 = vpop.f32.mrb[0].mxu0
  %565 = vmatprep.mubr.bf16.mxu0 0
  %566 = vmatmul.mubr.bf16.gmra.mrb[0].mxu0 %v413
  %v567 = vpop.f32.mrb[0].mxu0
  %v568 = vadd.f32 0.0, %v567
  %v569 = vpop.f32.mrb[0].mxu0
  %v570 = vpop.f32.mrb[0].mxu0
  %v571 = vadd.f32 0.0, %v570
  %v572 = vpop.f32.mrb[0].mxu0
  %573 = vmatprep.mubr.bf16.mxu0 0
  %574 = vmatmul.mubr.bf16.gmra.mrb[0].mxu0 %v416
  %v575 = vpop.f32.mrb[0].mxu0
  %v576 = vadd.f32 0.0, %v575
  %v577 = vpop.f32.mrb[0].mxu0
  %v578 = vpop.f32.mrb[0].mxu0
  %v579 = vadd.f32 0.0, %v578
  %v580 = vpop.f32.mrb[0].mxu0
  %581 = vmatprep.mubr.bf16.mxu0 0
  %582 = vmatmul.mubr.bf16.gmra.mrb[0].mxu0 %v419
  %v583 = vpop.f32.mrb[0].mxu0
  %v584 = vadd.f32 0.0, %v583
  %v585 = vpop.f32.mrb[0].mxu0
  %v586 = vpop.f32.mrb[0].mxu0
  %v587 = vadd.f32 0.0, %v586
  %v588 = vpop.f32.mrb[0].mxu0
  %589 = vmatprep.mubr.bf16.mxu0 0
  %590 = vmatmul.mubr.bf16.gmra.mrb[0].mxu0 %v422
  %v591 = vpop.f32.mrb[0].mxu0
  %v592 = vadd.f32 0.0, %v591
  %v593 = vpop.f32.mrb[0].mxu0
  %v594 = vpop.f32.mrb[0].mxu0
  %v595 = vadd.f32 0.0, %v594
  %v596 = vpop.f32.mrb[0].mxu0
  %597 = vmatprep.mubr.bf16.mxu0 0
  %598 = vmatmul.mubr.bf16.gmra.mrb[0].mxu0 %v425
  %v599 = vpop.f32.mrb[0].mxu0
  %v600 = vadd.f32 0.0, %v599
  %v601 = vpop.f32.mrb[0].mxu0
  %v602 = vpop.f32.mrb[0].mxu0
  %v603 = vadd.f32 0.0, %v602
  %v604 = vpop.f32.mrb[0].mxu0
  %605 = vmatprep.mubr.bf16.mxu0 0
  %606 = vmatmul.mubr.bf16.gmra.mrb[0].mxu0 %v428
  %v607 = vpop.f32.mrb[0].mxu0
  %v608 = vadd.f32 0.0, %v607
  %v609 = vpop.f32.mrb[0].mxu0
  %v610 = vpop.f32.mrb[0].mxu0
  %v611 = vadd.f32 0.0, %v610
  %v612 = vpop.f32.mrb[0].mxu0
  %613 = vmatprep.mubr.bf16.mxu0 0
  %614 = vmatmul.mubr.bf16.gmra.mrb[0].mxu0 %v431
  %v615 = vpop.f32.mrb[0].mxu0
  %v616 = vadd.f32 0.0, %v615
  %v617 = vpop.f32.mrb[0].mxu0
  %v618 = vpop.f32.mrb[0].mxu0
  %v619 = vadd.f32 0.0, %v618
  %v620 = vpop.f32.mrb[0].mxu0
  %621 = vmatprep.mubr.bf16.mxu0 0
  %622 = vmatmul.mubr.bf16.gmra.mrb[0].mxu0 %v434
  %v623 = vpop.f32.mrb[0].mxu0
  %v624 = vadd.f32 0.0, %v623
  %v625 = vpop.f32.mrb[0].mxu0
  %v626 = vpop.f32.mrb[0].mxu0
  %v627 = vadd.f32 0.0, %v626
  %v628 = vpop.f32.mrb[0].mxu0
  %629 = vmatprep.mubr.bf16.mxu0 0
  %630 = vmatmul.mubr.bf16.gmra.mrb[0].mxu0 %v437
  %v631 = vpop.f32.mrb[0].mxu0
  %v632 = vadd.f32 0.0, %v631
  %v633 = vpop.f32.mrb[0].mxu0
  %v634 = vpop.f32.mrb[0].mxu0
  %v635 = vadd.f32 0.0, %v634
  %v636 = vpop.f32.mrb[0].mxu0
  %637 = vmatprep.mubr.bf16.mxu0 0
  %638 = vmatmul.mubr.bf16.gmra.mrb[0].mxu0 %v440
  %v639 = vpop.f32.mrb[0].mxu0
  %v640 = vadd.f32 0.0, %v639
  %v641 = vpop.f32.mrb[0].mxu0
  %v642 = vpop.f32.mrb[0].mxu0
  %v643 = vadd.f32 0.0, %v642
  %v644 = vpop.f32.mrb[0].mxu0
  %645 = vmatprep.mubr.bf16.mxu0 0
  %646 = vmatmul.mubr.bf16.gmra.mrb[0].mxu0 %v443
  %v647 = vpop.f32.mrb[0].mxu0
  %v648 = vadd.f32 0.0, %v647
  %v649 = vpop.f32.mrb[0].mxu0
  %v650 = vpop.f32.mrb[0].mxu0
  %v651 = vadd.f32 0.0, %v650
  %v652 = vpop.f32.mrb[0].mxu0
  %653 = vmatprep.mubr.bf16.mxu0 0
  %654 = vmatmul.mubr.bf16.gmra.mrb[0].mxu0 %v446
  %v655 = vpop.f32.mrb[0].mxu0
  %v656 = vadd.f32 0.0, %v655
  %v657 = vpop.f32.mrb[0].mxu0
  %v658 = vpop.f32.mrb[0].mxu0
  %v659 = vadd.f32 0.0, %v658
  %v660 = vpop.f32.mrb[0].mxu0
  %661 = vmatprep.mubr.bf16.mxu0 0
  %662 = vmatmul.mubr.bf16.gmra.mrb[0].mxu0 %v449
  %v663 = vpop.f32.mrb[0].mxu0
  %v664 = vadd.f32 0.0, %v663
  %v665 = vpop.f32.mrb[0].mxu0
  %v666 = vpop.f32.mrb[0].mxu0
  %v667 = vadd.f32 0.0, %v666
  %v668 = vpop.f32.mrb[0].mxu0
  %669 = vmatprep.mubr.bf16.mxu0 0
  %670 = vmatmul.mubr.bf16.gmra.mrb[0].mxu0 %v452
  %v671 = vpop.f32.mrb[0].mxu0
  %v672 = vadd.f32 0.0, %v671
  %v673 = vpop.f32.mrb[0].mxu0
  %v674 = vpop.f32.mrb[0].mxu0
  %v675 = vadd.f32 0.0, %v674
  %v676 = vpop.f32.mrb[0].mxu0
  %677 = vmatprep.mubr.bf16.mxu0 0
  %678 = vmatmul.mubr.bf16.gmra.mrb[0].mxu0 %v455
  %v679 = vpop.f32.mrb[0].mxu0
  %v680 = vadd.f32 0.0, %v679
  %v681 = vpop.f32.mrb[0].mxu0
  %v682 = vpop.f32.mrb[0].mxu0
  %v683 = vadd.f32 0.0, %v682
  %v684 = vpop.f32.mrb[0].mxu0
  %685 = vmatprep.mubr.bf16.mxu0 0
  %686 = vmatmul.mubr.bf16.gmra.mrb[0].mxu0 %v458
  %v687 = vpop.f32.mrb[0].mxu0
  %v688 = vadd.f32 0.0, %v687
  %v689 = vpop.f32.mrb[0].mxu0
  %v690 = vpop.f32.mrb[0].mxu0
  %v691 = vadd.f32 0.0, %v690
  %v692 = vpop.f32.mrb[0].mxu0
  %693 = vmatprep.mubr.bf16.mxu0 0
  %694 = vmatmul.mubr.bf16.gmra.mrb[0].mxu0 %v461
  %v695 = vpop.f32.mrb[0].mxu0
  %v696 = vadd.f32 0.0, %v695
  %v697 = vpop.f32.mrb[0].mxu0
  %v698 = vpop.f32.mrb[0].mxu0
  %v699 = vadd.f32 0.0, %v698
  %v700 = vpop.f32.mrb[0].mxu0
  %701 = vmatprep.mubr.bf16.mxu0 0
  %702 = vmatmul.mubr.bf16.gmra.mrb[0].mxu0 %v464
  %v703 = vpop.f32.mrb[0].mxu0
  %v704 = vadd.f32 0.0, %v703
  %v705 = vpop.f32.mrb[0].mxu0
  %v706 = vpop.f32.mrb[0].mxu0
  %v707 = vadd.f32 0.0, %v706
  %v708 = vpop.f32.mrb[0].mxu0
  %709 = vmatprep.mubr.bf16.mxu0 0
  %710 = vmatmul.mubr.bf16.gmra.mrb[0].mxu0 %v467
  %v711 = vpop.f32.mrb[0].mxu0
  %v712 = vadd.f32 0.0, %v711
  %v713 = vpop.f32.mrb[0].mxu0
  %v714 = vpop.f32.mrb[0].mxu0
  %v715 = vadd.f32 0.0, %v714
  %v716 = vpop.f32.mrb[0].mxu0
  %717 = vmatprep.mubr.bf16.mxu0 0
  %718 = vmatmul.mubr.bf16.gmra.mrb[0].mxu0 %v470
  %v719 = vpop.f32.mrb[0].mxu0
  %v720 = vadd.f32 0.0, %v719
  %v721 = vpop.f32.mrb[0].mxu0
  %v722 = vpop.f32.mrb[0].mxu0
  %v723 = vadd.f32 0.0, %v722
  %v724 = vpop.f32.mrb[0].mxu0
  %725 = vmatprep.mubr.bf16.mxu0 0
  %726 = vmatmul.mubr.bf16.gmra.mrb[0].mxu0 %v473
  %v727 = vpop.f32.mrb[0].mxu0
  %v728 = vadd.f32 0.0, %v727
  %v729 = vpop.f32.mrb[0].mxu0
  %v730 = vpop.f32.mrb[0].mxu0
  %v731 = vadd.f32 0.0, %v730
  %v732 = vpop.f32.mrb[0].mxu0
  %733 = vmatprep.mubr.bf16.mxu0 0
  %734 = vmatmul.mubr.bf16.gmra.mrb[0].mxu0 %v476
  %v735 = vpop.f32.mrb[0].mxu0
  %v736 = vadd.f32 0.0, %v735
  %v737 = vpop.f32.mrb[0].mxu0
  %v738 = vpop.f32.mrb[0].mxu0
  %v739 = vadd.f32 0.0, %v738
  %v740 = vpop.f32.mrb[0].mxu0
  %741 = vmatprep.mubr.bf16.mxu0 0
  %742 = vmatmul.mubr.bf16.gmra.mrb[0].mxu0 %v479
  %v743 = vpop.f32.mrb[0].mxu0
  %v744 = vadd.f32 0.0, %v743
  %v745 = vpop.f32.mrb[0].mxu0
  %v746 = vpop.f32.mrb[0].mxu0
  %v747 = vadd.f32 0.0, %v746
  %v748 = vpop.f32.mrb[0].mxu0
  %749 = vmatprep.mubr.bf16.mxu0 0
  %750 = vmatmul.mubr.bf16.gmra.mrb[0].mxu0 %v482
  %v751 = vpop.f32.mrb[0].mxu0
  %v752 = vadd.f32 0.0, %v751
  %v753 = vpop.f32.mrb[0].mxu0
  %v754 = vpop.f32.mrb[0].mxu0
  %v755 = vadd.f32 0.0, %v754
  %v756 = vpop.f32.mrb[0].mxu0
  %757 = vmatprep.mubr.bf16.mxu0 0
  %758 = vmatmul.mubr.bf16.gmra.mrb[0].mxu0 %v485
  %v759 = vpop.f32.mrb[0].mxu0
  %v760 = vadd.f32 0.0, %v759
  %v761 = vpop.f32.mrb[0].mxu0
  %v762 = vpop.f32.mrb[0].mxu0
  %v763 = vadd.f32 0.0, %v762
  %v764 = vpop.f32.mrb[0].mxu0
  %765 = vmatprep.mubr.bf16.mxu0 0
  %766 = vmatmul.mubr.bf16.gmra.mrb[0].mxu0 %v488
  %v767 = vpop.f32.mrb[0].mxu0
  %v768 = vadd.f32 0.0, %v767
  %v769 = vpop.f32.mrb[0].mxu0
  %v770 = vpop.f32.mrb[0].mxu0
  %v771 = vadd.f32 0.0, %v770
  %v772 = vpop.f32.mrb[0].mxu0
  %773 = vmatprep.mubr.bf16.mxu0 0
  %774 = vmatmul.mubr.bf16.gmra.mrb[0].mxu0 %v491
  %v775 = vpop.f32.mrb[0].mxu0
  %v776 = vadd.f32 0.0, %v775
  %v777 = vpop.f32.mrb[0].mxu0
  %v778 = vpop.f32.mrb[0].mxu0
  %v779 = vadd.f32 0.0, %v778
  %v780 = vpop.f32.mrb[0].mxu0
  %781 = vdwg.mxu0
  %v782 = vadd.f32 %v84, %v528
  %v783 = vadd.f32 %v85, %v531
  %v784 = vadd.f32 %v86, %v536
  %v785 = vadd.f32 %v87, %v539
  %v786 = vadd.f32 %v88, %v544
  %v787 = vadd.f32 %v89, %v547
  %v788 = vadd.f32 %v90, %v552
  %v789 = vadd.f32 %v91, %v555
  %v790 = vadd.f32 %v92, %v560
  %v791 = vadd.f32 %v93, %v563
  %v792 = vadd.f32 %v94, %v568
  %v793 = vadd.f32 %v95, %v571
  %v794 = vadd.f32 %v96, %v576
  %v795 = vadd.f32 %v97, %v579
  %v796 = vadd.f32 %v98, %v584
  %v797 = vadd.f32 %v99, %v587
  %v798 = vadd.f32 %v100, %v592
  %v799 = vadd.f32 %v101, %v595
  %v800 = vadd.f32 %v102, %v600
  %v801 = vadd.f32 %v103, %v603
  %v802 = vadd.f32 %v104, %v608
  %v803 = vadd.f32 %v105, %v611
  %v804 = vadd.f32 %v106, %v616
  %v805 = vadd.f32 %v107, %v619
  %v806 = vadd.f32 %v108, %v624
  %v807 = vadd.f32 %v109, %v627
  %v808 = vadd.f32 %v110, %v632
  %v809 = vadd.f32 %v111, %v635
  %v810 = vadd.f32 %v112, %v640
  %v811 = vadd.f32 %v113, %v643
  %v812 = vadd.f32 %v114, %v648
  %v813 = vadd.f32 %v115, %v651
  %v814 = vadd.f32 %v116, %v656
  %v815 = vadd.f32 %v117, %v659
  %v816 = vadd.f32 %v118, %v664
  %v817 = vadd.f32 %v119, %v667
  %v818 = vadd.f32 %v120, %v672
  %v819 = vadd.f32 %v121, %v675
  %v820 = vadd.f32 %v122, %v680
  %v821 = vadd.f32 %v123, %v683
  %v822 = vadd.f32 %v124, %v688
  %v823 = vadd.f32 %v125, %v691
  %v824 = vadd.f32 %v126, %v696
  %v825 = vadd.f32 %v127, %v699
  %v826 = vadd.f32 %v128, %v704
  %v827 = vadd.f32 %v129, %v707
  %v828 = vadd.f32 %v130, %v712
  %v829 = vadd.f32 %v131, %v715
  %v830 = vadd.f32 %v132, %v720
  %v831 = vadd.f32 %v133, %v723
  %v832 = vadd.f32 %v134, %v728
  %v833 = vadd.f32 %v135, %v731
  %v834 = vadd.f32 %v136, %v736
  %v835 = vadd.f32 %v137, %v739
  %v836 = vadd.f32 %v138, %v744
  %v837 = vadd.f32 %v139, %v747
  %v838 = vadd.f32 %v140, %v752
  %v839 = vadd.f32 %v141, %v755
  %v840 = vadd.f32 %v142, %v760
  %v841 = vadd.f32 %v143, %v763
  %v842 = vadd.f32 %v144, %v768
  %v843 = vadd.f32 %v145, %v771
  %v844 = vadd.f32 %v146, %v776
  %v845 = vadd.f32 %v147, %v779
  %vm846 = vcmask 64512
  %847 = vst.msk [vmem:[#allocation2] sm:$0xff] %vm846, %v782
  %848 = vst.msk [vmem:[#allocation2 + $0x8] sm:$0xff] %vm846, %v783
  %849 = vst.msk [vmem:[#allocation2 + $0x10] sm:$0xff] %vm846, %v784
  %850 = vst.msk [vmem:[#allocation2 + $0x18] sm:$0xff] %vm846, %v785
  %851 = vst.msk [vmem:[#allocation2 + $0x20] sm:$0xff] %vm846, %v786
  %852 = vst.msk [vmem:[#allocation2 + $0x28] sm:$0xff] %vm846, %v787
  %853 = vst.msk [vmem:[#allocation2 + $0x30] sm:$0xff] %vm846, %v788
  %854 = vst.msk [vmem:[#allocation2 + $0x38] sm:$0xff] %vm846, %v789
  %855 = vst.msk [vmem:[#allocation2 + $0x40] sm:$0xff] %vm846, %v790
  %856 = vst.msk [vmem:[#allocation2 + $0x48] sm:$0xff] %vm846, %v791
  %857 = vst.msk [vmem:[#allocation2 + $0x50] sm:$0xff] %vm846, %v792
  %858 = vst.msk [vmem:[#allocation2 + $0x58] sm:$0xff] %vm846, %v793
  %859 = vst.msk [vmem:[#allocation2 + $0x60] sm:$0xff] %vm846, %v794
  %860 = vst.msk [vmem:[#allocation2 + $0x68] sm:$0xff] %vm846, %v795
  %861 = vst.msk [vmem:[#allocation2 + $0x70] sm:$0xff] %vm846, %v796
  %862 = vst.msk [vmem:[#allocation2 + $0x78] sm:$0xff] %vm846, %v797
  %863 = vst.msk [vmem:[#allocation2 + $0x80] sm:$0xff] %vm846, %v798
  %864 = vst.msk [vmem:[#allocation2 + $0x88] sm:$0xff] %vm846, %v799
  %865 = vst.msk [vmem:[#allocation2 + $0x90] sm:$0xff] %vm846, %v800
  %866 = vst.msk [vmem:[#allocation2 + $0x98] sm:$0xff] %vm846, %v801
  %867 = vst.msk [vmem:[#allocation2 + $0xa0] sm:$0xff] %vm846, %v802
  %868 = vst.msk [vmem:[#allocation2 + $0xa8] sm:$0xff] %vm846, %v803
  %869 = vst.msk [vmem:[#allocation2 + $0xb0] sm:$0xff] %vm846, %v804
  %870 = vst.msk [vmem:[#allocation2 + $0xb8] sm:$0xff] %vm846, %v805
  %871 = vst.msk [vmem:[#allocation2 + $0xc0] sm:$0xff] %vm846, %v806
  %872 = vst.msk [vmem:[#allocation2 + $0xc8] sm:$0xff] %vm846, %v807
  %873 = vst.msk [vmem:[#allocation2 + $0xd0] sm:$0xff] %vm846, %v808
  %874 = vst.msk [vmem:[#allocation2 + $0xd8] sm:$0xff] %vm846, %v809
  %875 = vst.msk [vmem:[#allocation2 + $0xe0] sm:$0xff] %vm846, %v810
  %876 = vst.msk [vmem:[#allocation2 + $0xe8] sm:$0xff] %vm846, %v811
  %877 = vst.msk [vmem:[#allocation2 + $0xf0] sm:$0xff] %vm846, %v812
  %878 = vst.msk [vmem:[#allocation2 + $0xf8] sm:$0xff] %vm846, %v813
  %879 = vst.msk [vmem:[#allocation2 + $0x100] sm:$0xff] %vm846, %v814
  %880 = vst.msk [vmem:[#allocation2 + $0x108] sm:$0xff] %vm846, %v815
  %881 = vst.msk [vmem:[#allocation2 + $0x110] sm:$0xff] %vm846, %v816
  %882 = vst.msk [vmem:[#allocation2 + $0x118] sm:$0xff] %vm846, %v817
  %883 = vst.msk [vmem:[#allocation2 + $0x120] sm:$0xff] %vm846, %v818
  %884 = vst.msk [vmem:[#allocation2 + $0x128] sm:$0xff] %vm846, %v819
  %885 = vst.msk [vmem:[#allocation2 + $0x130] sm:$0xff] %vm846, %v820
  %886 = vst.msk [vmem:[#allocation2 + $0x138] sm:$0xff] %vm846, %v821
  %887 = vst.msk [vmem:[#allocation2 + $0x140] sm:$0xff] %vm846, %v822
  %888 = vst.msk [vmem:[#allocation2 + $0x148] sm:$0xff] %vm846, %v823
  %889 = vst.msk [vmem:[#allocation2 + $0x150] sm:$0xff] %vm846, %v824
  %890 = vst.msk [vmem:[#allocation2 + $0x158] sm:$0xff] %vm846, %v825
  %891 = vst.msk [vmem:[#allocation2 + $0x160] sm:$0xff] %vm846, %v826
  %892 = vst.msk [vmem:[#allocation2 + $0x168] sm:$0xff] %vm846, %v827
  %893 = vst.msk [vmem:[#allocation2 + $0x170] sm:$0xff] %vm846, %v828
  %894 = vst.msk [vmem:[#allocation2 + $0x178] sm:$0xff] %vm846, %v829
  %895 = vst.msk [vmem:[#allocation2 + $0x180] sm:$0xff] %vm846, %v830
  %896 = vst.msk [vmem:[#allocation2 + $0x188] sm:$0xff] %vm846, %v831
  %897 = vst.msk [vmem:[#allocation2 + $0x190] sm:$0xff] %vm846, %v832
  %898 = vst.msk [vmem:[#allocation2 + $0x198] sm:$0xff] %vm846, %v833
  %899 = vst.msk [vmem:[#allocation2 + $0x1a0] sm:$0xff] %vm846, %v834
  %900 = vst.msk [vmem:[#allocation2 + $0x1a8] sm:$0xff] %vm846, %v835
  %901 = vst.msk [vmem:[#allocation2 + $0x1b0] sm:$0xff] %vm846, %v836
  %902 = vst.msk [vmem:[#allocation2 + $0x1b8] sm:$0xff] %vm846, %v837
  %903 = vst.msk [vmem:[#allocation2 + $0x1c0] sm:$0xff] %vm846, %v838
  %904 = vst.msk [vmem:[#allocation2 + $0x1c8] sm:$0xff] %vm846, %v839
  %905 = vst.msk [vmem:[#allocation2 + $0x1d0] sm:$0xff] %vm846, %v840
  %906 = vst.msk [vmem:[#allocation2 + $0x1d8] sm:$0xff] %vm846, %v841
  %907 = vst.msk [vmem:[#allocation2 + $0x1e0] sm:$0xff] %vm846, %v842
  %908 = vst.msk [vmem:[#allocation2 + $0x1e8] sm:$0xff] %vm846, %v843
  %909 = vst.msk [vmem:[#allocation2 + $0x1f0] sm:$0xff] %vm846, %v844
  %910 = vst.msk [vmem:[#allocation2 + $0x1f8] sm:$0xff] %vm846, %v845
  // Predicated region
  $region18: #{_lambda_.24} parent=0 // pred_check
    %p911 = pneg %p15
  $region19: #{_lambda_.24} parent=0 // pred_check_branch
    %913 = sbr.rel (%p911) target = $region21
  $region20: #{_lambda_.24} parent=0 // pred_region
    %v914 = vld [vmem:[#allocation2] sm:$0xff]
    %v915 = vld [vmem:[#allocation2 + $0x8] sm:$0xff]
    %v916 = vld [vmem:[#allocation2 + $0x10] sm:$0xff]
    %v917 = vld [vmem:[#allocation2 + $0x18] sm:$0xff]
    %v918 = vld [vmem:[#allocation2 + $0x20] sm:$0xff]
    %v919 = vld [vmem:[#allocation2 + $0x28] sm:$0xff]
    %v920 = vld [vmem:[#allocation2 + $0x30] sm:$0xff]
    %v921 = vld [vmem:[#allocation2 + $0x38] sm:$0xff]
    %v922 = vld [vmem:[#allocation2 + $0x40] sm:$0xff]
    %v923 = vld [vmem:[#allocation2 + $0x48] sm:$0xff]
    %v924 = vld [vmem:[#allocation2 + $0x50] sm:$0xff]
    %v925 = vld [vmem:[#allocation2 + $0x58] sm:$0xff]
    %v926 = vld [vmem:[#allocation2 + $0x60] sm:$0xff]
    %v927 = vld [vmem:[#allocation2 + $0x68] sm:$0xff]
    %v928 = vld [vmem:[#allocation2 + $0x70] sm:$0xff]
    %v929 = vld [vmem:[#allocation2 + $0x78] sm:$0xff]
    %v930 = vld [vmem:[#allocation2 + $0x80] sm:$0xff]
    %v931 = vld [vmem:[#allocation2 + $0x88] sm:$0xff]
    %v932 = vld [vmem:[#allocation2 + $0x90] sm:$0xff]
    %v933 = vld [vmem:[#allocation2 + $0x98] sm:$0xff]
    %v934 = vld [vmem:[#allocation2 + $0xa0] sm:$0xff]
    %v935 = vld [vmem:[#allocation2 + $0xa8] sm:$0xff]
    %v936 = vld [vmem:[#allocation2 + $0xb0] sm:$0xff]
    %v937 = vld [vmem:[#allocation2 + $0xb8] sm:$0xff]
    %v938 = vld [vmem:[#allocation2 + $0xc0] sm:$0xff]
    %v939 = vld [vmem:[#allocation2 + $0xc8] sm:$0xff]
    %v940 = vld [vmem:[#allocation2 + $0xd0] sm:$0xff]
    %v941 = vld [vmem:[#allocation2 + $0xd8] sm:$0xff]
    %v942 = vld [vmem:[#allocation2 + $0xe0] sm:$0xff]
    %v943 = vld [vmem:[#allocation2 + $0xe8] sm:$0xff]
    %v944 = vld [vmem:[#allocation2 + $0xf0] sm:$0xff]
    %v945 = vld [vmem:[#allocation2 + $0xf8] sm:$0xff]
    %v946 = vld [vmem:[#allocation2 + $0x100] sm:$0xff]
    %v947 = vld [vmem:[#allocation2 + $0x108] sm:$0xff]
    %v948 = vld [vmem:[#allocation2 + $0x110] sm:$0xff]
    %v949 = vld [vmem:[#allocation2 + $0x118] sm:$0xff]
    %v950 = vld [vmem:[#allocation2 + $0x120] sm:$0xff]
    %v951 = vld [vmem:[#allocation2 + $0x128] sm:$0xff]
    %v952 = vld [vmem:[#allocation2 + $0x130] sm:$0xff]
    %v953 = vld [vmem:[#allocation2 + $0x138] sm:$0xff]
    %v954 = vld [vmem:[#allocation2 + $0x140] sm:$0xff]
    %v955 = vld [vmem:[#allocation2 + $0x148] sm:$0xff]
    %v956 = vld [vmem:[#allocation2 + $0x150] sm:$0xff]
    %v957 = vld [vmem:[#allocation2 + $0x158] sm:$0xff]
    %v958 = vld [vmem:[#allocation2 + $0x160] sm:$0xff]
    %v959 = vld [vmem:[#allocation2 + $0x168] sm:$0xff]
    %v960 = vld [vmem:[#allocation2 + $0x170] sm:$0xff]
    %v961 = vld [vmem:[#allocation2 + $0x178] sm:$0xff]
    %v962 = vld [vmem:[#allocation2 + $0x180] sm:$0xff]
    %v963 = vld [vmem:[#allocation2 + $0x188] sm:$0xff]
    %v964 = vld [vmem:[#allocation2 + $0x190] sm:$0xff]
    %v965 = vld [vmem:[#allocation2 + $0x198] sm:$0xff]
    %v966 = vld [vmem:[#allocation2 + $0x1a0] sm:$0xff]
    %v967 = vld [vmem:[#allocation2 + $0x1a8] sm:$0xff]
    %v968 = vld [vmem:[#allocation2 + $0x1b0] sm:$0xff]
    %v969 = vld [vmem:[#allocation2 + $0x1b8] sm:$0xff]
    %v970 = vld [vmem:[#allocation2 + $0x1c0] sm:$0xff]
    %v971 = vld [vmem:[#allocation2 + $0x1c8] sm:$0xff]
    %v972 = vld [vmem:[#allocation2 + $0x1d0] sm:$0xff]
    %v973 = vld [vmem:[#allocation2 + $0x1d8] sm:$0xff]
    %v974 = vld [vmem:[#allocation2 + $0x1e0] sm:$0xff]
    %v975 = vld [vmem:[#allocation2 + $0x1e8] sm:$0xff]
    %v976 = vld [vmem:[#allocation2 + $0x1f0] sm:$0xff]
    %v977 = vld [vmem:[#allocation2 + $0x1f8] sm:$0xff]
    %v978 = vld [vmem:[%s2] sm:$0x1]
    %v980 = vlaneseq
    %v981 = vshrl.u32 %v980, 7
    %v982 = vsub.s32 0, %v981
    %v983 = vrot.slane %v978, %v982
    %v985 = vadd.f32 %v914, %v983
    %v986 = vadd.f32 %v915, %v983
    %v987 = vadd.f32 %v916, %v983
    %v988 = vadd.f32 %v917, %v983
    %v989 = vadd.f32 %v918, %v983
    %v990 = vadd.f32 %v919, %v983
    %v991 = vadd.f32 %v920, %v983
    %v992 = vadd.f32 %v921, %v983
    %v993 = vadd.f32 %v922, %v983
    %v994 = vadd.f32 %v923, %v983
    %v995 = vadd.f32 %v924, %v983
    %v996 = vadd.f32 %v925, %v983
    %v997 = vadd.f32 %v926, %v983
    %v998 = vadd.f32 %v927, %v983
    %v999 = vadd.f32 %v928, %v983
    %v1000 = vadd.f32 %v929, %v983
    %v1001 = vadd.f32 %v930, %v983
    %v1002 = vadd.f32 %v931, %v983
    %v1003 = vadd.f32 %v932, %v983
    %v1004 = vadd.f32 %v933, %v983
    %v1005 = vadd.f32 %v934, %v983
    %v1006 = vadd.f32 %v935, %v983
    %v1007 = vadd.f32 %v936, %v983
    %v1008 = vadd.f32 %v937, %v983
    %v1009 = vadd.f32 %v938, %v983
    %v1010 = vadd.f32 %v939, %v983
    %v1011 = vadd.f32 %v940, %v983
    %v1012 = vadd.f32 %v941, %v983
    %v1013 = vadd.f32 %v942, %v983
    %v1014 = vadd.f32 %v943, %v983
    %v1015 = vadd.f32 %v944, %v983
    %v1016 = vadd.f32 %v945, %v983
    %v1017 = vadd.f32 %v946, %v983
    %v1018 = vadd.f32 %v947, %v983
    %v1019 = vadd.f32 %v948, %v983
    %v1020 = vadd.f32 %v949, %v983
    %v1021 = vadd.f32 %v950, %v983
    %v1022 = vadd.f32 %v951, %v983
    %v1023 = vadd.f32 %v952, %v983
    %v1024 = vadd.f32 %v953, %v983
    %v1025 = vadd.f32 %v954, %v983
    %v1026 = vadd.f32 %v955, %v983
    %v1027 = vadd.f32 %v956, %v983
    %v1028 = vadd.f32 %v957, %v983
    %v1029 = vadd.f32 %v958, %v983
    %v1030 = vadd.f32 %v959, %v983
    %v1031 = vadd.f32 %v960, %v983
    %v1032 = vadd.f32 %v961, %v983
    %v1033 = vadd.f32 %v962, %v983
    %v1034 = vadd.f32 %v963, %v983
    %v1035 = vadd.f32 %v964, %v983
    %v1036 = vadd.f32 %v965, %v983
    %v1037 = vadd.f32 %v966, %v983
    %v1038 = vadd.f32 %v967, %v983
    %v1039 = vadd.f32 %v968, %v983
    %v1040 = vadd.f32 %v969, %v983
    %v1041 = vadd.f32 %v970, %v983
    %v1042 = vadd.f32 %v971, %v983
    %v1043 = vadd.f32 %v972, %v983
    %v1044 = vadd.f32 %v973, %v983
    %v1045 = vadd.f32 %v974, %v983
    %v1046 = vadd.f32 %v975, %v983
    %v1047 = vadd.f32 %v976, %v983
    %v1048 = vadd.f32 %v977, %v983
    %v1049 = vpack.c.bf16 %v986, %v985
    %v1050 = vpack.c.bf16 %v988, %v987
    %v1051 = vpack.c.bf16 %v990, %v989
    %v1052 = vpack.c.bf16 %v992, %v991
    %v1053 = vpack.c.bf16 %v994, %v993
    %v1054 = vpack.c.bf16 %v996, %v995
    %v1055 = vpack.c.bf16 %v998, %v997
    %v1056 = vpack.c.bf16 %v1000, %v999
    %v1057 = vpack.c.bf16 %v1002, %v1001
    %v1058 = vpack.c.bf16 %v1004, %v1003
    %v1059 = vpack.c.bf16 %v1006, %v1005
    %v1060 = vpack.c.bf16 %v1008, %v1007
    %v1061 = vpack.c.bf16 %v1010, %v1009
    %v1062 = vpack.c.bf16 %v1012, %v1011
    %v1063 = vpack.c.bf16 %v1014, %v1013
    %v1064 = vpack.c.bf16 %v1016, %v1015
    %v1065 = vpack.c.bf16 %v1018, %v1017
    %v1066 = vpack.c.bf16 %v1020, %v1019
    %v1067 = vpack.c.bf16 %v1022, %v1021
    %v1068 = vpack.c.bf16 %v1024, %v1023
    %v1069 = vpack.c.bf16 %v1026, %v1025
    %v1070 = vpack.c.bf16 %v1028, %v1027
    %v1071 = vpack.c.bf16 %v1030, %v1029
    %v1072 = vpack.c.bf16 %v1032, %v1031
    %v1073 = vpack.c.bf16 %v1034, %v1033
    %v1074 = vpack.c.bf16 %v1036, %v1035
    %v1075 = vpack.c.bf16 %v1038, %v1037
    %v1076 = vpack.c.bf16 %v1040, %v1039
    %v1077 = vpack.c.bf16 %v1042, %v1041
    %v1078 = vpack.c.bf16 %v1044, %v1043
    %v1079 = vpack.c.bf16 %v1046, %v1045
    %v1080 = vpack.c.bf16 %v1048, %v1047
    %v1113 = vunpack.c.l.b16 %v1049
    %v1114 = vunpack.c.h.b16 %v1049
    %v1115 = vunpack.c.l.b16 %v1050
    %v1116 = vunpack.c.h.b16 %v1050
    %v1117 = vunpack.c.l.b16 %v1051
    %v1118 = vunpack.c.h.b16 %v1051
    %v1119 = vunpack.c.l.b16 %v1052
    %v1120 = vunpack.c.h.b16 %v1052
    %v1121 = vunpack.c.l.b16 %v1053
    %v1122 = vunpack.c.h.b16 %v1053
    %v1123 = vunpack.c.l.b16 %v1054
    %v1124 = vunpack.c.h.b16 %v1054
    %v1125 = vunpack.c.l.b16 %v1055
    %v1126 = vunpack.c.h.b16 %v1055
    %v1127 = vunpack.c.l.b16 %v1056
    %v1128 = vunpack.c.h.b16 %v1056
    %v1129 = vunpack.c.l.b16 %v1057
    %v1130 = vunpack.c.h.b16 %v1057
    %v1131 = vunpack.c.l.b16 %v1058
    %v1132 = vunpack.c.h.b16 %v1058
    %v1133 = vunpack.c.l.b16 %v1059
    %v1134 = vunpack.c.h.b16 %v1059
    %v1135 = vunpack.c.l.b16 %v1060
    %v1136 = vunpack.c.h.b16 %v1060
    %v1137 = vunpack.c.l.b16 %v1061
    %v1138 = vunpack.c.h.b16 %v1061
    %v1139 = vunpack.c.l.b16 %v1062
    %v1140 = vunpack.c.h.b16 %v1062
    %v1141 = vunpack.c.l.b16 %v1063
    %v1142 = vunpack.c.h.b16 %v1063
    %v1143 = vunpack.c.l.b16 %v1064
    %v1144 = vunpack.c.h.b16 %v1064
    %v1145 = vunpack.c.l.b16 %v1065
    %v1146 = vunpack.c.h.b16 %v1065
    %v1147 = vunpack.c.l.b16 %v1066
    %v1148 = vunpack.c.h.b16 %v1066
    %v1149 = vunpack.c.l.b16 %v1067
    %v1150 = vunpack.c.h.b16 %v1067
    %v1151 = vunpack.c.l.b16 %v1068
    %v1152 = vunpack.c.h.b16 %v1068
    %v1153 = vunpack.c.l.b16 %v1069
    %v1154 = vunpack.c.h.b16 %v1069
    %v1155 = vunpack.c.l.b16 %v1070
    %v1156 = vunpack.c.h.b16 %v1070
    %v1157 = vunpack.c.l.b16 %v1071
    %v1158 = vunpack.c.h.b16 %v1071
    %v1159 = vunpack.c.l.b16 %v1072
    %v1160 = vunpack.c.h.b16 %v1072
    %v1161 = vunpack.c.l.b16 %v1073
    %v1162 = vunpack.c.h.b16 %v1073
    %v1163 = vunpack.c.l.b16 %v1074
    %v1164 = vunpack.c.h.b16 %v1074
    %v1165 = vunpack.c.l.b16 %v1075
    %v1166 = vunpack.c.h.b16 %v1075
    %v1167 = vunpack.c.l.b16 %v1076
    %v1168 = vunpack.c.h.b16 %v1076
    %v1169 = vunpack.c.l.b16 %v1077
    %v1170 = vunpack.c.h.b16 %v1077
    %v1171 = vunpack.c.l.b16 %v1078
    %v1172 = vunpack.c.h.b16 %v1078
    %v1173 = vunpack.c.l.b16 %v1079
    %v1174 = vunpack.c.h.b16 %v1079
    %v1175 = vunpack.c.l.b16 %v1080
    %v1176 = vunpack.c.h.b16 %v1080
    %v1177 = vpack.c.b16 %v1113, %v1113
    %v1178 = vpack.c.b16 %v1114, %v1114
    %v1179 = vpack.c.b16 %v1115, %v1115
    %v1180 = vpack.c.b16 %v1116, %v1116
    %v1181 = vpack.c.b16 %v1117, %v1117
    %v1182 = vpack.c.b16 %v1118, %v1118
    %v1183 = vpack.c.b16 %v1119, %v1119
    %v1184 = vpack.c.b16 %v1120, %v1120
    %v1185 = vpack.c.b16 %v1121, %v1121
    %v1186 = vpack.c.b16 %v1122, %v1122
    %v1187 = vpack.c.b16 %v1123, %v1123
    %v1188 = vpack.c.b16 %v1124, %v1124
    %v1189 = vpack.c.b16 %v1125, %v1125
    %v1190 = vpack.c.b16 %v1126, %v1126
    %v1191 = vpack.c.b16 %v1127, %v1127
    %v1192 = vpack.c.b16 %v1128, %v1128
    %v1193 = vpack.c.b16 %v1129, %v1129
    %v1194 = vpack.c.b16 %v1130, %v1130
    %v1195 = vpack.c.b16 %v1131, %v1131
    %v1196 = vpack.c.b16 %v1132, %v1132
    %v1197 = vpack.c.b16 %v1133, %v1133
    %v1198 = vpack.c.b16 %v1134, %v1134
    %v1199 = vpack.c.b16 %v1135, %v1135
    %v1200 = vpack.c.b16 %v1136, %v1136
    %v1201 = vpack.c.b16 %v1137, %v1137
    %v1202 = vpack.c.b16 %v1138, %v1138
    %v1203 = vpack.c.b16 %v1139, %v1139
    %v1204 = vpack.c.b16 %v1140, %v1140
    %v1205 = vpack.c.b16 %v1141, %v1141
    %v1206 = vpack.c.b16 %v1142, %v1142
    %v1207 = vpack.c.b16 %v1143, %v1143
    %v1208 = vpack.c.b16 %v1144, %v1144
    %v1209 = vpack.c.b16 %v1145, %v1145
    %v1210 = vpack.c.b16 %v1146, %v1146
    %v1211 = vpack.c.b16 %v1147, %v1147
    %v1212 = vpack.c.b16 %v1148, %v1148
    %v1213 = vpack.c.b16 %v1149, %v1149
    %v1214 = vpack.c.b16 %v1150, %v1150
    %v1215 = vpack.c.b16 %v1151, %v1151
    %v1216 = vpack.c.b16 %v1152, %v1152
    %v1217 = vpack.c.b16 %v1153, %v1153
    %v1218 = vpack.c.b16 %v1154, %v1154
    %v1219 = vpack.c.b16 %v1155, %v1155
    %v1220 = vpack.c.b16 %v1156, %v1156
    %v1221 = vpack.c.b16 %v1157, %v1157
    %v1222 = vpack.c.b16 %v1158, %v1158
    %v1223 = vpack.c.b16 %v1159, %v1159
    %v1224 = vpack.c.b16 %v1160, %v1160
    %v1225 = vpack.c.b16 %v1161, %v1161
    %v1226 = vpack.c.b16 %v1162, %v1162
    %v1227 = vpack.c.b16 %v1163, %v1163
    %v1228 = vpack.c.b16 %v1164, %v1164
    %v1229 = vpack.c.b16 %v1165, %v1165
    %v1230 = vpack.c.b16 %v1166, %v1166
    %v1231 = vpack.c.b16 %v1167, %v1167
    %v1232 = vpack.c.b16 %v1168, %v1168
    %v1233 = vpack.c.b16 %v1169, %v1169
    %v1234 = vpack.c.b16 %v1170, %v1170
    %v1235 = vpack.c.b16 %v1171, %v1171
    %v1236 = vpack.c.b16 %v1172, %v1172
    %v1237 = vpack.c.b16 %v1173, %v1173
    %v1238 = vpack.c.b16 %v1174, %v1174
    %v1239 = vpack.c.b16 %v1175, %v1175
    %v1240 = vpack.c.b16 %v1176, %v1176
    %vm1305 = vcmask 60416
    %1306 = vst.msk [vmem:[%s3] sm:$0xf] %vm1305, %v1177
    %1307 = vst.msk [vmem:[%s3 + $0x4] sm:$0xf] %vm1305, %v1178
    %1308 = vst.msk [vmem:[%s3 + $0x8] sm:$0xf] %vm1305, %v1179
    %1309 = vst.msk [vmem:[%s3 + $0xc] sm:$0xf] %vm1305, %v1180
    %1310 = vst.msk [vmem:[%s3 + $0x10] sm:$0xf] %vm1305, %v1181
    %1311 = vst.msk [vmem:[%s3 + $0x14] sm:$0xf] %vm1305, %v1182
    %1312 = vst.msk [vmem:[%s3 + $0x18] sm:$0xf] %vm1305, %v1183
    %1313 = vst.msk [vmem:[%s3 + $0x1c] sm:$0xf] %vm1305, %v1184
    %1314 = vst.msk [vmem:[%s3 + $0x20] sm:$0xf] %vm1305, %v1185
    %1315 = vst.msk [vmem:[%s3 + $0x24] sm:$0xf] %vm1305, %v1186
    %1316 = vst.msk [vmem:[%s3 + $0x28] sm:$0xf] %vm1305, %v1187
    %1317 = vst.msk [vmem:[%s3 + $0x2c] sm:$0xf] %vm1305, %v1188
    %1318 = vst.msk [vmem:[%s3 + $0x30] sm:$0xf] %vm1305, %v1189
    %1319 = vst.msk [vmem:[%s3 + $0x34] sm:$0xf] %vm1305, %v1190
    %1320 = vst.msk [vmem:[%s3 + $0x38] sm:$0xf] %vm1305, %v1191
    %1321 = vst.msk [vmem:[%s3 + $0x3c] sm:$0xf] %vm1305, %v1192
    %1322 = vst.msk [vmem:[%s3 + $0x40] sm:$0xf] %vm1305, %v1193
    %1323 = vst.msk [vmem:[%s3 + $0x44] sm:$0xf] %vm1305, %v1194
    %1324 = vst.msk [vmem:[%s3 + $0x48] sm:$0xf] %vm1305, %v1195
    %1325 = vst.msk [vmem:[%s3 + $0x4c] sm:$0xf] %vm1305, %v1196
    %1326 = vst.msk [vmem:[%s3 + $0x50] sm:$0xf] %vm1305, %v1197
    %1327 = vst.msk [vmem:[%s3 + $0x54] sm:$0xf] %vm1305, %v1198
    %1328 = vst.msk [vmem:[%s3 + $0x58] sm:$0xf] %vm1305, %v1199
    %1329 = vst.msk [vmem:[%s3 + $0x5c] sm:$0xf] %vm1305, %v1200
    %1330 = vst.msk [vmem:[%s3 + $0x60] sm:$0xf] %vm1305, %v1201
    %1331 = vst.msk [vmem:[%s3 + $0x64] sm:$0xf] %vm1305, %v1202
    %1332 = vst.msk [vmem:[%s3 + $0x68] sm:$0xf] %vm1305, %v1203
    %1333 = vst.msk [vmem:[%s3 + $0x6c] sm:$0xf] %vm1305, %v1204
    %1334 = vst.msk [vmem:[%s3 + $0x70] sm:$0xf] %vm1305, %v1205
    %1335 = vst.msk [vmem:[%s3 + $0x74] sm:$0xf] %vm1305, %v1206
    %1336 = vst.msk [vmem:[%s3 + $0x78] sm:$0xf] %vm1305, %v1207
    %1337 = vst.msk [vmem:[%s3 + $0x7c] sm:$0xf] %vm1305, %v1208
    %1338 = vst.msk [vmem:[%s3 + $0x80] sm:$0xf] %vm1305, %v1209
    %1339 = vst.msk [vmem:[%s3 + $0x84] sm:$0xf] %vm1305, %v1210
    %1340 = vst.msk [vmem:[%s3 + $0x88] sm:$0xf] %vm1305, %v1211
    %1341 = vst.msk [vmem:[%s3 + $0x8c] sm:$0xf] %vm1305, %v1212
    %1342 = vst.msk [vmem:[%s3 + $0x90] sm:$0xf] %vm1305, %v1213
    %1343 = vst.msk [vmem:[%s3 + $0x94] sm:$0xf] %vm1305, %v1214
    %1344 = vst.msk [vmem:[%s3 + $0x98] sm:$0xf] %vm1305, %v1215
    %1345 = vst.msk [vmem:[%s3 + $0x9c] sm:$0xf] %vm1305, %v1216
    %1346 = vst.msk [vmem:[%s3 + $0xa0] sm:$0xf] %vm1305, %v1217
    %1347 = vst.msk [vmem:[%s3 + $0xa4] sm:$0xf] %vm1305, %v1218
    %1348 = vst.msk [vmem:[%s3 + $0xa8] sm:$0xf] %vm1305, %v1219
    %1349 = vst.msk [vmem:[%s3 + $0xac] sm:$0xf] %vm1305, %v1220
    %1350 = vst.msk [vmem:[%s3 + $0xb0] sm:$0xf] %vm1305, %v1221
    %1351 = vst.msk [vmem:[%s3 + $0xb4] sm:$0xf] %vm1305, %v1222
    %1352 = vst.msk [vmem:[%s3 + $0xb8] sm:$0xf] %vm1305, %v1223
    %1353 = vst.msk [vmem:[%s3 + $0xbc] sm:$0xf] %vm1305, %v1224
    %1354 = vst.msk [vmem:[%s3 + $0xc0] sm:$0xf] %vm1305, %v1225
    %1355 = vst.msk [vmem:[%s3 + $0xc4] sm:$0xf] %vm1305, %v1226
    %1356 = vst.msk [vmem:[%s3 + $0xc8] sm:$0xf] %vm1305, %v1227
    %1357 = vst.msk [vmem:[%s3 + $0xcc] sm:$0xf] %vm1305, %v1228
    %1358 = vst.msk [vmem:[%s3 + $0xd0] sm:$0xf] %vm1305, %v1229
    %1359 = vst.msk [vmem:[%s3 + $0xd4] sm:$0xf] %vm1305, %v1230
    %1360 = vst.msk [vmem:[%s3 + $0xd8] sm:$0xf] %vm1305, %v1231
    %1361 = vst.msk [vmem:[%s3 + $0xdc] sm:$0xf] %vm1305, %v1232
    %1362 = vst.msk [vmem:[%s3 + $0xe0] sm:$0xf] %vm1305, %v1233
    %1363 = vst.msk [vmem:[%s3 + $0xe4] sm:$0xf] %vm1305, %v1234
    %1364 = vst.msk [vmem:[%s3 + $0xe8] sm:$0xf] %vm1305, %v1235
    %1365 = vst.msk [vmem:[%s3 + $0xec] sm:$0xf] %vm1305, %v1236
    %1366 = vst.msk [vmem:[%s3 + $0xf0] sm:$0xf] %vm1305, %v1237
    %1367 = vst.msk [vmem:[%s3 + $0xf4] sm:$0xf] %vm1305, %v1238
    %1368 = vst.msk [vmem:[%s3 + $0xf8] sm:$0xf] %vm1305, %v1239
    %1369 = vst.msk [vmem:[%s3 + $0xfc] sm:$0xf] %vm1305, %v1240
  $region21: #{_lambda_.24} parent=0 // pred_fallthru
    _
  // Predicated region
  $region22: #{_lambda_.24} parent=0 // pred_check
    _
  $region23: #{_lambda_.24} parent=0 // pred_check_branch
    %1371 = sbr.rel (0) target = $region25
  $region24: #{_lambda_.24} parent=0 // pred_region
    _
  $region25: #{_lambda_.24} parent=0 // pred_fallthru
    _
  // Predicated region
  $region26: #{_lambda_.24} parent=0 // pred_check
    _
  $region27: #{_lambda_.24} parent=0 // pred_check_branch
    %1373 = sbr.rel (0) target = $region29
  $region28: #{_lambda_.24} parent=0 // pred_region
    _
  $region29: #{_lambda_.24} parent=0 // pred_fallthru
    _

// kernel: _lambda_.25
$region0: #{_lambda_.25}
  #allocation0 [shape = 'u32[]', space=smem, size = 0x4, offset = 0x4, fixed_abs, tag = 'smem constant byte address 0x4 - core index']
  #allocation1 [shape = 'u32[144,128]{1,0:T(1,128)}', space=vmem, size = 0x12000, scoped, tag = 'internal scratch']
  #allocation2 [shape = 'f32[128,16]{1,0:T(8,128)}', space=vmem, size = 0x10000, scoped, tag = 'scratch operand']
  %s0 = inlined_call_operand.vmem [shape: bf16[128,128], index: 0, kind: input, shape index: {}]
  %s1 = inlined_call_operand.vmem [shape: bf16[128,16], index: 1, kind: input, shape index: {}]
  %s2 = inlined_call_operand.vmem [shape: f32[1,16], index: 2, kind: input, shape index: {}]
  %s3 = inlined_call_operand.vmem [shape: bf16[128,16], index: 3, kind: output, shape index: {}]
  %s4 = sld [smem:[#allocation0]]
  $region30: #{_lambda_.25} parent=0
    _
  %s6 = ssub.s32 1, %s4
  %s7 = scalar_select 0, %s6, %s4
  // Predicated region
  $region2: #{_lambda_.25} parent=0 // pred_check
    _
  $region3: #{_lambda_.25} parent=0 // pred_check_branch
    %9 = sbr.rel (0) target = $region5
  $region4: #{_lambda_.25} parent=0 // pred_region
    _
  $region5: #{_lambda_.25} parent=0 // pred_fallthru
    _
  // Predicated region
  $region6: #{_lambda_.25} parent=0 // pred_check
    _
  $region7: #{_lambda_.25} parent=0 // pred_check_branch
    %11 = sbr.rel (0) target = $region9
  $region8: #{_lambda_.25} parent=0 // pred_region
    _
  $region9: #{_lambda_.25} parent=0 // pred_fallthru
    _
  // Predicated region
  $region10: #{_lambda_.25} parent=0 // pred_check
    _
  $region11: #{_lambda_.25} parent=0 // pred_check_branch
    %13 = sbr.rel (0) target = $region13
  $region12: #{_lambda_.25} parent=0 // pred_region
    _
  $region13: #{_lambda_.25} parent=0 // pred_fallthru
    _
  %p15 = scmp.eq.s32.totalorder 0, 0
  // Predicated region
  $region14: #{_lambda_.25} parent=0 // pred_check
    %p16 = pneg %p15
  $region15: #{_lambda_.25} parent=0 // pred_check_branch
    %18 = sbr.rel (%p16) target = $region17
  $region16: #{_lambda_.25} parent=0 // pred_region
    %vm19 = vcmask 130048
    %20 = vst.msk [vmem:[#allocation2] sm:$0xff] %vm19, 0.0
    %21 = vst.msk [vmem:[#allocation2 + $0x8] sm:$0xff] %vm19, 0.0
    %22 = vst.msk [vmem:[#allocation2 + $0x10] sm:$0xff] %vm19, 0.0
    %23 = vst.msk [vmem:[#allocation2 + $0x18] sm:$0xff] %vm19, 0.0
    %24 = vst.msk [vmem:[#allocation2 + $0x20] sm:$0xff] %vm19, 0.0
    %25 = vst.msk [vmem:[#allocation2 + $0x28] sm:$0xff] %vm19, 0.0
    %26 = vst.msk [vmem:[#allocation2 + $0x30] sm:$0xff] %vm19, 0.0
    %27 = vst.msk [vmem:[#allocation2 + $0x38] sm:$0xff] %vm19, 0.0
    %28 = vst.msk [vmem:[#allocation2 + $0x40] sm:$0xff] %vm19, 0.0
    %29 = vst.msk [vmem:[#allocation2 + $0x48] sm:$0xff] %vm19, 0.0
    %30 = vst.msk [vmem:[#allocation2 + $0x50] sm:$0xff] %vm19, 0.0
    %31 = vst.msk [vmem:[#allocation2 + $0x58] sm:$0xff] %vm19, 0.0
    %32 = vst.msk [vmem:[#allocation2 + $0x60] sm:$0xff] %vm19, 0.0
    %33 = vst.msk [vmem:[#allocation2 + $0x68] sm:$0xff] %vm19, 0.0
    %34 = vst.msk [vmem:[#allocation2 + $0x70] sm:$0xff] %vm19, 0.0
    %35 = vst.msk [vmem:[#allocation2 + $0x78] sm:$0xff] %vm19, 0.0
  $region17: #{_lambda_.25} parent=0 // pred_fallthru
    _
  %v36 = vld [vmem:[#allocation2] sm:$0xff]
  %v37 = vld [vmem:[#allocation2 + $0x8] sm:$0xff]
  %v38 = vld [vmem:[#allocation2 + $0x10] sm:$0xff]
  %v39 = vld [vmem:[#allocation2 + $0x18] sm:$0xff]
  %v40 = vld [vmem:[#allocation2 + $0x20] sm:$0xff]
  %v41 = vld [vmem:[#allocation2 + $0x28] sm:$0xff]
  %v42 = vld [vmem:[#allocation2 + $0x30] sm:$0xff]
  %v43 = vld [vmem:[#allocation2 + $0x38] sm:$0xff]
  %v44 = vld [vmem:[#allocation2 + $0x40] sm:$0xff]
  %v45 = vld [vmem:[#allocation2 + $0x48] sm:$0xff]
  %v46 = vld [vmem:[#allocation2 + $0x50] sm:$0xff]
  %v47 = vld [vmem:[#allocation2 + $0x58] sm:$0xff]
  %v48 = vld [vmem:[#allocation2 + $0x60] sm:$0xff]
  %v49 = vld [vmem:[#allocation2 + $0x68] sm:$0xff]
  %v50 = vld [vmem:[#allocation2 + $0x70] sm:$0xff]
  %v51 = vld [vmem:[#allocation2 + $0x78] sm:$0xff]
  %v52 = vld [vmem:[%s0] sm:$0xf]
  %v53 = vld [vmem:[%s0 + $0x4] sm:$0xf]
  %v54 = vld [vmem:[%s0 + $0x8] sm:$0xf]
  %v55 = vld [vmem:[%s0 + $0xc] sm:$0xf]
  %v56 = vld [vmem:[%s0 + $0x10] sm:$0xf]
  %v57 = vld [vmem:[%s0 + $0x14] sm:$0xf]
  %v58 = vld [vmem:[%s0 + $0x18] sm:$0xf]
  %v59 = vld [vmem:[%s0 + $0x1c] sm:$0xf]
  %v60 = vld [vmem:[%s0 + $0x20] sm:$0xf]
  %v61 = vld [vmem:[%s0 + $0x24] sm:$0xf]
  %v62 = vld [vmem:[%s0 + $0x28] sm:$0xf]
  %v63 = vld [vmem:[%s0 + $0x2c] sm:$0xf]
  %v64 = vld [vmem:[%s0 + $0x30] sm:$0xf]
  %v65 = vld [vmem:[%s0 + $0x34] sm:$0xf]
  %v66 = vld [vmem:[%s0 + $0x38] sm:$0xf]
  %v67 = vld [vmem:[%s0 + $0x3c] sm:$0xf]
  %v68 = vld [vmem:[%s1] sm:$0xf]
  %v69 = vld [vmem:[%s1 + $0x4] sm:$0xf]
  %v70 = vld [vmem:[%s1 + $0x8] sm:$0xf]
  %v71 = vld [vmem:[%s1 + $0xc] sm:$0xf]
  %v72 = vld [vmem:[%s1 + $0x10] sm:$0xf]
  %v73 = vld [vmem:[%s1 + $0x14] sm:$0xf]
  %v74 = vld [vmem:[%s1 + $0x18] sm:$0xf]
  %v75 = vld [vmem:[%s1 + $0x1c] sm:$0xf]
  %v76 = vld [vmem:[%s1 + $0x20] sm:$0xf]
  %v77 = vld [vmem:[%s1 + $0x24] sm:$0xf]
  %v78 = vld [vmem:[%s1 + $0x28] sm:$0xf]
  %v79 = vld [vmem:[%s1 + $0x2c] sm:$0xf]
  %v80 = vld [vmem:[%s1 + $0x30] sm:$0xf]
  %v81 = vld [vmem:[%s1 + $0x34] sm:$0xf]
  %v82 = vld [vmem:[%s1 + $0x38] sm:$0xf]
  %v83 = vld [vmem:[%s1 + $0x3c] sm:$0xf]
  %v100 = vunpack.c.l.b16 %v52
  %v101 = vunpack.c.l.b16 %v53
  %v102 = vunpack.c.l.b16 %v54
  %v103 = vunpack.c.l.b16 %v55
  %v104 = vunpack.c.l.b16 %v56
  %v105 = vunpack.c.l.b16 %v57
  %v106 = vunpack.c.l.b16 %v58
  %v107 = vunpack.c.l.b16 %v59
  %v108 = vunpack.c.l.b16 %v60
  %v109 = vunpack.c.l.b16 %v61
  %v110 = vunpack.c.l.b16 %v62
  %v111 = vunpack.c.l.b16 %v63
  %v112 = vunpack.c.l.b16 %v64
  %v113 = vunpack.c.l.b16 %v65
  %v114 = vunpack.c.l.b16 %v66
  %v115 = vunpack.c.l.b16 %v67
  %v116 = vpack.c.b16 %v101, %v100
  %v117 = vpack.c.b16 %v103, %v102
  %v118 = vpack.c.b16 %v105, %v104
  %v119 = vpack.c.b16 %v107, %v106
  %v120 = vpack.c.b16 %v109, %v108
  %v121 = vpack.c.b16 %v111, %v110
  %v122 = vpack.c.b16 %v113, %v112
  %v123 = vpack.c.b16 %v115, %v114
  %v148 = vunpack.c.l.b16 %v68
  %v149 = vunpack.c.l.b16 %v69
  %v150 = vunpack.c.l.b16 %v70
  %v151 = vunpack.c.l.b16 %v71
  %v152 = vunpack.c.l.b16 %v72
  %v153 = vunpack.c.l.b16 %v73
  %v154 = vunpack.c.l.b16 %v74
  %v155 = vunpack.c.l.b16 %v75
  %v156 = vunpack.c.l.b16 %v76
  %v157 = vunpack.c.l.b16 %v77
  %v158 = vunpack.c.l.b16 %v78
  %v159 = vunpack.c.l.b16 %v79
  %v160 = vunpack.c.l.b16 %v80
  %v161 = vunpack.c.l.b16 %v81
  %v162 = vunpack.c.l.b16 %v82
  %v163 = vunpack.c.l.b16 %v83
  %v164 = vpack.c.b16 %v149, %v148
  %v165 = vpack.c.b16 %v151, %v150
  %v166 = vpack.c.b16 %v153, %v152
  %v167 = vpack.c.b16 %v155, %v154
  %v168 = vpack.c.b16 %v157, %v156
  %v169 = vpack.c.b16 %v159, %v158
  %v170 = vpack.c.b16 %v161, %v160
  %v171 = vpack.c.b16 %v163, %v162
  %180 = vmatprep.subr.bf16.mxu0 0
  %181 = vmatpush1.bf16.msra.mxu0 %v164
  %182 = vmatprep.subr.bf16.mxu0 0
  %183 = vmatpush1.bf16.msra.mxu0 %v165
  %184 = vmatprep.subr.bf16.mxu0 0
  %185 = vmatpush1.bf16.msra.mxu0 %v166
  %186 = vmatprep.subr.bf16.mxu0 0
  %187 = vmatpush1.bf16.msra.mxu0 %v167
  %188 = vmatprep.subr.bf16.mxu0 0
  %189 = vmatpush1.bf16.msra.mxu0 %v168
  %190 = vmatprep.subr.bf16.mxu0 0
  %191 = vmatpush1.bf16.msra.mxu0 %v169
  %192 = vmatprep.subr.bf16.mxu0 0
  %193 = vmatpush1.bf16.msra.mxu0 %v170
  %194 = vmatprep.subr.bf16.mxu0 0
  %195 = vmatpush1.bf16.msra.mxu0 %v171
  %196 = vmatprep.subr.bf16.mxu0 0
  %197 = vmatpush1.bf16.msra.mxu0 0
  %198 = vmatprep.subr.bf16.mxu0 0
  %199 = vmatpush1.bf16.msra.mxu0 0
  %200 = vmatprep.subr.bf16.mxu0 0
  %201 = vmatpush1.bf16.msra.mxu0 0
  %202 = vmatprep.subr.bf16.mxu0 0
  %203 = vmatpush1.bf16.msra.mxu0 0
  %204 = vmatprep.subr.bf16.mxu0 0
  %205 = vmatpush1.bf16.msra.mxu0 0
  %206 = vmatprep.subr.bf16.mxu0 0
  %207 = vmatpush1.bf16.msra.mxu0 0
  %208 = vmatprep.subr.bf16.mxu0 0
  %209 = vmatpush1.bf16.msra.mxu0 0
  %210 = vmatprep.subr.bf16.mxu0 0
  %211 = vmatpush1.bf16.msra.mxu0 0
  %212 = vmatprep.mubr.bf16.mxu0 0
  %213 = vmatmul.mubr.bf16.gmra.mrb[0].mxu0 %v116
  %v214 = vpop.f32.mrb[0].mxu0
  %v215 = vadd.f32 0.0, %v214
  %v216 = vpop.f32.mrb[0].mxu0
  %v217 = vpop.f32.mrb[0].mxu0
  %v218 = vadd.f32 0.0, %v217
  %v219 = vpop.f32.mrb[0].mxu0
  %220 = vmatprep.mubr.bf16.mxu0 0
  %221 = vmatmul.mubr.bf16.gmra.mrb[0].mxu0 %v117
  %v222 = vpop.f32.mrb[0].mxu0
  %v223 = vadd.f32 0.0, %v222
  %v224 = vpop.f32.mrb[0].mxu0
  %v225 = vpop.f32.mrb[0].mxu0
  %v226 = vadd.f32 0.0, %v225
  %v227 = vpop.f32.mrb[0].mxu0
  %228 = vmatprep.mubr.bf16.mxu0 0
  %229 = vmatmul.mubr.bf16.gmra.mrb[0].mxu0 %v118
  %v230 = vpop.f32.mrb[0].mxu0
  %v231 = vadd.f32 0.0, %v230
  %v232 = vpop.f32.mrb[0].mxu0
  %v233 = vpop.f32.mrb[0].mxu0
  %v234 = vadd.f32 0.0, %v233
  %v235 = vpop.f32.mrb[0].mxu0
  %236 = vmatprep.mubr.bf16.mxu0 0
  %237 = vmatmul.mubr.bf16.gmra.mrb[0].mxu0 %v119
  %v238 = vpop.f32.mrb[0].mxu0
  %v239 = vadd.f32 0.0, %v238
  %v240 = vpop.f32.mrb[0].mxu0
  %v241 = vpop.f32.mrb[0].mxu0
  %v242 = vadd.f32 0.0, %v241
  %v243 = vpop.f32.mrb[0].mxu0
  %244 = vmatprep.mubr.bf16.mxu0 0
  %245 = vmatmul.mubr.bf16.gmra.mrb[0].mxu0 %v120
  %v246 = vpop.f32.mrb[0].mxu0
  %v247 = vadd.f32 0.0, %v246
  %v248 = vpop.f32.mrb[0].mxu0
  %v249 = vpop.f32.mrb[0].mxu0
  %v250 = vadd.f32 0.0, %v249
  %v251 = vpop.f32.mrb[0].mxu0
  %252 = vmatprep.mubr.bf16.mxu0 0
  %253 = vmatmul.mubr.bf16.gmra.mrb[0].mxu0 %v121
  %v254 = vpop.f32.mrb[0].mxu0
  %v255 = vadd.f32 0.0, %v254
  %v256 = vpop.f32.mrb[0].mxu0
  %v257 = vpop.f32.mrb[0].mxu0
  %v258 = vadd.f32 0.0, %v257
  %v259 = vpop.f32.mrb[0].mxu0
  %260 = vmatprep.mubr.bf16.mxu0 0
  %261 = vmatmul.mubr.bf16.gmra.mrb[0].mxu0 %v122
  %v262 = vpop.f32.mrb[0].mxu0
  %v263 = vadd.f32 0.0, %v262
  %v264 = vpop.f32.mrb[0].mxu0
  %v265 = vpop.f32.mrb[0].mxu0
  %v266 = vadd.f32 0.0, %v265
  %v267 = vpop.f32.mrb[0].mxu0
  %268 = vmatprep.mubr.bf16.mxu0 0
  %269 = vmatmul.mubr.bf16.gmra.mrb[0].mxu0 %v123
  %v270 = vpop.f32.mrb[0].mxu0
  %v271 = vadd.f32 0.0, %v270
  %v272 = vpop.f32.mrb[0].mxu0
  %v273 = vpop.f32.mrb[0].mxu0
  %v274 = vadd.f32 0.0, %v273
  %v275 = vpop.f32.mrb[0].mxu0
  %276 = vdwg.mxu0
  %v277 = vadd.f32 %v36, %v215
  %v278 = vadd.f32 %v37, %v218
  %v279 = vadd.f32 %v38, %v223
  %v280 = vadd.f32 %v39, %v226
  %v281 = vadd.f32 %v40, %v231
  %v282 = vadd.f32 %v41, %v234
  %v283 = vadd.f32 %v42, %v239
  %v284 = vadd.f32 %v43, %v242
  %v285 = vadd.f32 %v44, %v247
  %v286 = vadd.f32 %v45, %v250
  %v287 = vadd.f32 %v46, %v255
  %v288 = vadd.f32 %v47, %v258
  %v289 = vadd.f32 %v48, %v263
  %v290 = vadd.f32 %v49, %v266
  %v291 = vadd.f32 %v50, %v271
  %v292 = vadd.f32 %v51, %v274
  %vm293 = vcmask 130048
  %294 = vst.msk [vmem:[#allocation2] sm:$0xff] %vm293, %v277
  %295 = vst.msk [vmem:[#allocation2 + $0x8] sm:$0xff] %vm293, %v278
  %296 = vst.msk [vmem:[#allocation2 + $0x10] sm:$0xff] %vm293, %v279
  %297 = vst.msk [vmem:[#allocation2 + $0x18] sm:$0xff] %vm293, %v280
  %298 = vst.msk [vmem:[#allocation2 + $0x20] sm:$0xff] %vm293, %v281
  %299 = vst.msk [vmem:[#allocation2 + $0x28] sm:$0xff] %vm293, %v282
  %300 = vst.msk [vmem:[#allocation2 + $0x30] sm:$0xff] %vm293, %v283
  %301 = vst.msk [vmem:[#allocation2 + $0x38] sm:$0xff] %vm293, %v284
  %302 = vst.msk [vmem:[#allocation2 + $0x40] sm:$0xff] %vm293, %v285
  %303 = vst.msk [vmem:[#allocation2 + $0x48] sm:$0xff] %vm293, %v286
  %304 = vst.msk [vmem:[#allocation2 + $0x50] sm:$0xff] %vm293, %v287
  %305 = vst.msk [vmem:[#allocation2 + $0x58] sm:$0xff] %vm293, %v288
  %306 = vst.msk [vmem:[#allocation2 + $0x60] sm:$0xff] %vm293, %v289
  %307 = vst.msk [vmem:[#allocation2 + $0x68] sm:$0xff] %vm293, %v290
  %308 = vst.msk [vmem:[#allocation2 + $0x70] sm:$0xff] %vm293, %v291
  %309 = vst.msk [vmem:[#allocation2 + $0x78] sm:$0xff] %vm293, %v292
  // Predicated region
  $region18: #{_lambda_.25} parent=0 // pred_check
    %p310 = pneg %p15
  $region19: #{_lambda_.25} parent=0 // pred_check_branch
    %312 = sbr.rel (%p310) target = $region21
  $region20: #{_lambda_.25} parent=0 // pred_region
    %v313 = vld [vmem:[#allocation2] sm:$0xff]
    %v314 = vld [vmem:[#allocation2 + $0x8] sm:$0xff]
    %v315 = vld [vmem:[#allocation2 + $0x10] sm:$0xff]
    %v316 = vld [vmem:[#allocation2 + $0x18] sm:$0xff]
    %v317 = vld [vmem:[#allocation2 + $0x20] sm:$0xff]
    %v318 = vld [vmem:[#allocation2 + $0x28] sm:$0xff]
    %v319 = vld [vmem:[#allocation2 + $0x30] sm:$0xff]
    %v320 = vld [vmem:[#allocation2 + $0x38] sm:$0xff]
    %v321 = vld [vmem:[#allocation2 + $0x40] sm:$0xff]
    %v322 = vld [vmem:[#allocation2 + $0x48] sm:$0xff]
    %v323 = vld [vmem:[#allocation2 + $0x50] sm:$0xff]
    %v324 = vld [vmem:[#allocation2 + $0x58] sm:$0xff]
    %v325 = vld [vmem:[#allocation2 + $0x60] sm:$0xff]
    %v326 = vld [vmem:[#allocation2 + $0x68] sm:$0xff]
    %v327 = vld [vmem:[#allocation2 + $0x70] sm:$0xff]
    %v328 = vld [vmem:[#allocation2 + $0x78] sm:$0xff]
    %v329 = vld [vmem:[%s2] sm:$0x1]
    %v331 = vlaneseq
    %v332 = vshrl.u32 %v331, 7
    %v333 = vsub.s32 0, %v332
    %v334 = vrot.slane %v329, %v333
    %v336 = vadd.f32 %v313, %v334
    %v337 = vadd.f32 %v314, %v334
    %v338 = vadd.f32 %v315, %v334
    %v339 = vadd.f32 %v316, %v334
    %v340 = vadd.f32 %v317, %v334
    %v341 = vadd.f32 %v318, %v334
    %v342 = vadd.f32 %v319, %v334
    %v343 = vadd.f32 %v320, %v334
    %v344 = vadd.f32 %v321, %v334
    %v345 = vadd.f32 %v322, %v334
    %v346 = vadd.f32 %v323, %v334
    %v347 = vadd.f32 %v324, %v334
    %v348 = vadd.f32 %v325, %v334
    %v349 = vadd.f32 %v326, %v334
    %v350 = vadd.f32 %v327, %v334
    %v351 = vadd.f32 %v328, %v334
    %v352 = vpack.c.bf16 %v337, %v336
    %v353 = vpack.c.bf16 %v339, %v338
    %v354 = vpack.c.bf16 %v341, %v340
    %v355 = vpack.c.bf16 %v343, %v342
    %v356 = vpack.c.bf16 %v345, %v344
    %v357 = vpack.c.bf16 %v347, %v346
    %v358 = vpack.c.bf16 %v349, %v348
    %v359 = vpack.c.bf16 %v351, %v350
    %v368 = vunpack.c.l.b16 %v352
    %v369 = vunpack.c.h.b16 %v352
    %v370 = vunpack.c.l.b16 %v353
    %v371 = vunpack.c.h.b16 %v353
    %v372 = vunpack.c.l.b16 %v354
    %v373 = vunpack.c.h.b16 %v354
    %v374 = vunpack.c.l.b16 %v355
    %v375 = vunpack.c.h.b16 %v355
    %v376 = vunpack.c.l.b16 %v356
    %v377 = vunpack.c.h.b16 %v356
    %v378 = vunpack.c.l.b16 %v357
    %v379 = vunpack.c.h.b16 %v357
    %v380 = vunpack.c.l.b16 %v358
    %v381 = vunpack.c.h.b16 %v358
    %v382 = vunpack.c.l.b16 %v359
    %v383 = vunpack.c.h.b16 %v359
    %v384 = vpack.c.b16 %v368, %v368
    %v385 = vpack.c.b16 %v369, %v369
    %v386 = vpack.c.b16 %v370, %v370
    %v387 = vpack.c.b16 %v371, %v371
    %v388 = vpack.c.b16 %v372, %v372
    %v389 = vpack.c.b16 %v373, %v373
    %v390 = vpack.c.b16 %v374, %v374
    %v391 = vpack.c.b16 %v375, %v375
    %v392 = vpack.c.b16 %v376, %v376
    %v393 = vpack.c.b16 %v377, %v377
    %v394 = vpack.c.b16 %v378, %v378
    %v395 = vpack.c.b16 %v379, %v379
    %v396 = vpack.c.b16 %v380, %v380
    %v397 = vpack.c.b16 %v381, %v381
    %v398 = vpack.c.b16 %v382, %v382
    %v399 = vpack.c.b16 %v383, %v383
    %vm416 = vcmask 125952
    %417 = vst.msk [vmem:[%s3] sm:$0xf] %vm416, %v384
    %418 = vst.msk [vmem:[%s3 + $0x4] sm:$0xf] %vm416, %v385
    %419 = vst.msk [vmem:[%s3 + $0x8] sm:$0xf] %vm416, %v386
    %420 = vst.msk [vmem:[%s3 + $0xc] sm:$0xf] %vm416, %v387
    %421 = vst.msk [vmem:[%s3 + $0x10] sm:$0xf] %vm416, %v388
    %422 = vst.msk [vmem:[%s3 + $0x14] sm:$0xf] %vm416, %v389
    %423 = vst.msk [vmem:[%s3 + $0x18] sm:$0xf] %vm416, %v390
    %424 = vst.msk [vmem:[%s3 + $0x1c] sm:$0xf] %vm416, %v391
    %425 = vst.msk [vmem:[%s3 + $0x20] sm:$0xf] %vm416, %v392
    %426 = vst.msk [vmem:[%s3 + $0x24] sm:$0xf] %vm416, %v393
    %427 = vst.msk [vmem:[%s3 + $0x28] sm:$0xf] %vm416, %v394
    %428 = vst.msk [vmem:[%s3 + $0x2c] sm:$0xf] %vm416, %v395
    %429 = vst.msk [vmem:[%s3 + $0x30] sm:$0xf] %vm416, %v396
    %430 = vst.msk [vmem:[%s3 + $0x34] sm:$0xf] %vm416, %v397
    %431 = vst.msk [vmem:[%s3 + $0x38] sm:$0xf] %vm416, %v398
    %432 = vst.msk [vmem:[%s3 + $0x3c] sm:$0xf] %vm416, %v399
  $region21: #{_lambda_.25} parent=0 // pred_fallthru
    _
  // Predicated region
  $region22: #{_lambda_.25} parent=0 // pred_check
    _
  $region23: #{_lambda_.25} parent=0 // pred_check_branch
    %434 = sbr.rel (0) target = $region25
  $region24: #{_lambda_.25} parent=0 // pred_region
    _
  $region25: #{_lambda_.25} parent=0 // pred_fallthru
    _
  // Predicated region
  $region26: #{_lambda_.25} parent=0 // pred_check
    _
  $region27: #{_lambda_.25} parent=0 // pred_check_branch
    %436 = sbr.rel (0) target = $region29
  $region28: #{_lambda_.25} parent=0 // pred_region
    _
  $region29: #{_lambda_.25} parent=0 // pred_fallthru
    _

// kernel: _lambda_.26
$region0: #{_lambda_.26}
  #allocation0 [shape = 'u32[]', space=smem, size = 0x4, offset = 0x4, fixed_abs, tag = 'smem constant byte address 0x4 - core index']
  #allocation1 [shape = 'u32[144,128]{1,0:T(1,128)}', space=vmem, size = 0x12000, scoped, tag = 'internal scratch']
  %s0 = inlined_call_operand.vmem [shape: bf16[128,16], index: 0, kind: input, shape index: {}]
  %s1 = inlined_call_operand.vmem [shape: f32[1,16], index: 1, kind: output, shape index: {0}]
  %s2 = inlined_call_operand.vmem [shape: f32[1,16], index: 2, kind: output, shape index: {1}]
  %3 = xla_tuple %s1, %s2
  %s4 = sld [smem:[#allocation0]]
  $region26: #{_lambda_.26} parent=0
    _
  %s6 = ssub.s32 1, %s4
  %s7 = scalar_select 0, %s6, %s4
  // Predicated region
  $region2: #{_lambda_.26} parent=0 // pred_check
    _
  $region3: #{_lambda_.26} parent=0 // pred_check_branch
    %9 = sbr.rel (0) target = $region5
  $region4: #{_lambda_.26} parent=0 // pred_region
    _
  $region5: #{_lambda_.26} parent=0 // pred_fallthru
    _
  %p10 = scmp.eq.s32.totalorder 0, 0
  // Predicated region
  $region6: #{_lambda_.26} parent=0 // pred_check
    %p11 = pneg %p10
  $region7: #{_lambda_.26} parent=0 // pred_check_branch
    %13 = sbr.rel (%p11) target = $region9
  $region8: #{_lambda_.26} parent=0 // pred_region
    %vm14 = vcmask 122880
    %15 = vst.msk [vmem:[%s1] sm:$0x1] %vm14, 0.0
    %16 = vst.msk [vmem:[%s2] sm:$0x1] %vm14, 0.0
  $region9: #{_lambda_.26} parent=0 // pred_fallthru
    _
  %v17 = vld [vmem:[%s0] sm:$0xf]
  %v18 = vld [vmem:[%s0 + $0x4] sm:$0xf]
  %v19 = vld [vmem:[%s0 + $0x8] sm:$0xf]
  %v20 = vld [vmem:[%s0 + $0xc] sm:$0xf]
  %v21 = vld [vmem:[%s0 + $0x10] sm:$0xf]
  %v22 = vld [vmem:[%s0 + $0x14] sm:$0xf]
  %v23 = vld [vmem:[%s0 + $0x18] sm:$0xf]
  %v24 = vld [vmem:[%s0 + $0x1c] sm:$0xf]
  %v25 = vld [vmem:[%s0 + $0x20] sm:$0xf]
  %v26 = vld [vmem:[%s0 + $0x24] sm:$0xf]
  %v27 = vld [vmem:[%s0 + $0x28] sm:$0xf]
  %v28 = vld [vmem:[%s0 + $0x2c] sm:$0xf]
  %v29 = vld [vmem:[%s0 + $0x30] sm:$0xf]
  %v30 = vld [vmem:[%s0 + $0x34] sm:$0xf]
  %v31 = vld [vmem:[%s0 + $0x38] sm:$0xf]
  %v32 = vld [vmem:[%s0 + $0x3c] sm:$0xf]
  %v33 = vunpack.c.l.bf16 %v17
  %v34 = vunpack.c.l.bf16 %v18
  %v35 = vunpack.c.l.bf16 %v19
  %v36 = vunpack.c.l.bf16 %v20
  %v37 = vunpack.c.l.bf16 %v21
  %v38 = vunpack.c.l.bf16 %v22
  %v39 = vunpack.c.l.bf16 %v23
  %v40 = vunpack.c.l.bf16 %v24
  %v41 = vunpack.c.l.bf16 %v25
  %v42 = vunpack.c.l.bf16 %v26
  %v43 = vunpack.c.l.bf16 %v27
  %v44 = vunpack.c.l.bf16 %v28
  %v45 = vunpack.c.l.bf16 %v29
  %v46 = vunpack.c.l.bf16 %v30
  %v47 = vunpack.c.l.bf16 %v31
  %v48 = vunpack.c.l.bf16 %v32
  %s49 = smul.u32 0, 128
  %v50 = vlaneseq
  %v51 = vshrl.u32 %v50, 7
  %v52 = vadd.s32 %v51, 8
  %v53 = vadd.s32 %v51, 16
  %v54 = vadd.s32 %v51, 24
  %v55 = vadd.s32 %v51, 32
  %v56 = vadd.s32 %v51, 40
  %v57 = vadd.s32 %v51, 48
  %v58 = vadd.s32 %v51, 56
  %v59 = vadd.s32 %v51, 64
  %v60 = vadd.s32 %v51, 72
  %v61 = vadd.s32 %v51, 80
  %v62 = vadd.s32 %v51, 88
  %v63 = vadd.s32 %v51, 96
  %v64 = vadd.s32 %v51, 104
  %v65 = vadd.s32 %v51, 112
  %v66 = vadd.s32 %v51, 120
  %v67 = vstv %s49
  %v68 = vadd.s32 %v67, %v51
  %v69 = vadd.s32 %v67, %v52
  %v70 = vadd.s32 %v67, %v53
  %v71 = vadd.s32 %v67, %v54
  %v72 = vadd.s32 %v67, %v55
  %v73 = vadd.s32 %v67, %v56
  %v74 = vadd.s32 %v67, %v57
  %v75 = vadd.s32 %v67, %v58
  %v76 = vadd.s32 %v67, %v59
  %v77 = vadd.s32 %v67, %v60
  %v78 = vadd.s32 %v67, %v61
  %v79 = vadd.s32 %v67, %v62
  %v80 = vadd.s32 %v67, %v63
  %v81 = vadd.s32 %v67, %v64
  %v82 = vadd.s32 %v67, %v65
  %v83 = vadd.s32 %v67, %v66
  %vm84 = vcmp.lt.s32.totalorder %v68, 128
  %vm85 = vcmp.lt.s32.totalorder %v69, 128
  %vm86 = vcmp.lt.s32.totalorder %v70, 128
  %vm87 = vcmp.lt.s32.totalorder %v71, 128
  %vm88 = vcmp.lt.s32.totalorder %v72, 128
  %vm89 = vcmp.lt.s32.totalorder %v73, 128
  %vm90 = vcmp.lt.s32.totalorder %v74, 128
  %vm91 = vcmp.lt.s32.totalorder %v75, 128
  %vm92 = vcmp.lt.s32.totalorder %v76, 128
  %vm93 = vcmp.lt.s32.totalorder %v77, 128
  %vm94 = vcmp.lt.s32.totalorder %v78, 128
  %vm95 = vcmp.lt.s32.totalorder %v79, 128
  %vm96 = vcmp.lt.s32.totalorder %v80, 128
  %vm97 = vcmp.lt.s32.totalorder %v81, 128
  %vm98 = vcmp.lt.s32.totalorder %v82, 128
  %vm99 = vcmp.lt.s32.totalorder %v83, 128
  %v100 = vsel %vm84, %v33, 0.0
  %v101 = vsel %vm85, %v34, 0.0
  %v102 = vsel %vm86, %v35, 0.0
  %v103 = vsel %vm87, %v36, 0.0
  %v104 = vsel %vm88, %v37, 0.0
  %v105 = vsel %vm89, %v38, 0.0
  %v106 = vsel %vm90, %v39, 0.0
  %v107 = vsel %vm91, %v40, 0.0
  %v108 = vsel %vm92, %v41, 0.0
  %v109 = vsel %vm93, %v42, 0.0
  %v110 = vsel %vm94, %v43, 0.0
  %v111 = vsel %vm95, %v44, 0.0
  %v112 = vsel %vm96, %v45, 0.0
  %v113 = vsel %vm97, %v46, 0.0
  %v114 = vsel %vm98, %v47, 0.0
  %v115 = vsel %vm99, %v48, 0.0
  %v116 = vld [vmem:[%s1] sm:$0x1]
  %vm117 = vcmask 130048
  %v118 = vsel %vm117, %v100, 0.0
  %v119 = vsel %vm117, %v101, 0.0
  %v120 = vadd.f32 %v118, %v119
  %v121 = vsel %vm117, %v102, 0.0
  %v122 = vadd.f32 %v120, %v121
  %v123 = vsel %vm117, %v103, 0.0
  %v124 = vadd.f32 %v122, %v123
  %v125 = vsel %vm117, %v104, 0.0
  %v126 = vadd.f32 %v124, %v125
  %v127 = vsel %vm117, %v105, 0.0
  %v128 = vadd.f32 %v126, %v127
  %v129 = vsel %vm117, %v106, 0.0
  %v130 = vadd.f32 %v128, %v129
  %v131 = vsel %vm117, %v107, 0.0
  %v132 = vadd.f32 %v130, %v131
  %v133 = vsel %vm117, %v108, 0.0
  %v134 = vadd.f32 %v132, %v133
  %v135 = vsel %vm117, %v109, 0.0
  %v136 = vadd.f32 %v134, %v135
  %v137 = vsel %vm117, %v110, 0.0
  %v138 = vadd.f32 %v136, %v137
  %v139 = vsel %vm117, %v111, 0.0
  %v140 = vadd.f32 %v138, %v139
  %v141 = vsel %vm117, %v112, 0.0
  %v142 = vadd.f32 %v140, %v141
  %v143 = vsel %vm117, %v113, 0.0
  %v144 = vadd.f32 %v142, %v143
  %v145 = vsel %vm117, %v114, 0.0
  %v146 = vadd.f32 %v144, %v145
  %v147 = vsel %vm117, %v115, 0.0
  %v148 = vadd.f32 %v146, %v147
  %v149 = vrot.slane %v148, 4
  %v150 = vadd.f32 %v148, %v149
  %v151 = vrot.slane %v150, 2
  %v152 = vadd.f32 %v150, %v151
  %v153 = vrot.slane %v152, 1
  %v154 = vadd.f32 %v152, %v153
  %v155 = vadd.f32 %v116, %v154
  %vm156 = vcmask 122880
  %157 = vst.msk [vmem:[%s1] sm:$0x1] %vm156, %v155
  %v158 = vld [vmem:[%s2] sm:$0x1]
  %v159 = vmul.f32 %v100, %v100
  %v160 = vmul.f32 %v101, %v101
  %v161 = vmul.f32 %v102, %v102
  %v162 = vmul.f32 %v103, %v103
  %v163 = vmul.f32 %v104, %v104
  %v164 = vmul.f32 %v105, %v105
  %v165 = vmul.f32 %v106, %v106
  %v166 = vmul.f32 %v107, %v107
  %v167 = vmul.f32 %v108, %v108
  %v168 = vmul.f32 %v109, %v109
  %v169 = vmul.f32 %v110, %v110
  %v170 = vmul.f32 %v111, %v111
  %v171 = vmul.f32 %v112, %v112
  %v172 = vmul.f32 %v113, %v113
  %v173 = vmul.f32 %v114, %v114
  %v174 = vmul.f32 %v115, %v115
  %v175 = vsel %vm117, %v159, 0.0
  %v176 = vsel %vm117, %v160, 0.0
  %v177 = vadd.f32 %v175, %v176
  %v178 = vsel %vm117, %v161, 0.0
  %v179 = vadd.f32 %v177, %v178
  %v180 = vsel %vm117, %v162, 0.0
  %v181 = vadd.f32 %v179, %v180
  %v182 = vsel %vm117, %v163, 0.0
  %v183 = vadd.f32 %v181, %v182
  %v184 = vsel %vm117, %v164, 0.0
  %v185 = vadd.f32 %v183, %v184
  %v186 = vsel %vm117, %v165, 0.0
  %v187 = vadd.f32 %v185, %v186
  %v188 = vsel %vm117, %v166, 0.0
  %v189 = vadd.f32 %v187, %v188
  %v190 = vsel %vm117, %v167, 0.0
  %v191 = vadd.f32 %v189, %v190
  %v192 = vsel %vm117, %v168, 0.0
  %v193 = vadd.f32 %v191, %v192
  %v194 = vsel %vm117, %v169, 0.0
  %v195 = vadd.f32 %v193, %v194
  %v196 = vsel %vm117, %v170, 0.0
  %v197 = vadd.f32 %v195, %v196
  %v198 = vsel %vm117, %v171, 0.0
  %v199 = vadd.f32 %v197, %v198
  %v200 = vsel %vm117, %v172, 0.0
  %v201 = vadd.f32 %v199, %v200
  %v202 = vsel %vm117, %v173, 0.0
  %v203 = vadd.f32 %v201, %v202
  %v204 = vsel %vm117, %v174, 0.0
  %v205 = vadd.f32 %v203, %v204
  %v206 = vrot.slane %v205, 4
  %v207 = vadd.f32 %v205, %v206
  %v208 = vrot.slane %v207, 2
  %v209 = vadd.f32 %v207, %v208
  %v210 = vrot.slane %v209, 1
  %v211 = vadd.f32 %v209, %v210
  %v212 = vadd.f32 %v158, %v211
  %213 = vst.msk [vmem:[%s2] sm:$0x1] %vm156, %v212
  // Predicated region
  $region10: #{_lambda_.26} parent=0 // pred_check
    _
  $region11: #{_lambda_.26} parent=0 // pred_check_branch
    %215 = sbr.rel (0) target = $region13
  $region12: #{_lambda_.26} parent=0 // pred_region
    _
  $region13: #{_lambda_.26} parent=0 // pred_fallthru
    _
  // Predicated region
  $region14: #{_lambda_.26} parent=0 // pred_check
    _
  $region15: #{_lambda_.26} parent=0 // pred_check_branch
    %217 = sbr.rel (0) target = $region17
  $region16: #{_lambda_.26} parent=0 // pred_region
    _
  $region17: #{_lambda_.26} parent=0 // pred_fallthru
    _
  // Predicated region
  $region18: #{_lambda_.26} parent=0 // pred_check
    _
  $region19: #{_lambda_.26} parent=0 // pred_check_branch
    %219 = sbr.rel (0) target = $region21
  $region20: #{_lambda_.26} parent=0 // pred_region
    _
  $region21: #{_lambda_.26} parent=0 // pred_fallthru
    _
  // Predicated region
  $region22: #{_lambda_.26} parent=0 // pred_check
    _
  $region23: #{_lambda_.26} parent=0 // pred_check_branch
    %221 = sbr.rel (0) target = $region25
  $region24: #{_lambda_.26} parent=0 // pred_region
    _
  $region25: #{_lambda_.26} parent=0 // pred_fallthru
    _

// kernel: _lambda_.27
$region0: #{_lambda_.27}
  #allocation0 [shape = 'u32[]', space=smem, size = 0x4, offset = 0x4, fixed_abs, tag = 'smem constant byte address 0x4 - core index']
  #allocation1 [shape = 'u32[144,128]{1,0:T(1,128)}', space=vmem, size = 0x12000, scoped, tag = 'internal scratch']
  %s0 = inlined_call_operand.vmem [shape: bf16[128,16], index: 0, kind: input, shape index: {}]
  %s1 = inlined_call_operand.vmem [shape: f32[1,16], index: 1, kind: input, shape index: {}]
  %s2 = inlined_call_operand.vmem [shape: f32[1,16], index: 2, kind: input, shape index: {}]
  %s3 = inlined_call_operand.vmem [shape: bf16[128,16], index: 3, kind: output, shape index: {}]
  %s4 = sld [smem:[#allocation0]]
  $region22: #{_lambda_.27} parent=0
    _
  %s6 = ssub.s32 1, %s4
  %s7 = scalar_select 0, %s6, %s4
  // Predicated region
  $region2: #{_lambda_.27} parent=0 // pred_check
    _
  $region3: #{_lambda_.27} parent=0 // pred_check_branch
    %9 = sbr.rel (0) target = $region5
  $region4: #{_lambda_.27} parent=0 // pred_region
    _
  $region5: #{_lambda_.27} parent=0 // pred_fallthru
    _
  // Predicated region
  $region6: #{_lambda_.27} parent=0 // pred_check
    _
  $region7: #{_lambda_.27} parent=0 // pred_check_branch
    %11 = sbr.rel (0) target = $region9
  $region8: #{_lambda_.27} parent=0 // pred_region
    _
  $region9: #{_lambda_.27} parent=0 // pred_fallthru
    _
  // Predicated region
  $region10: #{_lambda_.27} parent=0 // pred_check
    _
  $region11: #{_lambda_.27} parent=0 // pred_check_branch
    %13 = sbr.rel (0) target = $region13
  $region12: #{_lambda_.27} parent=0 // pred_region
    _
  $region13: #{_lambda_.27} parent=0 // pred_fallthru
    _
  %v14 = vld [vmem:[%s0] sm:$0xf]
  %v15 = vld [vmem:[%s0 + $0x4] sm:$0xf]
  %v16 = vld [vmem:[%s0 + $0x8] sm:$0xf]
  %v17 = vld [vmem:[%s0 + $0xc] sm:$0xf]
  %v18 = vld [vmem:[%s0 + $0x10] sm:$0xf]
  %v19 = vld [vmem:[%s0 + $0x14] sm:$0xf]
  %v20 = vld [vmem:[%s0 + $0x18] sm:$0xf]
  %v21 = vld [vmem:[%s0 + $0x1c] sm:$0xf]
  %v22 = vld [vmem:[%s0 + $0x20] sm:$0xf]
  %v23 = vld [vmem:[%s0 + $0x24] sm:$0xf]
  %v24 = vld [vmem:[%s0 + $0x28] sm:$0xf]
  %v25 = vld [vmem:[%s0 + $0x2c] sm:$0xf]
  %v26 = vld [vmem:[%s0 + $0x30] sm:$0xf]
  %v27 = vld [vmem:[%s0 + $0x34] sm:$0xf]
  %v28 = vld [vmem:[%s0 + $0x38] sm:$0xf]
  %v29 = vld [vmem:[%s0 + $0x3c] sm:$0xf]
  %v30 = vunpack.c.l.bf16 %v14
  %v31 = vunpack.c.l.bf16 %v15
  %v32 = vunpack.c.l.bf16 %v16
  %v33 = vunpack.c.l.bf16 %v17
  %v34 = vunpack.c.l.bf16 %v18
  %v35 = vunpack.c.l.bf16 %v19
  %v36 = vunpack.c.l.bf16 %v20
  %v37 = vunpack.c.l.bf16 %v21
  %v38 = vunpack.c.l.bf16 %v22
  %v39 = vunpack.c.l.bf16 %v23
  %v40 = vunpack.c.l.bf16 %v24
  %v41 = vunpack.c.l.bf16 %v25
  %v42 = vunpack.c.l.bf16 %v26
  %v43 = vunpack.c.l.bf16 %v27
  %v44 = vunpack.c.l.bf16 %v28
  %v45 = vunpack.c.l.bf16 %v29
  %v46 = vld [vmem:[%s1] sm:$0x1]
  %v48 = vlaneseq
  %v49 = vshrl.u32 %v48, 7
  %v50 = vsub.s32 0, %v49
  %v51 = vrot.slane %v46, %v50
  %v53 = vmul.f32 %v30, %v51
  %v54 = vmul.f32 %v31, %v51
  %v55 = vmul.f32 %v32, %v51
  %v56 = vmul.f32 %v33, %v51
  %v57 = vmul.f32 %v34, %v51
  %v58 = vmul.f32 %v35, %v51
  %v59 = vmul.f32 %v36, %v51
  %v60 = vmul.f32 %v37, %v51
  %v61 = vmul.f32 %v38, %v51
  %v62 = vmul.f32 %v39, %v51
  %v63 = vmul.f32 %v40, %v51
  %v64 = vmul.f32 %v41, %v51
  %v65 = vmul.f32 %v42, %v51
  %v66 = vmul.f32 %v43, %v51
  %v67 = vmul.f32 %v44, %v51
  %v68 = vmul.f32 %v45, %v51
  %v69 = vld [vmem:[%s2] sm:$0x1]
  %v71 = vlaneseq
  %v72 = vshrl.u32 %v71, 7
  %v73 = vsub.s32 0, %v72
  %v74 = vrot.slane %v69, %v73
  %v76 = vadd.f32 %v53, %v74
  %v77 = vadd.f32 %v54, %v74
  %v78 = vadd.f32 %v55, %v74
  %v79 = vadd.f32 %v56, %v74
  %v80 = vadd.f32 %v57, %v74
  %v81 = vadd.f32 %v58, %v74
  %v82 = vadd.f32 %v59, %v74
  %v83 = vadd.f32 %v60, %v74
  %v84 = vadd.f32 %v61, %v74
  %v85 = vadd.f32 %v62, %v74
  %v86 = vadd.f32 %v63, %v74
  %v87 = vadd.f32 %v64, %v74
  %v88 = vadd.f32 %v65, %v74
  %v89 = vadd.f32 %v66, %v74
  %v90 = vadd.f32 %v67, %v74
  %v91 = vadd.f32 %v68, %v74
  %v92 = vpack.c.bf16 %v77, %v76
  %v93 = vpack.c.bf16 %v79, %v78
  %v94 = vpack.c.bf16 %v81, %v80
  %v95 = vpack.c.bf16 %v83, %v82
  %v96 = vpack.c.bf16 %v85, %v84
  %v97 = vpack.c.bf16 %v87, %v86
  %v98 = vpack.c.bf16 %v89, %v88
  %v99 = vpack.c.bf16 %v91, %v90
  %v108 = vunpack.c.l.b16 %v92
  %v109 = vunpack.c.h.b16 %v92
  %v110 = vunpack.c.l.b16 %v93
  %v111 = vunpack.c.h.b16 %v93
  %v112 = vunpack.c.l.b16 %v94
  %v113 = vunpack.c.h.b16 %v94
  %v114 = vunpack.c.l.b16 %v95
  %v115 = vunpack.c.h.b16 %v95
  %v116 = vunpack.c.l.b16 %v96
  %v117 = vunpack.c.h.b16 %v96
  %v118 = vunpack.c.l.b16 %v97
  %v119 = vunpack.c.h.b16 %v97
  %v120 = vunpack.c.l.b16 %v98
  %v121 = vunpack.c.h.b16 %v98
  %v122 = vunpack.c.l.b16 %v99
  %v123 = vunpack.c.h.b16 %v99
  %v124 = vpack.c.b16 %v108, %v108
  %v125 = vpack.c.b16 %v109, %v109
  %v126 = vpack.c.b16 %v110, %v110
  %v127 = vpack.c.b16 %v111, %v111
  %v128 = vpack.c.b16 %v112, %v112
  %v129 = vpack.c.b16 %v113, %v113
  %v130 = vpack.c.b16 %v114, %v114
  %v131 = vpack.c.b16 %v115, %v115
  %v132 = vpack.c.b16 %v116, %v116
  %v133 = vpack.c.b16 %v117, %v117
  %v134 = vpack.c.b16 %v118, %v118
  %v135 = vpack.c.b16 %v119, %v119
  %v136 = vpack.c.b16 %v120, %v120
  %v137 = vpack.c.b16 %v121, %v121
  %v138 = vpack.c.b16 %v122, %v122
  %v139 = vpack.c.b16 %v123, %v123
  %vm156 = vcmask 125952
  %157 = vst.msk [vmem:[%s3] sm:$0xf] %vm156, %v124
  %158 = vst.msk [vmem:[%s3 + $0x4] sm:$0xf] %vm156, %v125
  %159 = vst.msk [vmem:[%s3 + $0x8] sm:$0xf] %vm156, %v126
  %160 = vst.msk [vmem:[%s3 + $0xc] sm:$0xf] %vm156, %v127
  %161 = vst.msk [vmem:[%s3 + $0x10] sm:$0xf] %vm156, %v128
  %162 = vst.msk [vmem:[%s3 + $0x14] sm:$0xf] %vm156, %v129
  %163 = vst.msk [vmem:[%s3 + $0x18] sm:$0xf] %vm156, %v130
  %164 = vst.msk [vmem:[%s3 + $0x1c] sm:$0xf] %vm156, %v131
  %165 = vst.msk [vmem:[%s3 + $0x20] sm:$0xf] %vm156, %v132
  %166 = vst.msk [vmem:[%s3 + $0x24] sm:$0xf] %vm156, %v133
  %167 = vst.msk [vmem:[%s3 + $0x28] sm:$0xf] %vm156, %v134
  %168 = vst.msk [vmem:[%s3 + $0x2c] sm:$0xf] %vm156, %v135
  %169 = vst.msk [vmem:[%s3 + $0x30] sm:$0xf] %vm156, %v136
  %170 = vst.msk [vmem:[%s3 + $0x34] sm:$0xf] %vm156, %v137
  %171 = vst.msk [vmem:[%s3 + $0x38] sm:$0xf] %vm156, %v138
  %172 = vst.msk [vmem:[%s3 + $0x3c] sm:$0xf] %vm156, %v139
  // Predicated region
  $region14: #{_lambda_.27} parent=0 // pred_check
    _
  $region15: #{_lambda_.27} parent=0 // pred_check_branch
    %174 = sbr.rel (0) target = $region17
  $region16: #{_lambda_.27} parent=0 // pred_region
    _
  $region17: #{_lambda_.27} parent=0 // pred_fallthru
    _
  // Predicated region
  $region18: #{_lambda_.27} parent=0 // pred_check
    _
  $region19: #{_lambda_.27} parent=0 // pred_check_branch
    %176 = sbr.rel (0) target = $region21
  $region20: #{_lambda_.27} parent=0 // pred_region
    _
  $region21: #{_lambda_.27} parent=0 // pred_fallthru
    _

// kernel: _lambda_.28
$region0: #{_lambda_.28}
  #allocation0 [shape = 'u32[]', space=smem, size = 0x4, offset = 0x4, fixed_abs, tag = 'smem constant byte address 0x4 - core index']
  #allocation1 [shape = 'u32[144,128]{1,0:T(1,128)}', space=vmem, size = 0x12000, scoped, tag = 'internal scratch']
  #allocation2 [shape = 'f32[32,32]{1,0:T(8,128)}', space=vmem, size = 0x4000, scoped, tag = 'scratch operand']
  %s0 = inlined_call_operand.vmem [shape: bf16[32,256], index: 0, kind: input, shape index: {}]
  %s1 = inlined_call_operand.vmem [shape: bf16[256,32], index: 1, kind: input, shape index: {}]
  %s2 = inlined_call_operand.vmem [shape: f32[1,32], index: 2, kind: input, shape index: {}]
  %s3 = inlined_call_operand.vmem [shape: bf16[32,32], index: 3, kind: output, shape index: {}]
  %s4 = sld [smem:[#allocation0]]
  $region30: #{_lambda_.28} parent=0
    _
  %s6 = ssub.s32 1, %s4
  %s7 = scalar_select 0, %s6, %s4
  // Predicated region
  $region2: #{_lambda_.28} parent=0 // pred_check
    _
  $region3: #{_lambda_.28} parent=0 // pred_check_branch
    %9 = sbr.rel (0) target = $region5
  $region4: #{_lambda_.28} parent=0 // pred_region
    _
  $region5: #{_lambda_.28} parent=0 // pred_fallthru
    _
  // Predicated region
  $region6: #{_lambda_.28} parent=0 // pred_check
    _
  $region7: #{_lambda_.28} parent=0 // pred_check_branch
    %11 = sbr.rel (0) target = $region9
  $region8: #{_lambda_.28} parent=0 // pred_region
    _
  $region9: #{_lambda_.28} parent=0 // pred_fallthru
    _
  // Predicated region
  $region10: #{_lambda_.28} parent=0 // pred_check
    _
  $region11: #{_lambda_.28} parent=0 // pred_check_branch
    %13 = sbr.rel (0) target = $region13
  $region12: #{_lambda_.28} parent=0 // pred_region
    _
  $region13: #{_lambda_.28} parent=0 // pred_fallthru
    _
  %p15 = scmp.eq.s32.totalorder 0, 0
  // Predicated region
  $region14: #{_lambda_.28} parent=0 // pred_check
    %p16 = pneg %p15
  $region15: #{_lambda_.28} parent=0 // pred_check_branch
    %18 = sbr.rel (%p16) target = $region17
  $region16: #{_lambda_.28} parent=0 // pred_region
    %vm19 = vcmask 261120
    %20 = vst.msk [vmem:[#allocation2] sm:$0xff] %vm19, 0.0
    %21 = vst.msk [vmem:[#allocation2 + $0x8] sm:$0xff] %vm19, 0.0
    %22 = vst.msk [vmem:[#allocation2 + $0x10] sm:$0xff] %vm19, 0.0
    %23 = vst.msk [vmem:[#allocation2 + $0x18] sm:$0xff] %vm19, 0.0
  $region17: #{_lambda_.28} parent=0 // pred_fallthru
    _
  %v24 = vld [vmem:[#allocation2] sm:$0xff]
  %v25 = vld [vmem:[#allocation2 + $0x8] sm:$0xff]
  %v26 = vld [vmem:[#allocation2 + $0x10] sm:$0xff]
  %v27 = vld [vmem:[#allocation2 + $0x18] sm:$0xff]
  %v28 = vld [vmem:[%s0] sm:$0xff]
  %v29 = vld [vmem:[%s0 + $0x8] sm:$0xff]
  %v30 = vld [vmem:[%s0 + $0x10] sm:$0xff]
  %v31 = vld [vmem:[%s0 + $0x18] sm:$0xff]
  %v32 = vld [vmem:[%s1] sm:$0xf]
  %v33 = vld [vmem:[%s1 + $0x4] sm:$0xf]
  %v34 = vld [vmem:[%s1 + $0x8] sm:$0xf]
  %v35 = vld [vmem:[%s1 + $0xc] sm:$0xf]
  %v36 = vld [vmem:[%s1 + $0x10] sm:$0xf]
  %v37 = vld [vmem:[%s1 + $0x14] sm:$0xf]
  %v38 = vld [vmem:[%s1 + $0x18] sm:$0xf]
  %v39 = vld [vmem:[%s1 + $0x1c] sm:$0xf]
  %v40 = vld [vmem:[%s1 + $0x20] sm:$0xf]
  %v41 = vld [vmem:[%s1 + $0x24] sm:$0xf]
  %v42 = vld [vmem:[%s1 + $0x28] sm:$0xf]
  %v43 = vld [vmem:[%s1 + $0x2c] sm:$0xf]
  %v44 = vld [vmem:[%s1 + $0x30] sm:$0xf]
  %v45 = vld [vmem:[%s1 + $0x34] sm:$0xf]
  %v46 = vld [vmem:[%s1 + $0x38] sm:$0xf]
  %v47 = vld [vmem:[%s1 + $0x3c] sm:$0xf]
  %v48 = vld [vmem:[%s1 + $0x40] sm:$0xf]
  %v49 = vld [vmem:[%s1 + $0x44] sm:$0xf]
  %v50 = vld [vmem:[%s1 + $0x48] sm:$0xf]
  %v51 = vld [vmem:[%s1 + $0x4c] sm:$0xf]
  %v52 = vld [vmem:[%s1 + $0x50] sm:$0xf]
  %v53 = vld [vmem:[%s1 + $0x54] sm:$0xf]
  %v54 = vld [vmem:[%s1 + $0x58] sm:$0xf]
  %v55 = vld [vmem:[%s1 + $0x5c] sm:$0xf]
  %v56 = vld [vmem:[%s1 + $0x60] sm:$0xf]
  %v57 = vld [vmem:[%s1 + $0x64] sm:$0xf]
  %v58 = vld [vmem:[%s1 + $0x68] sm:$0xf]
  %v59 = vld [vmem:[%s1 + $0x6c] sm:$0xf]
  %v60 = vld [vmem:[%s1 + $0x70] sm:$0xf]
  %v61 = vld [vmem:[%s1 + $0x74] sm:$0xf]
  %v62 = vld [vmem:[%s1 + $0x78] sm:$0xf]
  %v63 = vld [vmem:[%s1 + $0x7c] sm:$0xf]
  %v68 = vunpack.c.l.b16 %v28
  %v69 = vunpack.c.h.b16 %v28
  %v70 = vunpack.c.l.b16 %v29
  %v71 = vunpack.c.h.b16 %v29
  %v72 = vunpack.c.l.b16 %v30
  %v73 = vunpack.c.h.b16 %v30
  %v74 = vunpack.c.l.b16 %v31
  %v75 = vunpack.c.h.b16 %v31
  %v76 = vpack.c.b16 %v70, %v68
  %v77 = vpack.c.b16 %v71, %v69
  %v78 = vpack.c.b16 %v74, %v72
  %v79 = vpack.c.b16 %v75, %v73
  %v116 = vunpack.c.l.b16 %v32
  %v117 = vunpack.c.l.b16 %v33
  %v118 = vunpack.c.l.b16 %v34
  %v119 = vunpack.c.l.b16 %v35
  %v120 = vunpack.c.l.b16 %v36
  %v121 = vunpack.c.l.b16 %v37
  %v122 = vunpack.c.l.b16 %v38
  %v123 = vunpack.c.l.b16 %v39
  %v124 = vunpack.c.l.b16 %v40
  %v125 = vunpack.c.l.b16 %v41
  %v126 = vunpack.c.l.b16 %v42
  %v127 = vunpack.c.l.b16 %v43
  %v128 = vunpack.c.l.b16 %v44
  %v129 = vunpack.c.l.b16 %v45
  %v130 = vunpack.c.l.b16 %v46
  %v131 = vunpack.c.l.b16 %v47
  %v132 = vunpack.c.l.b16 %v48
  %v133 = vunpack.c.l.b16 %v49
  %v134 = vunpack.c.l.b16 %v50
  %v135 = vunpack.c.l.b16 %v51
  %v136 = vunpack.c.l.b16 %v52
  %v137 = vunpack.c.l.b16 %v53
  %v138 = vunpack.c.l.b16 %v54
  %v139 = vunpack.c.l.b16 %v55
  %v140 = vunpack.c.l.b16 %v56
  %v141 = vunpack.c.l.b16 %v57
  %v142 = vunpack.c.l.b16 %v58
  %v143 = vunpack.c.l.b16 %v59
  %v144 = vunpack.c.l.b16 %v60
  %v145 = vunpack.c.l.b16 %v61
  %v146 = vunpack.c.l.b16 %v62
  %v147 = vunpack.c.l.b16 %v63
  %v148 = vpack.c.b16 %v117, %v116
  %v149 = vpack.c.b16 %v119, %v118
  %v150 = vpack.c.b16 %v121, %v120
  %v151 = vpack.c.b16 %v123, %v122
  %v152 = vpack.c.b16 %v125, %v124
  %v153 = vpack.c.b16 %v127, %v126
  %v154 = vpack.c.b16 %v129, %v128
  %v155 = vpack.c.b16 %v131, %v130
  %v156 = vpack.c.b16 %v133, %v132
  %v157 = vpack.c.b16 %v135, %v134
  %v158 = vpack.c.b16 %v137, %v136
  %v159 = vpack.c.b16 %v139, %v138
  %v160 = vpack.c.b16 %v141, %v140
  %v161 = vpack.c.b16 %v143, %v142
  %v162 = vpack.c.b16 %v145, %v144
  %v163 = vpack.c.b16 %v147, %v146
  %180 = vmatprep.subr.bf16.mxu0 0
  %181 = vmatpush1.bf16.msra.mxu0 %v148
  %182 = vmatprep.subr.bf16.mxu0 0
  %183 = vmatpush1.bf16.msra.mxu0 %v149
  %184 = vmatprep.subr.bf16.mxu0 0
  %185 = vmatpush1.bf16.msra.mxu0 %v150
  %186 = vmatprep.subr.bf16.mxu0 0
  %187 = vmatpush1.bf16.msra.mxu0 %v151
  %188 = vmatprep.subr.bf16.mxu0 0
  %189 = vmatpush1.bf16.msra.mxu0 %v152
  %190 = vmatprep.subr.bf16.mxu0 0
  %191 = vmatpush1.bf16.msra.mxu0 %v153
  %192 = vmatprep.subr.bf16.mxu0 0
  %193 = vmatpush1.bf16.msra.mxu0 %v154
  %194 = vmatprep.subr.bf16.mxu0 0
  %195 = vmatpush1.bf16.msra.mxu0 %v155
  %196 = vmatprep.subr.bf16.mxu0 0
  %197 = vmatpush1.bf16.msra.mxu0 %v156
  %198 = vmatprep.subr.bf16.mxu0 0
  %199 = vmatpush1.bf16.msra.mxu0 %v157
  %200 = vmatprep.subr.bf16.mxu0 0
  %201 = vmatpush1.bf16.msra.mxu0 %v158
  %202 = vmatprep.subr.bf16.mxu0 0
  %203 = vmatpush1.bf16.msra.mxu0 %v159
  %204 = vmatprep.subr.bf16.mxu0 0
  %205 = vmatpush1.bf16.msra.mxu0 %v160
  %206 = vmatprep.subr.bf16.mxu0 0
  %207 = vmatpush1.bf16.msra.mxu0 %v161
  %208 = vmatprep.subr.bf16.mxu0 0
  %209 = vmatpush1.bf16.msra.mxu0 %v162
  %210 = vmatprep.subr.bf16.mxu0 0
  %211 = vmatpush1.bf16.msra.mxu0 %v163
  %212 = vmatprep.mubr.bf16.mxu0 %v77
  %213 = vmatmul.mubr.bf16.gmra.mrb[0].mxu0 %v76
  %v214 = vpop.f32.mrb[0].mxu0
  %v215 = vadd.f32 0.0, %v214
  %v216 = vpop.f32.mrb[0].mxu0
  %v217 = vpop.f32.mrb[0].mxu0
  %v218 = vadd.f32 0.0, %v217
  %v219 = vpop.f32.mrb[0].mxu0
  %220 = vmatprep.mubr.bf16.mxu0 %v79
  %221 = vmatmul.mubr.bf16.gmra.mrb[0].mxu0 %v78
  %v222 = vpop.f32.mrb[0].mxu0
  %v223 = vadd.f32 0.0, %v222
  %v224 = vpop.f32.mrb[0].mxu0
  %v225 = vpop.f32.mrb[0].mxu0
  %v226 = vadd.f32 0.0, %v225
  %v227 = vpop.f32.mrb[0].mxu0
  %228 = vdwg.mxu0
  %v229 = vadd.f32 %v24, %v215
  %v230 = vadd.f32 %v25, %v218
  %v231 = vadd.f32 %v26, %v223
  %v232 = vadd.f32 %v27, %v226
  %vm233 = vcmask 261120
  %234 = vst.msk [vmem:[#allocation2] sm:$0xff] %vm233, %v229
  %235 = vst.msk [vmem:[#allocation2 + $0x8] sm:$0xff] %vm233, %v230
  %236 = vst.msk [vmem:[#allocation2 + $0x10] sm:$0xff] %vm233, %v231
  %237 = vst.msk [vmem:[#allocation2 + $0x18] sm:$0xff] %vm233, %v232
  // Predicated region
  $region18: #{_lambda_.28} parent=0 // pred_check
    %p238 = pneg %p15
  $region19: #{_lambda_.28} parent=0 // pred_check_branch
    %240 = sbr.rel (%p238) target = $region21
  $region20: #{_lambda_.28} parent=0 // pred_region
    %v241 = vld [vmem:[#allocation2] sm:$0xff]
    %v242 = vld [vmem:[#allocation2 + $0x8] sm:$0xff]
    %v243 = vld [vmem:[#allocation2 + $0x10] sm:$0xff]
    %v244 = vld [vmem:[#allocation2 + $0x18] sm:$0xff]
    %v245 = vld [vmem:[%s2] sm:$0x1]
    %v247 = vlaneseq
    %v248 = vshrl.u32 %v247, 7
    %v249 = vsub.s32 0, %v248
    %v250 = vrot.slane %v245, %v249
    %v252 = vadd.f32 %v241, %v250
    %v253 = vadd.f32 %v242, %v250
    %v254 = vadd.f32 %v243, %v250
    %v255 = vadd.f32 %v244, %v250
    %v256 = vpack.c.bf16 %v253, %v252
    %v257 = vpack.c.bf16 %v255, %v254
    %v260 = vunpack.c.l.b16 %v256
    %v261 = vunpack.c.h.b16 %v256
    %v262 = vunpack.c.l.b16 %v257
    %v263 = vunpack.c.h.b16 %v257
    %v264 = vpack.c.b16 %v260, %v260
    %v265 = vpack.c.b16 %v261, %v261
    %v266 = vpack.c.b16 %v262, %v262
    %v267 = vpack.c.b16 %v263, %v263
    %vm272 = vcmask 257024
    %273 = vst.msk [vmem:[%s3] sm:$0xf] %vm272, %v264
    %274 = vst.msk [vmem:[%s3 + $0x4] sm:$0xf] %vm272, %v265
    %275 = vst.msk [vmem:[%s3 + $0x8] sm:$0xf] %vm272, %v266
    %276 = vst.msk [vmem:[%s3 + $0xc] sm:$0xf] %vm272, %v267
  $region21: #{_lambda_.28} parent=0 // pred_fallthru
    _
  // Predicated region
  $region22: #{_lambda_.28} parent=0 // pred_check
    _
  $region23: #{_lambda_.28} parent=0 // pred_check_branch
    %278 = sbr.rel (0) target = $region25
  $region24: #{_lambda_.28} parent=0 // pred_region
    _
  $region25: #{_lambda_.28} parent=0 // pred_fallthru
    _
  // Predicated region
  $region26: #{_lambda_.28} parent=0 // pred_check
    _
  $region27: #{_lambda_.28} parent=0 // pred_check_branch
    %280 = sbr.rel (0) target = $region29
  $region28: #{_lambda_.28} parent=0 // pred_region
    _
  $region29: #{_lambda_.28} parent=0 // pred_fallthru
    _

// kernel: _lambda_.29
$region0: #{_lambda_.29}
  #allocation0 [shape = 'u32[]', space=smem, size = 0x4, offset = 0x4, fixed_abs, tag = 'smem constant byte address 0x4 - core index']
  #allocation1 [shape = 'u32[144,128]{1,0:T(1,128)}', space=vmem, size = 0x12000, scoped, tag = 'internal scratch']
  %s0 = inlined_call_operand.vmem [shape: bf16[32,32], index: 0, kind: input, shape index: {}]
  %s1 = inlined_call_operand.vmem [shape: f32[1,32], index: 1, kind: output, shape index: {0}]
  %s2 = inlined_call_operand.vmem [shape: f32[1,32], index: 2, kind: output, shape index: {1}]
  %3 = xla_tuple %s1, %s2
  %s4 = sld [smem:[#allocation0]]
  $region26: #{_lambda_.29} parent=0
    _
  %s6 = ssub.s32 1, %s4
  %s7 = scalar_select 0, %s6, %s4
  // Predicated region
  $region2: #{_lambda_.29} parent=0 // pred_check
    _
  $region3: #{_lambda_.29} parent=0 // pred_check_branch
    %9 = sbr.rel (0) target = $region5
  $region4: #{_lambda_.29} parent=0 // pred_region
    _
  $region5: #{_lambda_.29} parent=0 // pred_fallthru
    _
  %p10 = scmp.eq.s32.totalorder 0, 0
  // Predicated region
  $region6: #{_lambda_.29} parent=0 // pred_check
    %p11 = pneg %p10
  $region7: #{_lambda_.29} parent=0 // pred_check_branch
    %13 = sbr.rel (%p11) target = $region9
  $region8: #{_lambda_.29} parent=0 // pred_region
    %vm14 = vcmask 253952
    %15 = vst.msk [vmem:[%s1] sm:$0x1] %vm14, 0.0
    %16 = vst.msk [vmem:[%s2] sm:$0x1] %vm14, 0.0
  $region9: #{_lambda_.29} parent=0 // pred_fallthru
    _
  %v17 = vld [vmem:[%s0] sm:$0xf]
  %v18 = vld [vmem:[%s0 + $0x4] sm:$0xf]
  %v19 = vld [vmem:[%s0 + $0x8] sm:$0xf]
  %v20 = vld [vmem:[%s0 + $0xc] sm:$0xf]
  %v21 = vunpack.c.l.bf16 %v17
  %v22 = vunpack.c.l.bf16 %v18
  %v23 = vunpack.c.l.bf16 %v19
  %v24 = vunpack.c.l.bf16 %v20
  %s25 = smul.u32 0, 32
  %v26 = vlaneseq
  %v27 = vshrl.u32 %v26, 7
  %v28 = vadd.s32 %v27, 8
  %v29 = vadd.s32 %v27, 16
  %v30 = vadd.s32 %v27, 24
  %v31 = vstv %s25
  %v32 = vadd.s32 %v31, %v27
  %v33 = vadd.s32 %v31, %v28
  %v34 = vadd.s32 %v31, %v29
  %v35 = vadd.s32 %v31, %v30
  %vm36 = vcmp.lt.s32.totalorder %v32, 32
  %vm37 = vcmp.lt.s32.totalorder %v33, 32
  %vm38 = vcmp.lt.s32.totalorder %v34, 32
  %vm39 = vcmp.lt.s32.totalorder %v35, 32
  %v40 = vsel %vm36, %v21, 0.0
  %v41 = vsel %vm37, %v22, 0.0
  %v42 = vsel %vm38, %v23, 0.0
  %v43 = vsel %vm39, %v24, 0.0
  %v44 = vld [vmem:[%s1] sm:$0x1]
  %vm45 = vcmask 261120
  %v46 = vsel %vm45, %v40, 0.0
  %v47 = vsel %vm45, %v41, 0.0
  %v48 = vadd.f32 %v46, %v47
  %v49 = vsel %vm45, %v42, 0.0
  %v50 = vadd.f32 %v48, %v49
  %v51 = vsel %vm45, %v43, 0.0
  %v52 = vadd.f32 %v50, %v51
  %v53 = vrot.slane %v52, 4
  %v54 = vadd.f32 %v52, %v53
  %v55 = vrot.slane %v54, 2
  %v56 = vadd.f32 %v54, %v55
  %v57 = vrot.slane %v56, 1
  %v58 = vadd.f32 %v56, %v57
  %v59 = vadd.f32 %v44, %v58
  %vm60 = vcmask 253952
  %61 = vst.msk [vmem:[%s1] sm:$0x1] %vm60, %v59
  %v62 = vld [vmem:[%s2] sm:$0x1]
  %v63 = vmul.f32 %v40, %v40
  %v64 = vmul.f32 %v41, %v41
  %v65 = vmul.f32 %v42, %v42
  %v66 = vmul.f32 %v43, %v43
  %v67 = vsel %vm45, %v63, 0.0
  %v68 = vsel %vm45, %v64, 0.0
  %v69 = vadd.f32 %v67, %v68
  %v70 = vsel %vm45, %v65, 0.0
  %v71 = vadd.f32 %v69, %v70
  %v72 = vsel %vm45, %v66, 0.0
  %v73 = vadd.f32 %v71, %v72
  %v74 = vrot.slane %v73, 4
  %v75 = vadd.f32 %v73, %v74
  %v76 = vrot.slane %v75, 2
  %v77 = vadd.f32 %v75, %v76
  %v78 = vrot.slane %v77, 1
  %v79 = vadd.f32 %v77, %v78
  %v80 = vadd.f32 %v62, %v79
  %81 = vst.msk [vmem:[%s2] sm:$0x1] %vm60, %v80
  // Predicated region
  $region10: #{_lambda_.29} parent=0 // pred_check
    _
  $region11: #{_lambda_.29} parent=0 // pred_check_branch
    %83 = sbr.rel (0) target = $region13
  $region12: #{_lambda_.29} parent=0 // pred_region
    _
  $region13: #{_lambda_.29} parent=0 // pred_fallthru
    _
  // Predicated region
  $region14: #{_lambda_.29} parent=0 // pred_check
    _
  $region15: #{_lambda_.29} parent=0 // pred_check_branch
    %85 = sbr.rel (0) target = $region17
  $region16: #{_lambda_.29} parent=0 // pred_region
    _
  $region17: #{_lambda_.29} parent=0 // pred_fallthru
    _
  // Predicated region
  $region18: #{_lambda_.29} parent=0 // pred_check
    _
  $region19: #{_lambda_.29} parent=0 // pred_check_branch
    %87 = sbr.rel (0) target = $region21
  $region20: #{_lambda_.29} parent=0 // pred_region
    _
  $region21: #{_lambda_.29} parent=0 // pred_fallthru
    _
  // Predicated region
  $region22: #{_lambda_.29} parent=0 // pred_check
    _
  $region23: #{_lambda_.29} parent=0 // pred_check_branch
    %89 = sbr.rel (0) target = $region25
  $region24: #{_lambda_.29} parent=0 // pred_region
    _
  $region25: #{_lambda_.29} parent=0 // pred_fallthru
    _

// kernel: _lambda_.30
$region0: #{_lambda_.30}
  #allocation0 [shape = 'u32[]', space=smem, size = 0x4, offset = 0x4, fixed_abs, tag = 'smem constant byte address 0x4 - core index']
  #allocation1 [shape = 'u32[144,128]{1,0:T(1,128)}', space=vmem, size = 0x12000, scoped, tag = 'internal scratch']
  %s0 = inlined_call_operand.vmem [shape: bf16[32,32], index: 0, kind: input, shape index: {}]
  %s1 = inlined_call_operand.vmem [shape: f32[1,32], index: 1, kind: input, shape index: {}]
  %s2 = inlined_call_operand.vmem [shape: f32[1,32], index: 2, kind: input, shape index: {}]
  %s3 = inlined_call_operand.vmem [shape: bf16[32,32], index: 3, kind: output, shape index: {}]
  %s4 = sld [smem:[#allocation0]]
  $region22: #{_lambda_.30} parent=0
    _
  %s6 = ssub.s32 1, %s4
  %s7 = scalar_select 0, %s6, %s4
  // Predicated region
  $region2: #{_lambda_.30} parent=0 // pred_check
    _
  $region3: #{_lambda_.30} parent=0 // pred_check_branch
    %9 = sbr.rel (0) target = $region5
  $region4: #{_lambda_.30} parent=0 // pred_region
    _
  $region5: #{_lambda_.30} parent=0 // pred_fallthru
    _
  // Predicated region
  $region6: #{_lambda_.30} parent=0 // pred_check
    _
  $region7: #{_lambda_.30} parent=0 // pred_check_branch
    %11 = sbr.rel (0) target = $region9
  $region8: #{_lambda_.30} parent=0 // pred_region
    _
  $region9: #{_lambda_.30} parent=0 // pred_fallthru
    _
  // Predicated region
  $region10: #{_lambda_.30} parent=0 // pred_check
    _
  $region11: #{_lambda_.30} parent=0 // pred_check_branch
    %13 = sbr.rel (0) target = $region13
  $region12: #{_lambda_.30} parent=0 // pred_region
    _
  $region13: #{_lambda_.30} parent=0 // pred_fallthru
    _
  %v14 = vld [vmem:[%s0] sm:$0xf]
  %v15 = vld [vmem:[%s0 + $0x4] sm:$0xf]
  %v16 = vld [vmem:[%s0 + $0x8] sm:$0xf]
  %v17 = vld [vmem:[%s0 + $0xc] sm:$0xf]
  %v18 = vunpack.c.l.bf16 %v14
  %v19 = vunpack.c.l.bf16 %v15
  %v20 = vunpack.c.l.bf16 %v16
  %v21 = vunpack.c.l.bf16 %v17
  %v22 = vld [vmem:[%s1] sm:$0x1]
  %v24 = vlaneseq
  %v25 = vshrl.u32 %v24, 7
  %v26 = vsub.s32 0, %v25
  %v27 = vrot.slane %v22, %v26
  %v29 = vmul.f32 %v18, %v27
  %v30 = vmul.f32 %v19, %v27
  %v31 = vmul.f32 %v20, %v27
  %v32 = vmul.f32 %v21, %v27
  %v33 = vld [vmem:[%s2] sm:$0x1]
  %v35 = vlaneseq
  %v36 = vshrl.u32 %v35, 7
  %v37 = vsub.s32 0, %v36
  %v38 = vrot.slane %v33, %v37
  %v40 = vadd.f32 %v29, %v38
  %v41 = vadd.f32 %v30, %v38
  %v42 = vadd.f32 %v31, %v38
  %v43 = vadd.f32 %v32, %v38
  %v44 = vpack.c.bf16 %v41, %v40
  %v45 = vpack.c.bf16 %v43, %v42
  %v48 = vunpack.c.l.b16 %v44
  %v49 = vunpack.c.h.b16 %v44
  %v50 = vunpack.c.l.b16 %v45
  %v51 = vunpack.c.h.b16 %v45
  %v52 = vpack.c.b16 %v48, %v48
  %v53 = vpack.c.b16 %v49, %v49
  %v54 = vpack.c.b16 %v50, %v50
  %v55 = vpack.c.b16 %v51, %v51
  %vm60 = vcmask 257024
  %61 = vst.msk [vmem:[%s3] sm:$0xf] %vm60, %v52
  %62 = vst.msk [vmem:[%s3 + $0x4] sm:$0xf] %vm60, %v53
  %63 = vst.msk [vmem:[%s3 + $0x8] sm:$0xf] %vm60, %v54
  %64 = vst.msk [vmem:[%s3 + $0xc] sm:$0xf] %vm60, %v55
  // Predicated region
  $region14: #{_lambda_.30} parent=0 // pred_check
    _
  $region15: #{_lambda_.30} parent=0 // pred_check_branch
    %66 = sbr.rel (0) target = $region17
  $region16: #{_lambda_.30} parent=0 // pred_region
    _
  $region17: #{_lambda_.30} parent=0 // pred_fallthru
    _
  // Predicated region
  $region18: #{_lambda_.30} parent=0 // pred_check
    _
  $region19: #{_lambda_.30} parent=0 // pred_check_branch
    %68 = sbr.rel (0) target = $region21
  $region20: #{_lambda_.30} parent=0 // pred_region
    _
  $region21: #{_lambda_.30} parent=0 // pred_fallthru
    _

// kernel: _lambda_.32
$region0: #{_lambda_.32}
  #allocation0 [shape = 'u32[]', space=smem, size = 0x4, offset = 0x4, fixed_abs, tag = 'smem constant byte address 0x4 - core index']
  #allocation1 [shape = 'u32[144,128]{1,0:T(1,128)}', space=vmem, size = 0x12000, scoped, tag = 'internal scratch']
  %s0 = inlined_call_operand.vmem [shape: bf16[8,64], index: 0, kind: input, shape index: {}]
  %s1 = inlined_call_operand.vmem [shape: f32[1,64], index: 1, kind: output, shape index: {0}]
  %s2 = inlined_call_operand.vmem [shape: f32[1,64], index: 2, kind: output, shape index: {1}]
  %3 = xla_tuple %s1, %s2
  %s4 = sld [smem:[#allocation0]]
  $region26: #{_lambda_.32} parent=0
    _
  %s6 = ssub.s32 1, %s4
  %s7 = scalar_select 0, %s6, %s4
  // Predicated region
  $region2: #{_lambda_.32} parent=0 // pred_check
    _
  $region3: #{_lambda_.32} parent=0 // pred_check_branch
    %9 = sbr.rel (0) target = $region5
  $region4: #{_lambda_.32} parent=0 // pred_region
    _
  $region5: #{_lambda_.32} parent=0 // pred_fallthru
    _
  %p10 = scmp.eq.s32.totalorder 0, 0
  // Predicated region
  $region6: #{_lambda_.32} parent=0 // pred_check
    %p11 = pneg %p10
  $region7: #{_lambda_.32} parent=0 // pred_check_branch
    %13 = sbr.rel (%p11) target = $region9
  $region8: #{_lambda_.32} parent=0 // pred_region
    %vm14 = vcmask 516096
    %15 = vst.msk [vmem:[%s1] sm:$0x1] %vm14, 0.0
    %16 = vst.msk [vmem:[%s2] sm:$0x1] %vm14, 0.0
  $region9: #{_lambda_.32} parent=0 // pred_fallthru
    _
  %v17 = vld [vmem:[%s0] sm:$0xf]
  %v18 = vunpack.c.l.bf16 %v17
  %s19 = smul.u32 0, 8
  %v20 = vlaneseq
  %v21 = vshrl.u32 %v20, 7
  %v22 = vstv %s19
  %v23 = vadd.s32 %v22, %v21
  %vm24 = vcmp.lt.s32.totalorder %v23, 8
  %v25 = vsel %vm24, %v18, 0.0
  %v26 = vld [vmem:[%s1] sm:$0x1]
  %vm27 = vcmask 523264
  %v28 = vsel %vm27, %v25, 0.0
  %v29 = vrot.slane %v28, 4
  %v30 = vadd.f32 %v28, %v29
  %v31 = vrot.slane %v30, 2
  %v32 = vadd.f32 %v30, %v31
  %v33 = vrot.slane %v32, 1
  %v34 = vadd.f32 %v32, %v33
  %v35 = vadd.f32 %v26, %v34
  %vm36 = vcmask 516096
  %37 = vst.msk [vmem:[%s1] sm:$0x1] %vm36, %v35
  %v38 = vld [vmem:[%s2] sm:$0x1]
  %v39 = vmul.f32 %v25, %v25
  %v40 = vsel %vm27, %v39, 0.0
  %v41 = vrot.slane %v40, 4
  %v42 = vadd.f32 %v40, %v41
  %v43 = vrot.slane %v42, 2
  %v44 = vadd.f32 %v42, %v43
  %v45 = vrot.slane %v44, 1
  %v46 = vadd.f32 %v44, %v45
  %v47 = vadd.f32 %v38, %v46
  %48 = vst.msk [vmem:[%s2] sm:$0x1] %vm36, %v47
  // Predicated region
  $region10: #{_lambda_.32} parent=0 // pred_check
    _
  $region11: #{_lambda_.32} parent=0 // pred_check_branch
    %50 = sbr.rel (0) target = $region13
  $region12: #{_lambda_.32} parent=0 // pred_region
    _
  $region13: #{_lambda_.32} parent=0 // pred_fallthru
    _
  // Predicated region
  $region14: #{_lambda_.32} parent=0 // pred_check
    _
  $region15: #{_lambda_.32} parent=0 // pred_check_branch
    %52 = sbr.rel (0) target = $region17
  $region16: #{_lambda_.32} parent=0 // pred_region
    _
  $region17: #{_lambda_.32} parent=0 // pred_fallthru
    _
  // Predicated region
  $region18: #{_lambda_.32} parent=0 // pred_check
    _
  $region19: #{_lambda_.32} parent=0 // pred_check_branch
    %54 = sbr.rel (0) target = $region21
  $region20: #{_lambda_.32} parent=0 // pred_region
    _
  $region21: #{_lambda_.32} parent=0 // pred_fallthru
    _
  // Predicated region
  $region22: #{_lambda_.32} parent=0 // pred_check
    _
  $region23: #{_lambda_.32} parent=0 // pred_check_branch
    %56 = sbr.rel (0) target = $region25
  $region24: #{_lambda_.32} parent=0 // pred_region
    _
  $region25: #{_lambda_.32} parent=0 // pred_fallthru
    _

// kernel: _lambda_.33
$region0: #{_lambda_.33}
  #allocation0 [shape = 'u32[]', space=smem, size = 0x4, offset = 0x4, fixed_abs, tag = 'smem constant byte address 0x4 - core index']
  #allocation1 [shape = 'u32[144,128]{1,0:T(1,128)}', space=vmem, size = 0x12000, scoped, tag = 'internal scratch']
  %s0 = inlined_call_operand.vmem [shape: bf16[8,64], index: 0, kind: input, shape index: {}]
  %s1 = inlined_call_operand.vmem [shape: f32[1,64], index: 1, kind: input, shape index: {}]
  %s2 = inlined_call_operand.vmem [shape: f32[1,64], index: 2, kind: input, shape index: {}]
  %s3 = inlined_call_operand.vmem [shape: bf16[8,64], index: 3, kind: output, shape index: {}]
  %s4 = sld [smem:[#allocation0]]
  $region22: #{_lambda_.33} parent=0
    _
  %s6 = ssub.s32 1, %s4
  %s7 = scalar_select 0, %s6, %s4
  // Predicated region
  $region2: #{_lambda_.33} parent=0 // pred_check
    _
  $region3: #{_lambda_.33} parent=0 // pred_check_branch
    %9 = sbr.rel (0) target = $region5
  $region4: #{_lambda_.33} parent=0 // pred_region
    _
  $region5: #{_lambda_.33} parent=0 // pred_fallthru
    _
  // Predicated region
  $region6: #{_lambda_.33} parent=0 // pred_check
    _
  $region7: #{_lambda_.33} parent=0 // pred_check_branch
    %11 = sbr.rel (0) target = $region9
  $region8: #{_lambda_.33} parent=0 // pred_region
    _
  $region9: #{_lambda_.33} parent=0 // pred_fallthru
    _
  // Predicated region
  $region10: #{_lambda_.33} parent=0 // pred_check
    _
  $region11: #{_lambda_.33} parent=0 // pred_check_branch
    %13 = sbr.rel (0) target = $region13
  $region12: #{_lambda_.33} parent=0 // pred_region
    _
  $region13: #{_lambda_.33} parent=0 // pred_fallthru
    _
  %v14 = vld [vmem:[%s0] sm:$0xf]
  %v15 = vunpack.c.l.bf16 %v14
  %v16 = vld [vmem:[%s1] sm:$0x1]
  %v18 = vlaneseq
  %v19 = vshrl.u32 %v18, 7
  %v20 = vsub.s32 0, %v19
  %v21 = vrot.slane %v16, %v20
  %v23 = vmul.f32 %v15, %v21
  %v24 = vld [vmem:[%s2] sm:$0x1]
  %v26 = vlaneseq
  %v27 = vshrl.u32 %v26, 7
  %v28 = vsub.s32 0, %v27
  %v29 = vrot.slane %v24, %v28
  %v31 = vadd.f32 %v23, %v29
  %v32 = vpack.c.bf16 %v31, %v31
  %vm33 = vcmask 519168
  %34 = vst.msk [vmem:[%s3] sm:$0xf] %vm33, %v32
  // Predicated region
  $region14: #{_lambda_.33} parent=0 // pred_check
    _
  $region15: #{_lambda_.33} parent=0 // pred_check_branch
    %36 = sbr.rel (0) target = $region17
  $region16: #{_lambda_.33} parent=0 // pred_region
    _
  $region17: #{_lambda_.33} parent=0 // pred_fallthru
    _
  // Predicated region
  $region18: #{_lambda_.33} parent=0 // pred_check
    _
  $region19: #{_lambda_.33} parent=0 // pred_check_branch
    %38 = sbr.rel (0) target = $region21
  $region20: #{_lambda_.33} parent=0 // pred_region
    _
  $region21: #{_lambda_.33} parent=0 // pred_fallthru
    _

// kernel: _lambda_.31
$region0: #{_lambda_.31}
  #allocation0 [shape = 'u32[]', space=smem, size = 0x4, offset = 0x4, fixed_abs, tag = 'smem constant byte address 0x4 - core index']
  #allocation1 [shape = 'u32[144,128]{1,0:T(1,128)}', space=vmem, size = 0x12000, scoped, tag = 'internal scratch']
  #allocation2 [shape = 'f32[8,64]{1,0:T(8,128)}', space=vmem, size = 0x1000, scoped, tag = 'scratch operand']
  %s0 = inlined_call_operand.vmem [shape: bf16[8,512], index: 0, kind: input, shape index: {}]
  %s1 = inlined_call_operand.vmem [shape: bf16[512,64], index: 1, kind: input, shape index: {}]
  %s2 = inlined_call_operand.vmem [shape: f32[1,64], index: 2, kind: input, shape index: {}]
  %s3 = inlined_call_operand.vmem [shape: bf16[8,64], index: 3, kind: output, shape index: {}]
  %s4 = sld [smem:[#allocation0]]
  $region30: #{_lambda_.31} parent=0
    _
  %s6 = ssub.s32 1, %s4
  %s7 = scalar_select 0, %s6, %s4
  // Predicated region
  $region2: #{_lambda_.31} parent=0 // pred_check
    _
  $region3: #{_lambda_.31} parent=0 // pred_check_branch
    %9 = sbr.rel (0) target = $region5
  $region4: #{_lambda_.31} parent=0 // pred_region
    _
  $region5: #{_lambda_.31} parent=0 // pred_fallthru
    _
  // Predicated region
  $region6: #{_lambda_.31} parent=0 // pred_check
    _
  $region7: #{_lambda_.31} parent=0 // pred_check_branch
    %11 = sbr.rel (0) target = $region9
  $region8: #{_lambda_.31} parent=0 // pred_region
    _
  $region9: #{_lambda_.31} parent=0 // pred_fallthru
    _
  // Predicated region
  $region10: #{_lambda_.31} parent=0 // pred_check
    _
  $region11: #{_lambda_.31} parent=0 // pred_check_branch
    %13 = sbr.rel (0) target = $region13
  $region12: #{_lambda_.31} parent=0 // pred_region
    _
  $region13: #{_lambda_.31} parent=0 // pred_fallthru
    _
  %p15 = scmp.eq.s32.totalorder 0, 0
  // Predicated region
  $region14: #{_lambda_.31} parent=0 // pred_check
    %p16 = pneg %p15
  $region15: #{_lambda_.31} parent=0 // pred_check_branch
    %18 = sbr.rel (%p16) target = $region17
  $region16: #{_lambda_.31} parent=0 // pred_region
    %vm19 = vcmask 523264
    %20 = vst.msk [vmem:[#allocation2] sm:$0xff] %vm19, 0.0
  $region17: #{_lambda_.31} parent=0 // pred_fallthru
    _
  %v21 = vld [vmem:[#allocation2] sm:$0xff]
  %v22 = vld [vmem:[%s0] sm:$0xff]
  %v23 = vld [vmem:[%s0 + $0x8] sm:$0xff]
  %v24 = vld [vmem:[%s1] sm:$0xf]
  %v25 = vld [vmem:[%s1 + $0x4] sm:$0xf]
  %v26 = vld [vmem:[%s1 + $0x8] sm:$0xf]
  %v27 = vld [vmem:[%s1 + $0xc] sm:$0xf]
  %v28 = vld [vmem:[%s1 + $0x10] sm:$0xf]
  %v29 = vld [vmem:[%s1 + $0x14] sm:$0xf]
  %v30 = vld [vmem:[%s1 + $0x18] sm:$0xf]
  %v31 = vld [vmem:[%s1 + $0x1c] sm:$0xf]
  %v32 = vld [vmem:[%s1 + $0x20] sm:$0xf]
  %v33 = vld [vmem:[%s1 + $0x24] sm:$0xf]
  %v34 = vld [vmem:[%s1 + $0x28] sm:$0xf]
  %v35 = vld [vmem:[%s1 + $0x2c] sm:$0xf]
  %v36 = vld [vmem:[%s1 + $0x30] sm:$0xf]
  %v37 = vld [vmem:[%s1 + $0x34] sm:$0xf]
  %v38 = vld [vmem:[%s1 + $0x38] sm:$0xf]
  %v39 = vld [vmem:[%s1 + $0x3c] sm:$0xf]
  %v40 = vld [vmem:[%s1 + $0x40] sm:$0xf]
  %v41 = vld [vmem:[%s1 + $0x44] sm:$0xf]
  %v42 = vld [vmem:[%s1 + $0x48] sm:$0xf]
  %v43 = vld [vmem:[%s1 + $0x4c] sm:$0xf]
  %v44 = vld [vmem:[%s1 + $0x50] sm:$0xf]
  %v45 = vld [vmem:[%s1 + $0x54] sm:$0xf]
  %v46 = vld [vmem:[%s1 + $0x58] sm:$0xf]
  %v47 = vld [vmem:[%s1 + $0x5c] sm:$0xf]
  %v48 = vld [vmem:[%s1 + $0x60] sm:$0xf]
  %v49 = vld [vmem:[%s1 + $0x64] sm:$0xf]
  %v50 = vld [vmem:[%s1 + $0x68] sm:$0xf]
  %v51 = vld [vmem:[%s1 + $0x6c] sm:$0xf]
  %v52 = vld [vmem:[%s1 + $0x70] sm:$0xf]
  %v53 = vld [vmem:[%s1 + $0x74] sm:$0xf]
  %v54 = vld [vmem:[%s1 + $0x78] sm:$0xf]
  %v55 = vld [vmem:[%s1 + $0x7c] sm:$0xf]
  %v56 = vld [vmem:[%s1 + $0x80] sm:$0xf]
  %v57 = vld [vmem:[%s1 + $0x84] sm:$0xf]
  %v58 = vld [vmem:[%s1 + $0x88] sm:$0xf]
  %v59 = vld [vmem:[%s1 + $0x8c] sm:$0xf]
  %v60 = vld [vmem:[%s1 + $0x90] sm:$0xf]
  %v61 = vld [vmem:[%s1 + $0x94] sm:$0xf]
  %v62 = vld [vmem:[%s1 + $0x98] sm:$0xf]
  %v63 = vld [vmem:[%s1 + $0x9c] sm:$0xf]
  %v64 = vld [vmem:[%s1 + $0xa0] sm:$0xf]
  %v65 = vld [vmem:[%s1 + $0xa4] sm:$0xf]
  %v66 = vld [vmem:[%s1 + $0xa8] sm:$0xf]
  %v67 = vld [vmem:[%s1 + $0xac] sm:$0xf]
  %v68 = vld [vmem:[%s1 + $0xb0] sm:$0xf]
  %v69 = vld [vmem:[%s1 + $0xb4] sm:$0xf]
  %v70 = vld [vmem:[%s1 + $0xb8] sm:$0xf]
  %v71 = vld [vmem:[%s1 + $0xbc] sm:$0xf]
  %v72 = vld [vmem:[%s1 + $0xc0] sm:$0xf]
  %v73 = vld [vmem:[%s1 + $0xc4] sm:$0xf]
  %v74 = vld [vmem:[%s1 + $0xc8] sm:$0xf]
  %v75 = vld [vmem:[%s1 + $0xcc] sm:$0xf]
  %v76 = vld [vmem:[%s1 + $0xd0] sm:$0xf]
  %v77 = vld [vmem:[%s1 + $0xd4] sm:$0xf]
  %v78 = vld [vmem:[%s1 + $0xd8] sm:$0xf]
  %v79 = vld [vmem:[%s1 + $0xdc] sm:$0xf]
  %v80 = vld [vmem:[%s1 + $0xe0] sm:$0xf]
  %v81 = vld [vmem:[%s1 + $0xe4] sm:$0xf]
  %v82 = vld [vmem:[%s1 + $0xe8] sm:$0xf]
  %v83 = vld [vmem:[%s1 + $0xec] sm:$0xf]
  %v84 = vld [vmem:[%s1 + $0xf0] sm:$0xf]
  %v85 = vld [vmem:[%s1 + $0xf4] sm:$0xf]
  %v86 = vld [vmem:[%s1 + $0xf8] sm:$0xf]
  %v87 = vld [vmem:[%s1 + $0xfc] sm:$0xf]
  %v90 = vunpack.c.l.b16 %v22
  %v91 = vunpack.c.h.b16 %v22
  %v92 = vunpack.c.l.b16 %v23
  %v93 = vunpack.c.h.b16 %v23
  %v94 = vpack.c.b16 %v90, %v90
  %v95 = vpack.c.b16 %v91, %v91
  %v96 = vpack.c.b16 %v92, %v92
  %v97 = vpack.c.b16 %v93, %v93
  %v166 = vunpack.c.l.b16 %v24
  %v167 = vunpack.c.l.b16 %v25
  %v168 = vunpack.c.l.b16 %v26
  %v169 = vunpack.c.l.b16 %v27
  %v170 = vunpack.c.l.b16 %v28
  %v171 = vunpack.c.l.b16 %v29
  %v172 = vunpack.c.l.b16 %v30
  %v173 = vunpack.c.l.b16 %v31
  %v174 = vunpack.c.l.b16 %v32
  %v175 = vunpack.c.l.b16 %v33
  %v176 = vunpack.c.l.b16 %v34
  %v177 = vunpack.c.l.b16 %v35
  %v178 = vunpack.c.l.b16 %v36
  %v179 = vunpack.c.l.b16 %v37
  %v180 = vunpack.c.l.b16 %v38
  %v181 = vunpack.c.l.b16 %v39
  %v182 = vunpack.c.l.b16 %v40
  %v183 = vunpack.c.l.b16 %v41
  %v184 = vunpack.c.l.b16 %v42
  %v185 = vunpack.c.l.b16 %v43
  %v186 = vunpack.c.l.b16 %v44
  %v187 = vunpack.c.l.b16 %v45
  %v188 = vunpack.c.l.b16 %v46
  %v189 = vunpack.c.l.b16 %v47
  %v190 = vunpack.c.l.b16 %v48
  %v191 = vunpack.c.l.b16 %v49
  %v192 = vunpack.c.l.b16 %v50
  %v193 = vunpack.c.l.b16 %v51
  %v194 = vunpack.c.l.b16 %v52
  %v195 = vunpack.c.l.b16 %v53
  %v196 = vunpack.c.l.b16 %v54
  %v197 = vunpack.c.l.b16 %v55
  %v198 = vunpack.c.l.b16 %v56
  %v199 = vunpack.c.l.b16 %v57
  %v200 = vunpack.c.l.b16 %v58
  %v201 = vunpack.c.l.b16 %v59
  %v202 = vunpack.c.l.b16 %v60
  %v203 = vunpack.c.l.b16 %v61
  %v204 = vunpack.c.l.b16 %v62
  %v205 = vunpack.c.l.b16 %v63
  %v206 = vunpack.c.l.b16 %v64
  %v207 = vunpack.c.l.b16 %v65
  %v208 = vunpack.c.l.b16 %v66
  %v209 = vunpack.c.l.b16 %v67
  %v210 = vunpack.c.l.b16 %v68
  %v211 = vunpack.c.l.b16 %v69
  %v212 = vunpack.c.l.b16 %v70
  %v213 = vunpack.c.l.b16 %v71
  %v214 = vunpack.c.l.b16 %v72
  %v215 = vunpack.c.l.b16 %v73
  %v216 = vunpack.c.l.b16 %v74
  %v217 = vunpack.c.l.b16 %v75
  %v218 = vunpack.c.l.b16 %v76
  %v219 = vunpack.c.l.b16 %v77
  %v220 = vunpack.c.l.b16 %v78
  %v221 = vunpack.c.l.b16 %v79
  %v222 = vunpack.c.l.b16 %v80
  %v223 = vunpack.c.l.b16 %v81
  %v224 = vunpack.c.l.b16 %v82
  %v225 = vunpack.c.l.b16 %v83
  %v226 = vunpack.c.l.b16 %v84
  %v227 = vunpack.c.l.b16 %v85
  %v228 = vunpack.c.l.b16 %v86
  %v229 = vunpack.c.l.b16 %v87
  %v230 = vpack.c.b16 %v167, %v166
  %v231 = vpack.c.b16 %v169, %v168
  %v232 = vpack.c.b16 %v171, %v170
  %v233 = vpack.c.b16 %v173, %v172
  %v234 = vpack.c.b16 %v175, %v174
  %v235 = vpack.c.b16 %v177, %v176
  %v236 = vpack.c.b16 %v179, %v178
  %v237 = vpack.c.b16 %v181, %v180
  %v238 = vpack.c.b16 %v183, %v182
  %v239 = vpack.c.b16 %v185, %v184
  %v240 = vpack.c.b16 %v187, %v186
  %v241 = vpack.c.b16 %v189, %v188
  %v242 = vpack.c.b16 %v191, %v190
  %v243 = vpack.c.b16 %v193, %v192
  %v244 = vpack.c.b16 %v195, %v194
  %v245 = vpack.c.b16 %v197, %v196
  %v246 = vpack.c.b16 %v199, %v198
  %v247 = vpack.c.b16 %v201, %v200
  %v248 = vpack.c.b16 %v203, %v202
  %v249 = vpack.c.b16 %v205, %v204
  %v250 = vpack.c.b16 %v207, %v206
  %v251 = vpack.c.b16 %v209, %v208
  %v252 = vpack.c.b16 %v211, %v210
  %v253 = vpack.c.b16 %v213, %v212
  %v254 = vpack.c.b16 %v215, %v214
  %v255 = vpack.c.b16 %v217, %v216
  %v256 = vpack.c.b16 %v219, %v218
  %v257 = vpack.c.b16 %v221, %v220
  %v258 = vpack.c.b16 %v223, %v222
  %v259 = vpack.c.b16 %v225, %v224
  %v260 = vpack.c.b16 %v227, %v226
  %v261 = vpack.c.b16 %v229, %v228
  %294 = vmatprep.subr.bf16.mxu0 0
  %295 = vmatpush1.bf16.msra.mxu0 %v230
  %296 = vmatprep.subr.bf16.mxu0 0
  %297 = vmatpush1.bf16.msra.mxu0 %v231
  %298 = vmatprep.subr.bf16.mxu0 0
  %299 = vmatpush1.bf16.msra.mxu0 %v232
  %300 = vmatprep.subr.bf16.mxu0 0
  %301 = vmatpush1.bf16.msra.mxu0 %v233
  %302 = vmatprep.subr.bf16.mxu0 0
  %303 = vmatpush1.bf16.msra.mxu0 %v234
  %304 = vmatprep.subr.bf16.mxu0 0
  %305 = vmatpush1.bf16.msra.mxu0 %v235
  %306 = vmatprep.subr.bf16.mxu0 0
  %307 = vmatpush1.bf16.msra.mxu0 %v236
  %308 = vmatprep.subr.bf16.mxu0 0
  %309 = vmatpush1.bf16.msra.mxu0 %v237
  %310 = vmatprep.subr.bf16.mxu0 0
  %311 = vmatpush1.bf16.msra.mxu0 %v238
  %312 = vmatprep.subr.bf16.mxu0 0
  %313 = vmatpush1.bf16.msra.mxu0 %v239
  %314 = vmatprep.subr.bf16.mxu0 0
  %315 = vmatpush1.bf16.msra.mxu0 %v240
  %316 = vmatprep.subr.bf16.mxu0 0
  %317 = vmatpush1.bf16.msra.mxu0 %v241
  %318 = vmatprep.subr.bf16.mxu0 0
  %319 = vmatpush1.bf16.msra.mxu0 %v242
  %320 = vmatprep.subr.bf16.mxu0 0
  %321 = vmatpush1.bf16.msra.mxu0 %v243
  %322 = vmatprep.subr.bf16.mxu0 0
  %323 = vmatpush1.bf16.msra.mxu0 %v244
  %324 = vmatprep.subr.bf16.mxu0 0
  %325 = vmatpush1.bf16.msra.mxu0 %v245
  %326 = vmatprep.mubr.bf16.mxu0 %v95
  %327 = vmatmul.mubr.bf16.gmra.mrb[0].mxu0 %v94
  %v328 = vpop.f32.mrb[0].mxu0
  %v329 = vadd.f32 0.0, %v328
  %v330 = vpop.f32.mrb[0].mxu0
  %v331 = vpop.f32.mrb[0].mxu0
  %v332 = vpop.f32.mrb[0].mxu0
  %333 = vdwg.mxu0
  %334 = vmatprep.subr.bf16.mxu0 0
  %335 = vmatpush1.bf16.msra.mxu0 %v246
  %336 = vmatprep.subr.bf16.mxu0 0
  %337 = vmatpush1.bf16.msra.mxu0 %v247
  %338 = vmatprep.subr.bf16.mxu0 0
  %339 = vmatpush1.bf16.msra.mxu0 %v248
  %340 = vmatprep.subr.bf16.mxu0 0
  %341 = vmatpush1.bf16.msra.mxu0 %v249
  %342 = vmatprep.subr.bf16.mxu0 0
  %343 = vmatpush1.bf16.msra.mxu0 %v250
  %344 = vmatprep.subr.bf16.mxu0 0
  %345 = vmatpush1.bf16.msra.mxu0 %v251
  %346 = vmatprep.subr.bf16.mxu0 0
  %347 = vmatpush1.bf16.msra.mxu0 %v252
  %348 = vmatprep.subr.bf16.mxu0 0
  %349 = vmatpush1.bf16.msra.mxu0 %v253
  %350 = vmatprep.subr.bf16.mxu0 0
  %351 = vmatpush1.bf16.msra.mxu0 %v254
  %352 = vmatprep.subr.bf16.mxu0 0
  %353 = vmatpush1.bf16.msra.mxu0 %v255
  %354 = vmatprep.subr.bf16.mxu0 0
  %355 = vmatpush1.bf16.msra.mxu0 %v256
  %356 = vmatprep.subr.bf16.mxu0 0
  %357 = vmatpush1.bf16.msra.mxu0 %v257
  %358 = vmatprep.subr.bf16.mxu0 0
  %359 = vmatpush1.bf16.msra.mxu0 %v258
  %360 = vmatprep.subr.bf16.mxu0 0
  %361 = vmatpush1.bf16.msra.mxu0 %v259
  %362 = vmatprep.subr.bf16.mxu0 0
  %363 = vmatpush1.bf16.msra.mxu0 %v260
  %364 = vmatprep.subr.bf16.mxu0 0
  %365 = vmatpush1.bf16.msra.mxu0 %v261
  %366 = vmatprep.mubr.bf16.mxu0 %v97
  %367 = vmatmul.mubr.bf16.gmra.mrb[0].mxu0 %v96
  %v368 = vpop.f32.mrb[0].mxu0
  %v369 = vadd.f32 %v329, %v368
  %v370 = vpop.f32.mrb[0].mxu0
  %v371 = vpop.f32.mrb[0].mxu0
  %v372 = vpop.f32.mrb[0].mxu0
  %373 = vdwg.mxu0
  %v374 = vadd.f32 %v21, %v369
  %vm375 = vcmask 523264
  %376 = vst.msk [vmem:[#allocation2] sm:$0xff] %vm375, %v374
  // Predicated region
  $region18: #{_lambda_.31} parent=0 // pred_check
    %p377 = pneg %p15
  $region19: #{_lambda_.31} parent=0 // pred_check_branch
    %379 = sbr.rel (%p377) target = $region21
  $region20: #{_lambda_.31} parent=0 // pred_region
    %v380 = vld [vmem:[#allocation2] sm:$0xff]
    %v381 = vld [vmem:[%s2] sm:$0x1]
    %v383 = vlaneseq
    %v384 = vshrl.u32 %v383, 7
    %v385 = vsub.s32 0, %v384
    %v386 = vrot.slane %v381, %v385
    %v388 = vadd.f32 %v380, %v386
    %v389 = vpack.c.bf16 %v388, %v388
    %vm390 = vcmask 519168
    %391 = vst.msk [vmem:[%s3] sm:$0xf] %vm390, %v389
  $region21: #{_lambda_.31} parent=0 // pred_fallthru
    _
  // Predicated region
  $region22: #{_lambda_.31} parent=0 // pred_check
    _
  $region23: #{_lambda_.31} parent=0 // pred_check_branch
    %393 = sbr.rel (0) target = $region25
  $region24: #{_lambda_.31} parent=0 // pred_region
    _
  $region25: #{_lambda_.31} parent=0 // pred_fallthru
    _
  // Predicated region
  $region26: #{_lambda_.31} parent=0 // pred_check
    _
  $region27: #{_lambda_.31} parent=0 // pred_check_branch
    %395 = sbr.rel (0) target = $region29
  $region28: #{_lambda_.31} parent=0 // pred_region
    _
  $region29: #{_lambda_.31} parent=0 // pred_fallthru
    _

// kernel: tile.22
$region0: #{tile.22}
  #allocation0 [shape = 's32[1]{0}', space=sflag, size = 0x4, scoped, tag = 'scoped memory for tile.22']
  %s0 = inlined_call_operand.vmem [shape: f32[64], index: 0, kind: input, shape index: {}]
  %s1 = inlined_call_operand.vmem [shape: f32[4,64], index: 1, kind: output, shape index: {}]
  // Predicated region
  $region2: #{tile.22} parent=0 // pred_check
    _
  $region3: #{tile.22} parent=0 // pred_check_branch
    %3 = sbr.rel (0) target = $region5
  $region4: #{tile.22} parent=0 // pred_region
    _
  $region5: #{tile.22} parent=0 // pred_fallthru
    _
  %v4 = vld [vmem:[%s0] ss:$0 sm:$0xff]
  %5 = vst [vmem:[%s1] sm:$0xf] %v4

// kernel: tile.23
$region0: #{tile.23}
  %s0 = inlined_call_operand.vmem [shape: f32[4,64], index: 0, kind: input, shape index: {}]
  %s1 = inlined_call_operand.vmem [shape: f32[1,256], index: 1, kind: output, shape index: {}]
  $region1: #{tile.23} parent=0
    #allocation0 [shape = 'u8[8192]{0}', space=vmem, size = 0x2000, scoped, tag = 'scoped mem for output reshape']
    #allocation1 [shape = 'u8[4096]{0}', space=vmem, size = 0x1000, scoped, tag = 'scoped mem for input reshape']
    %s3 = sshllo.u32 0, 4
    %v4 = vld [vmem:[%s0] sm:%s3]
    %5 = vst [vmem:[#allocation1] sm:%s3] %v4
    %s6 = smov 3
    %v7 = vld [vmem:[#allocation1] ss:$2 sm:%s6]
    %vm8 = vcmask 523264
    %9 = vst.msk [vmem:[#allocation0] ss:$8 sm:$0x3] %vm8, %v7
    %s10 = scalar_lea.vmem [#allocation1], 1
    %s11 = smov 3
    %v12 = vld [vmem:[%s10] ss:$2 sm:%s11]
    %13 = vrot.lane.b32.xlu0 %v12, 64
    %v14 = vpop.permute.xlu0 %13
    %vm15 = vcmask 1048064
    %16 = vst.msk [vmem:[#allocation0] ss:$8 sm:$0x3] %vm15, %v14
    %s18 = sshllo.u32 0, 1
    %v20 = vld [vmem:[#allocation0] sm:%s18]
    %s21 = sshllo.u32 0, 1
    %22 = vst [vmem:[%s1] sm:%s21] %v20
    %s23 = scalar_lea.vmem [#allocation0], 8
    %v24 = vld [vmem:[%s23] sm:%s18]
    %s25 = sshllo.u32 0, 1
    %s26 = scalar_lea.vmem %s1, 1
    %27 = vst [vmem:[%s26] sm:%s25] %v24

// kernel: _lambda_.34
$region0: #{_lambda_.34}
  #allocation0 [shape = 'u32[]', space=smem, size = 0x4, offset = 0x4, fixed_abs, tag = 'smem constant byte address 0x4 - core index']
  #allocation1 [shape = 'u32[144,128]{1,0:T(1,128)}', space=vmem, size = 0x12000, scoped, tag = 'internal scratch']
  #allocation2 [shape = 'f32[2,64]{1,0:T(2,128)}', space=vmem, size = 0x400, scoped, tag = 'scratch operand']
  %s0 = inlined_call_operand.vmem [shape: bf16[2,1024], index: 0, kind: input, shape index: {}]
  %s1 = inlined_call_operand.vmem [shape: bf16[1024,64], index: 1, kind: input, shape index: {}]
  %s2 = inlined_call_operand.vmem [shape: f32[1,64], index: 2, kind: input, shape index: {}]
  %s3 = inlined_call_operand.vmem [shape: bf16[2,64], index: 3, kind: output, shape index: {}]
  %s4 = sld [smem:[#allocation0]]
  $region53: #{_lambda_.34} parent=0
    _
  %s6 = ssub.s32 1, %s4
  %s7 = scalar_select 0, %s6, %s4
  loop: start=0, step=1, limit=4
  $region2: #{_lambda_.34} parent=0 // loop_pre_header
    _
  $region3: #{_lambda_.34} parent=0 // loop_header
    %s9 = sphi 0, %s13
    %p10 = scmp.ge.s32.totalorder %s9, 4
    %s16 = sphi 0, %s35
    %s17 = sphi 0, %s31
    %s18 = sphi 0, %s27
    %s19 = sphi 0, %s16
    %s20 = sphi 0, %s17
    %s21 = sphi 0, %s18
    %s22 = sphi 0, %s19
    %s23 = sphi 0, %s20
    %s24 = sphi 0, %s21
    %s40 = sphi 0, %s42
    %s43 = sphi 0, %s40
    %s44 = sphi 0, %s43
    %s60 = sphi 0, %s44
    %s68 = sphi 0, %s70
    %s71 = sphi 0, %s68
    %s72 = sphi 0, %s71
    %s88 = sphi 0, %s72
    %s94 = sphi 0, %s96
    %s97 = sphi 0, %s94
    %s98 = sphi 0, %s97
    %s114 = sphi 0, %s98
    %s122 = sphi 0, %s124
    %s125 = sphi 0, %s122
    %s126 = sphi 0, %s125
    %s142 = sphi 0, %s126
  $region4: #{_lambda_.34} parent=0 // loop_header_branch
    %12 = sbr.rel (%p10) target = $region8
  $region5: #{_lambda_.34} parent=0 // loop_body
    %s14 = ssub.s32 %s9, 1
    %s15 = ssub.s32 %s9, 2
    %s25 = sadd.s32 1, %s18
    %p26 = scmp.ge.s32.totalorder %s25, 2
    %s27 = scalar_select %p26, 0, %s25
    %s28 = sadd.s32 1, %s17
    %s29 = scalar_select %p26, %s28, %s17
    %p30 = scmp.ge.s32.totalorder %s29, 1
    %s31 = scalar_select %p30, 0, %s29
    %s32 = sadd.s32 1, %s16
    %s33 = scalar_select %p30, %s32, %s16
    %p34 = scmp.ge.s32.totalorder %s33, 1
    %s35 = scalar_select %p34, 0, %s33
    %s36 = ssub.s32 %s16, %s35
    %s37 = ssub.s32 %s18, %s27
    %s38 = sor.u32 %s36, %s37
    %p39 = scmp.eq.s32.totalorder %s38, 0
    %s41 = sadd.s32 %s40, 1
    %s42 = scalar_select %p39, %s40, %s41
    %p45 = pneg %p39
    %p46 = scmp.eq.s32.totalorder %s9, 1
    %p47 = por %p45, %p46
    %p48 = scmp.ne.s32.totalorder %s40, %s43
    %p49 = scmp.eq.s32.totalorder %s9, 0
    %p50 = por %p48, %p49
    %p51 = scmp.ne.s32.totalorder %s40, %s43
    %p52 = scmp.eq.s32.totalorder %s14, 1
    %p53 = por %p51, %p52
    %p54 = scmp.ne.s32.totalorder %s43, %s44
    %p55 = scmp.eq.s32.totalorder %s14, 0
    %p56 = por %p54, %p55
    %p57 = scmp.ne.s32.totalorder %s43, %s44
    %p58 = scmp.eq.s32.totalorder %s15, 1
    %p59 = por %p57, %p58
    %p61 = scmp.ne.s32.totalorder %s44, %s60
    %p62 = scmp.eq.s32.totalorder %s15, 0
    %p63 = por %p61, %p62
    %s64 = ssub.s32 %s18, %s27
    %s65 = ssub.s32 %s17, %s31
    %s66 = sor.u32 %s64, %s65
    %p67 = scmp.eq.s32.totalorder %s66, 0
    %s69 = sadd.s32 %s68, 1
    %s70 = scalar_select %p67, %s68, %s69
    %p73 = pneg %p67
    %p74 = scmp.eq.s32.totalorder %s9, 1
    %p75 = por %p73, %p74
    %p76 = scmp.ne.s32.totalorder %s68, %s71
    %p77 = scmp.eq.s32.totalorder %s9, 0
    %p78 = por %p76, %p77
    %p79 = scmp.ne.s32.totalorder %s68, %s71
    %p80 = scmp.eq.s32.totalorder %s14, 1
    %p81 = por %p79, %p80
    %p82 = scmp.ne.s32.totalorder %s71, %s72
    %p83 = scmp.eq.s32.totalorder %s14, 0
    %p84 = por %p82, %p83
    %p85 = scmp.ne.s32.totalorder %s71, %s72
    %p86 = scmp.eq.s32.totalorder %s15, 1
    %p87 = por %p85, %p86
    %p89 = scmp.ne.s32.totalorder %s72, %s88
    %p90 = scmp.eq.s32.totalorder %s15, 0
    %p91 = por %p89, %p90
    %s92 = ssub.s32 %s17, %s31
    %p93 = scmp.eq.s32.totalorder %s92, 0
    %s95 = sadd.s32 %s94, 1
    %s96 = scalar_select %p93, %s94, %s95
    %p99 = pneg %p93
    %p100 = scmp.eq.s32.totalorder %s9, 1
    %p101 = por %p99, %p100
    %p102 = scmp.ne.s32.totalorder %s94, %s97
    %p103 = scmp.eq.s32.totalorder %s9, 0
    %p104 = por %p102, %p103
    %p105 = scmp.ne.s32.totalorder %s94, %s97
    %p106 = scmp.eq.s32.totalorder %s14, 1
    %p107 = por %p105, %p106
    %p108 = scmp.ne.s32.totalorder %s97, %s98
    %p109 = scmp.eq.s32.totalorder %s14, 0
    %p110 = por %p108, %p109
    %p111 = scmp.ne.s32.totalorder %s97, %s98
    %p112 = scmp.eq.s32.totalorder %s15, 1
    %p113 = por %p111, %p112
    %p115 = scmp.ne.s32.totalorder %s98, %s114
    %p116 = scmp.eq.s32.totalorder %s15, 0
    %p117 = por %p115, %p116
    %s118 = ssub.s32 %s16, %s35
    %s119 = ssub.s32 %s17, %s31
    %s120 = sor.u32 %s118, %s119
    %p121 = scmp.eq.s32.totalorder %s120, 0
    %s123 = sadd.s32 %s122, 1
    %s124 = scalar_select %p121, %s122, %s123
    %p127 = pneg %p121
    %p128 = scmp.eq.s32.totalorder %s9, 1
    %p129 = por %p127, %p128
    %p130 = scmp.ne.s32.totalorder %s122, %s125
    %p131 = scmp.eq.s32.totalorder %s9, 0
    %p132 = por %p130, %p131
    %p133 = scmp.ne.s32.totalorder %s122, %s125
    %p134 = scmp.eq.s32.totalorder %s14, 1
    %p135 = por %p133, %p134
    %p136 = scmp.ne.s32.totalorder %s125, %s126
    %p137 = scmp.eq.s32.totalorder %s14, 0
    %p138 = por %p136, %p137
    %p139 = scmp.ne.s32.totalorder %s125, %s126
    %p140 = scmp.eq.s32.totalorder %s15, 1
    %p141 = por %p139, %p140
    %p143 = scmp.ne.s32.totalorder %s126, %s142
    %p144 = scmp.eq.s32.totalorder %s15, 0
    %p145 = por %p143, %p144
    %p146 = scmp.le.s32.totalorder 1, %s9
    %p147 = scmp.lt.s32.totalorder %s9, 3
    %p148 = pnand %p146, %p147
    %p149 = pneg %p148
    // Predicated region
    $region9: #{_lambda_.34} parent=5 // pred_check
      _
    $region10: #{_lambda_.34} parent=5 // pred_check_branch
      %151 = sbr.rel (%p148) target = $region12
    $region11: #{_lambda_.34} parent=5 // pred_region
      %s152 = ssub.s32 %s9, 1
      // Predicated region
      $region13: #{_lambda_.34} parent=11 // pred_check
        %p153 = pneg %p110
      $region14: #{_lambda_.34} parent=11 // pred_check_branch
        %155 = sbr.rel (%p153) target = $region16
      $region15: #{_lambda_.34} parent=11 // pred_region
        %p156 = scmp.lt.s32.totalorder %s20, 0
        %s157 = scalar_select %p156, %s20, 0
        %s158 = scalar_lea.vmem %s2, %s157
      $region16: #{_lambda_.34} parent=11 // pred_fallthru
        _
    $region12: #{_lambda_.34} parent=5 // pred_fallthru
      _
    %p159 = scmp.lt.s32.totalorder %s9, 2
    // Predicated region
    $region17: #{_lambda_.34} parent=5 // pred_check
      %p160 = pneg %p159
    $region18: #{_lambda_.34} parent=5 // pred_check_branch
      %162 = sbr.rel (%p160) target = $region20
    $region19: #{_lambda_.34} parent=5 // pred_region
      // Predicated region
      $region21: #{_lambda_.34} parent=19 // pred_check
        %p163 = pneg %p50
      $region22: #{_lambda_.34} parent=19 // pred_check_branch
        %165 = sbr.rel (%p163) target = $region24
      $region23: #{_lambda_.34} parent=19 // pred_region
        %s166 = smul.u32 4, %s18
        %p167 = scmp.lt.s32.totalorder %s16, 0
        %s168 = scalar_select %p167, %s16, 0
        %p169 = scmp.lt.s32.totalorder %s166, 7
        %s170 = scalar_select %p169, %s166, 7
        %s171 = smul.addr %s168, 8
        %s172 = sadd.s32 %s170, %s171
        %s173 = scalar_lea.vmem %s0, %s172
        %s174 = smul.u32 4, %s18
      $region24: #{_lambda_.34} parent=19 // pred_fallthru
        _
      // Predicated region
      $region25: #{_lambda_.34} parent=19 // pred_check
        %p175 = pneg %p78
      $region26: #{_lambda_.34} parent=19 // pred_check_branch
        %177 = sbr.rel (%p175) target = $region28
      $region27: #{_lambda_.34} parent=19 // pred_region
        %s178 = smul.u32 64, %s18
        %p179 = scmp.lt.s32.totalorder %s178, 127
        %s180 = scalar_select %p179, %s178, 127
        %p181 = scmp.lt.s32.totalorder %s17, 0
        %s182 = scalar_select %p181, %s17, 0
        %s183 = sadd.s32 %s182, %s180
        %s184 = smul.addr %s183, 4
        %s185 = scalar_lea.vmem %s1, %s184
        %s186 = smul.u32 64, %s18
      $region28: #{_lambda_.34} parent=19 // pred_fallthru
        _
    $region20: #{_lambda_.34} parent=5 // pred_fallthru
      _
    %p187 = scmp.le.s32.totalorder 1, %s9
    %p188 = scmp.lt.s32.totalorder %s9, 3
    %p189 = pnand %p187, %p188
    %p190 = pneg %p189
    // Predicated region
    $region29: #{_lambda_.34} parent=5 // pred_check
      _
    $region30: #{_lambda_.34} parent=5 // pred_check_branch
      %192 = sbr.rel (%p189) target = $region32
    $region31: #{_lambda_.34} parent=5 // pred_region
      %s193 = ssub.s32 %s9, 1
      %s194 = smul.u32 4, %s21
      %p195 = scmp.lt.s32.totalorder %s19, 0
      %s196 = scalar_select %p195, %s19, 0
      %p197 = scmp.lt.s32.totalorder %s194, 7
      %s198 = scalar_select %p197, %s194, 7
      %s199 = smul.addr %s196, 8
      %s200 = sadd.s32 %s198, %s199
      %s201 = scalar_lea.vmem %s0, %s200
      %p202 = pneg %p56
      %p203 = pneg %p53
      %s204 = smul.u32 64, %s21
      %p205 = scmp.lt.s32.totalorder %s204, 127
      %s206 = scalar_select %p205, %s204, 127
      %p207 = scmp.lt.s32.totalorder %s20, 0
      %s208 = scalar_select %p207, %s20, 0
      %s209 = sadd.s32 %s208, %s206
      %s210 = smul.addr %s209, 4
      %s211 = scalar_lea.vmem %s1, %s210
      %p212 = pneg %p84
      %p213 = pneg %p81
      %p214 = scmp.lt.s32.totalorder %s20, 0
      %s215 = scalar_select %p214, %s20, 0
      %s216 = scalar_lea.vmem %s2, %s215
      %p217 = pneg %p110
      %p218 = pneg %p107
      %p219 = pneg %p138
      %p220 = pneg %p135
      %p221 = scmp.lt.s32.totalorder %s19, 0
      %s222 = scalar_select %p221, %s19, 0
      %p223 = scmp.lt.s32.totalorder %s20, 0
      %s224 = scalar_select %p223, %s20, 0
      %s225 = sadd.s32 %s224, %s222
      %s226 = scalar_lea.vmem %s3, %s225
      %s227 = smul.u32 4, %s21
      %p228 = scmp.lt.s32.totalorder %s19, 0
      %s229 = scalar_select %p228, %s19, 0
      %p230 = scmp.lt.s32.totalorder %s227, 7
      %s231 = scalar_select %p230, %s227, 7
      %s232 = smul.addr %s229, 8
      %s233 = sadd.s32 %s231, %s232
      %s234 = scalar_lea.vmem %s0, %s233
      %s235 = smul.u32 4, %s21
      %s236 = smul.u32 64, %s21
      %p237 = scmp.lt.s32.totalorder %s236, 127
      %s238 = scalar_select %p237, %s236, 127
      %p239 = scmp.lt.s32.totalorder %s20, 0
      %s240 = scalar_select %p239, %s20, 0
      %s241 = sadd.s32 %s240, %s238
      %s242 = smul.addr %s241, 4
      %s243 = scalar_lea.vmem %s1, %s242
      %s244 = smul.u32 64, %s21
      %p245 = scmp.lt.s32.totalorder %s20, 0
      %s246 = scalar_select %p245, %s20, 0
      %s247 = scalar_lea.vmem %s2, %s246
      %p248 = scmp.lt.s32.totalorder %s19, 0
      %s249 = scalar_select %p248, %s19, 0
      %p250 = scmp.lt.s32.totalorder %s20, 0
      %s251 = scalar_select %p250, %s20, 0
      %s252 = sadd.s32 %s251, %s249
      %s253 = scalar_lea.vmem %s3, %s252
      %p255 = scmp.eq.s32.totalorder %s21, 0
      // Predicated region
      $region33: #{_lambda_.34} parent=31 // pred_check
        %p256 = pneg %p255
      $region34: #{_lambda_.34} parent=31 // pred_check_branch
        %258 = sbr.rel (%p256) target = $region36
      $region35: #{_lambda_.34} parent=31 // pred_region
        %vm259 = vcmask 517120
        %260 = vst.msk [vmem:[#allocation2] sm:$0x3] %vm259, 0.0
      $region36: #{_lambda_.34} parent=31 // pred_fallthru
        _
      %v261 = vld [vmem:[#allocation2] sm:$0x3]
      %v262 = vld [vmem:[%s234] sm:$0xf]
      %v263 = vld [vmem:[%s243] sm:$0xf]
      %v264 = vld [vmem:[%s243 + $0x4] sm:$0xf]
      %v265 = vld [vmem:[%s243 + $0x8] sm:$0xf]
      %v266 = vld [vmem:[%s243 + $0xc] sm:$0xf]
      %v267 = vld [vmem:[%s243 + $0x10] sm:$0xf]
      %v268 = vld [vmem:[%s243 + $0x14] sm:$0xf]
      %v269 = vld [vmem:[%s243 + $0x18] sm:$0xf]
      %v270 = vld [vmem:[%s243 + $0x1c] sm:$0xf]
      %v271 = vld [vmem:[%s243 + $0x20] sm:$0xf]
      %v272 = vld [vmem:[%s243 + $0x24] sm:$0xf]
      %v273 = vld [vmem:[%s243 + $0x28] sm:$0xf]
      %v274 = vld [vmem:[%s243 + $0x2c] sm:$0xf]
      %v275 = vld [vmem:[%s243 + $0x30] sm:$0xf]
      %v276 = vld [vmem:[%s243 + $0x34] sm:$0xf]
      %v277 = vld [vmem:[%s243 + $0x38] sm:$0xf]
      %v278 = vld [vmem:[%s243 + $0x3c] sm:$0xf]
      %v279 = vld [vmem:[%s243 + $0x40] sm:$0xf]
      %v280 = vld [vmem:[%s243 + $0x44] sm:$0xf]
      %v281 = vld [vmem:[%s243 + $0x48] sm:$0xf]
      %v282 = vld [vmem:[%s243 + $0x4c] sm:$0xf]
      %v283 = vld [vmem:[%s243 + $0x50] sm:$0xf]
      %v284 = vld [vmem:[%s243 + $0x54] sm:$0xf]
      %v285 = vld [vmem:[%s243 + $0x58] sm:$0xf]
      %v286 = vld [vmem:[%s243 + $0x5c] sm:$0xf]
      %v287 = vld [vmem:[%s243 + $0x60] sm:$0xf]
      %v288 = vld [vmem:[%s243 + $0x64] sm:$0xf]
      %v289 = vld [vmem:[%s243 + $0x68] sm:$0xf]
      %v290 = vld [vmem:[%s243 + $0x6c] sm:$0xf]
      %v291 = vld [vmem:[%s243 + $0x70] sm:$0xf]
      %v292 = vld [vmem:[%s243 + $0x74] sm:$0xf]
      %v293 = vld [vmem:[%s243 + $0x78] sm:$0xf]
      %v294 = vld [vmem:[%s243 + $0x7c] sm:$0xf]
      %v295 = vld [vmem:[%s243 + $0x80] sm:$0xf]
      %v296 = vld [vmem:[%s243 + $0x84] sm:$0xf]
      %v297 = vld [vmem:[%s243 + $0x88] sm:$0xf]
      %v298 = vld [vmem:[%s243 + $0x8c] sm:$0xf]
      %v299 = vld [vmem:[%s243 + $0x90] sm:$0xf]
      %v300 = vld [vmem:[%s243 + $0x94] sm:$0xf]
      %v301 = vld [vmem:[%s243 + $0x98] sm:$0xf]
      %v302 = vld [vmem:[%s243 + $0x9c] sm:$0xf]
      %v303 = vld [vmem:[%s243 + $0xa0] sm:$0xf]
      %v304 = vld [vmem:[%s243 + $0xa4] sm:$0xf]
      %v305 = vld [vmem:[%s243 + $0xa8] sm:$0xf]
      %v306 = vld [vmem:[%s243 + $0xac] sm:$0xf]
      %v307 = vld [vmem:[%s243 + $0xb0] sm:$0xf]
      %v308 = vld [vmem:[%s243 + $0xb4] sm:$0xf]
      %v309 = vld [vmem:[%s243 + $0xb8] sm:$0xf]
      %v310 = vld [vmem:[%s243 + $0xbc] sm:$0xf]
      %v311 = vld [vmem:[%s243 + $0xc0] sm:$0xf]
      %v312 = vld [vmem:[%s243 + $0xc4] sm:$0xf]
      %v313 = vld [vmem:[%s243 + $0xc8] sm:$0xf]
      %v314 = vld [vmem:[%s243 + $0xcc] sm:$0xf]
      %v315 = vld [vmem:[%s243 + $0xd0] sm:$0xf]
      %v316 = vld [vmem:[%s243 + $0xd4] sm:$0xf]
      %v317 = vld [vmem:[%s243 + $0xd8] sm:$0xf]
      %v318 = vld [vmem:[%s243 + $0xdc] sm:$0xf]
      %v319 = vld [vmem:[%s243 + $0xe0] sm:$0xf]
      %v320 = vld [vmem:[%s243 + $0xe4] sm:$0xf]
      %v321 = vld [vmem:[%s243 + $0xe8] sm:$0xf]
      %v322 = vld [vmem:[%s243 + $0xec] sm:$0xf]
      %v323 = vld [vmem:[%s243 + $0xf0] sm:$0xf]
      %v324 = vld [vmem:[%s243 + $0xf4] sm:$0xf]
      %v325 = vld [vmem:[%s243 + $0xf8] sm:$0xf]
      %v326 = vld [vmem:[%s243 + $0xfc] sm:$0xf]
      %v329 = vunpack.c.l.s4 1966171168
      %v330 = vunpack.c.0.s8 %v329
      %v331 = vlaneseq
      %v332 = vshrl.u32 %v331, 7
      %v333 = vsub.s32 %v330, %v332
      %v334 = vrot.slane %v262, %v333
      %v335 = vcombine.high %v334, %v334
      %v337 = vunpack.c.l.s4 1966171168
      %v338 = vunpack.c.0.s8 %v337
      %v339 = vlaneseq
      %v340 = vshrl.u32 %v339, 7
      %v341 = vsub.s32 %v338, %v340
      %v342 = vrot.slane %v334, %v341
      %v344 = vunpack.c.l.s4 1966171168
      %v345 = vunpack.c.0.s8 %v344
      %v346 = vlaneseq
      %v347 = vshrl.u32 %v346, 7
      %v348 = vsub.s32 %v345, %v347
      %v349 = vrot.slane %v335, %v348
      %v350 = vcombine.high %v342, %v342
      %v351 = vcombine.high %v349, %v349
      %v420 = vunpack.c.l.b16 %v263
      %v421 = vunpack.c.l.b16 %v264
      %v422 = vunpack.c.l.b16 %v265
      %v423 = vunpack.c.l.b16 %v266
      %v424 = vunpack.c.l.b16 %v267
      %v425 = vunpack.c.l.b16 %v268
      %v426 = vunpack.c.l.b16 %v269
      %v427 = vunpack.c.l.b16 %v270
      %v428 = vunpack.c.l.b16 %v271
      %v429 = vunpack.c.l.b16 %v272
      %v430 = vunpack.c.l.b16 %v273
      %v431 = vunpack.c.l.b16 %v274
      %v432 = vunpack.c.l.b16 %v275
      %v433 = vunpack.c.l.b16 %v276
      %v434 = vunpack.c.l.b16 %v277
      %v435 = vunpack.c.l.b16 %v278
      %v436 = vunpack.c.l.b16 %v279
      %v437 = vunpack.c.l.b16 %v280
      %v438 = vunpack.c.l.b16 %v281
      %v439 = vunpack.c.l.b16 %v282
      %v440 = vunpack.c.l.b16 %v283
      %v441 = vunpack.c.l.b16 %v284
      %v442 = vunpack.c.l.b16 %v285
      %v443 = vunpack.c.l.b16 %v286
      %v444 = vunpack.c.l.b16 %v287
      %v445 = vunpack.c.l.b16 %v288
      %v446 = vunpack.c.l.b16 %v289
      %v447 = vunpack.c.l.b16 %v290
      %v448 = vunpack.c.l.b16 %v291
      %v449 = vunpack.c.l.b16 %v292
      %v450 = vunpack.c.l.b16 %v293
      %v451 = vunpack.c.l.b16 %v294
      %v452 = vunpack.c.l.b16 %v295
      %v453 = vunpack.c.l.b16 %v296
      %v454 = vunpack.c.l.b16 %v297
      %v455 = vunpack.c.l.b16 %v298
      %v456 = vunpack.c.l.b16 %v299
      %v457 = vunpack.c.l.b16 %v300
      %v458 = vunpack.c.l.b16 %v301
      %v459 = vunpack.c.l.b16 %v302
      %v460 = vunpack.c.l.b16 %v303
      %v461 = vunpack.c.l.b16 %v304
      %v462 = vunpack.c.l.b16 %v305
      %v463 = vunpack.c.l.b16 %v306
      %v464 = vunpack.c.l.b16 %v307
      %v465 = vunpack.c.l.b16 %v308
      %v466 = vunpack.c.l.b16 %v309
      %v467 = vunpack.c.l.b16 %v310
      %v468 = vunpack.c.l.b16 %v311
      %v469 = vunpack.c.l.b16 %v312
      %v470 = vunpack.c.l.b16 %v313
      %v471 = vunpack.c.l.b16 %v314
      %v472 = vunpack.c.l.b16 %v315
      %v473 = vunpack.c.l.b16 %v316
      %v474 = vunpack.c.l.b16 %v317
      %v475 = vunpack.c.l.b16 %v318
      %v476 = vunpack.c.l.b16 %v319
      %v477 = vunpack.c.l.b16 %v320
      %v478 = vunpack.c.l.b16 %v321
      %v479 = vunpack.c.l.b16 %v322
      %v480 = vunpack.c.l.b16 %v323
      %v481 = vunpack.c.l.b16 %v324
      %v482 = vunpack.c.l.b16 %v325
      %v483 = vunpack.c.l.b16 %v326
      %v484 = vpack.c.b16 %v421, %v420
      %v485 = vpack.c.b16 %v423, %v422
      %v486 = vpack.c.b16 %v425, %v424
      %v487 = vpack.c.b16 %v427, %v426
      %v488 = vpack.c.b16 %v429, %v428
      %v489 = vpack.c.b16 %v431, %v430
      %v490 = vpack.c.b16 %v433, %v432
      %v491 = vpack.c.b16 %v435, %v434
      %v492 = vpack.c.b16 %v437, %v436
      %v493 = vpack.c.b16 %v439, %v438
      %v494 = vpack.c.b16 %v441, %v440
      %v495 = vpack.c.b16 %v443, %v442
      %v496 = vpack.c.b16 %v445, %v444
      %v497 = vpack.c.b16 %v447, %v446
      %v498 = vpack.c.b16 %v449, %v448
      %v499 = vpack.c.b16 %v451, %v450
      %v500 = vpack.c.b16 %v453, %v452
      %v501 = vpack.c.b16 %v455, %v454
      %v502 = vpack.c.b16 %v457, %v456
      %v503 = vpack.c.b16 %v459, %v458
      %v504 = vpack.c.b16 %v461, %v460
      %v505 = vpack.c.b16 %v463, %v462
      %v506 = vpack.c.b16 %v465, %v464
      %v507 = vpack.c.b16 %v467, %v466
      %v508 = vpack.c.b16 %v469, %v468
      %v509 = vpack.c.b16 %v471, %v470
      %v510 = vpack.c.b16 %v473, %v472
      %v511 = vpack.c.b16 %v475, %v474
      %v512 = vpack.c.b16 %v477, %v476
      %v513 = vpack.c.b16 %v479, %v478
      %v514 = vpack.c.b16 %v481, %v480
      %v515 = vpack.c.b16 %v483, %v482
      %548 = vmatprep.subr.bf16.mxu0 0
      %549 = vmatpush1.bf16.msra.mxu0 %v484
      %550 = vmatprep.subr.bf16.mxu0 0
      %551 = vmatpush1.bf16.msra.mxu0 %v485
      %552 = vmatprep.subr.bf16.mxu0 0
      %553 = vmatpush1.bf16.msra.mxu0 %v486
      %554 = vmatprep.subr.bf16.mxu0 0
      %555 = vmatpush1.bf16.msra.mxu0 %v487
      %556 = vmatprep.subr.bf16.mxu0 0
      %557 = vmatpush1.bf16.msra.mxu0 %v488
      %558 = vmatprep.subr.bf16.mxu0 0
      %559 = vmatpush1.bf16.msra.mxu0 %v489
      %560 = vmatprep.subr.bf16.mxu0 0
      %561 = vmatpush1.bf16.msra.mxu0 %v490
      %562 = vmatprep.subr.bf16.mxu0 0
      %563 = vmatpush1.bf16.msra.mxu0 %v491
      %564 = vmatprep.subr.bf16.mxu0 0
      %565 = vmatpush1.bf16.msra.mxu0 %v492
      %566 = vmatprep.subr.bf16.mxu0 0
      %567 = vmatpush1.bf16.msra.mxu0 %v493
      %568 = vmatprep.subr.bf16.mxu0 0
      %569 = vmatpush1.bf16.msra.mxu0 %v494
      %570 = vmatprep.subr.bf16.mxu0 0
      %571 = vmatpush1.bf16.msra.mxu0 %v495
      %572 = vmatprep.subr.bf16.mxu0 0
      %573 = vmatpush1.bf16.msra.mxu0 %v496
      %574 = vmatprep.subr.bf16.mxu0 0
      %575 = vmatpush1.bf16.msra.mxu0 %v497
      %576 = vmatprep.subr.bf16.mxu0 0
      %577 = vmatpush1.bf16.msra.mxu0 %v498
      %578 = vmatprep.subr.bf16.mxu0 0
      %579 = vmatpush1.bf16.msra.mxu0 %v499
      %580 = vmatprep.mubr.bf16.mxu0 %v349
      %581 = vmatmul.mubr.bf16.gmra.mrb[0].mxu0 %v342
      %v582 = vpop.f32.mrb[0].mxu0
      %v583 = vadd.f32 0.0, %v582
      %v584 = vpop.f32.mrb[0].mxu0
      %v585 = vpop.f32.mrb[0].mxu0
      %v586 = vpop.f32.mrb[0].mxu0
      %587 = vdwg.mxu0
      %588 = vmatprep.subr.bf16.mxu0 0
      %589 = vmatpush1.bf16.msra.mxu0 %v500
      %590 = vmatprep.subr.bf16.mxu0 0
      %591 = vmatpush1.bf16.msra.mxu0 %v501
      %592 = vmatprep.subr.bf16.mxu0 0
      %593 = vmatpush1.bf16.msra.mxu0 %v502
      %594 = vmatprep.subr.bf16.mxu0 0
      %595 = vmatpush1.bf16.msra.mxu0 %v503
      %596 = vmatprep.subr.bf16.mxu0 0
      %597 = vmatpush1.bf16.msra.mxu0 %v504
      %598 = vmatprep.subr.bf16.mxu0 0
      %599 = vmatpush1.bf16.msra.mxu0 %v505
      %600 = vmatprep.subr.bf16.mxu0 0
      %601 = vmatpush1.bf16.msra.mxu0 %v506
      %602 = vmatprep.subr.bf16.mxu0 0
      %603 = vmatpush1.bf16.msra.mxu0 %v507
      %604 = vmatprep.subr.bf16.mxu0 0
      %605 = vmatpush1.bf16.msra.mxu0 %v508
      %606 = vmatprep.subr.bf16.mxu0 0
      %607 = vmatpush1.bf16.msra.mxu0 %v509
      %608 = vmatprep.subr.bf16.mxu0 0
      %609 = vmatpush1.bf16.msra.mxu0 %v510
      %610 = vmatprep.subr.bf16.mxu0 0
      %611 = vmatpush1.bf16.msra.mxu0 %v511
      %612 = vmatprep.subr.bf16.mxu0 0
      %613 = vmatpush1.bf16.msra.mxu0 %v512
      %614 = vmatprep.subr.bf16.mxu0 0
      %615 = vmatpush1.bf16.msra.mxu0 %v513
      %616 = vmatprep.subr.bf16.mxu0 0
      %617 = vmatpush1.bf16.msra.mxu0 %v514
      %618 = vmatprep.subr.bf16.mxu0 0
      %619 = vmatpush1.bf16.msra.mxu0 %v515
      %620 = vmatprep.mubr.bf16.mxu0 %v351
      %621 = vmatmul.mubr.bf16.gmra.mrb[0].mxu0 %v350
      %v622 = vpop.f32.mrb[0].mxu0
      %v623 = vadd.f32 %v583, %v622
      %v624 = vpop.f32.mrb[0].mxu0
      %v625 = vpop.f32.mrb[0].mxu0
      %v626 = vpop.f32.mrb[0].mxu0
      %627 = vdwg.mxu0
      %v628 = vadd.f32 %v261, %v623
      %vm629 = vcmask 517120
      %630 = vst.msk [vmem:[#allocation2] sm:$0x3] %vm629, %v628
      %p631 = scmp.eq.s32.totalorder %s21, 1
      // Predicated region
      $region37: #{_lambda_.34} parent=31 // pred_check
        %p632 = pneg %p631
      $region38: #{_lambda_.34} parent=31 // pred_check_branch
        %634 = sbr.rel (%p632) target = $region40
      $region39: #{_lambda_.34} parent=31 // pred_region
        %v635 = vld [vmem:[#allocation2] sm:$0x3]
        %v636 = vld [vmem:[%s247] sm:$0x1]
        %v638 = vlaneseq
        %v639 = vshrl.u32 %v638, 7
        %v640 = vsub.s32 0, %v639
        %v641 = vrot.slane %v636, %v640
        %v643 = vadd.f32 %v635, %v641
        %v644 = vpack.c.bf16 %v643, %v643
        %vm645 = vcmask 516096
        %646 = vst.msk [vmem:[%s253] sm:$0x1] %vm645, %v644
      $region40: #{_lambda_.34} parent=31 // pred_fallthru
        _
      %p647 = scmp.lt.s32.totalorder %s19, 0
      %s648 = scalar_select %p647, %s19, 0
      %p649 = scmp.lt.s32.totalorder %s20, 0
      %s650 = scalar_select %p649, %s20, 0
      %s651 = sadd.s32 %s650, %s648
      %s652 = scalar_lea.vmem %s3, %s651
      // Predicated region
      $region41: #{_lambda_.34} parent=31 // pred_check
        %p653 = pneg %p135
      $region42: #{_lambda_.34} parent=31 // pred_check_branch
        %655 = sbr.rel (%p653) target = $region44
      $region43: #{_lambda_.34} parent=31 // pred_region
        _
      $region44: #{_lambda_.34} parent=31 // pred_fallthru
        _
      // Predicated region
      $region45: #{_lambda_.34} parent=31 // pred_check
        %p656 = pneg %p135
      $region46: #{_lambda_.34} parent=31 // pred_check_branch
        %658 = sbr.rel (%p656) target = $region48
      $region47: #{_lambda_.34} parent=31 // pred_region
        %p659 = scmp.lt.s32.totalorder %s19, 0
        %s660 = scalar_select %p659, %s19, 0
        %p661 = scmp.lt.s32.totalorder %s20, 0
        %s662 = scalar_select %p661, %s20, 0
        %s663 = sadd.s32 %s662, %s660
        %s664 = scalar_lea.vmem %s3, %s663
      $region48: #{_lambda_.34} parent=31 // pred_fallthru
        _
    $region32: #{_lambda_.34} parent=5 // pred_fallthru
      _
    %p665 = scmp.le.s32.totalorder 2, %s9
    // Predicated region
    $region49: #{_lambda_.34} parent=5 // pred_check
      %p666 = pneg %p665
    $region50: #{_lambda_.34} parent=5 // pred_check_branch
      %668 = sbr.rel (%p666) target = $region52
    $region51: #{_lambda_.34} parent=5 // pred_region
      %s669 = ssub.s32 %s9, 2
    $region52: #{_lambda_.34} parent=5 // pred_fallthru
      _
  $region6: #{_lambda_.34} parent=0 // loop_footer
    %s13 = sadd.s32 1, %s9
  $region7: #{_lambda_.34} parent=0 // loop_footer_branch
    %8 = sbr.rel target = $region3
  $region8: #{_lambda_.34} parent=0 // loop_exit
    _

// kernel: _lambda_.35
$region0: #{_lambda_.35}
  #allocation0 [shape = 'u32[]', space=smem, size = 0x4, offset = 0x4, fixed_abs, tag = 'smem constant byte address 0x4 - core index']
  #allocation1 [shape = 'u32[144,128]{1,0:T(1,128)}', space=vmem, size = 0x12000, scoped, tag = 'internal scratch']
  #allocation2 [shape = 'f32[8,256]{1,0:T(8,128)}', space=vmem, size = 0x2000, scoped, tag = 'scratch operand']
  %s0 = inlined_call_operand.vmem [shape: bf16[8,256], index: 0, kind: input, shape index: {}]
  %s1 = inlined_call_operand.vmem [shape: bf16[256,256], index: 1, kind: input, shape index: {}]
  %s2 = inlined_call_operand.vmem [shape: f32[1,256], index: 2, kind: input, shape index: {}]
  %s3 = inlined_call_operand.vmem [shape: bf16[8,256], index: 3, kind: output, shape index: {}]
  %s4 = sld [smem:[#allocation0]]
  $region30: #{_lambda_.35} parent=0
    _
  %s6 = ssub.s32 1, %s4
  %s7 = scalar_select 0, %s6, %s4
  // Predicated region
  $region2: #{_lambda_.35} parent=0 // pred_check
    _
  $region3: #{_lambda_.35} parent=0 // pred_check_branch
    %9 = sbr.rel (0) target = $region5
  $region4: #{_lambda_.35} parent=0 // pred_region
    _
  $region5: #{_lambda_.35} parent=0 // pred_fallthru
    _
  // Predicated region
  $region6: #{_lambda_.35} parent=0 // pred_check
    _
  $region7: #{_lambda_.35} parent=0 // pred_check_branch
    %11 = sbr.rel (0) target = $region9
  $region8: #{_lambda_.35} parent=0 // pred_region
    _
  $region9: #{_lambda_.35} parent=0 // pred_fallthru
    _
  // Predicated region
  $region10: #{_lambda_.35} parent=0 // pred_check
    _
  $region11: #{_lambda_.35} parent=0 // pred_check_branch
    %13 = sbr.rel (0) target = $region13
  $region12: #{_lambda_.35} parent=0 // pred_region
    _
  $region13: #{_lambda_.35} parent=0 // pred_fallthru
    _
  %p14 = scmp.eq.s32.totalorder 0, 0
  // Predicated region
  $region14: #{_lambda_.35} parent=0 // pred_check
    %p15 = pneg %p14
  $region15: #{_lambda_.35} parent=0 // pred_check_branch
    %17 = sbr.rel (%p15) target = $region17
  $region16: #{_lambda_.35} parent=0 // pred_region
    %18 = vst [vmem:[#allocation2] sm:$0xff] 0.0
    %19 = vst [vmem:[#allocation2 + $0x8] sm:$0xff] 0.0
  $region17: #{_lambda_.35} parent=0 // pred_fallthru
    _
  %v20 = vld [vmem:[#allocation2] sm:$0xff]
  %v21 = vld [vmem:[#allocation2 + $0x8] sm:$0xff]
  %v22 = vld [vmem:[%s0] sm:$0xff]
  %v23 = vld [vmem:[%s1] sm:$0xff]
  %v24 = vld [vmem:[%s1 + $0x8] sm:$0xff]
  %v25 = vld [vmem:[%s1 + $0x10] sm:$0xff]
  %v26 = vld [vmem:[%s1 + $0x18] sm:$0xff]
  %v27 = vld [vmem:[%s1 + $0x20] sm:$0xff]
  %v28 = vld [vmem:[%s1 + $0x28] sm:$0xff]
  %v29 = vld [vmem:[%s1 + $0x30] sm:$0xff]
  %v30 = vld [vmem:[%s1 + $0x38] sm:$0xff]
  %v31 = vld [vmem:[%s1 + $0x40] sm:$0xff]
  %v32 = vld [vmem:[%s1 + $0x48] sm:$0xff]
  %v33 = vld [vmem:[%s1 + $0x50] sm:$0xff]
  %v34 = vld [vmem:[%s1 + $0x58] sm:$0xff]
  %v35 = vld [vmem:[%s1 + $0x60] sm:$0xff]
  %v36 = vld [vmem:[%s1 + $0x68] sm:$0xff]
  %v37 = vld [vmem:[%s1 + $0x70] sm:$0xff]
  %v38 = vld [vmem:[%s1 + $0x78] sm:$0xff]
  %v39 = vld [vmem:[%s1 + $0x80] sm:$0xff]
  %v40 = vld [vmem:[%s1 + $0x88] sm:$0xff]
  %v41 = vld [vmem:[%s1 + $0x90] sm:$0xff]
  %v42 = vld [vmem:[%s1 + $0x98] sm:$0xff]
  %v43 = vld [vmem:[%s1 + $0xa0] sm:$0xff]
  %v44 = vld [vmem:[%s1 + $0xa8] sm:$0xff]
  %v45 = vld [vmem:[%s1 + $0xb0] sm:$0xff]
  %v46 = vld [vmem:[%s1 + $0xb8] sm:$0xff]
  %v47 = vld [vmem:[%s1 + $0xc0] sm:$0xff]
  %v48 = vld [vmem:[%s1 + $0xc8] sm:$0xff]
  %v49 = vld [vmem:[%s1 + $0xd0] sm:$0xff]
  %v50 = vld [vmem:[%s1 + $0xd8] sm:$0xff]
  %v51 = vld [vmem:[%s1 + $0xe0] sm:$0xff]
  %v52 = vld [vmem:[%s1 + $0xe8] sm:$0xff]
  %v53 = vld [vmem:[%s1 + $0xf0] sm:$0xff]
  %v54 = vld [vmem:[%s1 + $0xf8] sm:$0xff]
  %v56 = vunpack.c.l.b16 %v22
  %v57 = vunpack.c.h.b16 %v22
  %v58 = vpack.c.b16 %v56, %v56
  %v59 = vpack.c.b16 %v57, %v57
  %v94 = vunpack.c.l.b16 %v23
  %v95 = vunpack.c.h.b16 %v23
  %v96 = vunpack.c.l.b16 %v24
  %v97 = vunpack.c.h.b16 %v24
  %v98 = vunpack.c.l.b16 %v25
  %v99 = vunpack.c.h.b16 %v25
  %v100 = vunpack.c.l.b16 %v26
  %v101 = vunpack.c.h.b16 %v26
  %v102 = vunpack.c.l.b16 %v27
  %v103 = vunpack.c.h.b16 %v27
  %v104 = vunpack.c.l.b16 %v28
  %v105 = vunpack.c.h.b16 %v28
  %v106 = vunpack.c.l.b16 %v29
  %v107 = vunpack.c.h.b16 %v29
  %v108 = vunpack.c.l.b16 %v30
  %v109 = vunpack.c.h.b16 %v30
  %v110 = vunpack.c.l.b16 %v31
  %v111 = vunpack.c.h.b16 %v31
  %v112 = vunpack.c.l.b16 %v32
  %v113 = vunpack.c.h.b16 %v32
  %v114 = vunpack.c.l.b16 %v33
  %v115 = vunpack.c.h.b16 %v33
  %v116 = vunpack.c.l.b16 %v34
  %v117 = vunpack.c.h.b16 %v34
  %v118 = vunpack.c.l.b16 %v35
  %v119 = vunpack.c.h.b16 %v35
  %v120 = vunpack.c.l.b16 %v36
  %v121 = vunpack.c.h.b16 %v36
  %v122 = vunpack.c.l.b16 %v37
  %v123 = vunpack.c.h.b16 %v37
  %v124 = vunpack.c.l.b16 %v38
  %v125 = vunpack.c.h.b16 %v38
  %v126 = vunpack.c.l.b16 %v39
  %v127 = vunpack.c.h.b16 %v39
  %v128 = vunpack.c.l.b16 %v40
  %v129 = vunpack.c.h.b16 %v40
  %v130 = vunpack.c.l.b16 %v41
  %v131 = vunpack.c.h.b16 %v41
  %v132 = vunpack.c.l.b16 %v42
  %v133 = vunpack.c.h.b16 %v42
  %v134 = vunpack.c.l.b16 %v43
  %v135 = vunpack.c.h.b16 %v43
  %v136 = vunpack.c.l.b16 %v44
  %v137 = vunpack.c.h.b16 %v44
  %v138 = vunpack.c.l.b16 %v45
  %v139 = vunpack.c.h.b16 %v45
  %v140 = vunpack.c.l.b16 %v46
  %v141 = vunpack.c.h.b16 %v46
  %v142 = vunpack.c.l.b16 %v47
  %v143 = vunpack.c.h.b16 %v47
  %v144 = vunpack.c.l.b16 %v48
  %v145 = vunpack.c.h.b16 %v48
  %v146 = vunpack.c.l.b16 %v49
  %v147 = vunpack.c.h.b16 %v49
  %v148 = vunpack.c.l.b16 %v50
  %v149 = vunpack.c.h.b16 %v50
  %v150 = vunpack.c.l.b16 %v51
  %v151 = vunpack.c.h.b16 %v51
  %v152 = vunpack.c.l.b16 %v52
  %v153 = vunpack.c.h.b16 %v52
  %v154 = vunpack.c.l.b16 %v53
  %v155 = vunpack.c.h.b16 %v53
  %v156 = vunpack.c.l.b16 %v54
  %v157 = vunpack.c.h.b16 %v54
  %v158 = vpack.c.b16 %v96, %v94
  %v159 = vpack.c.b16 %v97, %v95
  %v160 = vpack.c.b16 %v100, %v98
  %v161 = vpack.c.b16 %v101, %v99
  %v162 = vpack.c.b16 %v104, %v102
  %v163 = vpack.c.b16 %v105, %v103
  %v164 = vpack.c.b16 %v108, %v106
  %v165 = vpack.c.b16 %v109, %v107
  %v166 = vpack.c.b16 %v112, %v110
  %v167 = vpack.c.b16 %v113, %v111
  %v168 = vpack.c.b16 %v116, %v114
  %v169 = vpack.c.b16 %v117, %v115
  %v170 = vpack.c.b16 %v120, %v118
  %v171 = vpack.c.b16 %v121, %v119
  %v172 = vpack.c.b16 %v124, %v122
  %v173 = vpack.c.b16 %v125, %v123
  %v174 = vpack.c.b16 %v128, %v126
  %v175 = vpack.c.b16 %v129, %v127
  %v176 = vpack.c.b16 %v132, %v130
  %v177 = vpack.c.b16 %v133, %v131
  %v178 = vpack.c.b16 %v136, %v134
  %v179 = vpack.c.b16 %v137, %v135
  %v180 = vpack.c.b16 %v140, %v138
  %v181 = vpack.c.b16 %v141, %v139
  %v182 = vpack.c.b16 %v144, %v142
  %v183 = vpack.c.b16 %v145, %v143
  %v184 = vpack.c.b16 %v148, %v146
  %v185 = vpack.c.b16 %v149, %v147
  %v186 = vpack.c.b16 %v152, %v150
  %v187 = vpack.c.b16 %v153, %v151
  %v188 = vpack.c.b16 %v156, %v154
  %v189 = vpack.c.b16 %v157, %v155
  %222 = vmatprep.subr.bf16.mxu0 %v159
  %223 = vmatpush1.bf16.msra.mxu0 %v158
  %224 = vmatprep.subr.bf16.mxu0 %v161
  %225 = vmatpush1.bf16.msra.mxu0 %v160
  %226 = vmatprep.subr.bf16.mxu0 %v163
  %227 = vmatpush1.bf16.msra.mxu0 %v162
  %228 = vmatprep.subr.bf16.mxu0 %v165
  %229 = vmatpush1.bf16.msra.mxu0 %v164
  %230 = vmatprep.subr.bf16.mxu0 %v167
  %231 = vmatpush1.bf16.msra.mxu0 %v166
  %232 = vmatprep.subr.bf16.mxu0 %v169
  %233 = vmatpush1.bf16.msra.mxu0 %v168
  %234 = vmatprep.subr.bf16.mxu0 %v171
  %235 = vmatpush1.bf16.msra.mxu0 %v170
  %236 = vmatprep.subr.bf16.mxu0 %v173
  %237 = vmatpush1.bf16.msra.mxu0 %v172
  %238 = vmatprep.subr.bf16.mxu0 %v175
  %239 = vmatpush1.bf16.msra.mxu0 %v174
  %240 = vmatprep.subr.bf16.mxu0 %v177
  %241 = vmatpush1.bf16.msra.mxu0 %v176
  %242 = vmatprep.subr.bf16.mxu0 %v179
  %243 = vmatpush1.bf16.msra.mxu0 %v178
  %244 = vmatprep.subr.bf16.mxu0 %v181
  %245 = vmatpush1.bf16.msra.mxu0 %v180
  %246 = vmatprep.subr.bf16.mxu0 %v183
  %247 = vmatpush1.bf16.msra.mxu0 %v182
  %248 = vmatprep.subr.bf16.mxu0 %v185
  %249 = vmatpush1.bf16.msra.mxu0 %v184
  %250 = vmatprep.subr.bf16.mxu0 %v187
  %251 = vmatpush1.bf16.msra.mxu0 %v186
  %252 = vmatprep.subr.bf16.mxu0 %v189
  %253 = vmatpush1.bf16.msra.mxu0 %v188
  %254 = vmatprep.mubr.bf16.mxu0 %v59
  %255 = vmatmul.mubr.bf16.gmra.mrb[0].mxu0 %v58
  %v256 = vpop.f32.mrb[0].mxu0
  %v257 = vadd.f32 0.0, %v256
  %v258 = vpop.f32.mrb[0].mxu0
  %v259 = vadd.f32 0.0, %v258
  %v260 = vpop.f32.mrb[0].mxu0
  %v261 = vpop.f32.mrb[0].mxu0
  %262 = vdwg.mxu0
  %v263 = vadd.f32 %v20, %v257
  %v264 = vadd.f32 %v21, %v259
  %265 = vst [vmem:[#allocation2] sm:$0xff] %v263
  %266 = vst [vmem:[#allocation2 + $0x8] sm:$0xff] %v264
  // Predicated region
  $region18: #{_lambda_.35} parent=0 // pred_check
    %p267 = pneg %p14
  $region19: #{_lambda_.35} parent=0 // pred_check_branch
    %269 = sbr.rel (%p267) target = $region21
  $region20: #{_lambda_.35} parent=0 // pred_region
    %v270 = vld [vmem:[#allocation2] sm:$0xff]
    %v271 = vld [vmem:[#allocation2 + $0x8] sm:$0xff]
    %v272 = vld [vmem:[%s2] sm:$0x3]
    %v274 = vlaneseq
    %v275 = vshrl.u32 %v274, 7
    %v276 = vsub.s32 0, %v275
    %v277 = vrot.slane %v272, %v276
    %v278 = vlaneseq
    %v279 = vshrl.u32 %v278, 7
    %v280 = vsub.s32 1, %v279
    %v281 = vrot.slane %v272, %v280
    %v284 = vadd.f32 %v270, %v277
    %v285 = vadd.f32 %v271, %v281
    %v286 = vpack.c.bf16 %v284, %v284
    %v287 = vpack.c.bf16 %v285, %v285
    %v290 = vunpack.c.l.b16 %v286
    %v291 = vunpack.c.l.b16 %v287
    %v292 = vpack.c.b16 %v291, %v290
    %294 = vst [vmem:[%s3] sm:$0xff] %v292
  $region21: #{_lambda_.35} parent=0 // pred_fallthru
    _
  // Predicated region
  $region22: #{_lambda_.35} parent=0 // pred_check
    _
  $region23: #{_lambda_.35} parent=0 // pred_check_branch
    %296 = sbr.rel (0) target = $region25
  $region24: #{_lambda_.35} parent=0 // pred_region
    _
  $region25: #{_lambda_.35} parent=0 // pred_fallthru
    _
  // Predicated region
  $region26: #{_lambda_.35} parent=0 // pred_check
    _
  $region27: #{_lambda_.35} parent=0 // pred_check_branch
    %298 = sbr.rel (0) target = $region29
  $region28: #{_lambda_.35} parent=0 // pred_region
    _
  $region29: #{_lambda_.35} parent=0 // pred_fallthru
    _

// kernel: tile.26
$region0: #{tile.26}
  #allocation0 [shape = 's32[1]{0}', space=sflag, size = 0x4, scoped, tag = 'scoped memory for tile.26']
  %s0 = inlined_call_operand.vmem [shape: f32[32], index: 0, kind: input, shape index: {}]
  %s1 = inlined_call_operand.vmem [shape: f32[4,32], index: 1, kind: output, shape index: {}]
  // Predicated region
  $region2: #{tile.26} parent=0 // pred_check
    _
  $region3: #{tile.26} parent=0 // pred_check_branch
    %3 = sbr.rel (0) target = $region5
  $region4: #{tile.26} parent=0 // pred_region
    _
  $region5: #{tile.26} parent=0 // pred_fallthru
    _
  %v4 = vld [vmem:[%s0] ss:$0 sm:$0xff]
  %5 = vst [vmem:[%s1] sm:$0xf] %v4

// kernel: tile.27
$region0: #{tile.27}
  %s0 = inlined_call_operand.vmem [shape: f32[4,32], index: 0, kind: input, shape index: {}]
  %s1 = inlined_call_operand.vmem [shape: f32[1,128], index: 1, kind: output, shape index: {}]
  $region1: #{tile.27} parent=0
    #allocation0 [shape = 'u8[4096]{0}', space=vmem, size = 0x1000, scoped, tag = 'scoped mem for output reshape']
    #allocation1 [shape = 'u8[4096]{0}', space=vmem, size = 0x1000, scoped, tag = 'scoped mem for input reshape']
    %s3 = sshllo.u32 0, 4
    %v4 = vld [vmem:[%s0] sm:%s3]
    %5 = vst [vmem:[#allocation1] sm:%s3] %v4
    %v6 = vld [vmem:[#allocation1] sm:$0x1]
    %vm7 = vcmask 261120
    %8 = vst.msk [vmem:[#allocation0] sm:$0x1] %vm7, %v6
    %s9 = scalar_lea.vmem [#allocation1], 3
    %v10 = vld [vmem:[%s9] sm:$0x1]
    %11 = vrot.lane.b32.xlu0 %v10, 96
    %v12 = vpop.permute.xlu0 %11
    %vm13 = vcmask 1048320
    %14 = vst.msk [vmem:[#allocation0] sm:$0x1] %vm13, %v12
    %s15 = scalar_lea.vmem [#allocation1], 2
    %v16 = vld [vmem:[%s15] sm:$0x1]
    %17 = vrot.lane.b32.xlu0 %v16, 64
    %v18 = vpop.permute.xlu0 %17
    %vm19 = vcmask 785920
    %20 = vst.msk [vmem:[#allocation0] sm:$0x1] %vm19, %v18
    %s21 = scalar_lea.vmem [#allocation1], 1
    %v22 = vld [vmem:[%s21] sm:$0x1]
    %23 = vrot.lane.b32.xlu0 %v22, 32
    %v24 = vpop.permute.xlu0 %23
    %vm25 = vcmask 523520
    %26 = vst.msk [vmem:[#allocation0] sm:$0x1] %vm25, %v24
    %s28 = sshllo.u32 0, 1
    %v30 = vld [vmem:[#allocation0] sm:%s28]
    %s31 = sshllo.u32 0, 1
    %32 = vst [vmem:[%s1] sm:%s31] %v30

// kernel: tile.30
$region0: #{tile.30}
  #allocation0 [shape = 's32[1]{0}', space=sflag, size = 0x4, scoped, tag = 'scoped memory for tile.30']
  %s0 = inlined_call_operand.vmem [shape: f32[16], index: 0, kind: input, shape index: {}]
  %s1 = inlined_call_operand.vmem [shape: f32[4,16], index: 1, kind: output, shape index: {}]
  // Predicated region
  $region2: #{tile.30} parent=0 // pred_check
    _
  $region3: #{tile.30} parent=0 // pred_check_branch
    %3 = sbr.rel (0) target = $region5
  $region4: #{tile.30} parent=0 // pred_region
    _
  $region5: #{tile.30} parent=0 // pred_fallthru
    _
  %v4 = vld [vmem:[%s0] ss:$0 sm:$0xff]
  %5 = vst [vmem:[%s1] sm:$0xf] %v4

// kernel: tile.31
$region0: #{tile.31}
  %s0 = inlined_call_operand.vmem [shape: f32[4,16], index: 0, kind: input, shape index: {}]
  %s1 = inlined_call_operand.vmem [shape: f32[1,64], index: 1, kind: output, shape index: {}]
  $region1: #{tile.31} parent=0
    #allocation0 [shape = 'u8[4096]{0}', space=vmem, size = 0x1000, scoped, tag = 'scoped mem for output reshape']
    #allocation1 [shape = 'u8[4096]{0}', space=vmem, size = 0x1000, scoped, tag = 'scoped mem for input reshape']
    %s3 = sshllo.u32 0, 4
    %v4 = vld [vmem:[%s0] sm:%s3]
    %5 = vst [vmem:[#allocation1] sm:%s3] %v4
    %v6 = vld [vmem:[#allocation1] sm:$0x1]
    %vm7 = vcmask 130048
    %8 = vst.msk [vmem:[#allocation0] sm:$0x1] %vm7, %v6
    %s9 = scalar_lea.vmem [#allocation1], 3
    %v10 = vld [vmem:[%s9] sm:$0x1]
    %11 = vrot.lane.b32.xlu0 %v10, 48
    %v12 = vpop.permute.xlu0 %11
    %vm13 = vcmask 523648
    %14 = vst.msk [vmem:[#allocation0] sm:$0x1] %vm13, %v12
    %s15 = scalar_lea.vmem [#allocation1], 2
    %v16 = vld [vmem:[%s15] sm:$0x1]
    %17 = vrot.lane.b32.xlu0 %v16, 32
    %v18 = vpop.permute.xlu0 %17
    %vm19 = vcmask 392448
    %20 = vst.msk [vmem:[#allocation0] sm:$0x1] %vm19, %v18
    %s21 = scalar_lea.vmem [#allocation1], 1
    %v22 = vld [vmem:[%s21] sm:$0x1]
    %23 = vrot.lane.b32.xlu0 %v22, 16
    %v24 = vpop.permute.xlu0 %23
    %vm25 = vcmask 261248
    %26 = vst.msk [vmem:[#allocation0] sm:$0x1] %vm25, %v24
    %s28 = sshllo.u32 0, 1
    %v30 = vld [vmem:[#allocation0] sm:%s28]
    %s31 = sshllo.u32 0, 1
    %32 = vst [vmem:[%s1] sm:%s31] %v30

// kernel: _lambda_.38
$region0: #{_lambda_.38}
  #allocation0 [shape = 'u32[]', space=smem, size = 0x4, offset = 0x4, fixed_abs, tag = 'smem constant byte address 0x4 - core index']
  #allocation1 [shape = 'u32[144,128]{1,0:T(1,128)}', space=vmem, size = 0x12000, scoped, tag = 'internal scratch']
  #allocation2 [shape = 'f32[18,128]{1,0:T(8,128)}', space=vmem, size = 0x3000, scoped, tag = 'scratch operand']
  %s0 = inlined_call_operand.vmem [shape: bf16[18,512], index: 0, kind: input, shape index: {}]
  %s1 = inlined_call_operand.vmem [shape: bf16[512,128], index: 1, kind: input, shape index: {}]
  %s2 = inlined_call_operand.vmem [shape: f32[1,128], index: 2, kind: input, shape index: {}]
  %s3 = inlined_call_operand.vmem [shape: bf16[18,128], index: 3, kind: output, shape index: {}]
  %s4 = sld [smem:[#allocation0]]
  $region30: #{_lambda_.38} parent=0
    _
  %s6 = ssub.s32 1, %s4
  %s7 = scalar_select 0, %s6, %s4
  // Predicated region
  $region2: #{_lambda_.38} parent=0 // pred_check
    _
  $region3: #{_lambda_.38} parent=0 // pred_check_branch
    %9 = sbr.rel (0) target = $region5
  $region4: #{_lambda_.38} parent=0 // pred_region
    _
  $region5: #{_lambda_.38} parent=0 // pred_fallthru
    _
  // Predicated region
  $region6: #{_lambda_.38} parent=0 // pred_check
    _
  $region7: #{_lambda_.38} parent=0 // pred_check_branch
    %11 = sbr.rel (0) target = $region9
  $region8: #{_lambda_.38} parent=0 // pred_region
    _
  $region9: #{_lambda_.38} parent=0 // pred_fallthru
    _
  // Predicated region
  $region10: #{_lambda_.38} parent=0 // pred_check
    _
  $region11: #{_lambda_.38} parent=0 // pred_check_branch
    %13 = sbr.rel (0) target = $region13
  $region12: #{_lambda_.38} parent=0 // pred_region
    _
  $region13: #{_lambda_.38} parent=0 // pred_fallthru
    _
  %p15 = scmp.eq.s32.totalorder 0, 0
  // Predicated region
  $region14: #{_lambda_.38} parent=0 // pred_check
    %p16 = pneg %p15
  $region15: #{_lambda_.38} parent=0 // pred_check_branch
    %18 = sbr.rel (%p16) target = $region17
  $region16: #{_lambda_.38} parent=0 // pred_region
    %19 = vst [vmem:[#allocation2] sm:$0xff] 0.0
    %20 = vst [vmem:[#allocation2 + $0x8] sm:$0xff] 0.0
    %21 = vst [vmem:[#allocation2 + $0x10] sm:$0x3] 0.0
  $region17: #{_lambda_.38} parent=0 // pred_fallthru
    _
  %v22 = vld [vmem:[#allocation2] sm:$0xff]
  %v23 = vld [vmem:[#allocation2 + $0x8] sm:$0xff]
  %v24 = vld [vmem:[#allocation2 + $0x10] sm:$0x3]
  %v25 = vld [vmem:[%s0] sm:$0xff]
  %v26 = vld [vmem:[%s0 + $0x8] sm:$0xff]
  %v27 = vld [vmem:[%s0 + $0x10] sm:$0xff]
  %v28 = vld [vmem:[%s0 + $0x18] sm:$0xff]
  %v29 = vld [vmem:[%s0 + $0x20] sm:$0x11]
  %v30 = vld [vmem:[%s0 + $0x28] sm:$0x11]
  %v31 = vld [vmem:[%s1] sm:$0xf]
  %v32 = vld [vmem:[%s1 + $0x4] sm:$0xf]
  %v33 = vld [vmem:[%s1 + $0x8] sm:$0xf]
  %v34 = vld [vmem:[%s1 + $0xc] sm:$0xf]
  %v35 = vld [vmem:[%s1 + $0x10] sm:$0xf]
  %v36 = vld [vmem:[%s1 + $0x14] sm:$0xf]
  %v37 = vld [vmem:[%s1 + $0x18] sm:$0xf]
  %v38 = vld [vmem:[%s1 + $0x1c] sm:$0xf]
  %v39 = vld [vmem:[%s1 + $0x20] sm:$0xf]
  %v40 = vld [vmem:[%s1 + $0x24] sm:$0xf]
  %v41 = vld [vmem:[%s1 + $0x28] sm:$0xf]
  %v42 = vld [vmem:[%s1 + $0x2c] sm:$0xf]
  %v43 = vld [vmem:[%s1 + $0x30] sm:$0xf]
  %v44 = vld [vmem:[%s1 + $0x34] sm:$0xf]
  %v45 = vld [vmem:[%s1 + $0x38] sm:$0xf]
  %v46 = vld [vmem:[%s1 + $0x3c] sm:$0xf]
  %v47 = vld [vmem:[%s1 + $0x40] sm:$0xf]
  %v48 = vld [vmem:[%s1 + $0x44] sm:$0xf]
  %v49 = vld [vmem:[%s1 + $0x48] sm:$0xf]
  %v50 = vld [vmem:[%s1 + $0x4c] sm:$0xf]
  %v51 = vld [vmem:[%s1 + $0x50] sm:$0xf]
  %v52 = vld [vmem:[%s1 + $0x54] sm:$0xf]
  %v53 = vld [vmem:[%s1 + $0x58] sm:$0xf]
  %v54 = vld [vmem:[%s1 + $0x5c] sm:$0xf]
  %v55 = vld [vmem:[%s1 + $0x60] sm:$0xf]
  %v56 = vld [vmem:[%s1 + $0x64] sm:$0xf]
  %v57 = vld [vmem:[%s1 + $0x68] sm:$0xf]
  %v58 = vld [vmem:[%s1 + $0x6c] sm:$0xf]
  %v59 = vld [vmem:[%s1 + $0x70] sm:$0xf]
  %v60 = vld [vmem:[%s1 + $0x74] sm:$0xf]
  %v61 = vld [vmem:[%s1 + $0x78] sm:$0xf]
  %v62 = vld [vmem:[%s1 + $0x7c] sm:$0xf]
  %v63 = vld [vmem:[%s1 + $0x80] sm:$0xf]
  %v64 = vld [vmem:[%s1 + $0x84] sm:$0xf]
  %v65 = vld [vmem:[%s1 + $0x88] sm:$0xf]
  %v66 = vld [vmem:[%s1 + $0x8c] sm:$0xf]
  %v67 = vld [vmem:[%s1 + $0x90] sm:$0xf]
  %v68 = vld [vmem:[%s1 + $0x94] sm:$0xf]
  %v69 = vld [vmem:[%s1 + $0x98] sm:$0xf]
  %v70 = vld [vmem:[%s1 + $0x9c] sm:$0xf]
  %v71 = vld [vmem:[%s1 + $0xa0] sm:$0xf]
  %v72 = vld [vmem:[%s1 + $0xa4] sm:$0xf]
  %v73 = vld [vmem:[%s1 + $0xa8] sm:$0xf]
  %v74 = vld [vmem:[%s1 + $0xac] sm:$0xf]
  %v75 = vld [vmem:[%s1 + $0xb0] sm:$0xf]
  %v76 = vld [vmem:[%s1 + $0xb4] sm:$0xf]
  %v77 = vld [vmem:[%s1 + $0xb8] sm:$0xf]
  %v78 = vld [vmem:[%s1 + $0xbc] sm:$0xf]
  %v79 = vld [vmem:[%s1 + $0xc0] sm:$0xf]
  %v80 = vld [vmem:[%s1 + $0xc4] sm:$0xf]
  %v81 = vld [vmem:[%s1 + $0xc8] sm:$0xf]
  %v82 = vld [vmem:[%s1 + $0xcc] sm:$0xf]
  %v83 = vld [vmem:[%s1 + $0xd0] sm:$0xf]
  %v84 = vld [vmem:[%s1 + $0xd4] sm:$0xf]
  %v85 = vld [vmem:[%s1 + $0xd8] sm:$0xf]
  %v86 = vld [vmem:[%s1 + $0xdc] sm:$0xf]
  %v87 = vld [vmem:[%s1 + $0xe0] sm:$0xf]
  %v88 = vld [vmem:[%s1 + $0xe4] sm:$0xf]
  %v89 = vld [vmem:[%s1 + $0xe8] sm:$0xf]
  %v90 = vld [vmem:[%s1 + $0xec] sm:$0xf]
  %v91 = vld [vmem:[%s1 + $0xf0] sm:$0xf]
  %v92 = vld [vmem:[%s1 + $0xf4] sm:$0xf]
  %v93 = vld [vmem:[%s1 + $0xf8] sm:$0xf]
  %v94 = vld [vmem:[%s1 + $0xfc] sm:$0xf]
  %v101 = vunpack.c.l.b16 %v25
  %v102 = vunpack.c.h.b16 %v25
  %v103 = vunpack.c.l.b16 %v26
  %v104 = vunpack.c.h.b16 %v26
  %v105 = vunpack.c.l.b16 %v27
  %v106 = vunpack.c.h.b16 %v27
  %v107 = vunpack.c.l.b16 %v28
  %v108 = vunpack.c.h.b16 %v28
  %v109 = vunpack.c.l.b16 %v29
  %v110 = vunpack.c.h.b16 %v29
  %v111 = vunpack.c.l.b16 %v30
  %v112 = vunpack.c.h.b16 %v30
  %v113 = vpack.c.b16 %v105, %v101
  %v114 = vpack.c.b16 %v106, %v102
  %v115 = vpack.c.b16 %v107, %v103
  %v116 = vpack.c.b16 %v108, %v104
  %v117 = vpack.c.b16 %v109, %v109
  %v118 = vpack.c.b16 %v110, %v110
  %v119 = vpack.c.b16 %v111, %v111
  %v120 = vpack.c.b16 %v112, %v112
  %v193 = vunpack.c.l.b16 %v31
  %v194 = vunpack.c.l.b16 %v32
  %v195 = vunpack.c.l.b16 %v33
  %v196 = vunpack.c.l.b16 %v34
  %v197 = vunpack.c.l.b16 %v35
  %v198 = vunpack.c.l.b16 %v36
  %v199 = vunpack.c.l.b16 %v37
  %v200 = vunpack.c.l.b16 %v38
  %v201 = vunpack.c.l.b16 %v39
  %v202 = vunpack.c.l.b16 %v40
  %v203 = vunpack.c.l.b16 %v41
  %v204 = vunpack.c.l.b16 %v42
  %v205 = vunpack.c.l.b16 %v43
  %v206 = vunpack.c.l.b16 %v44
  %v207 = vunpack.c.l.b16 %v45
  %v208 = vunpack.c.l.b16 %v46
  %v209 = vunpack.c.l.b16 %v47
  %v210 = vunpack.c.l.b16 %v48
  %v211 = vunpack.c.l.b16 %v49
  %v212 = vunpack.c.l.b16 %v50
  %v213 = vunpack.c.l.b16 %v51
  %v214 = vunpack.c.l.b16 %v52
  %v215 = vunpack.c.l.b16 %v53
  %v216 = vunpack.c.l.b16 %v54
  %v217 = vunpack.c.l.b16 %v55
  %v218 = vunpack.c.l.b16 %v56
  %v219 = vunpack.c.l.b16 %v57
  %v220 = vunpack.c.l.b16 %v58
  %v221 = vunpack.c.l.b16 %v59
  %v222 = vunpack.c.l.b16 %v60
  %v223 = vunpack.c.l.b16 %v61
  %v224 = vunpack.c.l.b16 %v62
  %v225 = vunpack.c.l.b16 %v63
  %v226 = vunpack.c.l.b16 %v64
  %v227 = vunpack.c.l.b16 %v65
  %v228 = vunpack.c.l.b16 %v66
  %v229 = vunpack.c.l.b16 %v67
  %v230 = vunpack.c.l.b16 %v68
  %v231 = vunpack.c.l.b16 %v69
  %v232 = vunpack.c.l.b16 %v70
  %v233 = vunpack.c.l.b16 %v71
  %v234 = vunpack.c.l.b16 %v72
  %v235 = vunpack.c.l.b16 %v73
  %v236 = vunpack.c.l.b16 %v74
  %v237 = vunpack.c.l.b16 %v75
  %v238 = vunpack.c.l.b16 %v76
  %v239 = vunpack.c.l.b16 %v77
  %v240 = vunpack.c.l.b16 %v78
  %v241 = vunpack.c.l.b16 %v79
  %v242 = vunpack.c.l.b16 %v80
  %v243 = vunpack.c.l.b16 %v81
  %v244 = vunpack.c.l.b16 %v82
  %v245 = vunpack.c.l.b16 %v83
  %v246 = vunpack.c.l.b16 %v84
  %v247 = vunpack.c.l.b16 %v85
  %v248 = vunpack.c.l.b16 %v86
  %v249 = vunpack.c.l.b16 %v87
  %v250 = vunpack.c.l.b16 %v88
  %v251 = vunpack.c.l.b16 %v89
  %v252 = vunpack.c.l.b16 %v90
  %v253 = vunpack.c.l.b16 %v91
  %v254 = vunpack.c.l.b16 %v92
  %v255 = vunpack.c.l.b16 %v93
  %v256 = vunpack.c.l.b16 %v94
  %v257 = vpack.c.b16 %v194, %v193
  %v258 = vpack.c.b16 %v196, %v195
  %v259 = vpack.c.b16 %v198, %v197
  %v260 = vpack.c.b16 %v200, %v199
  %v261 = vpack.c.b16 %v202, %v201
  %v262 = vpack.c.b16 %v204, %v203
  %v263 = vpack.c.b16 %v206, %v205
  %v264 = vpack.c.b16 %v208, %v207
  %v265 = vpack.c.b16 %v210, %v209
  %v266 = vpack.c.b16 %v212, %v211
  %v267 = vpack.c.b16 %v214, %v213
  %v268 = vpack.c.b16 %v216, %v215
  %v269 = vpack.c.b16 %v218, %v217
  %v270 = vpack.c.b16 %v220, %v219
  %v271 = vpack.c.b16 %v222, %v221
  %v272 = vpack.c.b16 %v224, %v223
  %v273 = vpack.c.b16 %v226, %v225
  %v274 = vpack.c.b16 %v228, %v227
  %v275 = vpack.c.b16 %v230, %v229
  %v276 = vpack.c.b16 %v232, %v231
  %v277 = vpack.c.b16 %v234, %v233
  %v278 = vpack.c.b16 %v236, %v235
  %v279 = vpack.c.b16 %v238, %v237
  %v280 = vpack.c.b16 %v240, %v239
  %v281 = vpack.c.b16 %v242, %v241
  %v282 = vpack.c.b16 %v244, %v243
  %v283 = vpack.c.b16 %v246, %v245
  %v284 = vpack.c.b16 %v248, %v247
  %v285 = vpack.c.b16 %v250, %v249
  %v286 = vpack.c.b16 %v252, %v251
  %v287 = vpack.c.b16 %v254, %v253
  %v288 = vpack.c.b16 %v256, %v255
  %321 = vmatprep.subr.bf16.mxu0 0
  %322 = vmatpush1.bf16.msra.mxu0 %v257
  %323 = vmatprep.subr.bf16.mxu0 0
  %324 = vmatpush1.bf16.msra.mxu0 %v258
  %325 = vmatprep.subr.bf16.mxu0 0
  %326 = vmatpush1.bf16.msra.mxu0 %v259
  %327 = vmatprep.subr.bf16.mxu0 0
  %328 = vmatpush1.bf16.msra.mxu0 %v260
  %329 = vmatprep.subr.bf16.mxu0 0
  %330 = vmatpush1.bf16.msra.mxu0 %v261
  %331 = vmatprep.subr.bf16.mxu0 0
  %332 = vmatpush1.bf16.msra.mxu0 %v262
  %333 = vmatprep.subr.bf16.mxu0 0
  %334 = vmatpush1.bf16.msra.mxu0 %v263
  %335 = vmatprep.subr.bf16.mxu0 0
  %336 = vmatpush1.bf16.msra.mxu0 %v264
  %337 = vmatprep.subr.bf16.mxu0 0
  %338 = vmatpush1.bf16.msra.mxu0 %v265
  %339 = vmatprep.subr.bf16.mxu0 0
  %340 = vmatpush1.bf16.msra.mxu0 %v266
  %341 = vmatprep.subr.bf16.mxu0 0
  %342 = vmatpush1.bf16.msra.mxu0 %v267
  %343 = vmatprep.subr.bf16.mxu0 0
  %344 = vmatpush1.bf16.msra.mxu0 %v268
  %345 = vmatprep.subr.bf16.mxu0 0
  %346 = vmatpush1.bf16.msra.mxu0 %v269
  %347 = vmatprep.subr.bf16.mxu0 0
  %348 = vmatpush1.bf16.msra.mxu0 %v270
  %349 = vmatprep.subr.bf16.mxu0 0
  %350 = vmatpush1.bf16.msra.mxu0 %v271
  %351 = vmatprep.subr.bf16.mxu0 0
  %352 = vmatpush1.bf16.msra.mxu0 %v272
  %353 = vmatprep.mubr.bf16.mxu0 %v114
  %354 = vmatmul.mubr.bf16.gmra.mrb[0].mxu0 %v113
  %v355 = vpop.f32.mrb[0].mxu0
  %v356 = vadd.f32 0.0, %v355
  %v357 = vpop.f32.mrb[0].mxu0
  %v358 = vpop.f32.mrb[0].mxu0
  %v359 = vadd.f32 0.0, %v358
  %v360 = vpop.f32.mrb[0].mxu0
  %361 = vmatprep.mubr.bf16.mxu0 %v118
  %362 = vmatmul.mubr.bf16.gmra.mrb[0].mxu0 %v117
  %v363 = vpop.f32.mrb[0].mxu0
  %v364 = vadd.f32 0.0, %v363
  %v365 = vpop.f32.mrb[0].mxu0
  %v366 = vpop.f32.mrb[0].mxu0
  %v367 = vpop.f32.mrb[0].mxu0
  %368 = vdwg.mxu0
  %369 = vmatprep.subr.bf16.mxu0 0
  %370 = vmatpush1.bf16.msra.mxu0 %v273
  %371 = vmatprep.subr.bf16.mxu0 0
  %372 = vmatpush1.bf16.msra.mxu0 %v274
  %373 = vmatprep.subr.bf16.mxu0 0
  %374 = vmatpush1.bf16.msra.mxu0 %v275
  %375 = vmatprep.subr.bf16.mxu0 0
  %376 = vmatpush1.bf16.msra.mxu0 %v276
  %377 = vmatprep.subr.bf16.mxu0 0
  %378 = vmatpush1.bf16.msra.mxu0 %v277
  %379 = vmatprep.subr.bf16.mxu0 0
  %380 = vmatpush1.bf16.msra.mxu0 %v278
  %381 = vmatprep.subr.bf16.mxu0 0
  %382 = vmatpush1.bf16.msra.mxu0 %v279
  %383 = vmatprep.subr.bf16.mxu0 0
  %384 = vmatpush1.bf16.msra.mxu0 %v280
  %385 = vmatprep.subr.bf16.mxu0 0
  %386 = vmatpush1.bf16.msra.mxu0 %v281
  %387 = vmatprep.subr.bf16.mxu0 0
  %388 = vmatpush1.bf16.msra.mxu0 %v282
  %389 = vmatprep.subr.bf16.mxu0 0
  %390 = vmatpush1.bf16.msra.mxu0 %v283
  %391 = vmatprep.subr.bf16.mxu0 0
  %392 = vmatpush1.bf16.msra.mxu0 %v284
  %393 = vmatprep.subr.bf16.mxu0 0
  %394 = vmatpush1.bf16.msra.mxu0 %v285
  %395 = vmatprep.subr.bf16.mxu0 0
  %396 = vmatpush1.bf16.msra.mxu0 %v286
  %397 = vmatprep.subr.bf16.mxu0 0
  %398 = vmatpush1.bf16.msra.mxu0 %v287
  %399 = vmatprep.subr.bf16.mxu0 0
  %400 = vmatpush1.bf16.msra.mxu0 %v288
  %401 = vmatprep.mubr.bf16.mxu0 %v116
  %402 = vmatmul.mubr.bf16.gmra.mrb[0].mxu0 %v115
  %v403 = vpop.f32.mrb[0].mxu0
  %v404 = vadd.f32 %v356, %v403
  %v405 = vpop.f32.mrb[0].mxu0
  %v406 = vpop.f32.mrb[0].mxu0
  %v407 = vadd.f32 %v359, %v406
  %v408 = vpop.f32.mrb[0].mxu0
  %409 = vmatprep.mubr.bf16.mxu0 %v120
  %410 = vmatmul.mubr.bf16.gmra.mrb[0].mxu0 %v119
  %v411 = vpop.f32.mrb[0].mxu0
  %v412 = vadd.f32 %v364, %v411
  %v413 = vpop.f32.mrb[0].mxu0
  %v414 = vpop.f32.mrb[0].mxu0
  %v415 = vpop.f32.mrb[0].mxu0
  %416 = vdwg.mxu0
  %v417 = vadd.f32 %v22, %v404
  %v418 = vadd.f32 %v23, %v407
  %v419 = vadd.f32 %v24, %v412
  %420 = vst [vmem:[#allocation2] sm:$0xff] %v417
  %421 = vst [vmem:[#allocation2 + $0x8] sm:$0xff] %v418
  %422 = vst [vmem:[#allocation2 + $0x10] sm:$0x3] %v419
  // Predicated region
  $region18: #{_lambda_.38} parent=0 // pred_check
    %p423 = pneg %p15
  $region19: #{_lambda_.38} parent=0 // pred_check_branch
    %425 = sbr.rel (%p423) target = $region21
  $region20: #{_lambda_.38} parent=0 // pred_region
    %v426 = vld [vmem:[#allocation2] sm:$0xff]
    %v427 = vld [vmem:[#allocation2 + $0x8] sm:$0xff]
    %v428 = vld [vmem:[#allocation2 + $0x10] sm:$0x3]
    %v429 = vld [vmem:[%s2] sm:$0x1]
    %v431 = vlaneseq
    %v432 = vshrl.u32 %v431, 7
    %v433 = vsub.s32 0, %v432
    %v434 = vrot.slane %v429, %v433
    %v436 = vadd.f32 %v426, %v434
    %v437 = vadd.f32 %v427, %v434
    %v438 = vadd.f32 %v428, %v434
    %v439 = vpack.c.bf16 %v437, %v436
    %v440 = vpack.c.bf16 %v438, %v438
    %v443 = vunpack.c.l.b16 %v439
    %v444 = vunpack.c.h.b16 %v439
    %v445 = vunpack.c.l.b16 %v440
    %v446 = vpack.c.b16 %v443, %v443
    %v447 = vpack.c.b16 %v444, %v444
    %v448 = vpack.c.b16 %v445, %v445
    %452 = vst [vmem:[%s3] sm:$0xf] %v446
    %453 = vst [vmem:[%s3 + $0x4] sm:$0xf] %v447
    %454 = vst [vmem:[%s3 + $0x8] sm:$0x1] %v448
  $region21: #{_lambda_.38} parent=0 // pred_fallthru
    _
  // Predicated region
  $region22: #{_lambda_.38} parent=0 // pred_check
    _
  $region23: #{_lambda_.38} parent=0 // pred_check_branch
    %456 = sbr.rel (0) target = $region25
  $region24: #{_lambda_.38} parent=0 // pred_region
    _
  $region25: #{_lambda_.38} parent=0 // pred_fallthru
    _
  // Predicated region
  $region26: #{_lambda_.38} parent=0 // pred_check
    _
  $region27: #{_lambda_.38} parent=0 // pred_check_branch
    %458 = sbr.rel (0) target = $region29
  $region28: #{_lambda_.38} parent=0 // pred_region
    _
  $region29: #{_lambda_.38} parent=0 // pred_fallthru
    _

// kernel: _lambda_.41
$region0: #{_lambda_.41}
  #allocation0 [shape = 'u32[]', space=smem, size = 0x4, offset = 0x4, fixed_abs, tag = 'smem constant byte address 0x4 - core index']
  #allocation1 [shape = 'u32[144,128]{1,0:T(1,128)}', space=vmem, size = 0x12000, scoped, tag = 'internal scratch']
  #allocation2 [shape = 'f32[50,64]{1,0:T(8,128)}', space=vmem, size = 0x7000, scoped, tag = 'scratch operand']
  %s0 = inlined_call_operand.vmem [shape: bf16[50,256], index: 0, kind: input, shape index: {}]
  %s1 = inlined_call_operand.vmem [shape: bf16[256,64], index: 1, kind: input, shape index: {}]
  %s2 = inlined_call_operand.vmem [shape: f32[1,64], index: 2, kind: input, shape index: {}]
  %s3 = inlined_call_operand.vmem [shape: bf16[50,64], index: 3, kind: output, shape index: {}]
  %s4 = sld [smem:[#allocation0]]
  $region30: #{_lambda_.41} parent=0
    _
  %s6 = ssub.s32 1, %s4
  %s7 = scalar_select 0, %s6, %s4
  // Predicated region
  $region2: #{_lambda_.41} parent=0 // pred_check
    _
  $region3: #{_lambda_.41} parent=0 // pred_check_branch
    %9 = sbr.rel (0) target = $region5
  $region4: #{_lambda_.41} parent=0 // pred_region
    _
  $region5: #{_lambda_.41} parent=0 // pred_fallthru
    _
  // Predicated region
  $region6: #{_lambda_.41} parent=0 // pred_check
    _
  $region7: #{_lambda_.41} parent=0 // pred_check_branch
    %11 = sbr.rel (0) target = $region9
  $region8: #{_lambda_.41} parent=0 // pred_region
    _
  $region9: #{_lambda_.41} parent=0 // pred_fallthru
    _
  // Predicated region
  $region10: #{_lambda_.41} parent=0 // pred_check
    _
  $region11: #{_lambda_.41} parent=0 // pred_check_branch
    %13 = sbr.rel (0) target = $region13
  $region12: #{_lambda_.41} parent=0 // pred_region
    _
  $region13: #{_lambda_.41} parent=0 // pred_fallthru
    _
  %p15 = scmp.eq.s32.totalorder 0, 0
  // Predicated region
  $region14: #{_lambda_.41} parent=0 // pred_check
    %p16 = pneg %p15
  $region15: #{_lambda_.41} parent=0 // pred_check_branch
    %18 = sbr.rel (%p16) target = $region17
  $region16: #{_lambda_.41} parent=0 // pred_region
    %vm19 = vcmask 523264
    %20 = vst.msk [vmem:[#allocation2] sm:$0xff] %vm19, 0.0
    %21 = vst.msk [vmem:[#allocation2 + $0x8] sm:$0xff] %vm19, 0.0
    %22 = vst.msk [vmem:[#allocation2 + $0x10] sm:$0xff] %vm19, 0.0
    %23 = vst.msk [vmem:[#allocation2 + $0x18] sm:$0xff] %vm19, 0.0
    %24 = vst.msk [vmem:[#allocation2 + $0x20] sm:$0xff] %vm19, 0.0
    %25 = vst.msk [vmem:[#allocation2 + $0x28] sm:$0xff] %vm19, 0.0
    %vm26 = vcmask 517120
    %27 = vst.msk [vmem:[#allocation2 + $0x30] sm:$0x3] %vm26, 0.0
  $region17: #{_lambda_.41} parent=0 // pred_fallthru
    _
  %v28 = vld [vmem:[#allocation2] sm:$0xff]
  %v29 = vld [vmem:[#allocation2 + $0x8] sm:$0xff]
  %v30 = vld [vmem:[#allocation2 + $0x10] sm:$0xff]
  %v31 = vld [vmem:[#allocation2 + $0x18] sm:$0xff]
  %v32 = vld [vmem:[#allocation2 + $0x20] sm:$0xff]
  %v33 = vld [vmem:[#allocation2 + $0x28] sm:$0xff]
  %v34 = vld [vmem:[#allocation2 + $0x30] sm:$0x3]
  %v35 = vld [vmem:[%s0] sm:$0xff]
  %v36 = vld [vmem:[%s0 + $0x8] sm:$0xff]
  %v37 = vld [vmem:[%s0 + $0x10] sm:$0xff]
  %v38 = vld [vmem:[%s0 + $0x18] sm:$0xff]
  %v39 = vld [vmem:[%s0 + $0x20] sm:$0xff]
  %v40 = vld [vmem:[%s0 + $0x28] sm:$0xff]
  %v41 = vld [vmem:[%s0 + $0x30] sm:$0x11]
  %v42 = vld [vmem:[%s1] sm:$0xf]
  %v43 = vld [vmem:[%s1 + $0x4] sm:$0xf]
  %v44 = vld [vmem:[%s1 + $0x8] sm:$0xf]
  %v45 = vld [vmem:[%s1 + $0xc] sm:$0xf]
  %v46 = vld [vmem:[%s1 + $0x10] sm:$0xf]
  %v47 = vld [vmem:[%s1 + $0x14] sm:$0xf]
  %v48 = vld [vmem:[%s1 + $0x18] sm:$0xf]
  %v49 = vld [vmem:[%s1 + $0x1c] sm:$0xf]
  %v50 = vld [vmem:[%s1 + $0x20] sm:$0xf]
  %v51 = vld [vmem:[%s1 + $0x24] sm:$0xf]
  %v52 = vld [vmem:[%s1 + $0x28] sm:$0xf]
  %v53 = vld [vmem:[%s1 + $0x2c] sm:$0xf]
  %v54 = vld [vmem:[%s1 + $0x30] sm:$0xf]
  %v55 = vld [vmem:[%s1 + $0x34] sm:$0xf]
  %v56 = vld [vmem:[%s1 + $0x38] sm:$0xf]
  %v57 = vld [vmem:[%s1 + $0x3c] sm:$0xf]
  %v58 = vld [vmem:[%s1 + $0x40] sm:$0xf]
  %v59 = vld [vmem:[%s1 + $0x44] sm:$0xf]
  %v60 = vld [vmem:[%s1 + $0x48] sm:$0xf]
  %v61 = vld [vmem:[%s1 + $0x4c] sm:$0xf]
  %v62 = vld [vmem:[%s1 + $0x50] sm:$0xf]
  %v63 = vld [vmem:[%s1 + $0x54] sm:$0xf]
  %v64 = vld [vmem:[%s1 + $0x58] sm:$0xf]
  %v65 = vld [vmem:[%s1 + $0x5c] sm:$0xf]
  %v66 = vld [vmem:[%s1 + $0x60] sm:$0xf]
  %v67 = vld [vmem:[%s1 + $0x64] sm:$0xf]
  %v68 = vld [vmem:[%s1 + $0x68] sm:$0xf]
  %v69 = vld [vmem:[%s1 + $0x6c] sm:$0xf]
  %v70 = vld [vmem:[%s1 + $0x70] sm:$0xf]
  %v71 = vld [vmem:[%s1 + $0x74] sm:$0xf]
  %v72 = vld [vmem:[%s1 + $0x78] sm:$0xf]
  %v73 = vld [vmem:[%s1 + $0x7c] sm:$0xf]
  %v81 = vunpack.c.l.b16 %v35
  %v82 = vunpack.c.h.b16 %v35
  %v83 = vunpack.c.l.b16 %v36
  %v84 = vunpack.c.h.b16 %v36
  %v85 = vunpack.c.l.b16 %v37
  %v86 = vunpack.c.h.b16 %v37
  %v87 = vunpack.c.l.b16 %v38
  %v88 = vunpack.c.h.b16 %v38
  %v89 = vunpack.c.l.b16 %v39
  %v90 = vunpack.c.h.b16 %v39
  %v91 = vunpack.c.l.b16 %v40
  %v92 = vunpack.c.h.b16 %v40
  %v93 = vunpack.c.l.b16 %v41
  %v94 = vunpack.c.h.b16 %v41
  %v95 = vpack.c.b16 %v83, %v81
  %v96 = vpack.c.b16 %v84, %v82
  %v97 = vpack.c.b16 %v87, %v85
  %v98 = vpack.c.b16 %v88, %v86
  %v99 = vpack.c.b16 %v91, %v89
  %v100 = vpack.c.b16 %v92, %v90
  %v101 = vpack.c.b16 %v93, %v93
  %v102 = vpack.c.b16 %v94, %v94
  %v143 = vunpack.c.l.b16 %v42
  %v144 = vunpack.c.l.b16 %v43
  %v145 = vunpack.c.l.b16 %v44
  %v146 = vunpack.c.l.b16 %v45
  %v147 = vunpack.c.l.b16 %v46
  %v148 = vunpack.c.l.b16 %v47
  %v149 = vunpack.c.l.b16 %v48
  %v150 = vunpack.c.l.b16 %v49
  %v151 = vunpack.c.l.b16 %v50
  %v152 = vunpack.c.l.b16 %v51
  %v153 = vunpack.c.l.b16 %v52
  %v154 = vunpack.c.l.b16 %v53
  %v155 = vunpack.c.l.b16 %v54
  %v156 = vunpack.c.l.b16 %v55
  %v157 = vunpack.c.l.b16 %v56
  %v158 = vunpack.c.l.b16 %v57
  %v159 = vunpack.c.l.b16 %v58
  %v160 = vunpack.c.l.b16 %v59
  %v161 = vunpack.c.l.b16 %v60
  %v162 = vunpack.c.l.b16 %v61
  %v163 = vunpack.c.l.b16 %v62
  %v164 = vunpack.c.l.b16 %v63
  %v165 = vunpack.c.l.b16 %v64
  %v166 = vunpack.c.l.b16 %v65
  %v167 = vunpack.c.l.b16 %v66
  %v168 = vunpack.c.l.b16 %v67
  %v169 = vunpack.c.l.b16 %v68
  %v170 = vunpack.c.l.b16 %v69
  %v171 = vunpack.c.l.b16 %v70
  %v172 = vunpack.c.l.b16 %v71
  %v173 = vunpack.c.l.b16 %v72
  %v174 = vunpack.c.l.b16 %v73
  %v175 = vpack.c.b16 %v144, %v143
  %v176 = vpack.c.b16 %v146, %v145
  %v177 = vpack.c.b16 %v148, %v147
  %v178 = vpack.c.b16 %v150, %v149
  %v179 = vpack.c.b16 %v152, %v151
  %v180 = vpack.c.b16 %v154, %v153
  %v181 = vpack.c.b16 %v156, %v155
  %v182 = vpack.c.b16 %v158, %v157
  %v183 = vpack.c.b16 %v160, %v159
  %v184 = vpack.c.b16 %v162, %v161
  %v185 = vpack.c.b16 %v164, %v163
  %v186 = vpack.c.b16 %v166, %v165
  %v187 = vpack.c.b16 %v168, %v167
  %v188 = vpack.c.b16 %v170, %v169
  %v189 = vpack.c.b16 %v172, %v171
  %v190 = vpack.c.b16 %v174, %v173
  %207 = vmatprep.subr.bf16.mxu0 0
  %208 = vmatpush1.bf16.msra.mxu0 %v175
  %209 = vmatprep.subr.bf16.mxu0 0
  %210 = vmatpush1.bf16.msra.mxu0 %v176
  %211 = vmatprep.subr.bf16.mxu0 0
  %212 = vmatpush1.bf16.msra.mxu0 %v177
  %213 = vmatprep.subr.bf16.mxu0 0
  %214 = vmatpush1.bf16.msra.mxu0 %v178
  %215 = vmatprep.subr.bf16.mxu0 0
  %216 = vmatpush1.bf16.msra.mxu0 %v179
  %217 = vmatprep.subr.bf16.mxu0 0
  %218 = vmatpush1.bf16.msra.mxu0 %v180
  %219 = vmatprep.subr.bf16.mxu0 0
  %220 = vmatpush1.bf16.msra.mxu0 %v181
  %221 = vmatprep.subr.bf16.mxu0 0
  %222 = vmatpush1.bf16.msra.mxu0 %v182
  %223 = vmatprep.subr.bf16.mxu0 0
  %224 = vmatpush1.bf16.msra.mxu0 %v183
  %225 = vmatprep.subr.bf16.mxu0 0
  %226 = vmatpush1.bf16.msra.mxu0 %v184
  %227 = vmatprep.subr.bf16.mxu0 0
  %228 = vmatpush1.bf16.msra.mxu0 %v185
  %229 = vmatprep.subr.bf16.mxu0 0
  %230 = vmatpush1.bf16.msra.mxu0 %v186
  %231 = vmatprep.subr.bf16.mxu0 0
  %232 = vmatpush1.bf16.msra.mxu0 %v187
  %233 = vmatprep.subr.bf16.mxu0 0
  %234 = vmatpush1.bf16.msra.mxu0 %v188
  %235 = vmatprep.subr.bf16.mxu0 0
  %236 = vmatpush1.bf16.msra.mxu0 %v189
  %237 = vmatprep.subr.bf16.mxu0 0
  %238 = vmatpush1.bf16.msra.mxu0 %v190
  %239 = vmatprep.mubr.bf16.mxu0 %v96
  %240 = vmatmul.mubr.bf16.gmra.mrb[0].mxu0 %v95
  %v241 = vpop.f32.mrb[0].mxu0
  %v242 = vadd.f32 0.0, %v241
  %v243 = vpop.f32.mrb[0].mxu0
  %v244 = vpop.f32.mrb[0].mxu0
  %v245 = vadd.f32 0.0, %v244
  %v246 = vpop.f32.mrb[0].mxu0
  %247 = vmatprep.mubr.bf16.mxu0 %v98
  %248 = vmatmul.mubr.bf16.gmra.mrb[0].mxu0 %v97
  %v249 = vpop.f32.mrb[0].mxu0
  %v250 = vadd.f32 0.0, %v249
  %v251 = vpop.f32.mrb[0].mxu0
  %v252 = vpop.f32.mrb[0].mxu0
  %v253 = vadd.f32 0.0, %v252
  %v254 = vpop.f32.mrb[0].mxu0
  %255 = vmatprep.mubr.bf16.mxu0 %v100
  %256 = vmatmul.mubr.bf16.gmra.mrb[0].mxu0 %v99
  %v257 = vpop.f32.mrb[0].mxu0
  %v258 = vadd.f32 0.0, %v257
  %v259 = vpop.f32.mrb[0].mxu0
  %v260 = vpop.f32.mrb[0].mxu0
  %v261 = vadd.f32 0.0, %v260
  %v262 = vpop.f32.mrb[0].mxu0
  %263 = vmatprep.mubr.bf16.mxu0 %v102
  %264 = vmatmul.mubr.bf16.gmra.mrb[0].mxu0 %v101
  %v265 = vpop.f32.mrb[0].mxu0
  %v266 = vadd.f32 0.0, %v265
  %v267 = vpop.f32.mrb[0].mxu0
  %v268 = vpop.f32.mrb[0].mxu0
  %v269 = vpop.f32.mrb[0].mxu0
  %270 = vdwg.mxu0
  %v271 = vadd.f32 %v28, %v242
  %v272 = vadd.f32 %v29, %v245
  %v273 = vadd.f32 %v30, %v250
  %v274 = vadd.f32 %v31, %v253
  %v275 = vadd.f32 %v32, %v258
  %v276 = vadd.f32 %v33, %v261
  %v277 = vadd.f32 %v34, %v266
  %vm278 = vcmask 523264
  %279 = vst.msk [vmem:[#allocation2] sm:$0xff] %vm278, %v271
  %280 = vst.msk [vmem:[#allocation2 + $0x8] sm:$0xff] %vm278, %v272
  %281 = vst.msk [vmem:[#allocation2 + $0x10] sm:$0xff] %vm278, %v273
  %282 = vst.msk [vmem:[#allocation2 + $0x18] sm:$0xff] %vm278, %v274
  %283 = vst.msk [vmem:[#allocation2 + $0x20] sm:$0xff] %vm278, %v275
  %284 = vst.msk [vmem:[#allocation2 + $0x28] sm:$0xff] %vm278, %v276
  %vm285 = vcmask 517120
  %286 = vst.msk [vmem:[#allocation2 + $0x30] sm:$0x3] %vm285, %v277
  // Predicated region
  $region18: #{_lambda_.41} parent=0 // pred_check
    %p287 = pneg %p15
  $region19: #{_lambda_.41} parent=0 // pred_check_branch
    %289 = sbr.rel (%p287) target = $region21
  $region20: #{_lambda_.41} parent=0 // pred_region
    %v290 = vld [vmem:[#allocation2] sm:$0xff]
    %v291 = vld [vmem:[#allocation2 + $0x8] sm:$0xff]
    %v292 = vld [vmem:[#allocation2 + $0x10] sm:$0xff]
    %v293 = vld [vmem:[#allocation2 + $0x18] sm:$0xff]
    %v294 = vld [vmem:[#allocation2 + $0x20] sm:$0xff]
    %v295 = vld [vmem:[#allocation2 + $0x28] sm:$0xff]
    %v296 = vld [vmem:[#allocation2 + $0x30] sm:$0x3]
    %v297 = vld [vmem:[%s2] sm:$0x1]
    %v299 = vlaneseq
    %v300 = vshrl.u32 %v299, 7
    %v301 = vsub.s32 0, %v300
    %v302 = vrot.slane %v297, %v301
    %v304 = vadd.f32 %v290, %v302
    %v305 = vadd.f32 %v291, %v302
    %v306 = vadd.f32 %v292, %v302
    %v307 = vadd.f32 %v293, %v302
    %v308 = vadd.f32 %v294, %v302
    %v309 = vadd.f32 %v295, %v302
    %v310 = vadd.f32 %v296, %v302
    %v311 = vpack.c.bf16 %v305, %v304
    %v312 = vpack.c.bf16 %v307, %v306
    %v313 = vpack.c.bf16 %v309, %v308
    %v314 = vpack.c.bf16 %v310, %v310
    %v319 = vunpack.c.l.b16 %v311
    %v320 = vunpack.c.h.b16 %v311
    %v321 = vunpack.c.l.b16 %v312
    %v322 = vunpack.c.h.b16 %v312
    %v323 = vunpack.c.l.b16 %v313
    %v324 = vunpack.c.h.b16 %v313
    %v325 = vunpack.c.l.b16 %v314
    %v326 = vpack.c.b16 %v319, %v319
    %v327 = vpack.c.b16 %v320, %v320
    %v328 = vpack.c.b16 %v321, %v321
    %v329 = vpack.c.b16 %v322, %v322
    %v330 = vpack.c.b16 %v323, %v323
    %v331 = vpack.c.b16 %v324, %v324
    %v332 = vpack.c.b16 %v325, %v325
    %vm340 = vcmask 519168
    %341 = vst.msk [vmem:[%s3] sm:$0xf] %vm340, %v326
    %342 = vst.msk [vmem:[%s3 + $0x4] sm:$0xf] %vm340, %v327
    %343 = vst.msk [vmem:[%s3 + $0x8] sm:$0xf] %vm340, %v328
    %344 = vst.msk [vmem:[%s3 + $0xc] sm:$0xf] %vm340, %v329
    %345 = vst.msk [vmem:[%s3 + $0x10] sm:$0xf] %vm340, %v330
    %346 = vst.msk [vmem:[%s3 + $0x14] sm:$0xf] %vm340, %v331
    %vm347 = vcmask 516096
    %348 = vst.msk [vmem:[%s3 + $0x18] sm:$0x1] %vm347, %v332
  $region21: #{_lambda_.41} parent=0 // pred_fallthru
    _
  // Predicated region
  $region22: #{_lambda_.41} parent=0 // pred_check
    _
  $region23: #{_lambda_.41} parent=0 // pred_check_branch
    %350 = sbr.rel (0) target = $region25
  $region24: #{_lambda_.41} parent=0 // pred_region
    _
  $region25: #{_lambda_.41} parent=0 // pred_fallthru
    _
  // Predicated region
  $region26: #{_lambda_.41} parent=0 // pred_check
    _
  $region27: #{_lambda_.41} parent=0 // pred_check_branch
    %352 = sbr.rel (0) target = $region29
  $region28: #{_lambda_.41} parent=0 // pred_region
    _
  $region29: #{_lambda_.41} parent=0 // pred_fallthru
    _

// kernel: tile.34
$region0: #{tile.34}
  #allocation0 [shape = 's32[1]{0}', space=sflag, size = 0x4, scoped, tag = 'scoped memory for tile.34']
  %s0 = inlined_call_operand.vmem [shape: f32[8], index: 0, kind: input, shape index: {}]
  %s1 = inlined_call_operand.vmem [shape: f32[4,8], index: 1, kind: output, shape index: {}]
  // Predicated region
  $region2: #{tile.34} parent=0 // pred_check
    _
  $region3: #{tile.34} parent=0 // pred_check_branch
    %3 = sbr.rel (0) target = $region5
  $region4: #{tile.34} parent=0 // pred_region
    _
  $region5: #{tile.34} parent=0 // pred_fallthru
    _
  %v4 = vld [vmem:[%s0] ss:$0 sm:$0xff]
  %5 = vst [vmem:[%s1] sm:$0xf] %v4

// kernel: tile.35
$region0: #{tile.35}
  %s0 = inlined_call_operand.vmem [shape: f32[4,8], index: 0, kind: input, shape index: {}]
  %s1 = inlined_call_operand.vmem [shape: f32[1,32], index: 1, kind: output, shape index: {}]
  $region1: #{tile.35} parent=0
    #allocation0 [shape = 'u8[4096]{0}', space=vmem, size = 0x1000, scoped, tag = 'scoped mem for output reshape']
    #allocation1 [shape = 'u8[4096]{0}', space=vmem, size = 0x1000, scoped, tag = 'scoped mem for input reshape']
    %s3 = sshllo.u32 0, 4
    %v4 = vld [vmem:[%s0] sm:%s3]
    %5 = vst [vmem:[#allocation1] sm:%s3] %v4
    %v6 = vld [vmem:[#allocation1] sm:$0x1]
    %vm7 = vcmask 64512
    %8 = vst.msk [vmem:[#allocation0] sm:$0x1] %vm7, %v6
    %s9 = scalar_lea.vmem [#allocation1], 3
    %v10 = vld [vmem:[%s9] sm:$0x1]
    %11 = vrot.lane.b32.xlu0 %v10, 24
    %v12 = vpop.permute.xlu0 %11
    %vm13 = vcmask 261312
    %14 = vst.msk [vmem:[#allocation0] sm:$0x1] %vm13, %v12
    %s15 = scalar_lea.vmem [#allocation1], 2
    %v16 = vld [vmem:[%s15] sm:$0x1]
    %17 = vrot.lane.b32.xlu0 %v16, 16
    %v18 = vpop.permute.xlu0 %17
    %vm19 = vcmask 195712
    %20 = vst.msk [vmem:[#allocation0] sm:$0x1] %vm19, %v18
    %s21 = scalar_lea.vmem [#allocation1], 1
    %v22 = vld [vmem:[%s21] sm:$0x1]
    %23 = vrot.lane.b32.xlu0 %v22, 8
    %v24 = vpop.permute.xlu0 %23
    %vm25 = vcmask 130112
    %26 = vst.msk [vmem:[#allocation0] sm:$0x1] %vm25, %v24
    %s28 = sshllo.u32 0, 1
    %v30 = vld [vmem:[#allocation0] sm:%s28]
    %s31 = sshllo.u32 0, 1
    %32 = vst [vmem:[%s1] sm:%s31] %v30

// kernel: _lambda_.44
$region0: #{_lambda_.44}
  #allocation0 [shape = 'u32[]', space=smem, size = 0x4, offset = 0x4, fixed_abs, tag = 'smem constant byte address 0x4 - core index']
  #allocation1 [shape = 'u32[144,128]{1,0:T(1,128)}', space=vmem, size = 0x12000, scoped, tag = 'internal scratch']
  #allocation2 [shape = 'f32[162,32]{1,0:T(8,128)}', space=vmem, size = 0x15000, scoped, tag = 'scratch operand']
  %s0 = inlined_call_operand.vmem [shape: bf16[162,128], index: 0, kind: input, shape index: {}]
  %s1 = inlined_call_operand.vmem [shape: bf16[128,32], index: 1, kind: input, shape index: {}]
  %s2 = inlined_call_operand.vmem [shape: f32[1,32], index: 2, kind: input, shape index: {}]
  %s3 = inlined_call_operand.vmem [shape: bf16[162,32], index: 3, kind: output, shape index: {}]
  %s4 = sld [smem:[#allocation0]]
  $region30: #{_lambda_.44} parent=0
    _
  %s6 = ssub.s32 1, %s4
  %s7 = scalar_select 0, %s6, %s4
  // Predicated region
  $region2: #{_lambda_.44} parent=0 // pred_check
    _
  $region3: #{_lambda_.44} parent=0 // pred_check_branch
    %9 = sbr.rel (0) target = $region5
  $region4: #{_lambda_.44} parent=0 // pred_region
    _
  $region5: #{_lambda_.44} parent=0 // pred_fallthru
    _
  // Predicated region
  $region6: #{_lambda_.44} parent=0 // pred_check
    _
  $region7: #{_lambda_.44} parent=0 // pred_check_branch
    %11 = sbr.rel (0) target = $region9
  $region8: #{_lambda_.44} parent=0 // pred_region
    _
  $region9: #{_lambda_.44} parent=0 // pred_fallthru
    _
  // Predicated region
  $region10: #{_lambda_.44} parent=0 // pred_check
    _
  $region11: #{_lambda_.44} parent=0 // pred_check_branch
    %13 = sbr.rel (0) target = $region13
  $region12: #{_lambda_.44} parent=0 // pred_region
    _
  $region13: #{_lambda_.44} parent=0 // pred_fallthru
    _
  %p15 = scmp.eq.s32.totalorder 0, 0
  // Predicated region
  $region14: #{_lambda_.44} parent=0 // pred_check
    %p16 = pneg %p15
  $region15: #{_lambda_.44} parent=0 // pred_check_branch
    %18 = sbr.rel (%p16) target = $region17
  $region16: #{_lambda_.44} parent=0 // pred_region
    %vm19 = vcmask 261120
    %20 = vst.msk [vmem:[#allocation2] sm:$0xff] %vm19, 0.0
    %21 = vst.msk [vmem:[#allocation2 + $0x8] sm:$0xff] %vm19, 0.0
    %22 = vst.msk [vmem:[#allocation2 + $0x10] sm:$0xff] %vm19, 0.0
    %23 = vst.msk [vmem:[#allocation2 + $0x18] sm:$0xff] %vm19, 0.0
    %24 = vst.msk [vmem:[#allocation2 + $0x20] sm:$0xff] %vm19, 0.0
    %25 = vst.msk [vmem:[#allocation2 + $0x28] sm:$0xff] %vm19, 0.0
    %26 = vst.msk [vmem:[#allocation2 + $0x30] sm:$0xff] %vm19, 0.0
    %27 = vst.msk [vmem:[#allocation2 + $0x38] sm:$0xff] %vm19, 0.0
    %28 = vst.msk [vmem:[#allocation2 + $0x40] sm:$0xff] %vm19, 0.0
    %29 = vst.msk [vmem:[#allocation2 + $0x48] sm:$0xff] %vm19, 0.0
    %30 = vst.msk [vmem:[#allocation2 + $0x50] sm:$0xff] %vm19, 0.0
    %31 = vst.msk [vmem:[#allocation2 + $0x58] sm:$0xff] %vm19, 0.0
    %32 = vst.msk [vmem:[#allocation2 + $0x60] sm:$0xff] %vm19, 0.0
    %33 = vst.msk [vmem:[#allocation2 + $0x68] sm:$0xff] %vm19, 0.0
    %34 = vst.msk [vmem:[#allocation2 + $0x70] sm:$0xff] %vm19, 0.0
    %35 = vst.msk [vmem:[#allocation2 + $0x78] sm:$0xff] %vm19, 0.0
    %36 = vst.msk [vmem:[#allocation2 + $0x80] sm:$0xff] %vm19, 0.0
    %37 = vst.msk [vmem:[#allocation2 + $0x88] sm:$0xff] %vm19, 0.0
    %38 = vst.msk [vmem:[#allocation2 + $0x90] sm:$0xff] %vm19, 0.0
    %39 = vst.msk [vmem:[#allocation2 + $0x98] sm:$0xff] %vm19, 0.0
    %vm40 = vcmask 254976
    %41 = vst.msk [vmem:[#allocation2 + $0xa0] sm:$0x3] %vm40, 0.0
  $region17: #{_lambda_.44} parent=0 // pred_fallthru
    _
  %v42 = vld [vmem:[#allocation2] sm:$0xff]
  %v43 = vld [vmem:[#allocation2 + $0x8] sm:$0xff]
  %v44 = vld [vmem:[#allocation2 + $0x10] sm:$0xff]
  %v45 = vld [vmem:[#allocation2 + $0x18] sm:$0xff]
  %v46 = vld [vmem:[#allocation2 + $0x20] sm:$0xff]
  %v47 = vld [vmem:[#allocation2 + $0x28] sm:$0xff]
  %v48 = vld [vmem:[#allocation2 + $0x30] sm:$0xff]
  %v49 = vld [vmem:[#allocation2 + $0x38] sm:$0xff]
  %v50 = vld [vmem:[#allocation2 + $0x40] sm:$0xff]
  %v51 = vld [vmem:[#allocation2 + $0x48] sm:$0xff]
  %v52 = vld [vmem:[#allocation2 + $0x50] sm:$0xff]
  %v53 = vld [vmem:[#allocation2 + $0x58] sm:$0xff]
  %v54 = vld [vmem:[#allocation2 + $0x60] sm:$0xff]
  %v55 = vld [vmem:[#allocation2 + $0x68] sm:$0xff]
  %v56 = vld [vmem:[#allocation2 + $0x70] sm:$0xff]
  %v57 = vld [vmem:[#allocation2 + $0x78] sm:$0xff]
  %v58 = vld [vmem:[#allocation2 + $0x80] sm:$0xff]
  %v59 = vld [vmem:[#allocation2 + $0x88] sm:$0xff]
  %v60 = vld [vmem:[#allocation2 + $0x90] sm:$0xff]
  %v61 = vld [vmem:[#allocation2 + $0x98] sm:$0xff]
  %v62 = vld [vmem:[#allocation2 + $0xa0] sm:$0x3]
  %v63 = vld [vmem:[%s0] sm:$0xf]
  %v64 = vld [vmem:[%s0 + $0x4] sm:$0xf]
  %v65 = vld [vmem:[%s0 + $0x8] sm:$0xf]
  %v66 = vld [vmem:[%s0 + $0xc] sm:$0xf]
  %v67 = vld [vmem:[%s0 + $0x10] sm:$0xf]
  %v68 = vld [vmem:[%s0 + $0x14] sm:$0xf]
  %v69 = vld [vmem:[%s0 + $0x18] sm:$0xf]
  %v70 = vld [vmem:[%s0 + $0x1c] sm:$0xf]
  %v71 = vld [vmem:[%s0 + $0x20] sm:$0xf]
  %v72 = vld [vmem:[%s0 + $0x24] sm:$0xf]
  %v73 = vld [vmem:[%s0 + $0x28] sm:$0xf]
  %v74 = vld [vmem:[%s0 + $0x2c] sm:$0xf]
  %v75 = vld [vmem:[%s0 + $0x30] sm:$0xf]
  %v76 = vld [vmem:[%s0 + $0x34] sm:$0xf]
  %v77 = vld [vmem:[%s0 + $0x38] sm:$0xf]
  %v78 = vld [vmem:[%s0 + $0x3c] sm:$0xf]
  %v79 = vld [vmem:[%s0 + $0x40] sm:$0xf]
  %v80 = vld [vmem:[%s0 + $0x44] sm:$0xf]
  %v81 = vld [vmem:[%s0 + $0x48] sm:$0xf]
  %v82 = vld [vmem:[%s0 + $0x4c] sm:$0xf]
  %v83 = vld [vmem:[%s0 + $0x50] sm:$0x1]
  %v84 = vld [vmem:[%s1] sm:$0xf]
  %v85 = vld [vmem:[%s1 + $0x4] sm:$0xf]
  %v86 = vld [vmem:[%s1 + $0x8] sm:$0xf]
  %v87 = vld [vmem:[%s1 + $0xc] sm:$0xf]
  %v88 = vld [vmem:[%s1 + $0x10] sm:$0xf]
  %v89 = vld [vmem:[%s1 + $0x14] sm:$0xf]
  %v90 = vld [vmem:[%s1 + $0x18] sm:$0xf]
  %v91 = vld [vmem:[%s1 + $0x1c] sm:$0xf]
  %v92 = vld [vmem:[%s1 + $0x20] sm:$0xf]
  %v93 = vld [vmem:[%s1 + $0x24] sm:$0xf]
  %v94 = vld [vmem:[%s1 + $0x28] sm:$0xf]
  %v95 = vld [vmem:[%s1 + $0x2c] sm:$0xf]
  %v96 = vld [vmem:[%s1 + $0x30] sm:$0xf]
  %v97 = vld [vmem:[%s1 + $0x34] sm:$0xf]
  %v98 = vld [vmem:[%s1 + $0x38] sm:$0xf]
  %v99 = vld [vmem:[%s1 + $0x3c] sm:$0xf]
  %v121 = vunpack.c.l.b16 %v63
  %v122 = vunpack.c.l.b16 %v64
  %v123 = vunpack.c.l.b16 %v65
  %v124 = vunpack.c.l.b16 %v66
  %v125 = vunpack.c.l.b16 %v67
  %v126 = vunpack.c.l.b16 %v68
  %v127 = vunpack.c.l.b16 %v69
  %v128 = vunpack.c.l.b16 %v70
  %v129 = vunpack.c.l.b16 %v71
  %v130 = vunpack.c.l.b16 %v72
  %v131 = vunpack.c.l.b16 %v73
  %v132 = vunpack.c.l.b16 %v74
  %v133 = vunpack.c.l.b16 %v75
  %v134 = vunpack.c.l.b16 %v76
  %v135 = vunpack.c.l.b16 %v77
  %v136 = vunpack.c.l.b16 %v78
  %v137 = vunpack.c.l.b16 %v79
  %v138 = vunpack.c.l.b16 %v80
  %v139 = vunpack.c.l.b16 %v81
  %v140 = vunpack.c.l.b16 %v82
  %v141 = vunpack.c.l.b16 %v83
  %v142 = vpack.c.b16 %v122, %v121
  %v143 = vpack.c.b16 %v124, %v123
  %v144 = vpack.c.b16 %v126, %v125
  %v145 = vpack.c.b16 %v128, %v127
  %v146 = vpack.c.b16 %v130, %v129
  %v147 = vpack.c.b16 %v132, %v131
  %v148 = vpack.c.b16 %v134, %v133
  %v149 = vpack.c.b16 %v136, %v135
  %v150 = vpack.c.b16 %v138, %v137
  %v151 = vpack.c.b16 %v140, %v139
  %v152 = vpack.c.b16 %v141, %v141
  %v180 = vunpack.c.l.b16 %v84
  %v181 = vunpack.c.l.b16 %v85
  %v182 = vunpack.c.l.b16 %v86
  %v183 = vunpack.c.l.b16 %v87
  %v184 = vunpack.c.l.b16 %v88
  %v185 = vunpack.c.l.b16 %v89
  %v186 = vunpack.c.l.b16 %v90
  %v187 = vunpack.c.l.b16 %v91
  %v188 = vunpack.c.l.b16 %v92
  %v189 = vunpack.c.l.b16 %v93
  %v190 = vunpack.c.l.b16 %v94
  %v191 = vunpack.c.l.b16 %v95
  %v192 = vunpack.c.l.b16 %v96
  %v193 = vunpack.c.l.b16 %v97
  %v194 = vunpack.c.l.b16 %v98
  %v195 = vunpack.c.l.b16 %v99
  %v196 = vpack.c.b16 %v181, %v180
  %v197 = vpack.c.b16 %v183, %v182
  %v198 = vpack.c.b16 %v185, %v184
  %v199 = vpack.c.b16 %v187, %v186
  %v200 = vpack.c.b16 %v189, %v188
  %v201 = vpack.c.b16 %v191, %v190
  %v202 = vpack.c.b16 %v193, %v192
  %v203 = vpack.c.b16 %v195, %v194
  %212 = vmatprep.subr.bf16.mxu0 0
  %213 = vmatpush1.bf16.msra.mxu0 %v196
  %214 = vmatprep.subr.bf16.mxu0 0
  %215 = vmatpush1.bf16.msra.mxu0 %v197
  %216 = vmatprep.subr.bf16.mxu0 0
  %217 = vmatpush1.bf16.msra.mxu0 %v198
  %218 = vmatprep.subr.bf16.mxu0 0
  %219 = vmatpush1.bf16.msra.mxu0 %v199
  %220 = vmatprep.subr.bf16.mxu0 0
  %221 = vmatpush1.bf16.msra.mxu0 %v200
  %222 = vmatprep.subr.bf16.mxu0 0
  %223 = vmatpush1.bf16.msra.mxu0 %v201
  %224 = vmatprep.subr.bf16.mxu0 0
  %225 = vmatpush1.bf16.msra.mxu0 %v202
  %226 = vmatprep.subr.bf16.mxu0 0
  %227 = vmatpush1.bf16.msra.mxu0 %v203
  %228 = vmatprep.subr.bf16.mxu0 0
  %229 = vmatpush1.bf16.msra.mxu0 0
  %230 = vmatprep.subr.bf16.mxu0 0
  %231 = vmatpush1.bf16.msra.mxu0 0
  %232 = vmatprep.subr.bf16.mxu0 0
  %233 = vmatpush1.bf16.msra.mxu0 0
  %234 = vmatprep.subr.bf16.mxu0 0
  %235 = vmatpush1.bf16.msra.mxu0 0
  %236 = vmatprep.subr.bf16.mxu0 0
  %237 = vmatpush1.bf16.msra.mxu0 0
  %238 = vmatprep.subr.bf16.mxu0 0
  %239 = vmatpush1.bf16.msra.mxu0 0
  %240 = vmatprep.subr.bf16.mxu0 0
  %241 = vmatpush1.bf16.msra.mxu0 0
  %242 = vmatprep.subr.bf16.mxu0 0
  %243 = vmatpush1.bf16.msra.mxu0 0
  %244 = vmatprep.mubr.bf16.mxu0 0
  %245 = vmatmul.mubr.bf16.gmra.mrb[0].mxu0 %v142
  %v246 = vpop.f32.mrb[0].mxu0
  %v247 = vadd.f32 0.0, %v246
  %v248 = vpop.f32.mrb[0].mxu0
  %v249 = vpop.f32.mrb[0].mxu0
  %v250 = vadd.f32 0.0, %v249
  %v251 = vpop.f32.mrb[0].mxu0
  %252 = vmatprep.mubr.bf16.mxu0 0
  %253 = vmatmul.mubr.bf16.gmra.mrb[0].mxu0 %v143
  %v254 = vpop.f32.mrb[0].mxu0
  %v255 = vadd.f32 0.0, %v254
  %v256 = vpop.f32.mrb[0].mxu0
  %v257 = vpop.f32.mrb[0].mxu0
  %v258 = vadd.f32 0.0, %v257
  %v259 = vpop.f32.mrb[0].mxu0
  %260 = vmatprep.mubr.bf16.mxu0 0
  %261 = vmatmul.mubr.bf16.gmra.mrb[0].mxu0 %v144
  %v262 = vpop.f32.mrb[0].mxu0
  %v263 = vadd.f32 0.0, %v262
  %v264 = vpop.f32.mrb[0].mxu0
  %v265 = vpop.f32.mrb[0].mxu0
  %v266 = vadd.f32 0.0, %v265
  %v267 = vpop.f32.mrb[0].mxu0
  %268 = vmatprep.mubr.bf16.mxu0 0
  %269 = vmatmul.mubr.bf16.gmra.mrb[0].mxu0 %v145
  %v270 = vpop.f32.mrb[0].mxu0
  %v271 = vadd.f32 0.0, %v270
  %v272 = vpop.f32.mrb[0].mxu0
  %v273 = vpop.f32.mrb[0].mxu0
  %v274 = vadd.f32 0.0, %v273
  %v275 = vpop.f32.mrb[0].mxu0
  %276 = vmatprep.mubr.bf16.mxu0 0
  %277 = vmatmul.mubr.bf16.gmra.mrb[0].mxu0 %v146
  %v278 = vpop.f32.mrb[0].mxu0
  %v279 = vadd.f32 0.0, %v278
  %v280 = vpop.f32.mrb[0].mxu0
  %v281 = vpop.f32.mrb[0].mxu0
  %v282 = vadd.f32 0.0, %v281
  %v283 = vpop.f32.mrb[0].mxu0
  %284 = vmatprep.mubr.bf16.mxu0 0
  %285 = vmatmul.mubr.bf16.gmra.mrb[0].mxu0 %v147
  %v286 = vpop.f32.mrb[0].mxu0
  %v287 = vadd.f32 0.0, %v286
  %v288 = vpop.f32.mrb[0].mxu0
  %v289 = vpop.f32.mrb[0].mxu0
  %v290 = vadd.f32 0.0, %v289
  %v291 = vpop.f32.mrb[0].mxu0
  %292 = vmatprep.mubr.bf16.mxu0 0
  %293 = vmatmul.mubr.bf16.gmra.mrb[0].mxu0 %v148
  %v294 = vpop.f32.mrb[0].mxu0
  %v295 = vadd.f32 0.0, %v294
  %v296 = vpop.f32.mrb[0].mxu0
  %v297 = vpop.f32.mrb[0].mxu0
  %v298 = vadd.f32 0.0, %v297
  %v299 = vpop.f32.mrb[0].mxu0
  %300 = vmatprep.mubr.bf16.mxu0 0
  %301 = vmatmul.mubr.bf16.gmra.mrb[0].mxu0 %v149
  %v302 = vpop.f32.mrb[0].mxu0
  %v303 = vadd.f32 0.0, %v302
  %v304 = vpop.f32.mrb[0].mxu0
  %v305 = vpop.f32.mrb[0].mxu0
  %v306 = vadd.f32 0.0, %v305
  %v307 = vpop.f32.mrb[0].mxu0
  %308 = vmatprep.mubr.bf16.mxu0 0
  %309 = vmatmul.mubr.bf16.gmra.mrb[0].mxu0 %v150
  %v310 = vpop.f32.mrb[0].mxu0
  %v311 = vadd.f32 0.0, %v310
  %v312 = vpop.f32.mrb[0].mxu0
  %v313 = vpop.f32.mrb[0].mxu0
  %v314 = vadd.f32 0.0, %v313
  %v315 = vpop.f32.mrb[0].mxu0
  %316 = vmatprep.mubr.bf16.mxu0 0
  %317 = vmatmul.mubr.bf16.gmra.mrb[0].mxu0 %v151
  %v318 = vpop.f32.mrb[0].mxu0
  %v319 = vadd.f32 0.0, %v318
  %v320 = vpop.f32.mrb[0].mxu0
  %v321 = vpop.f32.mrb[0].mxu0
  %v322 = vadd.f32 0.0, %v321
  %v323 = vpop.f32.mrb[0].mxu0
  %324 = vmatprep.mubr.bf16.mxu0 0
  %325 = vmatmul.mubr.bf16.gmra.mrb[0].mxu0 %v152
  %v326 = vpop.f32.mrb[0].mxu0
  %v327 = vadd.f32 0.0, %v326
  %v328 = vpop.f32.mrb[0].mxu0
  %v329 = vpop.f32.mrb[0].mxu0
  %v330 = vpop.f32.mrb[0].mxu0
  %331 = vdwg.mxu0
  %v332 = vadd.f32 %v42, %v247
  %v333 = vadd.f32 %v43, %v250
  %v334 = vadd.f32 %v44, %v255
  %v335 = vadd.f32 %v45, %v258
  %v336 = vadd.f32 %v46, %v263
  %v337 = vadd.f32 %v47, %v266
  %v338 = vadd.f32 %v48, %v271
  %v339 = vadd.f32 %v49, %v274
  %v340 = vadd.f32 %v50, %v279
  %v341 = vadd.f32 %v51, %v282
  %v342 = vadd.f32 %v52, %v287
  %v343 = vadd.f32 %v53, %v290
  %v344 = vadd.f32 %v54, %v295
  %v345 = vadd.f32 %v55, %v298
  %v346 = vadd.f32 %v56, %v303
  %v347 = vadd.f32 %v57, %v306
  %v348 = vadd.f32 %v58, %v311
  %v349 = vadd.f32 %v59, %v314
  %v350 = vadd.f32 %v60, %v319
  %v351 = vadd.f32 %v61, %v322
  %v352 = vadd.f32 %v62, %v327
  %vm353 = vcmask 261120
  %354 = vst.msk [vmem:[#allocation2] sm:$0xff] %vm353, %v332
  %355 = vst.msk [vmem:[#allocation2 + $0x8] sm:$0xff] %vm353, %v333
  %356 = vst.msk [vmem:[#allocation2 + $0x10] sm:$0xff] %vm353, %v334
  %357 = vst.msk [vmem:[#allocation2 + $0x18] sm:$0xff] %vm353, %v335
  %358 = vst.msk [vmem:[#allocation2 + $0x20] sm:$0xff] %vm353, %v336
  %359 = vst.msk [vmem:[#allocation2 + $0x28] sm:$0xff] %vm353, %v337
  %360 = vst.msk [vmem:[#allocation2 + $0x30] sm:$0xff] %vm353, %v338
  %361 = vst.msk [vmem:[#allocation2 + $0x38] sm:$0xff] %vm353, %v339
  %362 = vst.msk [vmem:[#allocation2 + $0x40] sm:$0xff] %vm353, %v340
  %363 = vst.msk [vmem:[#allocation2 + $0x48] sm:$0xff] %vm353, %v341
  %364 = vst.msk [vmem:[#allocation2 + $0x50] sm:$0xff] %vm353, %v342
  %365 = vst.msk [vmem:[#allocation2 + $0x58] sm:$0xff] %vm353, %v343
  %366 = vst.msk [vmem:[#allocation2 + $0x60] sm:$0xff] %vm353, %v344
  %367 = vst.msk [vmem:[#allocation2 + $0x68] sm:$0xff] %vm353, %v345
  %368 = vst.msk [vmem:[#allocation2 + $0x70] sm:$0xff] %vm353, %v346
  %369 = vst.msk [vmem:[#allocation2 + $0x78] sm:$0xff] %vm353, %v347
  %370 = vst.msk [vmem:[#allocation2 + $0x80] sm:$0xff] %vm353, %v348
  %371 = vst.msk [vmem:[#allocation2 + $0x88] sm:$0xff] %vm353, %v349
  %372 = vst.msk [vmem:[#allocation2 + $0x90] sm:$0xff] %vm353, %v350
  %373 = vst.msk [vmem:[#allocation2 + $0x98] sm:$0xff] %vm353, %v351
  %vm374 = vcmask 254976
  %375 = vst.msk [vmem:[#allocation2 + $0xa0] sm:$0x3] %vm374, %v352
  // Predicated region
  $region18: #{_lambda_.44} parent=0 // pred_check
    %p376 = pneg %p15
  $region19: #{_lambda_.44} parent=0 // pred_check_branch
    %378 = sbr.rel (%p376) target = $region21
  $region20: #{_lambda_.44} parent=0 // pred_region
    %v379 = vld [vmem:[#allocation2] sm:$0xff]
    %v380 = vld [vmem:[#allocation2 + $0x8] sm:$0xff]
    %v381 = vld [vmem:[#allocation2 + $0x10] sm:$0xff]
    %v382 = vld [vmem:[#allocation2 + $0x18] sm:$0xff]
    %v383 = vld [vmem:[#allocation2 + $0x20] sm:$0xff]
    %v384 = vld [vmem:[#allocation2 + $0x28] sm:$0xff]
    %v385 = vld [vmem:[#allocation2 + $0x30] sm:$0xff]
    %v386 = vld [vmem:[#allocation2 + $0x38] sm:$0xff]
    %v387 = vld [vmem:[#allocation2 + $0x40] sm:$0xff]
    %v388 = vld [vmem:[#allocation2 + $0x48] sm:$0xff]
    %v389 = vld [vmem:[#allocation2 + $0x50] sm:$0xff]
    %v390 = vld [vmem:[#allocation2 + $0x58] sm:$0xff]
    %v391 = vld [vmem:[#allocation2 + $0x60] sm:$0xff]
    %v392 = vld [vmem:[#allocation2 + $0x68] sm:$0xff]
    %v393 = vld [vmem:[#allocation2 + $0x70] sm:$0xff]
    %v394 = vld [vmem:[#allocation2 + $0x78] sm:$0xff]
    %v395 = vld [vmem:[#allocation2 + $0x80] sm:$0xff]
    %v396 = vld [vmem:[#allocation2 + $0x88] sm:$0xff]
    %v397 = vld [vmem:[#allocation2 + $0x90] sm:$0xff]
    %v398 = vld [vmem:[#allocation2 + $0x98] sm:$0xff]
    %v399 = vld [vmem:[#allocation2 + $0xa0] sm:$0x3]
    %v400 = vld [vmem:[%s2] sm:$0x1]
    %v402 = vlaneseq
    %v403 = vshrl.u32 %v402, 7
    %v404 = vsub.s32 0, %v403
    %v405 = vrot.slane %v400, %v404
    %v407 = vadd.f32 %v379, %v405
    %v408 = vadd.f32 %v380, %v405
    %v409 = vadd.f32 %v381, %v405
    %v410 = vadd.f32 %v382, %v405
    %v411 = vadd.f32 %v383, %v405
    %v412 = vadd.f32 %v384, %v405
    %v413 = vadd.f32 %v385, %v405
    %v414 = vadd.f32 %v386, %v405
    %v415 = vadd.f32 %v387, %v405
    %v416 = vadd.f32 %v388, %v405
    %v417 = vadd.f32 %v389, %v405
    %v418 = vadd.f32 %v390, %v405
    %v419 = vadd.f32 %v391, %v405
    %v420 = vadd.f32 %v392, %v405
    %v421 = vadd.f32 %v393, %v405
    %v422 = vadd.f32 %v394, %v405
    %v423 = vadd.f32 %v395, %v405
    %v424 = vadd.f32 %v396, %v405
    %v425 = vadd.f32 %v397, %v405
    %v426 = vadd.f32 %v398, %v405
    %v427 = vadd.f32 %v399, %v405
    %v428 = vpack.c.bf16 %v408, %v407
    %v429 = vpack.c.bf16 %v410, %v409
    %v430 = vpack.c.bf16 %v412, %v411
    %v431 = vpack.c.bf16 %v414, %v413
    %v432 = vpack.c.bf16 %v416, %v415
    %v433 = vpack.c.bf16 %v418, %v417
    %v434 = vpack.c.bf16 %v420, %v419
    %v435 = vpack.c.bf16 %v422, %v421
    %v436 = vpack.c.bf16 %v424, %v423
    %v437 = vpack.c.bf16 %v426, %v425
    %v438 = vpack.c.bf16 %v427, %v427
    %v450 = vunpack.c.l.b16 %v428
    %v451 = vunpack.c.h.b16 %v428
    %v452 = vunpack.c.l.b16 %v429
    %v453 = vunpack.c.h.b16 %v429
    %v454 = vunpack.c.l.b16 %v430
    %v455 = vunpack.c.h.b16 %v430
    %v456 = vunpack.c.l.b16 %v431
    %v457 = vunpack.c.h.b16 %v431
    %v458 = vunpack.c.l.b16 %v432
    %v459 = vunpack.c.h.b16 %v432
    %v460 = vunpack.c.l.b16 %v433
    %v461 = vunpack.c.h.b16 %v433
    %v462 = vunpack.c.l.b16 %v434
    %v463 = vunpack.c.h.b16 %v434
    %v464 = vunpack.c.l.b16 %v435
    %v465 = vunpack.c.h.b16 %v435
    %v466 = vunpack.c.l.b16 %v436
    %v467 = vunpack.c.h.b16 %v436
    %v468 = vunpack.c.l.b16 %v437
    %v469 = vunpack.c.h.b16 %v437
    %v470 = vunpack.c.l.b16 %v438
    %v471 = vpack.c.b16 %v450, %v450
    %v472 = vpack.c.b16 %v451, %v451
    %v473 = vpack.c.b16 %v452, %v452
    %v474 = vpack.c.b16 %v453, %v453
    %v475 = vpack.c.b16 %v454, %v454
    %v476 = vpack.c.b16 %v455, %v455
    %v477 = vpack.c.b16 %v456, %v456
    %v478 = vpack.c.b16 %v457, %v457
    %v479 = vpack.c.b16 %v458, %v458
    %v480 = vpack.c.b16 %v459, %v459
    %v481 = vpack.c.b16 %v460, %v460
    %v482 = vpack.c.b16 %v461, %v461
    %v483 = vpack.c.b16 %v462, %v462
    %v484 = vpack.c.b16 %v463, %v463
    %v485 = vpack.c.b16 %v464, %v464
    %v486 = vpack.c.b16 %v465, %v465
    %v487 = vpack.c.b16 %v466, %v466
    %v488 = vpack.c.b16 %v467, %v467
    %v489 = vpack.c.b16 %v468, %v468
    %v490 = vpack.c.b16 %v469, %v469
    %v491 = vpack.c.b16 %v470, %v470
    %vm513 = vcmask 257024
    %514 = vst.msk [vmem:[%s3] sm:$0xf] %vm513, %v471
    %515 = vst.msk [vmem:[%s3 + $0x4] sm:$0xf] %vm513, %v472
    %516 = vst.msk [vmem:[%s3 + $0x8] sm:$0xf] %vm513, %v473
    %517 = vst.msk [vmem:[%s3 + $0xc] sm:$0xf] %vm513, %v474
    %518 = vst.msk [vmem:[%s3 + $0x10] sm:$0xf] %vm513, %v475
    %519 = vst.msk [vmem:[%s3 + $0x14] sm:$0xf] %vm513, %v476
    %520 = vst.msk [vmem:[%s3 + $0x18] sm:$0xf] %vm513, %v477
    %521 = vst.msk [vmem:[%s3 + $0x1c] sm:$0xf] %vm513, %v478
    %522 = vst.msk [vmem:[%s3 + $0x20] sm:$0xf] %vm513, %v479
    %523 = vst.msk [vmem:[%s3 + $0x24] sm:$0xf] %vm513, %v480
    %524 = vst.msk [vmem:[%s3 + $0x28] sm:$0xf] %vm513, %v481
    %525 = vst.msk [vmem:[%s3 + $0x2c] sm:$0xf] %vm513, %v482
    %526 = vst.msk [vmem:[%s3 + $0x30] sm:$0xf] %vm513, %v483
    %527 = vst.msk [vmem:[%s3 + $0x34] sm:$0xf] %vm513, %v484
    %528 = vst.msk [vmem:[%s3 + $0x38] sm:$0xf] %vm513, %v485
    %529 = vst.msk [vmem:[%s3 + $0x3c] sm:$0xf] %vm513, %v486
    %530 = vst.msk [vmem:[%s3 + $0x40] sm:$0xf] %vm513, %v487
    %531 = vst.msk [vmem:[%s3 + $0x44] sm:$0xf] %vm513, %v488
    %532 = vst.msk [vmem:[%s3 + $0x48] sm:$0xf] %vm513, %v489
    %533 = vst.msk [vmem:[%s3 + $0x4c] sm:$0xf] %vm513, %v490
    %vm534 = vcmask 253952
    %535 = vst.msk [vmem:[%s3 + $0x50] sm:$0x1] %vm534, %v491
  $region21: #{_lambda_.44} parent=0 // pred_fallthru
    _
  // Predicated region
  $region22: #{_lambda_.44} parent=0 // pred_check
    _
  $region23: #{_lambda_.44} parent=0 // pred_check_branch
    %537 = sbr.rel (0) target = $region25
  $region24: #{_lambda_.44} parent=0 // pred_region
    _
  $region25: #{_lambda_.44} parent=0 // pred_fallthru
    _
  // Predicated region
  $region26: #{_lambda_.44} parent=0 // pred_check
    _
  $region27: #{_lambda_.44} parent=0 // pred_check_branch
    %539 = sbr.rel (0) target = $region29
  $region28: #{_lambda_.44} parent=0 // pred_region
    _
  $region29: #{_lambda_.44} parent=0 // pred_fallthru
    _

// kernel: _lambda_.45
$region0: #{_lambda_.45}
  #allocation0 [shape = 'u32[]', space=smem, size = 0x4, offset = 0x4, fixed_abs, tag = 'smem constant byte address 0x4 - core index']
  #allocation1 [shape = 'u32[144,128]{1,0:T(1,128)}', space=vmem, size = 0x12000, scoped, tag = 'internal scratch']
  %s0 = inlined_call_operand.vmem [shape: bf16[512,8], index: 0, kind: input, shape index: {}]
  %s1 = inlined_call_operand.vmem [shape: f32[1,8], index: 1, kind: output, shape index: {0}]
  %s2 = inlined_call_operand.vmem [shape: f32[1,8], index: 2, kind: output, shape index: {1}]
  %3 = xla_tuple %s1, %s2
  %s4 = sld [smem:[#allocation0]]
  $region26: #{_lambda_.45} parent=0
    _
  %s6 = ssub.s32 1, %s4
  %s7 = scalar_select 0, %s6, %s4
  // Predicated region
  $region2: #{_lambda_.45} parent=0 // pred_check
    _
  $region3: #{_lambda_.45} parent=0 // pred_check_branch
    %9 = sbr.rel (0) target = $region5
  $region4: #{_lambda_.45} parent=0 // pred_region
    _
  $region5: #{_lambda_.45} parent=0 // pred_fallthru
    _
  %p10 = scmp.eq.s32.totalorder 0, 0
  // Predicated region
  $region6: #{_lambda_.45} parent=0 // pred_check
    %p11 = pneg %p10
  $region7: #{_lambda_.45} parent=0 // pred_check_branch
    %13 = sbr.rel (%p11) target = $region9
  $region8: #{_lambda_.45} parent=0 // pred_region
    %vm14 = vcmask 57344
    %15 = vst.msk [vmem:[%s1] sm:$0x1] %vm14, 0.0
    %16 = vst.msk [vmem:[%s2] sm:$0x1] %vm14, 0.0
  $region9: #{_lambda_.45} parent=0 // pred_fallthru
    _
  %v17 = vld [vmem:[%s0] sm:$0xf]
  %v18 = vld [vmem:[%s0 + $0x4] sm:$0xf]
  %v19 = vld [vmem:[%s0 + $0x8] sm:$0xf]
  %v20 = vld [vmem:[%s0 + $0xc] sm:$0xf]
  %v21 = vld [vmem:[%s0 + $0x10] sm:$0xf]
  %v22 = vld [vmem:[%s0 + $0x14] sm:$0xf]
  %v23 = vld [vmem:[%s0 + $0x18] sm:$0xf]
  %v24 = vld [vmem:[%s0 + $0x1c] sm:$0xf]
  %v25 = vld [vmem:[%s0 + $0x20] sm:$0xf]
  %v26 = vld [vmem:[%s0 + $0x24] sm:$0xf]
  %v27 = vld [vmem:[%s0 + $0x28] sm:$0xf]
  %v28 = vld [vmem:[%s0 + $0x2c] sm:$0xf]
  %v29 = vld [vmem:[%s0 + $0x30] sm:$0xf]
  %v30 = vld [vmem:[%s0 + $0x34] sm:$0xf]
  %v31 = vld [vmem:[%s0 + $0x38] sm:$0xf]
  %v32 = vld [vmem:[%s0 + $0x3c] sm:$0xf]
  %v33 = vld [vmem:[%s0 + $0x40] sm:$0xf]
  %v34 = vld [vmem:[%s0 + $0x44] sm:$0xf]
  %v35 = vld [vmem:[%s0 + $0x48] sm:$0xf]
  %v36 = vld [vmem:[%s0 + $0x4c] sm:$0xf]
  %v37 = vld [vmem:[%s0 + $0x50] sm:$0xf]
  %v38 = vld [vmem:[%s0 + $0x54] sm:$0xf]
  %v39 = vld [vmem:[%s0 + $0x58] sm:$0xf]
  %v40 = vld [vmem:[%s0 + $0x5c] sm:$0xf]
  %v41 = vld [vmem:[%s0 + $0x60] sm:$0xf]
  %v42 = vld [vmem:[%s0 + $0x64] sm:$0xf]
  %v43 = vld [vmem:[%s0 + $0x68] sm:$0xf]
  %v44 = vld [vmem:[%s0 + $0x6c] sm:$0xf]
  %v45 = vld [vmem:[%s0 + $0x70] sm:$0xf]
  %v46 = vld [vmem:[%s0 + $0x74] sm:$0xf]
  %v47 = vld [vmem:[%s0 + $0x78] sm:$0xf]
  %v48 = vld [vmem:[%s0 + $0x7c] sm:$0xf]
  %v49 = vld [vmem:[%s0 + $0x80] sm:$0xf]
  %v50 = vld [vmem:[%s0 + $0x84] sm:$0xf]
  %v51 = vld [vmem:[%s0 + $0x88] sm:$0xf]
  %v52 = vld [vmem:[%s0 + $0x8c] sm:$0xf]
  %v53 = vld [vmem:[%s0 + $0x90] sm:$0xf]
  %v54 = vld [vmem:[%s0 + $0x94] sm:$0xf]
  %v55 = vld [vmem:[%s0 + $0x98] sm:$0xf]
  %v56 = vld [vmem:[%s0 + $0x9c] sm:$0xf]
  %v57 = vld [vmem:[%s0 + $0xa0] sm:$0xf]
  %v58 = vld [vmem:[%s0 + $0xa4] sm:$0xf]
  %v59 = vld [vmem:[%s0 + $0xa8] sm:$0xf]
  %v60 = vld [vmem:[%s0 + $0xac] sm:$0xf]
  %v61 = vld [vmem:[%s0 + $0xb0] sm:$0xf]
  %v62 = vld [vmem:[%s0 + $0xb4] sm:$0xf]
  %v63 = vld [vmem:[%s0 + $0xb8] sm:$0xf]
  %v64 = vld [vmem:[%s0 + $0xbc] sm:$0xf]
  %v65 = vld [vmem:[%s0 + $0xc0] sm:$0xf]
  %v66 = vld [vmem:[%s0 + $0xc4] sm:$0xf]
  %v67 = vld [vmem:[%s0 + $0xc8] sm:$0xf]
  %v68 = vld [vmem:[%s0 + $0xcc] sm:$0xf]
  %v69 = vld [vmem:[%s0 + $0xd0] sm:$0xf]
  %v70 = vld [vmem:[%s0 + $0xd4] sm:$0xf]
  %v71 = vld [vmem:[%s0 + $0xd8] sm:$0xf]
  %v72 = vld [vmem:[%s0 + $0xdc] sm:$0xf]
  %v73 = vld [vmem:[%s0 + $0xe0] sm:$0xf]
  %v74 = vld [vmem:[%s0 + $0xe4] sm:$0xf]
  %v75 = vld [vmem:[%s0 + $0xe8] sm:$0xf]
  %v76 = vld [vmem:[%s0 + $0xec] sm:$0xf]
  %v77 = vld [vmem:[%s0 + $0xf0] sm:$0xf]
  %v78 = vld [vmem:[%s0 + $0xf4] sm:$0xf]
  %v79 = vld [vmem:[%s0 + $0xf8] sm:$0xf]
  %v80 = vld [vmem:[%s0 + $0xfc] sm:$0xf]
  %v81 = vunpack.c.l.bf16 %v17
  %v82 = vunpack.c.l.bf16 %v18
  %v83 = vunpack.c.l.bf16 %v19
  %v84 = vunpack.c.l.bf16 %v20
  %v85 = vunpack.c.l.bf16 %v21
  %v86 = vunpack.c.l.bf16 %v22
  %v87 = vunpack.c.l.bf16 %v23
  %v88 = vunpack.c.l.bf16 %v24
  %v89 = vunpack.c.l.bf16 %v25
  %v90 = vunpack.c.l.bf16 %v26
  %v91 = vunpack.c.l.bf16 %v27
  %v92 = vunpack.c.l.bf16 %v28
  %v93 = vunpack.c.l.bf16 %v29
  %v94 = vunpack.c.l.bf16 %v30
  %v95 = vunpack.c.l.bf16 %v31
  %v96 = vunpack.c.l.bf16 %v32
  %v97 = vunpack.c.l.bf16 %v33
  %v98 = vunpack.c.l.bf16 %v34
  %v99 = vunpack.c.l.bf16 %v35
  %v100 = vunpack.c.l.bf16 %v36
  %v101 = vunpack.c.l.bf16 %v37
  %v102 = vunpack.c.l.bf16 %v38
  %v103 = vunpack.c.l.bf16 %v39
  %v104 = vunpack.c.l.bf16 %v40
  %v105 = vunpack.c.l.bf16 %v41
  %v106 = vunpack.c.l.bf16 %v42
  %v107 = vunpack.c.l.bf16 %v43
  %v108 = vunpack.c.l.bf16 %v44
  %v109 = vunpack.c.l.bf16 %v45
  %v110 = vunpack.c.l.bf16 %v46
  %v111 = vunpack.c.l.bf16 %v47
  %v112 = vunpack.c.l.bf16 %v48
  %v113 = vunpack.c.l.bf16 %v49
  %v114 = vunpack.c.l.bf16 %v50
  %v115 = vunpack.c.l.bf16 %v51
  %v116 = vunpack.c.l.bf16 %v52
  %v117 = vunpack.c.l.bf16 %v53
  %v118 = vunpack.c.l.bf16 %v54
  %v119 = vunpack.c.l.bf16 %v55
  %v120 = vunpack.c.l.bf16 %v56
  %v121 = vunpack.c.l.bf16 %v57
  %v122 = vunpack.c.l.bf16 %v58
  %v123 = vunpack.c.l.bf16 %v59
  %v124 = vunpack.c.l.bf16 %v60
  %v125 = vunpack.c.l.bf16 %v61
  %v126 = vunpack.c.l.bf16 %v62
  %v127 = vunpack.c.l.bf16 %v63
  %v128 = vunpack.c.l.bf16 %v64
  %v129 = vunpack.c.l.bf16 %v65
  %v130 = vunpack.c.l.bf16 %v66
  %v131 = vunpack.c.l.bf16 %v67
  %v132 = vunpack.c.l.bf16 %v68
  %v133 = vunpack.c.l.bf16 %v69
  %v134 = vunpack.c.l.bf16 %v70
  %v135 = vunpack.c.l.bf16 %v71
  %v136 = vunpack.c.l.bf16 %v72
  %v137 = vunpack.c.l.bf16 %v73
  %v138 = vunpack.c.l.bf16 %v74
  %v139 = vunpack.c.l.bf16 %v75
  %v140 = vunpack.c.l.bf16 %v76
  %v141 = vunpack.c.l.bf16 %v77
  %v142 = vunpack.c.l.bf16 %v78
  %v143 = vunpack.c.l.bf16 %v79
  %v144 = vunpack.c.l.bf16 %v80
  %s145 = smul.u32 0, 512
  %v146 = vlaneseq
  %v147 = vshrl.u32 %v146, 7
  %v148 = vadd.s32 %v147, 8
  %v149 = vadd.s32 %v147, 16
  %v150 = vadd.s32 %v147, 24
  %v151 = vadd.s32 %v147, 32
  %v152 = vadd.s32 %v147, 40
  %v153 = vadd.s32 %v147, 48
  %v154 = vadd.s32 %v147, 56
  %v155 = vadd.s32 %v147, 64
  %v156 = vadd.s32 %v147, 72
  %v157 = vadd.s32 %v147, 80
  %v158 = vadd.s32 %v147, 88
  %v159 = vadd.s32 %v147, 96
  %v160 = vadd.s32 %v147, 104
  %v161 = vadd.s32 %v147, 112
  %v162 = vadd.s32 %v147, 120
  %v163 = vadd.s32 %v147, 128
  %v164 = vadd.s32 %v147, 136
  %v165 = vadd.s32 %v147, 144
  %v166 = vadd.s32 %v147, 152
  %v167 = vadd.s32 %v147, 160
  %v168 = vadd.s32 %v147, 168
  %v169 = vadd.s32 %v147, 176
  %v170 = vadd.s32 %v147, 184
  %v171 = vadd.s32 %v147, 192
  %v172 = vadd.s32 %v147, 200
  %v173 = vadd.s32 %v147, 208
  %v174 = vadd.s32 %v147, 216
  %v175 = vadd.s32 %v147, 224
  %v176 = vadd.s32 %v147, 232
  %v177 = vadd.s32 %v147, 240
  %v178 = vadd.s32 %v147, 248
  %v179 = vadd.s32 %v147, 256
  %v180 = vadd.s32 %v147, 264
  %v181 = vadd.s32 %v147, 272
  %v182 = vadd.s32 %v147, 280
  %v183 = vadd.s32 %v147, 288
  %v184 = vadd.s32 %v147, 296
  %v185 = vadd.s32 %v147, 304
  %v186 = vadd.s32 %v147, 312
  %v187 = vadd.s32 %v147, 320
  %v188 = vadd.s32 %v147, 328
  %v189 = vadd.s32 %v147, 336
  %v190 = vadd.s32 %v147, 344
  %v191 = vadd.s32 %v147, 352
  %v192 = vadd.s32 %v147, 360
  %v193 = vadd.s32 %v147, 368
  %v194 = vadd.s32 %v147, 376
  %v195 = vadd.s32 %v147, 384
  %v196 = vadd.s32 %v147, 392
  %v197 = vadd.s32 %v147, 400
  %v198 = vadd.s32 %v147, 408
  %v199 = vadd.s32 %v147, 416
  %v200 = vadd.s32 %v147, 424
  %v201 = vadd.s32 %v147, 432
  %v202 = vadd.s32 %v147, 440
  %v203 = vadd.s32 %v147, 448
  %v204 = vadd.s32 %v147, 456
  %v205 = vadd.s32 %v147, 464
  %v206 = vadd.s32 %v147, 472
  %v207 = vadd.s32 %v147, 480
  %v208 = vadd.s32 %v147, 488
  %v209 = vadd.s32 %v147, 496
  %v210 = vadd.s32 %v147, 504
  %v211 = vstv %s145
  %v212 = vadd.s32 %v211, %v147
  %v213 = vadd.s32 %v211, %v148
  %v214 = vadd.s32 %v211, %v149
  %v215 = vadd.s32 %v211, %v150
  %v216 = vadd.s32 %v211, %v151
  %v217 = vadd.s32 %v211, %v152
  %v218 = vadd.s32 %v211, %v153
  %v219 = vadd.s32 %v211, %v154
  %v220 = vadd.s32 %v211, %v155
  %v221 = vadd.s32 %v211, %v156
  %v222 = vadd.s32 %v211, %v157
  %v223 = vadd.s32 %v211, %v158
  %v224 = vadd.s32 %v211, %v159
  %v225 = vadd.s32 %v211, %v160
  %v226 = vadd.s32 %v211, %v161
  %v227 = vadd.s32 %v211, %v162
  %v228 = vadd.s32 %v211, %v163
  %v229 = vadd.s32 %v211, %v164
  %v230 = vadd.s32 %v211, %v165
  %v231 = vadd.s32 %v211, %v166
  %v232 = vadd.s32 %v211, %v167
  %v233 = vadd.s32 %v211, %v168
  %v234 = vadd.s32 %v211, %v169
  %v235 = vadd.s32 %v211, %v170
  %v236 = vadd.s32 %v211, %v171
  %v237 = vadd.s32 %v211, %v172
  %v238 = vadd.s32 %v211, %v173
  %v239 = vadd.s32 %v211, %v174
  %v240 = vadd.s32 %v211, %v175
  %v241 = vadd.s32 %v211, %v176
  %v242 = vadd.s32 %v211, %v177
  %v243 = vadd.s32 %v211, %v178
  %v244 = vadd.s32 %v211, %v179
  %v245 = vadd.s32 %v211, %v180
  %v246 = vadd.s32 %v211, %v181
  %v247 = vadd.s32 %v211, %v182
  %v248 = vadd.s32 %v211, %v183
  %v249 = vadd.s32 %v211, %v184
  %v250 = vadd.s32 %v211, %v185
  %v251 = vadd.s32 %v211, %v186
  %v252 = vadd.s32 %v211, %v187
  %v253 = vadd.s32 %v211, %v188
  %v254 = vadd.s32 %v211, %v189
  %v255 = vadd.s32 %v211, %v190
  %v256 = vadd.s32 %v211, %v191
  %v257 = vadd.s32 %v211, %v192
  %v258 = vadd.s32 %v211, %v193
  %v259 = vadd.s32 %v211, %v194
  %v260 = vadd.s32 %v211, %v195
  %v261 = vadd.s32 %v211, %v196
  %v262 = vadd.s32 %v211, %v197
  %v263 = vadd.s32 %v211, %v198
  %v264 = vadd.s32 %v211, %v199
  %v265 = vadd.s32 %v211, %v200
  %v266 = vadd.s32 %v211, %v201
  %v267 = vadd.s32 %v211, %v202
  %v268 = vadd.s32 %v211, %v203
  %v269 = vadd.s32 %v211, %v204
  %v270 = vadd.s32 %v211, %v205
  %v271 = vadd.s32 %v211, %v206
  %v272 = vadd.s32 %v211, %v207
  %v273 = vadd.s32 %v211, %v208
  %v274 = vadd.s32 %v211, %v209
  %v275 = vadd.s32 %v211, %v210
  %vm276 = vcmp.lt.s32.totalorder %v212, 512
  %vm277 = vcmp.lt.s32.totalorder %v213, 512
  %vm278 = vcmp.lt.s32.totalorder %v214, 512
  %vm279 = vcmp.lt.s32.totalorder %v215, 512
  %vm280 = vcmp.lt.s32.totalorder %v216, 512
  %vm281 = vcmp.lt.s32.totalorder %v217, 512
  %vm282 = vcmp.lt.s32.totalorder %v218, 512
  %vm283 = vcmp.lt.s32.totalorder %v219, 512
  %vm284 = vcmp.lt.s32.totalorder %v220, 512
  %vm285 = vcmp.lt.s32.totalorder %v221, 512
  %vm286 = vcmp.lt.s32.totalorder %v222, 512
  %vm287 = vcmp.lt.s32.totalorder %v223, 512
  %vm288 = vcmp.lt.s32.totalorder %v224, 512
  %vm289 = vcmp.lt.s32.totalorder %v225, 512
  %vm290 = vcmp.lt.s32.totalorder %v226, 512
  %vm291 = vcmp.lt.s32.totalorder %v227, 512
  %vm292 = vcmp.lt.s32.totalorder %v228, 512
  %vm293 = vcmp.lt.s32.totalorder %v229, 512
  %vm294 = vcmp.lt.s32.totalorder %v230, 512
  %vm295 = vcmp.lt.s32.totalorder %v231, 512
  %vm296 = vcmp.lt.s32.totalorder %v232, 512
  %vm297 = vcmp.lt.s32.totalorder %v233, 512
  %vm298 = vcmp.lt.s32.totalorder %v234, 512
  %vm299 = vcmp.lt.s32.totalorder %v235, 512
  %vm300 = vcmp.lt.s32.totalorder %v236, 512
  %vm301 = vcmp.lt.s32.totalorder %v237, 512
  %vm302 = vcmp.lt.s32.totalorder %v238, 512
  %vm303 = vcmp.lt.s32.totalorder %v239, 512
  %vm304 = vcmp.lt.s32.totalorder %v240, 512
  %vm305 = vcmp.lt.s32.totalorder %v241, 512
  %vm306 = vcmp.lt.s32.totalorder %v242, 512
  %vm307 = vcmp.lt.s32.totalorder %v243, 512
  %vm308 = vcmp.lt.s32.totalorder %v244, 512
  %vm309 = vcmp.lt.s32.totalorder %v245, 512
  %vm310 = vcmp.lt.s32.totalorder %v246, 512
  %vm311 = vcmp.lt.s32.totalorder %v247, 512
  %vm312 = vcmp.lt.s32.totalorder %v248, 512
  %vm313 = vcmp.lt.s32.totalorder %v249, 512
  %vm314 = vcmp.lt.s32.totalorder %v250, 512
  %vm315 = vcmp.lt.s32.totalorder %v251, 512
  %vm316 = vcmp.lt.s32.totalorder %v252, 512
  %vm317 = vcmp.lt.s32.totalorder %v253, 512
  %vm318 = vcmp.lt.s32.totalorder %v254, 512
  %vm319 = vcmp.lt.s32.totalorder %v255, 512
  %vm320 = vcmp.lt.s32.totalorder %v256, 512
  %vm321 = vcmp.lt.s32.totalorder %v257, 512
  %vm322 = vcmp.lt.s32.totalorder %v258, 512
  %vm323 = vcmp.lt.s32.totalorder %v259, 512
  %vm324 = vcmp.lt.s32.totalorder %v260, 512
  %vm325 = vcmp.lt.s32.totalorder %v261, 512
  %vm326 = vcmp.lt.s32.totalorder %v262, 512
  %vm327 = vcmp.lt.s32.totalorder %v263, 512
  %vm328 = vcmp.lt.s32.totalorder %v264, 512
  %vm329 = vcmp.lt.s32.totalorder %v265, 512
  %vm330 = vcmp.lt.s32.totalorder %v266, 512
  %vm331 = vcmp.lt.s32.totalorder %v267, 512
  %vm332 = vcmp.lt.s32.totalorder %v268, 512
  %vm333 = vcmp.lt.s32.totalorder %v269, 512
  %vm334 = vcmp.lt.s32.totalorder %v270, 512
  %vm335 = vcmp.lt.s32.totalorder %v271, 512
  %vm336 = vcmp.lt.s32.totalorder %v272, 512
  %vm337 = vcmp.lt.s32.totalorder %v273, 512
  %vm338 = vcmp.lt.s32.totalorder %v274, 512
  %vm339 = vcmp.lt.s32.totalorder %v275, 512
  %v340 = vsel %vm276, %v81, 0.0
  %v341 = vsel %vm277, %v82, 0.0
  %v342 = vsel %vm278, %v83, 0.0
  %v343 = vsel %vm279, %v84, 0.0
  %v344 = vsel %vm280, %v85, 0.0
  %v345 = vsel %vm281, %v86, 0.0
  %v346 = vsel %vm282, %v87, 0.0
  %v347 = vsel %vm283, %v88, 0.0
  %v348 = vsel %vm284, %v89, 0.0
  %v349 = vsel %vm285, %v90, 0.0
  %v350 = vsel %vm286, %v91, 0.0
  %v351 = vsel %vm287, %v92, 0.0
  %v352 = vsel %vm288, %v93, 0.0
  %v353 = vsel %vm289, %v94, 0.0
  %v354 = vsel %vm290, %v95, 0.0
  %v355 = vsel %vm291, %v96, 0.0
  %v356 = vsel %vm292, %v97, 0.0
  %v357 = vsel %vm293, %v98, 0.0
  %v358 = vsel %vm294, %v99, 0.0
  %v359 = vsel %vm295, %v100, 0.0
  %v360 = vsel %vm296, %v101, 0.0
  %v361 = vsel %vm297, %v102, 0.0
  %v362 = vsel %vm298, %v103, 0.0
  %v363 = vsel %vm299, %v104, 0.0
  %v364 = vsel %vm300, %v105, 0.0
  %v365 = vsel %vm301, %v106, 0.0
  %v366 = vsel %vm302, %v107, 0.0
  %v367 = vsel %vm303, %v108, 0.0
  %v368 = vsel %vm304, %v109, 0.0
  %v369 = vsel %vm305, %v110, 0.0
  %v370 = vsel %vm306, %v111, 0.0
  %v371 = vsel %vm307, %v112, 0.0
  %v372 = vsel %vm308, %v113, 0.0
  %v373 = vsel %vm309, %v114, 0.0
  %v374 = vsel %vm310, %v115, 0.0
  %v375 = vsel %vm311, %v116, 0.0
  %v376 = vsel %vm312, %v117, 0.0
  %v377 = vsel %vm313, %v118, 0.0
  %v378 = vsel %vm314, %v119, 0.0
  %v379 = vsel %vm315, %v120, 0.0
  %v380 = vsel %vm316, %v121, 0.0
  %v381 = vsel %vm317, %v122, 0.0
  %v382 = vsel %vm318, %v123, 0.0
  %v383 = vsel %vm319, %v124, 0.0
  %v384 = vsel %vm320, %v125, 0.0
  %v385 = vsel %vm321, %v126, 0.0
  %v386 = vsel %vm322, %v127, 0.0
  %v387 = vsel %vm323, %v128, 0.0
  %v388 = vsel %vm324, %v129, 0.0
  %v389 = vsel %vm325, %v130, 0.0
  %v390 = vsel %vm326, %v131, 0.0
  %v391 = vsel %vm327, %v132, 0.0
  %v392 = vsel %vm328, %v133, 0.0
  %v393 = vsel %vm329, %v134, 0.0
  %v394 = vsel %vm330, %v135, 0.0
  %v395 = vsel %vm331, %v136, 0.0
  %v396 = vsel %vm332, %v137, 0.0
  %v397 = vsel %vm333, %v138, 0.0
  %v398 = vsel %vm334, %v139, 0.0
  %v399 = vsel %vm335, %v140, 0.0
  %v400 = vsel %vm336, %v141, 0.0
  %v401 = vsel %vm337, %v142, 0.0
  %v402 = vsel %vm338, %v143, 0.0
  %v403 = vsel %vm339, %v144, 0.0
  %v404 = vld [vmem:[%s1] sm:$0x1]
  %vm405 = vcmask 64512
  %v406 = vsel %vm405, %v340, 0.0
  %v407 = vsel %vm405, %v341, 0.0
  %v408 = vadd.f32 %v406, %v407
  %v409 = vsel %vm405, %v342, 0.0
  %v410 = vadd.f32 %v408, %v409
  %v411 = vsel %vm405, %v343, 0.0
  %v412 = vadd.f32 %v410, %v411
  %v413 = vsel %vm405, %v344, 0.0
  %v414 = vadd.f32 %v412, %v413
  %v415 = vsel %vm405, %v345, 0.0
  %v416 = vadd.f32 %v414, %v415
  %v417 = vsel %vm405, %v346, 0.0
  %v418 = vadd.f32 %v416, %v417
  %v419 = vsel %vm405, %v347, 0.0
  %v420 = vadd.f32 %v418, %v419
  %v421 = vsel %vm405, %v348, 0.0
  %v422 = vadd.f32 %v420, %v421
  %v423 = vsel %vm405, %v349, 0.0
  %v424 = vadd.f32 %v422, %v423
  %v425 = vsel %vm405, %v350, 0.0
  %v426 = vadd.f32 %v424, %v425
  %v427 = vsel %vm405, %v351, 0.0
  %v428 = vadd.f32 %v426, %v427
  %v429 = vsel %vm405, %v352, 0.0
  %v430 = vadd.f32 %v428, %v429
  %v431 = vsel %vm405, %v353, 0.0
  %v432 = vadd.f32 %v430, %v431
  %v433 = vsel %vm405, %v354, 0.0
  %v434 = vadd.f32 %v432, %v433
  %v435 = vsel %vm405, %v355, 0.0
  %v436 = vadd.f32 %v434, %v435
  %v437 = vsel %vm405, %v356, 0.0
  %v438 = vadd.f32 %v436, %v437
  %v439 = vsel %vm405, %v357, 0.0
  %v440 = vadd.f32 %v438, %v439
  %v441 = vsel %vm405, %v358, 0.0
  %v442 = vadd.f32 %v440, %v441
  %v443 = vsel %vm405, %v359, 0.0
  %v444 = vadd.f32 %v442, %v443
  %v445 = vsel %vm405, %v360, 0.0
  %v446 = vadd.f32 %v444, %v445
  %v447 = vsel %vm405, %v361, 0.0
  %v448 = vadd.f32 %v446, %v447
  %v449 = vsel %vm405, %v362, 0.0
  %v450 = vadd.f32 %v448, %v449
  %v451 = vsel %vm405, %v363, 0.0
  %v452 = vadd.f32 %v450, %v451
  %v453 = vsel %vm405, %v364, 0.0
  %v454 = vadd.f32 %v452, %v453
  %v455 = vsel %vm405, %v365, 0.0
  %v456 = vadd.f32 %v454, %v455
  %v457 = vsel %vm405, %v366, 0.0
  %v458 = vadd.f32 %v456, %v457
  %v459 = vsel %vm405, %v367, 0.0
  %v460 = vadd.f32 %v458, %v459
  %v461 = vsel %vm405, %v368, 0.0
  %v462 = vadd.f32 %v460, %v461
  %v463 = vsel %vm405, %v369, 0.0
  %v464 = vadd.f32 %v462, %v463
  %v465 = vsel %vm405, %v370, 0.0
  %v466 = vadd.f32 %v464, %v465
  %v467 = vsel %vm405, %v371, 0.0
  %v468 = vadd.f32 %v466, %v467
  %v469 = vsel %vm405, %v372, 0.0
  %v470 = vadd.f32 %v468, %v469
  %v471 = vsel %vm405, %v373, 0.0
  %v472 = vadd.f32 %v470, %v471
  %v473 = vsel %vm405, %v374, 0.0
  %v474 = vadd.f32 %v472, %v473
  %v475 = vsel %vm405, %v375, 0.0
  %v476 = vadd.f32 %v474, %v475
  %v477 = vsel %vm405, %v376, 0.0
  %v478 = vadd.f32 %v476, %v477
  %v479 = vsel %vm405, %v377, 0.0
  %v480 = vadd.f32 %v478, %v479
  %v481 = vsel %vm405, %v378, 0.0
  %v482 = vadd.f32 %v480, %v481
  %v483 = vsel %vm405, %v379, 0.0
  %v484 = vadd.f32 %v482, %v483
  %v485 = vsel %vm405, %v380, 0.0
  %v486 = vadd.f32 %v484, %v485
  %v487 = vsel %vm405, %v381, 0.0
  %v488 = vadd.f32 %v486, %v487
  %v489 = vsel %vm405, %v382, 0.0
  %v490 = vadd.f32 %v488, %v489
  %v491 = vsel %vm405, %v383, 0.0
  %v492 = vadd.f32 %v490, %v491
  %v493 = vsel %vm405, %v384, 0.0
  %v494 = vadd.f32 %v492, %v493
  %v495 = vsel %vm405, %v385, 0.0
  %v496 = vadd.f32 %v494, %v495
  %v497 = vsel %vm405, %v386, 0.0
  %v498 = vadd.f32 %v496, %v497
  %v499 = vsel %vm405, %v387, 0.0
  %v500 = vadd.f32 %v498, %v499
  %v501 = vsel %vm405, %v388, 0.0
  %v502 = vadd.f32 %v500, %v501
  %v503 = vsel %vm405, %v389, 0.0
  %v504 = vadd.f32 %v502, %v503
  %v505 = vsel %vm405, %v390, 0.0
  %v506 = vadd.f32 %v504, %v505
  %v507 = vsel %vm405, %v391, 0.0
  %v508 = vadd.f32 %v506, %v507
  %v509 = vsel %vm405, %v392, 0.0
  %v510 = vadd.f32 %v508, %v509
  %v511 = vsel %vm405, %v393, 0.0
  %v512 = vadd.f32 %v510, %v511
  %v513 = vsel %vm405, %v394, 0.0
  %v514 = vadd.f32 %v512, %v513
  %v515 = vsel %vm405, %v395, 0.0
  %v516 = vadd.f32 %v514, %v515
  %v517 = vsel %vm405, %v396, 0.0
  %v518 = vadd.f32 %v516, %v517
  %v519 = vsel %vm405, %v397, 0.0
  %v520 = vadd.f32 %v518, %v519
  %v521 = vsel %vm405, %v398, 0.0
  %v522 = vadd.f32 %v520, %v521
  %v523 = vsel %vm405, %v399, 0.0
  %v524 = vadd.f32 %v522, %v523
  %v525 = vsel %vm405, %v400, 0.0
  %v526 = vadd.f32 %v524, %v525
  %v527 = vsel %vm405, %v401, 0.0
  %v528 = vadd.f32 %v526, %v527
  %v529 = vsel %vm405, %v402, 0.0
  %v530 = vadd.f32 %v528, %v529
  %v531 = vsel %vm405, %v403, 0.0
  %v532 = vadd.f32 %v530, %v531
  %v533 = vrot.slane %v532, 4
  %v534 = vadd.f32 %v532, %v533
  %v535 = vrot.slane %v534, 2
  %v536 = vadd.f32 %v534, %v535
  %v537 = vrot.slane %v536, 1
  %v538 = vadd.f32 %v536, %v537
  %v539 = vadd.f32 %v404, %v538
  %vm540 = vcmask 57344
  %541 = vst.msk [vmem:[%s1] sm:$0x1] %vm540, %v539
  %v542 = vld [vmem:[%s2] sm:$0x1]
  %v543 = vmul.f32 %v340, %v340
  %v544 = vmul.f32 %v341, %v341
  %v545 = vmul.f32 %v342, %v342
  %v546 = vmul.f32 %v343, %v343
  %v547 = vmul.f32 %v344, %v344
  %v548 = vmul.f32 %v345, %v345
  %v549 = vmul.f32 %v346, %v346
  %v550 = vmul.f32 %v347, %v347
  %v551 = vmul.f32 %v348, %v348
  %v552 = vmul.f32 %v349, %v349
  %v553 = vmul.f32 %v350, %v350
  %v554 = vmul.f32 %v351, %v351
  %v555 = vmul.f32 %v352, %v352
  %v556 = vmul.f32 %v353, %v353
  %v557 = vmul.f32 %v354, %v354
  %v558 = vmul.f32 %v355, %v355
  %v559 = vmul.f32 %v356, %v356
  %v560 = vmul.f32 %v357, %v357
  %v561 = vmul.f32 %v358, %v358
  %v562 = vmul.f32 %v359, %v359
  %v563 = vmul.f32 %v360, %v360
  %v564 = vmul.f32 %v361, %v361
  %v565 = vmul.f32 %v362, %v362
  %v566 = vmul.f32 %v363, %v363
  %v567 = vmul.f32 %v364, %v364
  %v568 = vmul.f32 %v365, %v365
  %v569 = vmul.f32 %v366, %v366
  %v570 = vmul.f32 %v367, %v367
  %v571 = vmul.f32 %v368, %v368
  %v572 = vmul.f32 %v369, %v369
  %v573 = vmul.f32 %v370, %v370
  %v574 = vmul.f32 %v371, %v371
  %v575 = vmul.f32 %v372, %v372
  %v576 = vmul.f32 %v373, %v373
  %v577 = vmul.f32 %v374, %v374
  %v578 = vmul.f32 %v375, %v375
  %v579 = vmul.f32 %v376, %v376
  %v580 = vmul.f32 %v377, %v377
  %v581 = vmul.f32 %v378, %v378
  %v582 = vmul.f32 %v379, %v379
  %v583 = vmul.f32 %v380, %v380
  %v584 = vmul.f32 %v381, %v381
  %v585 = vmul.f32 %v382, %v382
  %v586 = vmul.f32 %v383, %v383
  %v587 = vmul.f32 %v384, %v384
  %v588 = vmul.f32 %v385, %v385
  %v589 = vmul.f32 %v386, %v386
  %v590 = vmul.f32 %v387, %v387
  %v591 = vmul.f32 %v388, %v388
  %v592 = vmul.f32 %v389, %v389
  %v593 = vmul.f32 %v390, %v390
  %v594 = vmul.f32 %v391, %v391
  %v595 = vmul.f32 %v392, %v392
  %v596 = vmul.f32 %v393, %v393
  %v597 = vmul.f32 %v394, %v394
  %v598 = vmul.f32 %v395, %v395
  %v599 = vmul.f32 %v396, %v396
  %v600 = vmul.f32 %v397, %v397
  %v601 = vmul.f32 %v398, %v398
  %v602 = vmul.f32 %v399, %v399
  %v603 = vmul.f32 %v400, %v400
  %v604 = vmul.f32 %v401, %v401
  %v605 = vmul.f32 %v402, %v402
  %v606 = vmul.f32 %v403, %v403
  %v607 = vsel %vm405, %v543, 0.0
  %v608 = vsel %vm405, %v544, 0.0
  %v609 = vadd.f32 %v607, %v608
  %v610 = vsel %vm405, %v545, 0.0
  %v611 = vadd.f32 %v609, %v610
  %v612 = vsel %vm405, %v546, 0.0
  %v613 = vadd.f32 %v611, %v612
  %v614 = vsel %vm405, %v547, 0.0
  %v615 = vadd.f32 %v613, %v614
  %v616 = vsel %vm405, %v548, 0.0
  %v617 = vadd.f32 %v615, %v616
  %v618 = vsel %vm405, %v549, 0.0
  %v619 = vadd.f32 %v617, %v618
  %v620 = vsel %vm405, %v550, 0.0
  %v621 = vadd.f32 %v619, %v620
  %v622 = vsel %vm405, %v551, 0.0
  %v623 = vadd.f32 %v621, %v622
  %v624 = vsel %vm405, %v552, 0.0
  %v625 = vadd.f32 %v623, %v624
  %v626 = vsel %vm405, %v553, 0.0
  %v627 = vadd.f32 %v625, %v626
  %v628 = vsel %vm405, %v554, 0.0
  %v629 = vadd.f32 %v627, %v628
  %v630 = vsel %vm405, %v555, 0.0
  %v631 = vadd.f32 %v629, %v630
  %v632 = vsel %vm405, %v556, 0.0
  %v633 = vadd.f32 %v631, %v632
  %v634 = vsel %vm405, %v557, 0.0
  %v635 = vadd.f32 %v633, %v634
  %v636 = vsel %vm405, %v558, 0.0
  %v637 = vadd.f32 %v635, %v636
  %v638 = vsel %vm405, %v559, 0.0
  %v639 = vadd.f32 %v637, %v638
  %v640 = vsel %vm405, %v560, 0.0
  %v641 = vadd.f32 %v639, %v640
  %v642 = vsel %vm405, %v561, 0.0
  %v643 = vadd.f32 %v641, %v642
  %v644 = vsel %vm405, %v562, 0.0
  %v645 = vadd.f32 %v643, %v644
  %v646 = vsel %vm405, %v563, 0.0
  %v647 = vadd.f32 %v645, %v646
  %v648 = vsel %vm405, %v564, 0.0
  %v649 = vadd.f32 %v647, %v648
  %v650 = vsel %vm405, %v565, 0.0
  %v651 = vadd.f32 %v649, %v650
  %v652 = vsel %vm405, %v566, 0.0
  %v653 = vadd.f32 %v651, %v652
  %v654 = vsel %vm405, %v567, 0.0
  %v655 = vadd.f32 %v653, %v654
  %v656 = vsel %vm405, %v568, 0.0
  %v657 = vadd.f32 %v655, %v656
  %v658 = vsel %vm405, %v569, 0.0
  %v659 = vadd.f32 %v657, %v658
  %v660 = vsel %vm405, %v570, 0.0
  %v661 = vadd.f32 %v659, %v660
  %v662 = vsel %vm405, %v571, 0.0
  %v663 = vadd.f32 %v661, %v662
  %v664 = vsel %vm405, %v572, 0.0
  %v665 = vadd.f32 %v663, %v664
  %v666 = vsel %vm405, %v573, 0.0
  %v667 = vadd.f32 %v665, %v666
  %v668 = vsel %vm405, %v574, 0.0
  %v669 = vadd.f32 %v667, %v668
  %v670 = vsel %vm405, %v575, 0.0
  %v671 = vadd.f32 %v669, %v670
  %v672 = vsel %vm405, %v576, 0.0
  %v673 = vadd.f32 %v671, %v672
  %v674 = vsel %vm405, %v577, 0.0
  %v675 = vadd.f32 %v673, %v674
  %v676 = vsel %vm405, %v578, 0.0
  %v677 = vadd.f32 %v675, %v676
  %v678 = vsel %vm405, %v579, 0.0
  %v679 = vadd.f32 %v677, %v678
  %v680 = vsel %vm405, %v580, 0.0
  %v681 = vadd.f32 %v679, %v680
  %v682 = vsel %vm405, %v581, 0.0
  %v683 = vadd.f32 %v681, %v682
  %v684 = vsel %vm405, %v582, 0.0
  %v685 = vadd.f32 %v683, %v684
  %v686 = vsel %vm405, %v583, 0.0
  %v687 = vadd.f32 %v685, %v686
  %v688 = vsel %vm405, %v584, 0.0
  %v689 = vadd.f32 %v687, %v688
  %v690 = vsel %vm405, %v585, 0.0
  %v691 = vadd.f32 %v689, %v690
  %v692 = vsel %vm405, %v586, 0.0
  %v693 = vadd.f32 %v691, %v692
  %v694 = vsel %vm405, %v587, 0.0
  %v695 = vadd.f32 %v693, %v694
  %v696 = vsel %vm405, %v588, 0.0
  %v697 = vadd.f32 %v695, %v696
  %v698 = vsel %vm405, %v589, 0.0
  %v699 = vadd.f32 %v697, %v698
  %v700 = vsel %vm405, %v590, 0.0
  %v701 = vadd.f32 %v699, %v700
  %v702 = vsel %vm405, %v591, 0.0
  %v703 = vadd.f32 %v701, %v702
  %v704 = vsel %vm405, %v592, 0.0
  %v705 = vadd.f32 %v703, %v704
  %v706 = vsel %vm405, %v593, 0.0
  %v707 = vadd.f32 %v705, %v706
  %v708 = vsel %vm405, %v594, 0.0
  %v709 = vadd.f32 %v707, %v708
  %v710 = vsel %vm405, %v595, 0.0
  %v711 = vadd.f32 %v709, %v710
  %v712 = vsel %vm405, %v596, 0.0
  %v713 = vadd.f32 %v711, %v712
  %v714 = vsel %vm405, %v597, 0.0
  %v715 = vadd.f32 %v713, %v714
  %v716 = vsel %vm405, %v598, 0.0
  %v717 = vadd.f32 %v715, %v716
  %v718 = vsel %vm405, %v599, 0.0
  %v719 = vadd.f32 %v717, %v718
  %v720 = vsel %vm405, %v600, 0.0
  %v721 = vadd.f32 %v719, %v720
  %v722 = vsel %vm405, %v601, 0.0
  %v723 = vadd.f32 %v721, %v722
  %v724 = vsel %vm405, %v602, 0.0
  %v725 = vadd.f32 %v723, %v724
  %v726 = vsel %vm405, %v603, 0.0
  %v727 = vadd.f32 %v725, %v726
  %v728 = vsel %vm405, %v604, 0.0
  %v729 = vadd.f32 %v727, %v728
  %v730 = vsel %vm405, %v605, 0.0
  %v731 = vadd.f32 %v729, %v730
  %v732 = vsel %vm405, %v606, 0.0
  %v733 = vadd.f32 %v731, %v732
  %v734 = vrot.slane %v733, 4
  %v735 = vadd.f32 %v733, %v734
  %v736 = vrot.slane %v735, 2
  %v737 = vadd.f32 %v735, %v736
  %v738 = vrot.slane %v737, 1
  %v739 = vadd.f32 %v737, %v738
  %v740 = vadd.f32 %v542, %v739
  %741 = vst.msk [vmem:[%s2] sm:$0x1] %vm540, %v740
  // Predicated region
  $region10: #{_lambda_.45} parent=0 // pred_check
    _
  $region11: #{_lambda_.45} parent=0 // pred_check_branch
    %743 = sbr.rel (0) target = $region13
  $region12: #{_lambda_.45} parent=0 // pred_region
    _
  $region13: #{_lambda_.45} parent=0 // pred_fallthru
    _
  // Predicated region
  $region14: #{_lambda_.45} parent=0 // pred_check
    _
  $region15: #{_lambda_.45} parent=0 // pred_check_branch
    %745 = sbr.rel (0) target = $region17
  $region16: #{_lambda_.45} parent=0 // pred_region
    _
  $region17: #{_lambda_.45} parent=0 // pred_fallthru
    _
  // Predicated region
  $region18: #{_lambda_.45} parent=0 // pred_check
    _
  $region19: #{_lambda_.45} parent=0 // pred_check_branch
    %747 = sbr.rel (0) target = $region21
  $region20: #{_lambda_.45} parent=0 // pred_region
    _
  $region21: #{_lambda_.45} parent=0 // pred_fallthru
    _
  // Predicated region
  $region22: #{_lambda_.45} parent=0 // pred_check
    _
  $region23: #{_lambda_.45} parent=0 // pred_check_branch
    %749 = sbr.rel (0) target = $region25
  $region24: #{_lambda_.45} parent=0 // pred_region
    _
  $region25: #{_lambda_.45} parent=0 // pred_fallthru
    _

// kernel: _lambda_.46
$region0: #{_lambda_.46}
  #allocation0 [shape = 'u32[]', space=smem, size = 0x4, offset = 0x4, fixed_abs, tag = 'smem constant byte address 0x4 - core index']
  #allocation1 [shape = 'u32[144,128]{1,0:T(1,128)}', space=vmem, size = 0x12000, scoped, tag = 'internal scratch']
  %s0 = inlined_call_operand.vmem [shape: bf16[512,8], index: 0, kind: input, shape index: {}]
  %s1 = inlined_call_operand.vmem [shape: f32[1,8], index: 1, kind: input, shape index: {}]
  %s2 = inlined_call_operand.vmem [shape: f32[1,8], index: 2, kind: input, shape index: {}]
  %s3 = inlined_call_operand.vmem [shape: bf16[512,8], index: 3, kind: output, shape index: {}]
  %s4 = sld [smem:[#allocation0]]
  $region22: #{_lambda_.46} parent=0
    _
  %s6 = ssub.s32 1, %s4
  %s7 = scalar_select 0, %s6, %s4
  // Predicated region
  $region2: #{_lambda_.46} parent=0 // pred_check
    _
  $region3: #{_lambda_.46} parent=0 // pred_check_branch
    %9 = sbr.rel (0) target = $region5
  $region4: #{_lambda_.46} parent=0 // pred_region
    _
  $region5: #{_lambda_.46} parent=0 // pred_fallthru
    _
  // Predicated region
  $region6: #{_lambda_.46} parent=0 // pred_check
    _
  $region7: #{_lambda_.46} parent=0 // pred_check_branch
    %11 = sbr.rel (0) target = $region9
  $region8: #{_lambda_.46} parent=0 // pred_region
    _
  $region9: #{_lambda_.46} parent=0 // pred_fallthru
    _
  // Predicated region
  $region10: #{_lambda_.46} parent=0 // pred_check
    _
  $region11: #{_lambda_.46} parent=0 // pred_check_branch
    %13 = sbr.rel (0) target = $region13
  $region12: #{_lambda_.46} parent=0 // pred_region
    _
  $region13: #{_lambda_.46} parent=0 // pred_fallthru
    _
  %v14 = vld [vmem:[%s0] sm:$0xf]
  %v15 = vld [vmem:[%s0 + $0x4] sm:$0xf]
  %v16 = vld [vmem:[%s0 + $0x8] sm:$0xf]
  %v17 = vld [vmem:[%s0 + $0xc] sm:$0xf]
  %v18 = vld [vmem:[%s0 + $0x10] sm:$0xf]
  %v19 = vld [vmem:[%s0 + $0x14] sm:$0xf]
  %v20 = vld [vmem:[%s0 + $0x18] sm:$0xf]
  %v21 = vld [vmem:[%s0 + $0x1c] sm:$0xf]
  %v22 = vld [vmem:[%s0 + $0x20] sm:$0xf]
  %v23 = vld [vmem:[%s0 + $0x24] sm:$0xf]
  %v24 = vld [vmem:[%s0 + $0x28] sm:$0xf]
  %v25 = vld [vmem:[%s0 + $0x2c] sm:$0xf]
  %v26 = vld [vmem:[%s0 + $0x30] sm:$0xf]
  %v27 = vld [vmem:[%s0 + $0x34] sm:$0xf]
  %v28 = vld [vmem:[%s0 + $0x38] sm:$0xf]
  %v29 = vld [vmem:[%s0 + $0x3c] sm:$0xf]
  %v30 = vld [vmem:[%s0 + $0x40] sm:$0xf]
  %v31 = vld [vmem:[%s0 + $0x44] sm:$0xf]
  %v32 = vld [vmem:[%s0 + $0x48] sm:$0xf]
  %v33 = vld [vmem:[%s0 + $0x4c] sm:$0xf]
  %v34 = vld [vmem:[%s0 + $0x50] sm:$0xf]
  %v35 = vld [vmem:[%s0 + $0x54] sm:$0xf]
  %v36 = vld [vmem:[%s0 + $0x58] sm:$0xf]
  %v37 = vld [vmem:[%s0 + $0x5c] sm:$0xf]
  %v38 = vld [vmem:[%s0 + $0x60] sm:$0xf]
  %v39 = vld [vmem:[%s0 + $0x64] sm:$0xf]
  %v40 = vld [vmem:[%s0 + $0x68] sm:$0xf]
  %v41 = vld [vmem:[%s0 + $0x6c] sm:$0xf]
  %v42 = vld [vmem:[%s0 + $0x70] sm:$0xf]
  %v43 = vld [vmem:[%s0 + $0x74] sm:$0xf]
  %v44 = vld [vmem:[%s0 + $0x78] sm:$0xf]
  %v45 = vld [vmem:[%s0 + $0x7c] sm:$0xf]
  %v46 = vld [vmem:[%s0 + $0x80] sm:$0xf]
  %v47 = vld [vmem:[%s0 + $0x84] sm:$0xf]
  %v48 = vld [vmem:[%s0 + $0x88] sm:$0xf]
  %v49 = vld [vmem:[%s0 + $0x8c] sm:$0xf]
  %v50 = vld [vmem:[%s0 + $0x90] sm:$0xf]
  %v51 = vld [vmem:[%s0 + $0x94] sm:$0xf]
  %v52 = vld [vmem:[%s0 + $0x98] sm:$0xf]
  %v53 = vld [vmem:[%s0 + $0x9c] sm:$0xf]
  %v54 = vld [vmem:[%s0 + $0xa0] sm:$0xf]
  %v55 = vld [vmem:[%s0 + $0xa4] sm:$0xf]
  %v56 = vld [vmem:[%s0 + $0xa8] sm:$0xf]
  %v57 = vld [vmem:[%s0 + $0xac] sm:$0xf]
  %v58 = vld [vmem:[%s0 + $0xb0] sm:$0xf]
  %v59 = vld [vmem:[%s0 + $0xb4] sm:$0xf]
  %v60 = vld [vmem:[%s0 + $0xb8] sm:$0xf]
  %v61 = vld [vmem:[%s0 + $0xbc] sm:$0xf]
  %v62 = vld [vmem:[%s0 + $0xc0] sm:$0xf]
  %v63 = vld [vmem:[%s0 + $0xc4] sm:$0xf]
  %v64 = vld [vmem:[%s0 + $0xc8] sm:$0xf]
  %v65 = vld [vmem:[%s0 + $0xcc] sm:$0xf]
  %v66 = vld [vmem:[%s0 + $0xd0] sm:$0xf]
  %v67 = vld [vmem:[%s0 + $0xd4] sm:$0xf]
  %v68 = vld [vmem:[%s0 + $0xd8] sm:$0xf]
  %v69 = vld [vmem:[%s0 + $0xdc] sm:$0xf]
  %v70 = vld [vmem:[%s0 + $0xe0] sm:$0xf]
  %v71 = vld [vmem:[%s0 + $0xe4] sm:$0xf]
  %v72 = vld [vmem:[%s0 + $0xe8] sm:$0xf]
  %v73 = vld [vmem:[%s0 + $0xec] sm:$0xf]
  %v74 = vld [vmem:[%s0 + $0xf0] sm:$0xf]
  %v75 = vld [vmem:[%s0 + $0xf4] sm:$0xf]
  %v76 = vld [vmem:[%s0 + $0xf8] sm:$0xf]
  %v77 = vld [vmem:[%s0 + $0xfc] sm:$0xf]
  %v78 = vunpack.c.l.bf16 %v14
  %v79 = vunpack.c.l.bf16 %v15
  %v80 = vunpack.c.l.bf16 %v16
  %v81 = vunpack.c.l.bf16 %v17
  %v82 = vunpack.c.l.bf16 %v18
  %v83 = vunpack.c.l.bf16 %v19
  %v84 = vunpack.c.l.bf16 %v20
  %v85 = vunpack.c.l.bf16 %v21
  %v86 = vunpack.c.l.bf16 %v22
  %v87 = vunpack.c.l.bf16 %v23
  %v88 = vunpack.c.l.bf16 %v24
  %v89 = vunpack.c.l.bf16 %v25
  %v90 = vunpack.c.l.bf16 %v26
  %v91 = vunpack.c.l.bf16 %v27
  %v92 = vunpack.c.l.bf16 %v28
  %v93 = vunpack.c.l.bf16 %v29
  %v94 = vunpack.c.l.bf16 %v30
  %v95 = vunpack.c.l.bf16 %v31
  %v96 = vunpack.c.l.bf16 %v32
  %v97 = vunpack.c.l.bf16 %v33
  %v98 = vunpack.c.l.bf16 %v34
  %v99 = vunpack.c.l.bf16 %v35
  %v100 = vunpack.c.l.bf16 %v36
  %v101 = vunpack.c.l.bf16 %v37
  %v102 = vunpack.c.l.bf16 %v38
  %v103 = vunpack.c.l.bf16 %v39
  %v104 = vunpack.c.l.bf16 %v40
  %v105 = vunpack.c.l.bf16 %v41
  %v106 = vunpack.c.l.bf16 %v42
  %v107 = vunpack.c.l.bf16 %v43
  %v108 = vunpack.c.l.bf16 %v44
  %v109 = vunpack.c.l.bf16 %v45
  %v110 = vunpack.c.l.bf16 %v46
  %v111 = vunpack.c.l.bf16 %v47
  %v112 = vunpack.c.l.bf16 %v48
  %v113 = vunpack.c.l.bf16 %v49
  %v114 = vunpack.c.l.bf16 %v50
  %v115 = vunpack.c.l.bf16 %v51
  %v116 = vunpack.c.l.bf16 %v52
  %v117 = vunpack.c.l.bf16 %v53
  %v118 = vunpack.c.l.bf16 %v54
  %v119 = vunpack.c.l.bf16 %v55
  %v120 = vunpack.c.l.bf16 %v56
  %v121 = vunpack.c.l.bf16 %v57
  %v122 = vunpack.c.l.bf16 %v58
  %v123 = vunpack.c.l.bf16 %v59
  %v124 = vunpack.c.l.bf16 %v60
  %v125 = vunpack.c.l.bf16 %v61
  %v126 = vunpack.c.l.bf16 %v62
  %v127 = vunpack.c.l.bf16 %v63
  %v128 = vunpack.c.l.bf16 %v64
  %v129 = vunpack.c.l.bf16 %v65
  %v130 = vunpack.c.l.bf16 %v66
  %v131 = vunpack.c.l.bf16 %v67
  %v132 = vunpack.c.l.bf16 %v68
  %v133 = vunpack.c.l.bf16 %v69
  %v134 = vunpack.c.l.bf16 %v70
  %v135 = vunpack.c.l.bf16 %v71
  %v136 = vunpack.c.l.bf16 %v72
  %v137 = vunpack.c.l.bf16 %v73
  %v138 = vunpack.c.l.bf16 %v74
  %v139 = vunpack.c.l.bf16 %v75
  %v140 = vunpack.c.l.bf16 %v76
  %v141 = vunpack.c.l.bf16 %v77
  %v142 = vld [vmem:[%s1] sm:$0x1]
  %v144 = vlaneseq
  %v145 = vshrl.u32 %v144, 7
  %v146 = vsub.s32 0, %v145
  %v147 = vrot.slane %v142, %v146
  %v149 = vmul.f32 %v78, %v147
  %v150 = vmul.f32 %v79, %v147
  %v151 = vmul.f32 %v80, %v147
  %v152 = vmul.f32 %v81, %v147
  %v153 = vmul.f32 %v82, %v147
  %v154 = vmul.f32 %v83, %v147
  %v155 = vmul.f32 %v84, %v147
  %v156 = vmul.f32 %v85, %v147
  %v157 = vmul.f32 %v86, %v147
  %v158 = vmul.f32 %v87, %v147
  %v159 = vmul.f32 %v88, %v147
  %v160 = vmul.f32 %v89, %v147
  %v161 = vmul.f32 %v90, %v147
  %v162 = vmul.f32 %v91, %v147
  %v163 = vmul.f32 %v92, %v147
  %v164 = vmul.f32 %v93, %v147
  %v165 = vmul.f32 %v94, %v147
  %v166 = vmul.f32 %v95, %v147
  %v167 = vmul.f32 %v96, %v147
  %v168 = vmul.f32 %v97, %v147
  %v169 = vmul.f32 %v98, %v147
  %v170 = vmul.f32 %v99, %v147
  %v171 = vmul.f32 %v100, %v147
  %v172 = vmul.f32 %v101, %v147
  %v173 = vmul.f32 %v102, %v147
  %v174 = vmul.f32 %v103, %v147
  %v175 = vmul.f32 %v104, %v147
  %v176 = vmul.f32 %v105, %v147
  %v177 = vmul.f32 %v106, %v147
  %v178 = vmul.f32 %v107, %v147
  %v179 = vmul.f32 %v108, %v147
  %v180 = vmul.f32 %v109, %v147
  %v181 = vmul.f32 %v110, %v147
  %v182 = vmul.f32 %v111, %v147
  %v183 = vmul.f32 %v112, %v147
  %v184 = vmul.f32 %v113, %v147
  %v185 = vmul.f32 %v114, %v147
  %v186 = vmul.f32 %v115, %v147
  %v187 = vmul.f32 %v116, %v147
  %v188 = vmul.f32 %v117, %v147
  %v189 = vmul.f32 %v118, %v147
  %v190 = vmul.f32 %v119, %v147
  %v191 = vmul.f32 %v120, %v147
  %v192 = vmul.f32 %v121, %v147
  %v193 = vmul.f32 %v122, %v147
  %v194 = vmul.f32 %v123, %v147
  %v195 = vmul.f32 %v124, %v147
  %v196 = vmul.f32 %v125, %v147
  %v197 = vmul.f32 %v126, %v147
  %v198 = vmul.f32 %v127, %v147
  %v199 = vmul.f32 %v128, %v147
  %v200 = vmul.f32 %v129, %v147
  %v201 = vmul.f32 %v130, %v147
  %v202 = vmul.f32 %v131, %v147
  %v203 = vmul.f32 %v132, %v147
  %v204 = vmul.f32 %v133, %v147
  %v205 = vmul.f32 %v134, %v147
  %v206 = vmul.f32 %v135, %v147
  %v207 = vmul.f32 %v136, %v147
  %v208 = vmul.f32 %v137, %v147
  %v209 = vmul.f32 %v138, %v147
  %v210 = vmul.f32 %v139, %v147
  %v211 = vmul.f32 %v140, %v147
  %v212 = vmul.f32 %v141, %v147
  %v213 = vld [vmem:[%s2] sm:$0x1]
  %v215 = vlaneseq
  %v216 = vshrl.u32 %v215, 7
  %v217 = vsub.s32 0, %v216
  %v218 = vrot.slane %v213, %v217
  %v220 = vadd.f32 %v149, %v218
  %v221 = vadd.f32 %v150, %v218
  %v222 = vadd.f32 %v151, %v218
  %v223 = vadd.f32 %v152, %v218
  %v224 = vadd.f32 %v153, %v218
  %v225 = vadd.f32 %v154, %v218
  %v226 = vadd.f32 %v155, %v218
  %v227 = vadd.f32 %v156, %v218
  %v228 = vadd.f32 %v157, %v218
  %v229 = vadd.f32 %v158, %v218
  %v230 = vadd.f32 %v159, %v218
  %v231 = vadd.f32 %v160, %v218
  %v232 = vadd.f32 %v161, %v218
  %v233 = vadd.f32 %v162, %v218
  %v234 = vadd.f32 %v163, %v218
  %v235 = vadd.f32 %v164, %v218
  %v236 = vadd.f32 %v165, %v218
  %v237 = vadd.f32 %v166, %v218
  %v238 = vadd.f32 %v167, %v218
  %v239 = vadd.f32 %v168, %v218
  %v240 = vadd.f32 %v169, %v218
  %v241 = vadd.f32 %v170, %v218
  %v242 = vadd.f32 %v171, %v218
  %v243 = vadd.f32 %v172, %v218
  %v244 = vadd.f32 %v173, %v218
  %v245 = vadd.f32 %v174, %v218
  %v246 = vadd.f32 %v175, %v218
  %v247 = vadd.f32 %v176, %v218
  %v248 = vadd.f32 %v177, %v218
  %v249 = vadd.f32 %v178, %v218
  %v250 = vadd.f32 %v179, %v218
  %v251 = vadd.f32 %v180, %v218
  %v252 = vadd.f32 %v181, %v218
  %v253 = vadd.f32 %v182, %v218
  %v254 = vadd.f32 %v183, %v218
  %v255 = vadd.f32 %v184, %v218
  %v256 = vadd.f32 %v185, %v218
  %v257 = vadd.f32 %v186, %v218
  %v258 = vadd.f32 %v187, %v218
  %v259 = vadd.f32 %v188, %v218
  %v260 = vadd.f32 %v189, %v218
  %v261 = vadd.f32 %v190, %v218
  %v262 = vadd.f32 %v191, %v218
  %v263 = vadd.f32 %v192, %v218
  %v264 = vadd.f32 %v193, %v218
  %v265 = vadd.f32 %v194, %v218
  %v266 = vadd.f32 %v195, %v218
  %v267 = vadd.f32 %v196, %v218
  %v268 = vadd.f32 %v197, %v218
  %v269 = vadd.f32 %v198, %v218
  %v270 = vadd.f32 %v199, %v218
  %v271 = vadd.f32 %v200, %v218
  %v272 = vadd.f32 %v201, %v218
  %v273 = vadd.f32 %v202, %v218
  %v274 = vadd.f32 %v203, %v218
  %v275 = vadd.f32 %v204, %v218
  %v276 = vadd.f32 %v205, %v218
  %v277 = vadd.f32 %v206, %v218
  %v278 = vadd.f32 %v207, %v218
  %v279 = vadd.f32 %v208, %v218
  %v280 = vadd.f32 %v209, %v218
  %v281 = vadd.f32 %v210, %v218
  %v282 = vadd.f32 %v211, %v218
  %v283 = vadd.f32 %v212, %v218
  %v284 = vpack.c.bf16 %v221, %v220
  %v285 = vpack.c.bf16 %v223, %v222
  %v286 = vpack.c.bf16 %v225, %v224
  %v287 = vpack.c.bf16 %v227, %v226
  %v288 = vpack.c.bf16 %v229, %v228
  %v289 = vpack.c.bf16 %v231, %v230
  %v290 = vpack.c.bf16 %v233, %v232
  %v291 = vpack.c.bf16 %v235, %v234
  %v292 = vpack.c.bf16 %v237, %v236
  %v293 = vpack.c.bf16 %v239, %v238
  %v294 = vpack.c.bf16 %v241, %v240
  %v295 = vpack.c.bf16 %v243, %v242
  %v296 = vpack.c.bf16 %v245, %v244
  %v297 = vpack.c.bf16 %v247, %v246
  %v298 = vpack.c.bf16 %v249, %v248
  %v299 = vpack.c.bf16 %v251, %v250
  %v300 = vpack.c.bf16 %v253, %v252
  %v301 = vpack.c.bf16 %v255, %v254
  %v302 = vpack.c.bf16 %v257, %v256
  %v303 = vpack.c.bf16 %v259, %v258
  %v304 = vpack.c.bf16 %v261, %v260
  %v305 = vpack.c.bf16 %v263, %v262
  %v306 = vpack.c.bf16 %v265, %v264
  %v307 = vpack.c.bf16 %v267, %v266
  %v308 = vpack.c.bf16 %v269, %v268
  %v309 = vpack.c.bf16 %v271, %v270
  %v310 = vpack.c.bf16 %v273, %v272
  %v311 = vpack.c.bf16 %v275, %v274
  %v312 = vpack.c.bf16 %v277, %v276
  %v313 = vpack.c.bf16 %v279, %v278
  %v314 = vpack.c.bf16 %v281, %v280
  %v315 = vpack.c.bf16 %v283, %v282
  %v348 = vunpack.c.l.b16 %v284
  %v349 = vunpack.c.h.b16 %v284
  %v350 = vunpack.c.l.b16 %v285
  %v351 = vunpack.c.h.b16 %v285
  %v352 = vunpack.c.l.b16 %v286
  %v353 = vunpack.c.h.b16 %v286
  %v354 = vunpack.c.l.b16 %v287
  %v355 = vunpack.c.h.b16 %v287
  %v356 = vunpack.c.l.b16 %v288
  %v357 = vunpack.c.h.b16 %v288
  %v358 = vunpack.c.l.b16 %v289
  %v359 = vunpack.c.h.b16 %v289
  %v360 = vunpack.c.l.b16 %v290
  %v361 = vunpack.c.h.b16 %v290
  %v362 = vunpack.c.l.b16 %v291
  %v363 = vunpack.c.h.b16 %v291
  %v364 = vunpack.c.l.b16 %v292
  %v365 = vunpack.c.h.b16 %v292
  %v366 = vunpack.c.l.b16 %v293
  %v367 = vunpack.c.h.b16 %v293
  %v368 = vunpack.c.l.b16 %v294
  %v369 = vunpack.c.h.b16 %v294
  %v370 = vunpack.c.l.b16 %v295
  %v371 = vunpack.c.h.b16 %v295
  %v372 = vunpack.c.l.b16 %v296
  %v373 = vunpack.c.h.b16 %v296
  %v374 = vunpack.c.l.b16 %v297
  %v375 = vunpack.c.h.b16 %v297
  %v376 = vunpack.c.l.b16 %v298
  %v377 = vunpack.c.h.b16 %v298
  %v378 = vunpack.c.l.b16 %v299
  %v379 = vunpack.c.h.b16 %v299
  %v380 = vunpack.c.l.b16 %v300
  %v381 = vunpack.c.h.b16 %v300
  %v382 = vunpack.c.l.b16 %v301
  %v383 = vunpack.c.h.b16 %v301
  %v384 = vunpack.c.l.b16 %v302
  %v385 = vunpack.c.h.b16 %v302
  %v386 = vunpack.c.l.b16 %v303
  %v387 = vunpack.c.h.b16 %v303
  %v388 = vunpack.c.l.b16 %v304
  %v389 = vunpack.c.h.b16 %v304
  %v390 = vunpack.c.l.b16 %v305
  %v391 = vunpack.c.h.b16 %v305
  %v392 = vunpack.c.l.b16 %v306
  %v393 = vunpack.c.h.b16 %v306
  %v394 = vunpack.c.l.b16 %v307
  %v395 = vunpack.c.h.b16 %v307
  %v396 = vunpack.c.l.b16 %v308
  %v397 = vunpack.c.h.b16 %v308
  %v398 = vunpack.c.l.b16 %v309
  %v399 = vunpack.c.h.b16 %v309
  %v400 = vunpack.c.l.b16 %v310
  %v401 = vunpack.c.h.b16 %v310
  %v402 = vunpack.c.l.b16 %v311
  %v403 = vunpack.c.h.b16 %v311
  %v404 = vunpack.c.l.b16 %v312
  %v405 = vunpack.c.h.b16 %v312
  %v406 = vunpack.c.l.b16 %v313
  %v407 = vunpack.c.h.b16 %v313
  %v408 = vunpack.c.l.b16 %v314
  %v409 = vunpack.c.h.b16 %v314
  %v410 = vunpack.c.l.b16 %v315
  %v411 = vunpack.c.h.b16 %v315
  %v412 = vpack.c.b16 %v348, %v348
  %v413 = vpack.c.b16 %v349, %v349
  %v414 = vpack.c.b16 %v350, %v350
  %v415 = vpack.c.b16 %v351, %v351
  %v416 = vpack.c.b16 %v352, %v352
  %v417 = vpack.c.b16 %v353, %v353
  %v418 = vpack.c.b16 %v354, %v354
  %v419 = vpack.c.b16 %v355, %v355
  %v420 = vpack.c.b16 %v356, %v356
  %v421 = vpack.c.b16 %v357, %v357
  %v422 = vpack.c.b16 %v358, %v358
  %v423 = vpack.c.b16 %v359, %v359
  %v424 = vpack.c.b16 %v360, %v360
  %v425 = vpack.c.b16 %v361, %v361
  %v426 = vpack.c.b16 %v362, %v362
  %v427 = vpack.c.b16 %v363, %v363
  %v428 = vpack.c.b16 %v364, %v364
  %v429 = vpack.c.b16 %v365, %v365
  %v430 = vpack.c.b16 %v366, %v366
  %v431 = vpack.c.b16 %v367, %v367
  %v432 = vpack.c.b16 %v368, %v368
  %v433 = vpack.c.b16 %v369, %v369
  %v434 = vpack.c.b16 %v370, %v370
  %v435 = vpack.c.b16 %v371, %v371
  %v436 = vpack.c.b16 %v372, %v372
  %v437 = vpack.c.b16 %v373, %v373
  %v438 = vpack.c.b16 %v374, %v374
  %v439 = vpack.c.b16 %v375, %v375
  %v440 = vpack.c.b16 %v376, %v376
  %v441 = vpack.c.b16 %v377, %v377
  %v442 = vpack.c.b16 %v378, %v378
  %v443 = vpack.c.b16 %v379, %v379
  %v444 = vpack.c.b16 %v380, %v380
  %v445 = vpack.c.b16 %v381, %v381
  %v446 = vpack.c.b16 %v382, %v382
  %v447 = vpack.c.b16 %v383, %v383
  %v448 = vpack.c.b16 %v384, %v384
  %v449 = vpack.c.b16 %v385, %v385
  %v450 = vpack.c.b16 %v386, %v386
  %v451 = vpack.c.b16 %v387, %v387
  %v452 = vpack.c.b16 %v388, %v388
  %v453 = vpack.c.b16 %v389, %v389
  %v454 = vpack.c.b16 %v390, %v390
  %v455 = vpack.c.b16 %v391, %v391
  %v456 = vpack.c.b16 %v392, %v392
  %v457 = vpack.c.b16 %v393, %v393
  %v458 = vpack.c.b16 %v394, %v394
  %v459 = vpack.c.b16 %v395, %v395
  %v460 = vpack.c.b16 %v396, %v396
  %v461 = vpack.c.b16 %v397, %v397
  %v462 = vpack.c.b16 %v398, %v398
  %v463 = vpack.c.b16 %v399, %v399
  %v464 = vpack.c.b16 %v400, %v400
  %v465 = vpack.c.b16 %v401, %v401
  %v466 = vpack.c.b16 %v402, %v402
  %v467 = vpack.c.b16 %v403, %v403
  %v468 = vpack.c.b16 %v404, %v404
  %v469 = vpack.c.b16 %v405, %v405
  %v470 = vpack.c.b16 %v406, %v406
  %v471 = vpack.c.b16 %v407, %v407
  %v472 = vpack.c.b16 %v408, %v408
  %v473 = vpack.c.b16 %v409, %v409
  %v474 = vpack.c.b16 %v410, %v410
  %v475 = vpack.c.b16 %v411, %v411
  %vm540 = vcmask 60416
  %541 = vst.msk [vmem:[%s3] sm:$0xf] %vm540, %v412
  %542 = vst.msk [vmem:[%s3 + $0x4] sm:$0xf] %vm540, %v413
  %543 = vst.msk [vmem:[%s3 + $0x8] sm:$0xf] %vm540, %v414
  %544 = vst.msk [vmem:[%s3 + $0xc] sm:$0xf] %vm540, %v415
  %545 = vst.msk [vmem:[%s3 + $0x10] sm:$0xf] %vm540, %v416
  %546 = vst.msk [vmem:[%s3 + $0x14] sm:$0xf] %vm540, %v417
  %547 = vst.msk [vmem:[%s3 + $0x18] sm:$0xf] %vm540, %v418
  %548 = vst.msk [vmem:[%s3 + $0x1c] sm:$0xf] %vm540, %v419
  %549 = vst.msk [vmem:[%s3 + $0x20] sm:$0xf] %vm540, %v420
  %550 = vst.msk [vmem:[%s3 + $0x24] sm:$0xf] %vm540, %v421
  %551 = vst.msk [vmem:[%s3 + $0x28] sm:$0xf] %vm540, %v422
  %552 = vst.msk [vmem:[%s3 + $0x2c] sm:$0xf] %vm540, %v423
  %553 = vst.msk [vmem:[%s3 + $0x30] sm:$0xf] %vm540, %v424
  %554 = vst.msk [vmem:[%s3 + $0x34] sm:$0xf] %vm540, %v425
  %555 = vst.msk [vmem:[%s3 + $0x38] sm:$0xf] %vm540, %v426
  %556 = vst.msk [vmem:[%s3 + $0x3c] sm:$0xf] %vm540, %v427
  %557 = vst.msk [vmem:[%s3 + $0x40] sm:$0xf] %vm540, %v428
  %558 = vst.msk [vmem:[%s3 + $0x44] sm:$0xf] %vm540, %v429
  %559 = vst.msk [vmem:[%s3 + $0x48] sm:$0xf] %vm540, %v430
  %560 = vst.msk [vmem:[%s3 + $0x4c] sm:$0xf] %vm540, %v431
  %561 = vst.msk [vmem:[%s3 + $0x50] sm:$0xf] %vm540, %v432
  %562 = vst.msk [vmem:[%s3 + $0x54] sm:$0xf] %vm540, %v433
  %563 = vst.msk [vmem:[%s3 + $0x58] sm:$0xf] %vm540, %v434
  %564 = vst.msk [vmem:[%s3 + $0x5c] sm:$0xf] %vm540, %v435
  %565 = vst.msk [vmem:[%s3 + $0x60] sm:$0xf] %vm540, %v436
  %566 = vst.msk [vmem:[%s3 + $0x64] sm:$0xf] %vm540, %v437
  %567 = vst.msk [vmem:[%s3 + $0x68] sm:$0xf] %vm540, %v438
  %568 = vst.msk [vmem:[%s3 + $0x6c] sm:$0xf] %vm540, %v439
  %569 = vst.msk [vmem:[%s3 + $0x70] sm:$0xf] %vm540, %v440
  %570 = vst.msk [vmem:[%s3 + $0x74] sm:$0xf] %vm540, %v441
  %571 = vst.msk [vmem:[%s3 + $0x78] sm:$0xf] %vm540, %v442
  %572 = vst.msk [vmem:[%s3 + $0x7c] sm:$0xf] %vm540, %v443
  %573 = vst.msk [vmem:[%s3 + $0x80] sm:$0xf] %vm540, %v444
  %574 = vst.msk [vmem:[%s3 + $0x84] sm:$0xf] %vm540, %v445
  %575 = vst.msk [vmem:[%s3 + $0x88] sm:$0xf] %vm540, %v446
  %576 = vst.msk [vmem:[%s3 + $0x8c] sm:$0xf] %vm540, %v447
  %577 = vst.msk [vmem:[%s3 + $0x90] sm:$0xf] %vm540, %v448
  %578 = vst.msk [vmem:[%s3 + $0x94] sm:$0xf] %vm540, %v449
  %579 = vst.msk [vmem:[%s3 + $0x98] sm:$0xf] %vm540, %v450
  %580 = vst.msk [vmem:[%s3 + $0x9c] sm:$0xf] %vm540, %v451
  %581 = vst.msk [vmem:[%s3 + $0xa0] sm:$0xf] %vm540, %v452
  %582 = vst.msk [vmem:[%s3 + $0xa4] sm:$0xf] %vm540, %v453
  %583 = vst.msk [vmem:[%s3 + $0xa8] sm:$0xf] %vm540, %v454
  %584 = vst.msk [vmem:[%s3 + $0xac] sm:$0xf] %vm540, %v455
  %585 = vst.msk [vmem:[%s3 + $0xb0] sm:$0xf] %vm540, %v456
  %586 = vst.msk [vmem:[%s3 + $0xb4] sm:$0xf] %vm540, %v457
  %587 = vst.msk [vmem:[%s3 + $0xb8] sm:$0xf] %vm540, %v458
  %588 = vst.msk [vmem:[%s3 + $0xbc] sm:$0xf] %vm540, %v459
  %589 = vst.msk [vmem:[%s3 + $0xc0] sm:$0xf] %vm540, %v460
  %590 = vst.msk [vmem:[%s3 + $0xc4] sm:$0xf] %vm540, %v461
  %591 = vst.msk [vmem:[%s3 + $0xc8] sm:$0xf] %vm540, %v462
  %592 = vst.msk [vmem:[%s3 + $0xcc] sm:$0xf] %vm540, %v463
  %593 = vst.msk [vmem:[%s3 + $0xd0] sm:$0xf] %vm540, %v464
  %594 = vst.msk [vmem:[%s3 + $0xd4] sm:$0xf] %vm540, %v465
  %595 = vst.msk [vmem:[%s3 + $0xd8] sm:$0xf] %vm540, %v466
  %596 = vst.msk [vmem:[%s3 + $0xdc] sm:$0xf] %vm540, %v467
  %597 = vst.msk [vmem:[%s3 + $0xe0] sm:$0xf] %vm540, %v468
  %598 = vst.msk [vmem:[%s3 + $0xe4] sm:$0xf] %vm540, %v469
  %599 = vst.msk [vmem:[%s3 + $0xe8] sm:$0xf] %vm540, %v470
  %600 = vst.msk [vmem:[%s3 + $0xec] sm:$0xf] %vm540, %v471
  %601 = vst.msk [vmem:[%s3 + $0xf0] sm:$0xf] %vm540, %v472
  %602 = vst.msk [vmem:[%s3 + $0xf4] sm:$0xf] %vm540, %v473
  %603 = vst.msk [vmem:[%s3 + $0xf8] sm:$0xf] %vm540, %v474
  %604 = vst.msk [vmem:[%s3 + $0xfc] sm:$0xf] %vm540, %v475
  // Predicated region
  $region14: #{_lambda_.46} parent=0 // pred_check
    _
  $region15: #{_lambda_.46} parent=0 // pred_check_branch
    %606 = sbr.rel (0) target = $region17
  $region16: #{_lambda_.46} parent=0 // pred_region
    _
  $region17: #{_lambda_.46} parent=0 // pred_fallthru
    _
  // Predicated region
  $region18: #{_lambda_.46} parent=0 // pred_check
    _
  $region19: #{_lambda_.46} parent=0 // pred_check_branch
    %608 = sbr.rel (0) target = $region21
  $region20: #{_lambda_.46} parent=0 // pred_region
    _
  $region21: #{_lambda_.46} parent=0 // pred_fallthru
    _

// kernel: tile.38
$region0: #{tile.38}
  #allocation0 [shape = 's32[1]{0}', space=sflag, size = 0x4, scoped, tag = 'scoped memory for tile.38']
  %s0 = inlined_call_operand.vmem [shape: f32[3], index: 0, kind: input, shape index: {}]
  %s1 = inlined_call_operand.vmem [shape: f32[4,3], index: 1, kind: output, shape index: {}]
  // Predicated region
  $region2: #{tile.38} parent=0 // pred_check
    _
  $region3: #{tile.38} parent=0 // pred_check_branch
    %3 = sbr.rel (0) target = $region5
  $region4: #{tile.38} parent=0 // pred_region
    _
  $region5: #{tile.38} parent=0 // pred_fallthru
    _
  %v4 = vld [vmem:[%s0] ss:$0 sm:$0xff]
  %5 = vst [vmem:[%s1] sm:$0xf] %v4

// kernel: tile.39
$region0: #{tile.39}
  %s0 = inlined_call_operand.vmem [shape: f32[4,3], index: 0, kind: input, shape index: {}]
  %s1 = inlined_call_operand.vmem [shape: f32[1,12], index: 1, kind: output, shape index: {}]
  $region1: #{tile.39} parent=0
    #allocation0 [shape = 'u8[4096]{0}', space=vmem, size = 0x1000, scoped, tag = 'scoped mem for output reshape']
    #allocation1 [shape = 'u8[4096]{0}', space=vmem, size = 0x1000, scoped, tag = 'scoped mem for input reshape']
    %s3 = sshllo.u32 0, 4
    %v4 = vld [vmem:[%s0] sm:%s3]
    %5 = vst [vmem:[#allocation1] sm:%s3] %v4
    %v6 = vld [vmem:[#allocation1] sm:$0x1]
    %vm7 = vcmask 23552
    %8 = vst.msk [vmem:[#allocation0] sm:$0x1] %vm7, %v6
    %s9 = scalar_lea.vmem [#allocation1], 3
    %v10 = vld [vmem:[%s9] sm:$0x1]
    %11 = vrot.lane.b32.xlu0 %v10, 9
    %v12 = vpop.permute.xlu0 %11
    %vm13 = vcmask 97352
    %14 = vst.msk [vmem:[#allocation0] sm:$0x1] %vm13, %v12
    %s15 = scalar_lea.vmem [#allocation1], 2
    %v16 = vld [vmem:[%s15] sm:$0x1]
    %17 = vrot.lane.b32.xlu0 %v16, 6
    %v18 = vpop.permute.xlu0 %17
    %vm19 = vcmask 72752
    %20 = vst.msk [vmem:[#allocation0] sm:$0x1] %vm19, %v18
    %s21 = scalar_lea.vmem [#allocation1], 1
    %v22 = vld [vmem:[%s21] sm:$0x1]
    %23 = vrot.lane.b32.xlu0 %v22, 3
    %v24 = vpop.permute.xlu0 %23
    %vm25 = vcmask 48152
    %26 = vst.msk [vmem:[#allocation0] sm:$0x1] %vm25, %v24
    %s28 = sshllo.u32 0, 1
    %v30 = vld [vmem:[#allocation0] sm:%s28]
    %s31 = sshllo.u32 0, 1
    %32 = vst [vmem:[%s1] sm:%s31] %v30

// kernel: _lambda_.47
$region0: #{_lambda_.47}
  #allocation0 [shape = 'u32[]', space=smem, size = 0x4, offset = 0x4, fixed_abs, tag = 'smem constant byte address 0x4 - core index']
  #allocation1 [shape = 'u32[144,128]{1,0:T(1,128)}', space=vmem, size = 0x12000, scoped, tag = 'internal scratch']
  #allocation2 [shape = 'f32[578,12]{1,0:T(8,128)}', space=vmem, size = 0x49000, scoped, tag = 'scratch operand']
  %s0 = inlined_call_operand.vmem [shape: bf16[578,64], index: 0, kind: input, shape index: {}]
  %s1 = inlined_call_operand.vmem [shape: bf16[64,12], index: 1, kind: input, shape index: {}]
  %s2 = inlined_call_operand.vmem [shape: f32[1,12], index: 2, kind: input, shape index: {}]
  %s3 = inlined_call_operand.vmem [shape: f32[578,12], index: 3, kind: output, shape index: {}]
  %s4 = sld [smem:[#allocation0]]
  $region30: #{_lambda_.47} parent=0
    _
  %s6 = ssub.s32 1, %s4
  %s7 = scalar_select 0, %s6, %s4
  // Predicated region
  $region2: #{_lambda_.47} parent=0 // pred_check
    _
  $region3: #{_lambda_.47} parent=0 // pred_check_branch
    %9 = sbr.rel (0) target = $region5
  $region4: #{_lambda_.47} parent=0 // pred_region
    _
  $region5: #{_lambda_.47} parent=0 // pred_fallthru
    _
  // Predicated region
  $region6: #{_lambda_.47} parent=0 // pred_check
    _
  $region7: #{_lambda_.47} parent=0 // pred_check_branch
    %11 = sbr.rel (0) target = $region9
  $region8: #{_lambda_.47} parent=0 // pred_region
    _
  $region9: #{_lambda_.47} parent=0 // pred_fallthru
    _
  // Predicated region
  $region10: #{_lambda_.47} parent=0 // pred_check
    _
  $region11: #{_lambda_.47} parent=0 // pred_check_branch
    %13 = sbr.rel (0) target = $region13
  $region12: #{_lambda_.47} parent=0 // pred_region
    _
  $region13: #{_lambda_.47} parent=0 // pred_fallthru
    _
  %p15 = scmp.eq.s32.totalorder 0, 0
  // Predicated region
  $region14: #{_lambda_.47} parent=0 // pred_check
    %p16 = pneg %p15
  $region15: #{_lambda_.47} parent=0 // pred_check_branch
    %18 = sbr.rel (%p16) target = $region17
  $region16: #{_lambda_.47} parent=0 // pred_region
    %vm19 = vcmask 97280
    %20 = vst.msk [vmem:[#allocation2] sm:$0xff] %vm19, 0.0
    %21 = vst.msk [vmem:[#allocation2 + $0x8] sm:$0xff] %vm19, 0.0
    %22 = vst.msk [vmem:[#allocation2 + $0x10] sm:$0xff] %vm19, 0.0
    %23 = vst.msk [vmem:[#allocation2 + $0x18] sm:$0xff] %vm19, 0.0
    %24 = vst.msk [vmem:[#allocation2 + $0x20] sm:$0xff] %vm19, 0.0
    %25 = vst.msk [vmem:[#allocation2 + $0x28] sm:$0xff] %vm19, 0.0
    %26 = vst.msk [vmem:[#allocation2 + $0x30] sm:$0xff] %vm19, 0.0
    %27 = vst.msk [vmem:[#allocation2 + $0x38] sm:$0xff] %vm19, 0.0
    %28 = vst.msk [vmem:[#allocation2 + $0x40] sm:$0xff] %vm19, 0.0
    %29 = vst.msk [vmem:[#allocation2 + $0x48] sm:$0xff] %vm19, 0.0
    %30 = vst.msk [vmem:[#allocation2 + $0x50] sm:$0xff] %vm19, 0.0
    %31 = vst.msk [vmem:[#allocation2 + $0x58] sm:$0xff] %vm19, 0.0
    %32 = vst.msk [vmem:[#allocation2 + $0x60] sm:$0xff] %vm19, 0.0
    %33 = vst.msk [vmem:[#allocation2 + $0x68] sm:$0xff] %vm19, 0.0
    %34 = vst.msk [vmem:[#allocation2 + $0x70] sm:$0xff] %vm19, 0.0
    %35 = vst.msk [vmem:[#allocation2 + $0x78] sm:$0xff] %vm19, 0.0
    %36 = vst.msk [vmem:[#allocation2 + $0x80] sm:$0xff] %vm19, 0.0
    %37 = vst.msk [vmem:[#allocation2 + $0x88] sm:$0xff] %vm19, 0.0
    %38 = vst.msk [vmem:[#allocation2 + $0x90] sm:$0xff] %vm19, 0.0
    %39 = vst.msk [vmem:[#allocation2 + $0x98] sm:$0xff] %vm19, 0.0
    %40 = vst.msk [vmem:[#allocation2 + $0xa0] sm:$0xff] %vm19, 0.0
    %41 = vst.msk [vmem:[#allocation2 + $0xa8] sm:$0xff] %vm19, 0.0
    %42 = vst.msk [vmem:[#allocation2 + $0xb0] sm:$0xff] %vm19, 0.0
    %43 = vst.msk [vmem:[#allocation2 + $0xb8] sm:$0xff] %vm19, 0.0
    %44 = vst.msk [vmem:[#allocation2 + $0xc0] sm:$0xff] %vm19, 0.0
    %45 = vst.msk [vmem:[#allocation2 + $0xc8] sm:$0xff] %vm19, 0.0
    %46 = vst.msk [vmem:[#allocation2 + $0xd0] sm:$0xff] %vm19, 0.0
    %47 = vst.msk [vmem:[#allocation2 + $0xd8] sm:$0xff] %vm19, 0.0
    %48 = vst.msk [vmem:[#allocation2 + $0xe0] sm:$0xff] %vm19, 0.0
    %49 = vst.msk [vmem:[#allocation2 + $0xe8] sm:$0xff] %vm19, 0.0
    %50 = vst.msk [vmem:[#allocation2 + $0xf0] sm:$0xff] %vm19, 0.0
    %51 = vst.msk [vmem:[#allocation2 + $0xf8] sm:$0xff] %vm19, 0.0
    %52 = vst.msk [vmem:[#allocation2 + $0x100] sm:$0xff] %vm19, 0.0
    %53 = vst.msk [vmem:[#allocation2 + $0x108] sm:$0xff] %vm19, 0.0
    %54 = vst.msk [vmem:[#allocation2 + $0x110] sm:$0xff] %vm19, 0.0
    %55 = vst.msk [vmem:[#allocation2 + $0x118] sm:$0xff] %vm19, 0.0
    %56 = vst.msk [vmem:[#allocation2 + $0x120] sm:$0xff] %vm19, 0.0
    %57 = vst.msk [vmem:[#allocation2 + $0x128] sm:$0xff] %vm19, 0.0
    %58 = vst.msk [vmem:[#allocation2 + $0x130] sm:$0xff] %vm19, 0.0
    %59 = vst.msk [vmem:[#allocation2 + $0x138] sm:$0xff] %vm19, 0.0
    %60 = vst.msk [vmem:[#allocation2 + $0x140] sm:$0xff] %vm19, 0.0
    %61 = vst.msk [vmem:[#allocation2 + $0x148] sm:$0xff] %vm19, 0.0
    %62 = vst.msk [vmem:[#allocation2 + $0x150] sm:$0xff] %vm19, 0.0
    %63 = vst.msk [vmem:[#allocation2 + $0x158] sm:$0xff] %vm19, 0.0
    %64 = vst.msk [vmem:[#allocation2 + $0x160] sm:$0xff] %vm19, 0.0
    %65 = vst.msk [vmem:[#allocation2 + $0x168] sm:$0xff] %vm19, 0.0
    %66 = vst.msk [vmem:[#allocation2 + $0x170] sm:$0xff] %vm19, 0.0
    %67 = vst.msk [vmem:[#allocation2 + $0x178] sm:$0xff] %vm19, 0.0
    %68 = vst.msk [vmem:[#allocation2 + $0x180] sm:$0xff] %vm19, 0.0
    %69 = vst.msk [vmem:[#allocation2 + $0x188] sm:$0xff] %vm19, 0.0
    %70 = vst.msk [vmem:[#allocation2 + $0x190] sm:$0xff] %vm19, 0.0
    %71 = vst.msk [vmem:[#allocation2 + $0x198] sm:$0xff] %vm19, 0.0
    %72 = vst.msk [vmem:[#allocation2 + $0x1a0] sm:$0xff] %vm19, 0.0
    %73 = vst.msk [vmem:[#allocation2 + $0x1a8] sm:$0xff] %vm19, 0.0
    %74 = vst.msk [vmem:[#allocation2 + $0x1b0] sm:$0xff] %vm19, 0.0
    %75 = vst.msk [vmem:[#allocation2 + $0x1b8] sm:$0xff] %vm19, 0.0
    %76 = vst.msk [vmem:[#allocation2 + $0x1c0] sm:$0xff] %vm19, 0.0
    %77 = vst.msk [vmem:[#allocation2 + $0x1c8] sm:$0xff] %vm19, 0.0
    %78 = vst.msk [vmem:[#allocation2 + $0x1d0] sm:$0xff] %vm19, 0.0
    %79 = vst.msk [vmem:[#allocation2 + $0x1d8] sm:$0xff] %vm19, 0.0
    %80 = vst.msk [vmem:[#allocation2 + $0x1e0] sm:$0xff] %vm19, 0.0
    %81 = vst.msk [vmem:[#allocation2 + $0x1e8] sm:$0xff] %vm19, 0.0
    %82 = vst.msk [vmem:[#allocation2 + $0x1f0] sm:$0xff] %vm19, 0.0
    %83 = vst.msk [vmem:[#allocation2 + $0x1f8] sm:$0xff] %vm19, 0.0
    %84 = vst.msk [vmem:[#allocation2 + $0x200] sm:$0xff] %vm19, 0.0
    %85 = vst.msk [vmem:[#allocation2 + $0x208] sm:$0xff] %vm19, 0.0
    %86 = vst.msk [vmem:[#allocation2 + $0x210] sm:$0xff] %vm19, 0.0
    %87 = vst.msk [vmem:[#allocation2 + $0x218] sm:$0xff] %vm19, 0.0
    %88 = vst.msk [vmem:[#allocation2 + $0x220] sm:$0xff] %vm19, 0.0
    %89 = vst.msk [vmem:[#allocation2 + $0x228] sm:$0xff] %vm19, 0.0
    %90 = vst.msk [vmem:[#allocation2 + $0x230] sm:$0xff] %vm19, 0.0
    %91 = vst.msk [vmem:[#allocation2 + $0x238] sm:$0xff] %vm19, 0.0
    %vm92 = vcmask 91136
    %93 = vst.msk [vmem:[#allocation2 + $0x240] sm:$0x3] %vm92, 0.0
  $region17: #{_lambda_.47} parent=0 // pred_fallthru
    _
  %v94 = vld [vmem:[#allocation2] sm:$0xff]
  %v95 = vld [vmem:[#allocation2 + $0x8] sm:$0xff]
  %v96 = vld [vmem:[#allocation2 + $0x10] sm:$0xff]
  %v97 = vld [vmem:[#allocation2 + $0x18] sm:$0xff]
  %v98 = vld [vmem:[#allocation2 + $0x20] sm:$0xff]
  %v99 = vld [vmem:[#allocation2 + $0x28] sm:$0xff]
  %v100 = vld [vmem:[#allocation2 + $0x30] sm:$0xff]
  %v101 = vld [vmem:[#allocation2 + $0x38] sm:$0xff]
  %v102 = vld [vmem:[#allocation2 + $0x40] sm:$0xff]
  %v103 = vld [vmem:[#allocation2 + $0x48] sm:$0xff]
  %v104 = vld [vmem:[#allocation2 + $0x50] sm:$0xff]
  %v105 = vld [vmem:[#allocation2 + $0x58] sm:$0xff]
  %v106 = vld [vmem:[#allocation2 + $0x60] sm:$0xff]
  %v107 = vld [vmem:[#allocation2 + $0x68] sm:$0xff]
  %v108 = vld [vmem:[#allocation2 + $0x70] sm:$0xff]
  %v109 = vld [vmem:[#allocation2 + $0x78] sm:$0xff]
  %v110 = vld [vmem:[#allocation2 + $0x80] sm:$0xff]
  %v111 = vld [vmem:[#allocation2 + $0x88] sm:$0xff]
  %v112 = vld [vmem:[#allocation2 + $0x90] sm:$0xff]
  %v113 = vld [vmem:[#allocation2 + $0x98] sm:$0xff]
  %v114 = vld [vmem:[#allocation2 + $0xa0] sm:$0xff]
  %v115 = vld [vmem:[#allocation2 + $0xa8] sm:$0xff]
  %v116 = vld [vmem:[#allocation2 + $0xb0] sm:$0xff]
  %v117 = vld [vmem:[#allocation2 + $0xb8] sm:$0xff]
  %v118 = vld [vmem:[#allocation2 + $0xc0] sm:$0xff]
  %v119 = vld [vmem:[#allocation2 + $0xc8] sm:$0xff]
  %v120 = vld [vmem:[#allocation2 + $0xd0] sm:$0xff]
  %v121 = vld [vmem:[#allocation2 + $0xd8] sm:$0xff]
  %v122 = vld [vmem:[#allocation2 + $0xe0] sm:$0xff]
  %v123 = vld [vmem:[#allocation2 + $0xe8] sm:$0xff]
  %v124 = vld [vmem:[#allocation2 + $0xf0] sm:$0xff]
  %v125 = vld [vmem:[#allocation2 + $0xf8] sm:$0xff]
  %v126 = vld [vmem:[#allocation2 + $0x100] sm:$0xff]
  %v127 = vld [vmem:[#allocation2 + $0x108] sm:$0xff]
  %v128 = vld [vmem:[#allocation2 + $0x110] sm:$0xff]
  %v129 = vld [vmem:[#allocation2 + $0x118] sm:$0xff]
  %v130 = vld [vmem:[#allocation2 + $0x120] sm:$0xff]
  %v131 = vld [vmem:[#allocation2 + $0x128] sm:$0xff]
  %v132 = vld [vmem:[#allocation2 + $0x130] sm:$0xff]
  %v133 = vld [vmem:[#allocation2 + $0x138] sm:$0xff]
  %v134 = vld [vmem:[#allocation2 + $0x140] sm:$0xff]
  %v135 = vld [vmem:[#allocation2 + $0x148] sm:$0xff]
  %v136 = vld [vmem:[#allocation2 + $0x150] sm:$0xff]
  %v137 = vld [vmem:[#allocation2 + $0x158] sm:$0xff]
  %v138 = vld [vmem:[#allocation2 + $0x160] sm:$0xff]
  %v139 = vld [vmem:[#allocation2 + $0x168] sm:$0xff]
  %v140 = vld [vmem:[#allocation2 + $0x170] sm:$0xff]
  %v141 = vld [vmem:[#allocation2 + $0x178] sm:$0xff]
  %v142 = vld [vmem:[#allocation2 + $0x180] sm:$0xff]
  %v143 = vld [vmem:[#allocation2 + $0x188] sm:$0xff]
  %v144 = vld [vmem:[#allocation2 + $0x190] sm:$0xff]
  %v145 = vld [vmem:[#allocation2 + $0x198] sm:$0xff]
  %v146 = vld [vmem:[#allocation2 + $0x1a0] sm:$0xff]
  %v147 = vld [vmem:[#allocation2 + $0x1a8] sm:$0xff]
  %v148 = vld [vmem:[#allocation2 + $0x1b0] sm:$0xff]
  %v149 = vld [vmem:[#allocation2 + $0x1b8] sm:$0xff]
  %v150 = vld [vmem:[#allocation2 + $0x1c0] sm:$0xff]
  %v151 = vld [vmem:[#allocation2 + $0x1c8] sm:$0xff]
  %v152 = vld [vmem:[#allocation2 + $0x1d0] sm:$0xff]
  %v153 = vld [vmem:[#allocation2 + $0x1d8] sm:$0xff]
  %v154 = vld [vmem:[#allocation2 + $0x1e0] sm:$0xff]
  %v155 = vld [vmem:[#allocation2 + $0x1e8] sm:$0xff]
  %v156 = vld [vmem:[#allocation2 + $0x1f0] sm:$0xff]
  %v157 = vld [vmem:[#allocation2 + $0x1f8] sm:$0xff]
  %v158 = vld [vmem:[#allocation2 + $0x200] sm:$0xff]
  %v159 = vld [vmem:[#allocation2 + $0x208] sm:$0xff]
  %v160 = vld [vmem:[#allocation2 + $0x210] sm:$0xff]
  %v161 = vld [vmem:[#allocation2 + $0x218] sm:$0xff]
  %v162 = vld [vmem:[#allocation2 + $0x220] sm:$0xff]
  %v163 = vld [vmem:[#allocation2 + $0x228] sm:$0xff]
  %v164 = vld [vmem:[#allocation2 + $0x230] sm:$0xff]
  %v165 = vld [vmem:[#allocation2 + $0x238] sm:$0xff]
  %v166 = vld [vmem:[#allocation2 + $0x240] sm:$0x3]
  %v167 = vld [vmem:[%s0] sm:$0xf]
  %v168 = vld [vmem:[%s0 + $0x4] sm:$0xf]
  %v169 = vld [vmem:[%s0 + $0x8] sm:$0xf]
  %v170 = vld [vmem:[%s0 + $0xc] sm:$0xf]
  %v171 = vld [vmem:[%s0 + $0x10] sm:$0xf]
  %v172 = vld [vmem:[%s0 + $0x14] sm:$0xf]
  %v173 = vld [vmem:[%s0 + $0x18] sm:$0xf]
  %v174 = vld [vmem:[%s0 + $0x1c] sm:$0xf]
  %v175 = vld [vmem:[%s0 + $0x20] sm:$0xf]
  %v176 = vld [vmem:[%s0 + $0x24] sm:$0xf]
  %v177 = vld [vmem:[%s0 + $0x28] sm:$0xf]
  %v178 = vld [vmem:[%s0 + $0x2c] sm:$0xf]
  %v179 = vld [vmem:[%s0 + $0x30] sm:$0xf]
  %v180 = vld [vmem:[%s0 + $0x34] sm:$0xf]
  %v181 = vld [vmem:[%s0 + $0x38] sm:$0xf]
  %v182 = vld [vmem:[%s0 + $0x3c] sm:$0xf]
  %v183 = vld [vmem:[%s0 + $0x40] sm:$0xf]
  %v184 = vld [vmem:[%s0 + $0x44] sm:$0xf]
  %v185 = vld [vmem:[%s0 + $0x48] sm:$0xf]
  %v186 = vld [vmem:[%s0 + $0x4c] sm:$0xf]
  %v187 = vld [vmem:[%s0 + $0x50] sm:$0xf]
  %v188 = vld [vmem:[%s0 + $0x54] sm:$0xf]
  %v189 = vld [vmem:[%s0 + $0x58] sm:$0xf]
  %v190 = vld [vmem:[%s0 + $0x5c] sm:$0xf]
  %v191 = vld [vmem:[%s0 + $0x60] sm:$0xf]
  %v192 = vld [vmem:[%s0 + $0x64] sm:$0xf]
  %v193 = vld [vmem:[%s0 + $0x68] sm:$0xf]
  %v194 = vld [vmem:[%s0 + $0x6c] sm:$0xf]
  %v195 = vld [vmem:[%s0 + $0x70] sm:$0xf]
  %v196 = vld [vmem:[%s0 + $0x74] sm:$0xf]
  %v197 = vld [vmem:[%s0 + $0x78] sm:$0xf]
  %v198 = vld [vmem:[%s0 + $0x7c] sm:$0xf]
  %v199 = vld [vmem:[%s0 + $0x80] sm:$0xf]
  %v200 = vld [vmem:[%s0 + $0x84] sm:$0xf]
  %v201 = vld [vmem:[%s0 + $0x88] sm:$0xf]
  %v202 = vld [vmem:[%s0 + $0x8c] sm:$0xf]
  %v203 = vld [vmem:[%s0 + $0x90] sm:$0xf]
  %v204 = vld [vmem:[%s0 + $0x94] sm:$0xf]
  %v205 = vld [vmem:[%s0 + $0x98] sm:$0xf]
  %v206 = vld [vmem:[%s0 + $0x9c] sm:$0xf]
  %v207 = vld [vmem:[%s0 + $0xa0] sm:$0xf]
  %v208 = vld [vmem:[%s0 + $0xa4] sm:$0xf]
  %v209 = vld [vmem:[%s0 + $0xa8] sm:$0xf]
  %v210 = vld [vmem:[%s0 + $0xac] sm:$0xf]
  %v211 = vld [vmem:[%s0 + $0xb0] sm:$0xf]
  %v212 = vld [vmem:[%s0 + $0xb4] sm:$0xf]
  %v213 = vld [vmem:[%s0 + $0xb8] sm:$0xf]
  %v214 = vld [vmem:[%s0 + $0xbc] sm:$0xf]
  %v215 = vld [vmem:[%s0 + $0xc0] sm:$0xf]
  %v216 = vld [vmem:[%s0 + $0xc4] sm:$0xf]
  %v217 = vld [vmem:[%s0 + $0xc8] sm:$0xf]
  %v218 = vld [vmem:[%s0 + $0xcc] sm:$0xf]
  %v219 = vld [vmem:[%s0 + $0xd0] sm:$0xf]
  %v220 = vld [vmem:[%s0 + $0xd4] sm:$0xf]
  %v221 = vld [vmem:[%s0 + $0xd8] sm:$0xf]
  %v222 = vld [vmem:[%s0 + $0xdc] sm:$0xf]
  %v223 = vld [vmem:[%s0 + $0xe0] sm:$0xf]
  %v224 = vld [vmem:[%s0 + $0xe4] sm:$0xf]
  %v225 = vld [vmem:[%s0 + $0xe8] sm:$0xf]
  %v226 = vld [vmem:[%s0 + $0xec] sm:$0xf]
  %v227 = vld [vmem:[%s0 + $0xf0] sm:$0xf]
  %v228 = vld [vmem:[%s0 + $0xf4] sm:$0xf]
  %v229 = vld [vmem:[%s0 + $0xf8] sm:$0xf]
  %v230 = vld [vmem:[%s0 + $0xfc] sm:$0xf]
  %v231 = vld [vmem:[%s0 + $0x100] sm:$0xf]
  %v232 = vld [vmem:[%s0 + $0x104] sm:$0xf]
  %v233 = vld [vmem:[%s0 + $0x108] sm:$0xf]
  %v234 = vld [vmem:[%s0 + $0x10c] sm:$0xf]
  %v235 = vld [vmem:[%s0 + $0x110] sm:$0xf]
  %v236 = vld [vmem:[%s0 + $0x114] sm:$0xf]
  %v237 = vld [vmem:[%s0 + $0x118] sm:$0xf]
  %v238 = vld [vmem:[%s0 + $0x11c] sm:$0xf]
  %v239 = vld [vmem:[%s0 + $0x120] sm:$0x1]
  %v240 = vld [vmem:[%s1] sm:$0xf]
  %v241 = vld [vmem:[%s1 + $0x4] sm:$0xf]
  %v242 = vld [vmem:[%s1 + $0x8] sm:$0xf]
  %v243 = vld [vmem:[%s1 + $0xc] sm:$0xf]
  %v244 = vld [vmem:[%s1 + $0x10] sm:$0xf]
  %v245 = vld [vmem:[%s1 + $0x14] sm:$0xf]
  %v246 = vld [vmem:[%s1 + $0x18] sm:$0xf]
  %v247 = vld [vmem:[%s1 + $0x1c] sm:$0xf]
  %v321 = vunpack.c.l.b16 %v167
  %v322 = vunpack.c.l.b16 %v168
  %v323 = vunpack.c.l.b16 %v169
  %v324 = vunpack.c.l.b16 %v170
  %v325 = vunpack.c.l.b16 %v171
  %v326 = vunpack.c.l.b16 %v172
  %v327 = vunpack.c.l.b16 %v173
  %v328 = vunpack.c.l.b16 %v174
  %v329 = vunpack.c.l.b16 %v175
  %v330 = vunpack.c.l.b16 %v176
  %v331 = vunpack.c.l.b16 %v177
  %v332 = vunpack.c.l.b16 %v178
  %v333 = vunpack.c.l.b16 %v179
  %v334 = vunpack.c.l.b16 %v180
  %v335 = vunpack.c.l.b16 %v181
  %v336 = vunpack.c.l.b16 %v182
  %v337 = vunpack.c.l.b16 %v183
  %v338 = vunpack.c.l.b16 %v184
  %v339 = vunpack.c.l.b16 %v185
  %v340 = vunpack.c.l.b16 %v186
  %v341 = vunpack.c.l.b16 %v187
  %v342 = vunpack.c.l.b16 %v188
  %v343 = vunpack.c.l.b16 %v189
  %v344 = vunpack.c.l.b16 %v190
  %v345 = vunpack.c.l.b16 %v191
  %v346 = vunpack.c.l.b16 %v192
  %v347 = vunpack.c.l.b16 %v193
  %v348 = vunpack.c.l.b16 %v194
  %v349 = vunpack.c.l.b16 %v195
  %v350 = vunpack.c.l.b16 %v196
  %v351 = vunpack.c.l.b16 %v197
  %v352 = vunpack.c.l.b16 %v198
  %v353 = vunpack.c.l.b16 %v199
  %v354 = vunpack.c.l.b16 %v200
  %v355 = vunpack.c.l.b16 %v201
  %v356 = vunpack.c.l.b16 %v202
  %v357 = vunpack.c.l.b16 %v203
  %v358 = vunpack.c.l.b16 %v204
  %v359 = vunpack.c.l.b16 %v205
  %v360 = vunpack.c.l.b16 %v206
  %v361 = vunpack.c.l.b16 %v207
  %v362 = vunpack.c.l.b16 %v208
  %v363 = vunpack.c.l.b16 %v209
  %v364 = vunpack.c.l.b16 %v210
  %v365 = vunpack.c.l.b16 %v211
  %v366 = vunpack.c.l.b16 %v212
  %v367 = vunpack.c.l.b16 %v213
  %v368 = vunpack.c.l.b16 %v214
  %v369 = vunpack.c.l.b16 %v215
  %v370 = vunpack.c.l.b16 %v216
  %v371 = vunpack.c.l.b16 %v217
  %v372 = vunpack.c.l.b16 %v218
  %v373 = vunpack.c.l.b16 %v219
  %v374 = vunpack.c.l.b16 %v220
  %v375 = vunpack.c.l.b16 %v221
  %v376 = vunpack.c.l.b16 %v222
  %v377 = vunpack.c.l.b16 %v223
  %v378 = vunpack.c.l.b16 %v224
  %v379 = vunpack.c.l.b16 %v225
  %v380 = vunpack.c.l.b16 %v226
  %v381 = vunpack.c.l.b16 %v227
  %v382 = vunpack.c.l.b16 %v228
  %v383 = vunpack.c.l.b16 %v229
  %v384 = vunpack.c.l.b16 %v230
  %v385 = vunpack.c.l.b16 %v231
  %v386 = vunpack.c.l.b16 %v232
  %v387 = vunpack.c.l.b16 %v233
  %v388 = vunpack.c.l.b16 %v234
  %v389 = vunpack.c.l.b16 %v235
  %v390 = vunpack.c.l.b16 %v236
  %v391 = vunpack.c.l.b16 %v237
  %v392 = vunpack.c.l.b16 %v238
  %v393 = vunpack.c.l.b16 %v239
  %v394 = vpack.c.b16 %v322, %v321
  %v395 = vpack.c.b16 %v324, %v323
  %v396 = vpack.c.b16 %v326, %v325
  %v397 = vpack.c.b16 %v328, %v327
  %v398 = vpack.c.b16 %v330, %v329
  %v399 = vpack.c.b16 %v332, %v331
  %v400 = vpack.c.b16 %v334, %v333
  %v401 = vpack.c.b16 %v336, %v335
  %v402 = vpack.c.b16 %v338, %v337
  %v403 = vpack.c.b16 %v340, %v339
  %v404 = vpack.c.b16 %v342, %v341
  %v405 = vpack.c.b16 %v344, %v343
  %v406 = vpack.c.b16 %v346, %v345
  %v407 = vpack.c.b16 %v348, %v347
  %v408 = vpack.c.b16 %v350, %v349
  %v409 = vpack.c.b16 %v352, %v351
  %v410 = vpack.c.b16 %v354, %v353
  %v411 = vpack.c.b16 %v356, %v355
  %v412 = vpack.c.b16 %v358, %v357
  %v413 = vpack.c.b16 %v360, %v359
  %v414 = vpack.c.b16 %v362, %v361
  %v415 = vpack.c.b16 %v364, %v363
  %v416 = vpack.c.b16 %v366, %v365
  %v417 = vpack.c.b16 %v368, %v367
  %v418 = vpack.c.b16 %v370, %v369
  %v419 = vpack.c.b16 %v372, %v371
  %v420 = vpack.c.b16 %v374, %v373
  %v421 = vpack.c.b16 %v376, %v375
  %v422 = vpack.c.b16 %v378, %v377
  %v423 = vpack.c.b16 %v380, %v379
  %v424 = vpack.c.b16 %v382, %v381
  %v425 = vpack.c.b16 %v384, %v383
  %v426 = vpack.c.b16 %v386, %v385
  %v427 = vpack.c.b16 %v388, %v387
  %v428 = vpack.c.b16 %v390, %v389
  %v429 = vpack.c.b16 %v392, %v391
  %v430 = vpack.c.b16 %v393, %v393
  %v439 = vunpack.c.l.b16 %v240
  %v440 = vunpack.c.l.b16 %v241
  %v441 = vunpack.c.l.b16 %v242
  %v442 = vunpack.c.l.b16 %v243
  %v443 = vunpack.c.l.b16 %v244
  %v444 = vunpack.c.l.b16 %v245
  %v445 = vunpack.c.l.b16 %v246
  %v446 = vunpack.c.l.b16 %v247
  %v447 = vpack.c.b16 %v440, %v439
  %v448 = vpack.c.b16 %v442, %v441
  %v449 = vpack.c.b16 %v444, %v443
  %v450 = vpack.c.b16 %v446, %v445
  %vm455 = vcmask 523264
  %v457 = vsel %vm455, %v394, 0
  %v460 = vsel %vm455, %v395, 0
  %v463 = vsel %vm455, %v396, 0
  %v466 = vsel %vm455, %v397, 0
  %v469 = vsel %vm455, %v398, 0
  %v472 = vsel %vm455, %v399, 0
  %v475 = vsel %vm455, %v400, 0
  %v478 = vsel %vm455, %v401, 0
  %v481 = vsel %vm455, %v402, 0
  %v484 = vsel %vm455, %v403, 0
  %v487 = vsel %vm455, %v404, 0
  %v490 = vsel %vm455, %v405, 0
  %v493 = vsel %vm455, %v406, 0
  %v496 = vsel %vm455, %v407, 0
  %v499 = vsel %vm455, %v408, 0
  %v502 = vsel %vm455, %v409, 0
  %v505 = vsel %vm455, %v410, 0
  %v508 = vsel %vm455, %v411, 0
  %v511 = vsel %vm455, %v412, 0
  %v514 = vsel %vm455, %v413, 0
  %v517 = vsel %vm455, %v414, 0
  %v520 = vsel %vm455, %v415, 0
  %v523 = vsel %vm455, %v416, 0
  %v526 = vsel %vm455, %v417, 0
  %v529 = vsel %vm455, %v418, 0
  %v532 = vsel %vm455, %v419, 0
  %v535 = vsel %vm455, %v420, 0
  %v538 = vsel %vm455, %v421, 0
  %v541 = vsel %vm455, %v422, 0
  %v544 = vsel %vm455, %v423, 0
  %v547 = vsel %vm455, %v424, 0
  %v550 = vsel %vm455, %v425, 0
  %v553 = vsel %vm455, %v426, 0
  %v556 = vsel %vm455, %v427, 0
  %v559 = vsel %vm455, %v428, 0
  %v562 = vsel %vm455, %v429, 0
  %v565 = vsel %vm455, %v430, 0
  %567 = vmatprep.subr.bf16.mxu0 0
  %568 = vmatpush1.bf16.msra.mxu0 %v447
  %569 = vmatprep.subr.bf16.mxu0 0
  %570 = vmatpush1.bf16.msra.mxu0 %v448
  %571 = vmatprep.subr.bf16.mxu0 0
  %572 = vmatpush1.bf16.msra.mxu0 %v449
  %573 = vmatprep.subr.bf16.mxu0 0
  %574 = vmatpush1.bf16.msra.mxu0 %v450
  %575 = vmatprep.subr.bf16.mxu0 0
  %576 = vmatpush1.bf16.msra.mxu0 0
  %577 = vmatprep.subr.bf16.mxu0 0
  %578 = vmatpush1.bf16.msra.mxu0 0
  %579 = vmatprep.subr.bf16.mxu0 0
  %580 = vmatpush1.bf16.msra.mxu0 0
  %581 = vmatprep.subr.bf16.mxu0 0
  %582 = vmatpush1.bf16.msra.mxu0 0
  %583 = vmatprep.subr.bf16.mxu0 0
  %584 = vmatpush1.bf16.msra.mxu0 0
  %585 = vmatprep.subr.bf16.mxu0 0
  %586 = vmatpush1.bf16.msra.mxu0 0
  %587 = vmatprep.subr.bf16.mxu0 0
  %588 = vmatpush1.bf16.msra.mxu0 0
  %589 = vmatprep.subr.bf16.mxu0 0
  %590 = vmatpush1.bf16.msra.mxu0 0
  %591 = vmatprep.subr.bf16.mxu0 0
  %592 = vmatpush1.bf16.msra.mxu0 0
  %593 = vmatprep.subr.bf16.mxu0 0
  %594 = vmatpush1.bf16.msra.mxu0 0
  %595 = vmatprep.subr.bf16.mxu0 0
  %596 = vmatpush1.bf16.msra.mxu0 0
  %597 = vmatprep.subr.bf16.mxu0 0
  %598 = vmatpush1.bf16.msra.mxu0 0
  %599 = vmatprep.mubr.bf16.mxu0 0
  %600 = vmatmul.mubr.bf16.gmra.mrb[0].mxu0 %v457
  %v601 = vpop.f32.mrb[0].mxu0
  %v602 = vadd.f32 0.0, %v601
  %v603 = vpop.f32.mrb[0].mxu0
  %v604 = vpop.f32.mrb[0].mxu0
  %v605 = vadd.f32 0.0, %v604
  %v606 = vpop.f32.mrb[0].mxu0
  %607 = vmatprep.mubr.bf16.mxu0 0
  %608 = vmatmul.mubr.bf16.gmra.mrb[0].mxu0 %v460
  %v609 = vpop.f32.mrb[0].mxu0
  %v610 = vadd.f32 0.0, %v609
  %v611 = vpop.f32.mrb[0].mxu0
  %v612 = vpop.f32.mrb[0].mxu0
  %v613 = vadd.f32 0.0, %v612
  %v614 = vpop.f32.mrb[0].mxu0
  %615 = vmatprep.mubr.bf16.mxu0 0
  %616 = vmatmul.mubr.bf16.gmra.mrb[0].mxu0 %v463
  %v617 = vpop.f32.mrb[0].mxu0
  %v618 = vadd.f32 0.0, %v617
  %v619 = vpop.f32.mrb[0].mxu0
  %v620 = vpop.f32.mrb[0].mxu0
  %v621 = vadd.f32 0.0, %v620
  %v622 = vpop.f32.mrb[0].mxu0
  %623 = vmatprep.mubr.bf16.mxu0 0
  %624 = vmatmul.mubr.bf16.gmra.mrb[0].mxu0 %v466
  %v625 = vpop.f32.mrb[0].mxu0
  %v626 = vadd.f32 0.0, %v625
  %v627 = vpop.f32.mrb[0].mxu0
  %v628 = vpop.f32.mrb[0].mxu0
  %v629 = vadd.f32 0.0, %v628
  %v630 = vpop.f32.mrb[0].mxu0
  %631 = vmatprep.mubr.bf16.mxu0 0
  %632 = vmatmul.mubr.bf16.gmra.mrb[0].mxu0 %v469
  %v633 = vpop.f32.mrb[0].mxu0
  %v634 = vadd.f32 0.0, %v633
  %v635 = vpop.f32.mrb[0].mxu0
  %v636 = vpop.f32.mrb[0].mxu0
  %v637 = vadd.f32 0.0, %v636
  %v638 = vpop.f32.mrb[0].mxu0
  %639 = vmatprep.mubr.bf16.mxu0 0
  %640 = vmatmul.mubr.bf16.gmra.mrb[0].mxu0 %v472
  %v641 = vpop.f32.mrb[0].mxu0
  %v642 = vadd.f32 0.0, %v641
  %v643 = vpop.f32.mrb[0].mxu0
  %v644 = vpop.f32.mrb[0].mxu0
  %v645 = vadd.f32 0.0, %v644
  %v646 = vpop.f32.mrb[0].mxu0
  %647 = vmatprep.mubr.bf16.mxu0 0
  %648 = vmatmul.mubr.bf16.gmra.mrb[0].mxu0 %v475
  %v649 = vpop.f32.mrb[0].mxu0
  %v650 = vadd.f32 0.0, %v649
  %v651 = vpop.f32.mrb[0].mxu0
  %v652 = vpop.f32.mrb[0].mxu0
  %v653 = vadd.f32 0.0, %v652
  %v654 = vpop.f32.mrb[0].mxu0
  %655 = vmatprep.mubr.bf16.mxu0 0
  %656 = vmatmul.mubr.bf16.gmra.mrb[0].mxu0 %v478
  %v657 = vpop.f32.mrb[0].mxu0
  %v658 = vadd.f32 0.0, %v657
  %v659 = vpop.f32.mrb[0].mxu0
  %v660 = vpop.f32.mrb[0].mxu0
  %v661 = vadd.f32 0.0, %v660
  %v662 = vpop.f32.mrb[0].mxu0
  %663 = vmatprep.mubr.bf16.mxu0 0
  %664 = vmatmul.mubr.bf16.gmra.mrb[0].mxu0 %v481
  %v665 = vpop.f32.mrb[0].mxu0
  %v666 = vadd.f32 0.0, %v665
  %v667 = vpop.f32.mrb[0].mxu0
  %v668 = vpop.f32.mrb[0].mxu0
  %v669 = vadd.f32 0.0, %v668
  %v670 = vpop.f32.mrb[0].mxu0
  %671 = vmatprep.mubr.bf16.mxu0 0
  %672 = vmatmul.mubr.bf16.gmra.mrb[0].mxu0 %v484
  %v673 = vpop.f32.mrb[0].mxu0
  %v674 = vadd.f32 0.0, %v673
  %v675 = vpop.f32.mrb[0].mxu0
  %v676 = vpop.f32.mrb[0].mxu0
  %v677 = vadd.f32 0.0, %v676
  %v678 = vpop.f32.mrb[0].mxu0
  %679 = vmatprep.mubr.bf16.mxu0 0
  %680 = vmatmul.mubr.bf16.gmra.mrb[0].mxu0 %v487
  %v681 = vpop.f32.mrb[0].mxu0
  %v682 = vadd.f32 0.0, %v681
  %v683 = vpop.f32.mrb[0].mxu0
  %v684 = vpop.f32.mrb[0].mxu0
  %v685 = vadd.f32 0.0, %v684
  %v686 = vpop.f32.mrb[0].mxu0
  %687 = vmatprep.mubr.bf16.mxu0 0
  %688 = vmatmul.mubr.bf16.gmra.mrb[0].mxu0 %v490
  %v689 = vpop.f32.mrb[0].mxu0
  %v690 = vadd.f32 0.0, %v689
  %v691 = vpop.f32.mrb[0].mxu0
  %v692 = vpop.f32.mrb[0].mxu0
  %v693 = vadd.f32 0.0, %v692
  %v694 = vpop.f32.mrb[0].mxu0
  %695 = vmatprep.mubr.bf16.mxu0 0
  %696 = vmatmul.mubr.bf16.gmra.mrb[0].mxu0 %v493
  %v697 = vpop.f32.mrb[0].mxu0
  %v698 = vadd.f32 0.0, %v697
  %v699 = vpop.f32.mrb[0].mxu0
  %v700 = vpop.f32.mrb[0].mxu0
  %v701 = vadd.f32 0.0, %v700
  %v702 = vpop.f32.mrb[0].mxu0
  %703 = vmatprep.mubr.bf16.mxu0 0
  %704 = vmatmul.mubr.bf16.gmra.mrb[0].mxu0 %v496
  %v705 = vpop.f32.mrb[0].mxu0
  %v706 = vadd.f32 0.0, %v705
  %v707 = vpop.f32.mrb[0].mxu0
  %v708 = vpop.f32.mrb[0].mxu0
  %v709 = vadd.f32 0.0, %v708
  %v710 = vpop.f32.mrb[0].mxu0
  %711 = vmatprep.mubr.bf16.mxu0 0
  %712 = vmatmul.mubr.bf16.gmra.mrb[0].mxu0 %v499
  %v713 = vpop.f32.mrb[0].mxu0
  %v714 = vadd.f32 0.0, %v713
  %v715 = vpop.f32.mrb[0].mxu0
  %v716 = vpop.f32.mrb[0].mxu0
  %v717 = vadd.f32 0.0, %v716
  %v718 = vpop.f32.mrb[0].mxu0
  %719 = vmatprep.mubr.bf16.mxu0 0
  %720 = vmatmul.mubr.bf16.gmra.mrb[0].mxu0 %v502
  %v721 = vpop.f32.mrb[0].mxu0
  %v722 = vadd.f32 0.0, %v721
  %v723 = vpop.f32.mrb[0].mxu0
  %v724 = vpop.f32.mrb[0].mxu0
  %v725 = vadd.f32 0.0, %v724
  %v726 = vpop.f32.mrb[0].mxu0
  %727 = vmatprep.mubr.bf16.mxu0 0
  %728 = vmatmul.mubr.bf16.gmra.mrb[0].mxu0 %v505
  %v729 = vpop.f32.mrb[0].mxu0
  %v730 = vadd.f32 0.0, %v729
  %v731 = vpop.f32.mrb[0].mxu0
  %v732 = vpop.f32.mrb[0].mxu0
  %v733 = vadd.f32 0.0, %v732
  %v734 = vpop.f32.mrb[0].mxu0
  %735 = vmatprep.mubr.bf16.mxu0 0
  %736 = vmatmul.mubr.bf16.gmra.mrb[0].mxu0 %v508
  %v737 = vpop.f32.mrb[0].mxu0
  %v738 = vadd.f32 0.0, %v737
  %v739 = vpop.f32.mrb[0].mxu0
  %v740 = vpop.f32.mrb[0].mxu0
  %v741 = vadd.f32 0.0, %v740
  %v742 = vpop.f32.mrb[0].mxu0
  %743 = vmatprep.mubr.bf16.mxu0 0
  %744 = vmatmul.mubr.bf16.gmra.mrb[0].mxu0 %v511
  %v745 = vpop.f32.mrb[0].mxu0
  %v746 = vadd.f32 0.0, %v745
  %v747 = vpop.f32.mrb[0].mxu0
  %v748 = vpop.f32.mrb[0].mxu0
  %v749 = vadd.f32 0.0, %v748
  %v750 = vpop.f32.mrb[0].mxu0
  %751 = vmatprep.mubr.bf16.mxu0 0
  %752 = vmatmul.mubr.bf16.gmra.mrb[0].mxu0 %v514
  %v753 = vpop.f32.mrb[0].mxu0
  %v754 = vadd.f32 0.0, %v753
  %v755 = vpop.f32.mrb[0].mxu0
  %v756 = vpop.f32.mrb[0].mxu0
  %v757 = vadd.f32 0.0, %v756
  %v758 = vpop.f32.mrb[0].mxu0
  %759 = vmatprep.mubr.bf16.mxu0 0
  %760 = vmatmul.mubr.bf16.gmra.mrb[0].mxu0 %v517
  %v761 = vpop.f32.mrb[0].mxu0
  %v762 = vadd.f32 0.0, %v761
  %v763 = vpop.f32.mrb[0].mxu0
  %v764 = vpop.f32.mrb[0].mxu0
  %v765 = vadd.f32 0.0, %v764
  %v766 = vpop.f32.mrb[0].mxu0
  %767 = vmatprep.mubr.bf16.mxu0 0
  %768 = vmatmul.mubr.bf16.gmra.mrb[0].mxu0 %v520
  %v769 = vpop.f32.mrb[0].mxu0
  %v770 = vadd.f32 0.0, %v769
  %v771 = vpop.f32.mrb[0].mxu0
  %v772 = vpop.f32.mrb[0].mxu0
  %v773 = vadd.f32 0.0, %v772
  %v774 = vpop.f32.mrb[0].mxu0
  %775 = vmatprep.mubr.bf16.mxu0 0
  %776 = vmatmul.mubr.bf16.gmra.mrb[0].mxu0 %v523
  %v777 = vpop.f32.mrb[0].mxu0
  %v778 = vadd.f32 0.0, %v777
  %v779 = vpop.f32.mrb[0].mxu0
  %v780 = vpop.f32.mrb[0].mxu0
  %v781 = vadd.f32 0.0, %v780
  %v782 = vpop.f32.mrb[0].mxu0
  %783 = vmatprep.mubr.bf16.mxu0 0
  %784 = vmatmul.mubr.bf16.gmra.mrb[0].mxu0 %v526
  %v785 = vpop.f32.mrb[0].mxu0
  %v786 = vadd.f32 0.0, %v785
  %v787 = vpop.f32.mrb[0].mxu0
  %v788 = vpop.f32.mrb[0].mxu0
  %v789 = vadd.f32 0.0, %v788
  %v790 = vpop.f32.mrb[0].mxu0
  %791 = vmatprep.mubr.bf16.mxu0 0
  %792 = vmatmul.mubr.bf16.gmra.mrb[0].mxu0 %v529
  %v793 = vpop.f32.mrb[0].mxu0
  %v794 = vadd.f32 0.0, %v793
  %v795 = vpop.f32.mrb[0].mxu0
  %v796 = vpop.f32.mrb[0].mxu0
  %v797 = vadd.f32 0.0, %v796
  %v798 = vpop.f32.mrb[0].mxu0
  %799 = vmatprep.mubr.bf16.mxu0 0
  %800 = vmatmul.mubr.bf16.gmra.mrb[0].mxu0 %v532
  %v801 = vpop.f32.mrb[0].mxu0
  %v802 = vadd.f32 0.0, %v801
  %v803 = vpop.f32.mrb[0].mxu0
  %v804 = vpop.f32.mrb[0].mxu0
  %v805 = vadd.f32 0.0, %v804
  %v806 = vpop.f32.mrb[0].mxu0
  %807 = vmatprep.mubr.bf16.mxu0 0
  %808 = vmatmul.mubr.bf16.gmra.mrb[0].mxu0 %v535
  %v809 = vpop.f32.mrb[0].mxu0
  %v810 = vadd.f32 0.0, %v809
  %v811 = vpop.f32.mrb[0].mxu0
  %v812 = vpop.f32.mrb[0].mxu0
  %v813 = vadd.f32 0.0, %v812
  %v814 = vpop.f32.mrb[0].mxu0
  %815 = vmatprep.mubr.bf16.mxu0 0
  %816 = vmatmul.mubr.bf16.gmra.mrb[0].mxu0 %v538
  %v817 = vpop.f32.mrb[0].mxu0
  %v818 = vadd.f32 0.0, %v817
  %v819 = vpop.f32.mrb[0].mxu0
  %v820 = vpop.f32.mrb[0].mxu0
  %v821 = vadd.f32 0.0, %v820
  %v822 = vpop.f32.mrb[0].mxu0
  %823 = vmatprep.mubr.bf16.mxu0 0
  %824 = vmatmul.mubr.bf16.gmra.mrb[0].mxu0 %v541
  %v825 = vpop.f32.mrb[0].mxu0
  %v826 = vadd.f32 0.0, %v825
  %v827 = vpop.f32.mrb[0].mxu0
  %v828 = vpop.f32.mrb[0].mxu0
  %v829 = vadd.f32 0.0, %v828
  %v830 = vpop.f32.mrb[0].mxu0
  %831 = vmatprep.mubr.bf16.mxu0 0
  %832 = vmatmul.mubr.bf16.gmra.mrb[0].mxu0 %v544
  %v833 = vpop.f32.mrb[0].mxu0
  %v834 = vadd.f32 0.0, %v833
  %v835 = vpop.f32.mrb[0].mxu0
  %v836 = vpop.f32.mrb[0].mxu0
  %v837 = vadd.f32 0.0, %v836
  %v838 = vpop.f32.mrb[0].mxu0
  %839 = vmatprep.mubr.bf16.mxu0 0
  %840 = vmatmul.mubr.bf16.gmra.mrb[0].mxu0 %v547
  %v841 = vpop.f32.mrb[0].mxu0
  %v842 = vadd.f32 0.0, %v841
  %v843 = vpop.f32.mrb[0].mxu0
  %v844 = vpop.f32.mrb[0].mxu0
  %v845 = vadd.f32 0.0, %v844
  %v846 = vpop.f32.mrb[0].mxu0
  %847 = vmatprep.mubr.bf16.mxu0 0
  %848 = vmatmul.mubr.bf16.gmra.mrb[0].mxu0 %v550
  %v849 = vpop.f32.mrb[0].mxu0
  %v850 = vadd.f32 0.0, %v849
  %v851 = vpop.f32.mrb[0].mxu0
  %v852 = vpop.f32.mrb[0].mxu0
  %v853 = vadd.f32 0.0, %v852
  %v854 = vpop.f32.mrb[0].mxu0
  %855 = vmatprep.mubr.bf16.mxu0 0
  %856 = vmatmul.mubr.bf16.gmra.mrb[0].mxu0 %v553
  %v857 = vpop.f32.mrb[0].mxu0
  %v858 = vadd.f32 0.0, %v857
  %v859 = vpop.f32.mrb[0].mxu0
  %v860 = vpop.f32.mrb[0].mxu0
  %v861 = vadd.f32 0.0, %v860
  %v862 = vpop.f32.mrb[0].mxu0
  %863 = vmatprep.mubr.bf16.mxu0 0
  %864 = vmatmul.mubr.bf16.gmra.mrb[0].mxu0 %v556
  %v865 = vpop.f32.mrb[0].mxu0
  %v866 = vadd.f32 0.0, %v865
  %v867 = vpop.f32.mrb[0].mxu0
  %v868 = vpop.f32.mrb[0].mxu0
  %v869 = vadd.f32 0.0, %v868
  %v870 = vpop.f32.mrb[0].mxu0
  %871 = vmatprep.mubr.bf16.mxu0 0
  %872 = vmatmul.mubr.bf16.gmra.mrb[0].mxu0 %v559
  %v873 = vpop.f32.mrb[0].mxu0
  %v874 = vadd.f32 0.0, %v873
  %v875 = vpop.f32.mrb[0].mxu0
  %v876 = vpop.f32.mrb[0].mxu0
  %v877 = vadd.f32 0.0, %v876
  %v878 = vpop.f32.mrb[0].mxu0
  %879 = vmatprep.mubr.bf16.mxu0 0
  %880 = vmatmul.mubr.bf16.gmra.mrb[0].mxu0 %v562
  %v881 = vpop.f32.mrb[0].mxu0
  %v882 = vadd.f32 0.0, %v881
  %v883 = vpop.f32.mrb[0].mxu0
  %v884 = vpop.f32.mrb[0].mxu0
  %v885 = vadd.f32 0.0, %v884
  %v886 = vpop.f32.mrb[0].mxu0
  %887 = vmatprep.mubr.bf16.mxu0 0
  %888 = vmatmul.mubr.bf16.gmra.mrb[0].mxu0 %v565
  %v889 = vpop.f32.mrb[0].mxu0
  %v890 = vadd.f32 0.0, %v889
  %v891 = vpop.f32.mrb[0].mxu0
  %v892 = vpop.f32.mrb[0].mxu0
  %v893 = vpop.f32.mrb[0].mxu0
  %894 = vdwg.mxu0
  %v895 = vadd.f32 %v94, %v602
  %v896 = vadd.f32 %v95, %v605
  %v897 = vadd.f32 %v96, %v610
  %v898 = vadd.f32 %v97, %v613
  %v899 = vadd.f32 %v98, %v618
  %v900 = vadd.f32 %v99, %v621
  %v901 = vadd.f32 %v100, %v626
  %v902 = vadd.f32 %v101, %v629
  %v903 = vadd.f32 %v102, %v634
  %v904 = vadd.f32 %v103, %v637
  %v905 = vadd.f32 %v104, %v642
  %v906 = vadd.f32 %v105, %v645
  %v907 = vadd.f32 %v106, %v650
  %v908 = vadd.f32 %v107, %v653
  %v909 = vadd.f32 %v108, %v658
  %v910 = vadd.f32 %v109, %v661
  %v911 = vadd.f32 %v110, %v666
  %v912 = vadd.f32 %v111, %v669
  %v913 = vadd.f32 %v112, %v674
  %v914 = vadd.f32 %v113, %v677
  %v915 = vadd.f32 %v114, %v682
  %v916 = vadd.f32 %v115, %v685
  %v917 = vadd.f32 %v116, %v690
  %v918 = vadd.f32 %v117, %v693
  %v919 = vadd.f32 %v118, %v698
  %v920 = vadd.f32 %v119, %v701
  %v921 = vadd.f32 %v120, %v706
  %v922 = vadd.f32 %v121, %v709
  %v923 = vadd.f32 %v122, %v714
  %v924 = vadd.f32 %v123, %v717
  %v925 = vadd.f32 %v124, %v722
  %v926 = vadd.f32 %v125, %v725
  %v927 = vadd.f32 %v126, %v730
  %v928 = vadd.f32 %v127, %v733
  %v929 = vadd.f32 %v128, %v738
  %v930 = vadd.f32 %v129, %v741
  %v931 = vadd.f32 %v130, %v746
  %v932 = vadd.f32 %v131, %v749
  %v933 = vadd.f32 %v132, %v754
  %v934 = vadd.f32 %v133, %v757
  %v935 = vadd.f32 %v134, %v762
  %v936 = vadd.f32 %v135, %v765
  %v937 = vadd.f32 %v136, %v770
  %v938 = vadd.f32 %v137, %v773
  %v939 = vadd.f32 %v138, %v778
  %v940 = vadd.f32 %v139, %v781
  %v941 = vadd.f32 %v140, %v786
  %v942 = vadd.f32 %v141, %v789
  %v943 = vadd.f32 %v142, %v794
  %v944 = vadd.f32 %v143, %v797
  %v945 = vadd.f32 %v144, %v802
  %v946 = vadd.f32 %v145, %v805
  %v947 = vadd.f32 %v146, %v810
  %v948 = vadd.f32 %v147, %v813
  %v949 = vadd.f32 %v148, %v818
  %v950 = vadd.f32 %v149, %v821
  %v951 = vadd.f32 %v150, %v826
  %v952 = vadd.f32 %v151, %v829
  %v953 = vadd.f32 %v152, %v834
  %v954 = vadd.f32 %v153, %v837
  %v955 = vadd.f32 %v154, %v842
  %v956 = vadd.f32 %v155, %v845
  %v957 = vadd.f32 %v156, %v850
  %v958 = vadd.f32 %v157, %v853
  %v959 = vadd.f32 %v158, %v858
  %v960 = vadd.f32 %v159, %v861
  %v961 = vadd.f32 %v160, %v866
  %v962 = vadd.f32 %v161, %v869
  %v963 = vadd.f32 %v162, %v874
  %v964 = vadd.f32 %v163, %v877
  %v965 = vadd.f32 %v164, %v882
  %v966 = vadd.f32 %v165, %v885
  %v967 = vadd.f32 %v166, %v890
  %vm968 = vcmask 97280
  %969 = vst.msk [vmem:[#allocation2] sm:$0xff] %vm968, %v895
  %970 = vst.msk [vmem:[#allocation2 + $0x8] sm:$0xff] %vm968, %v896
  %971 = vst.msk [vmem:[#allocation2 + $0x10] sm:$0xff] %vm968, %v897
  %972 = vst.msk [vmem:[#allocation2 + $0x18] sm:$0xff] %vm968, %v898
  %973 = vst.msk [vmem:[#allocation2 + $0x20] sm:$0xff] %vm968, %v899
  %974 = vst.msk [vmem:[#allocation2 + $0x28] sm:$0xff] %vm968, %v900
  %975 = vst.msk [vmem:[#allocation2 + $0x30] sm:$0xff] %vm968, %v901
  %976 = vst.msk [vmem:[#allocation2 + $0x38] sm:$0xff] %vm968, %v902
  %977 = vst.msk [vmem:[#allocation2 + $0x40] sm:$0xff] %vm968, %v903
  %978 = vst.msk [vmem:[#allocation2 + $0x48] sm:$0xff] %vm968, %v904
  %979 = vst.msk [vmem:[#allocation2 + $0x50] sm:$0xff] %vm968, %v905
  %980 = vst.msk [vmem:[#allocation2 + $0x58] sm:$0xff] %vm968, %v906
  %981 = vst.msk [vmem:[#allocation2 + $0x60] sm:$0xff] %vm968, %v907
  %982 = vst.msk [vmem:[#allocation2 + $0x68] sm:$0xff] %vm968, %v908
  %983 = vst.msk [vmem:[#allocation2 + $0x70] sm:$0xff] %vm968, %v909
  %984 = vst.msk [vmem:[#allocation2 + $0x78] sm:$0xff] %vm968, %v910
  %985 = vst.msk [vmem:[#allocation2 + $0x80] sm:$0xff] %vm968, %v911
  %986 = vst.msk [vmem:[#allocation2 + $0x88] sm:$0xff] %vm968, %v912
  %987 = vst.msk [vmem:[#allocation2 + $0x90] sm:$0xff] %vm968, %v913
  %988 = vst.msk [vmem:[#allocation2 + $0x98] sm:$0xff] %vm968, %v914
  %989 = vst.msk [vmem:[#allocation2 + $0xa0] sm:$0xff] %vm968, %v915
  %990 = vst.msk [vmem:[#allocation2 + $0xa8] sm:$0xff] %vm968, %v916
  %991 = vst.msk [vmem:[#allocation2 + $0xb0] sm:$0xff] %vm968, %v917
  %992 = vst.msk [vmem:[#allocation2 + $0xb8] sm:$0xff] %vm968, %v918
  %993 = vst.msk [vmem:[#allocation2 + $0xc0] sm:$0xff] %vm968, %v919
  %994 = vst.msk [vmem:[#allocation2 + $0xc8] sm:$0xff] %vm968, %v920
  %995 = vst.msk [vmem:[#allocation2 + $0xd0] sm:$0xff] %vm968, %v921
  %996 = vst.msk [vmem:[#allocation2 + $0xd8] sm:$0xff] %vm968, %v922
  %997 = vst.msk [vmem:[#allocation2 + $0xe0] sm:$0xff] %vm968, %v923
  %998 = vst.msk [vmem:[#allocation2 + $0xe8] sm:$0xff] %vm968, %v924
  %999 = vst.msk [vmem:[#allocation2 + $0xf0] sm:$0xff] %vm968, %v925
  %1000 = vst.msk [vmem:[#allocation2 + $0xf8] sm:$0xff] %vm968, %v926
  %1001 = vst.msk [vmem:[#allocation2 + $0x100] sm:$0xff] %vm968, %v927
  %1002 = vst.msk [vmem:[#allocation2 + $0x108] sm:$0xff] %vm968, %v928
  %1003 = vst.msk [vmem:[#allocation2 + $0x110] sm:$0xff] %vm968, %v929
  %1004 = vst.msk [vmem:[#allocation2 + $0x118] sm:$0xff] %vm968, %v930
  %1005 = vst.msk [vmem:[#allocation2 + $0x120] sm:$0xff] %vm968, %v931
  %1006 = vst.msk [vmem:[#allocation2 + $0x128] sm:$0xff] %vm968, %v932
  %1007 = vst.msk [vmem:[#allocation2 + $0x130] sm:$0xff] %vm968, %v933
  %1008 = vst.msk [vmem:[#allocation2 + $0x138] sm:$0xff] %vm968, %v934
  %1009 = vst.msk [vmem:[#allocation2 + $0x140] sm:$0xff] %vm968, %v935
  %1010 = vst.msk [vmem:[#allocation2 + $0x148] sm:$0xff] %vm968, %v936
  %1011 = vst.msk [vmem:[#allocation2 + $0x150] sm:$0xff] %vm968, %v937
  %1012 = vst.msk [vmem:[#allocation2 + $0x158] sm:$0xff] %vm968, %v938
  %1013 = vst.msk [vmem:[#allocation2 + $0x160] sm:$0xff] %vm968, %v939
  %1014 = vst.msk [vmem:[#allocation2 + $0x168] sm:$0xff] %vm968, %v940
  %1015 = vst.msk [vmem:[#allocation2 + $0x170] sm:$0xff] %vm968, %v941
  %1016 = vst.msk [vmem:[#allocation2 + $0x178] sm:$0xff] %vm968, %v942
  %1017 = vst.msk [vmem:[#allocation2 + $0x180] sm:$0xff] %vm968, %v943
  %1018 = vst.msk [vmem:[#allocation2 + $0x188] sm:$0xff] %vm968, %v944
  %1019 = vst.msk [vmem:[#allocation2 + $0x190] sm:$0xff] %vm968, %v945
  %1020 = vst.msk [vmem:[#allocation2 + $0x198] sm:$0xff] %vm968, %v946
  %1021 = vst.msk [vmem:[#allocation2 + $0x1a0] sm:$0xff] %vm968, %v947
  %1022 = vst.msk [vmem:[#allocation2 + $0x1a8] sm:$0xff] %vm968, %v948
  %1023 = vst.msk [vmem:[#allocation2 + $0x1b0] sm:$0xff] %vm968, %v949
  %1024 = vst.msk [vmem:[#allocation2 + $0x1b8] sm:$0xff] %vm968, %v950
  %1025 = vst.msk [vmem:[#allocation2 + $0x1c0] sm:$0xff] %vm968, %v951
  %1026 = vst.msk [vmem:[#allocation2 + $0x1c8] sm:$0xff] %vm968, %v952
  %1027 = vst.msk [vmem:[#allocation2 + $0x1d0] sm:$0xff] %vm968, %v953
  %1028 = vst.msk [vmem:[#allocation2 + $0x1d8] sm:$0xff] %vm968, %v954
  %1029 = vst.msk [vmem:[#allocation2 + $0x1e0] sm:$0xff] %vm968, %v955
  %1030 = vst.msk [vmem:[#allocation2 + $0x1e8] sm:$0xff] %vm968, %v956
  %1031 = vst.msk [vmem:[#allocation2 + $0x1f0] sm:$0xff] %vm968, %v957
  %1032 = vst.msk [vmem:[#allocation2 + $0x1f8] sm:$0xff] %vm968, %v958
  %1033 = vst.msk [vmem:[#allocation2 + $0x200] sm:$0xff] %vm968, %v959
  %1034 = vst.msk [vmem:[#allocation2 + $0x208] sm:$0xff] %vm968, %v960
  %1035 = vst.msk [vmem:[#allocation2 + $0x210] sm:$0xff] %vm968, %v961
  %1036 = vst.msk [vmem:[#allocation2 + $0x218] sm:$0xff] %vm968, %v962
  %1037 = vst.msk [vmem:[#allocation2 + $0x220] sm:$0xff] %vm968, %v963
  %1038 = vst.msk [vmem:[#allocation2 + $0x228] sm:$0xff] %vm968, %v964
  %1039 = vst.msk [vmem:[#allocation2 + $0x230] sm:$0xff] %vm968, %v965
  %1040 = vst.msk [vmem:[#allocation2 + $0x238] sm:$0xff] %vm968, %v966
  %vm1041 = vcmask 91136
  %1042 = vst.msk [vmem:[#allocation2 + $0x240] sm:$0x3] %vm1041, %v967
  // Predicated region
  $region18: #{_lambda_.47} parent=0 // pred_check
    %p1043 = pneg %p15
  $region19: #{_lambda_.47} parent=0 // pred_check_branch
    %1045 = sbr.rel (%p1043) target = $region21
  $region20: #{_lambda_.47} parent=0 // pred_region
    %v1046 = vld [vmem:[#allocation2] sm:$0xff]
    %v1047 = vld [vmem:[#allocation2 + $0x8] sm:$0xff]
    %v1048 = vld [vmem:[#allocation2 + $0x10] sm:$0xff]
    %v1049 = vld [vmem:[#allocation2 + $0x18] sm:$0xff]
    %v1050 = vld [vmem:[#allocation2 + $0x20] sm:$0xff]
    %v1051 = vld [vmem:[#allocation2 + $0x28] sm:$0xff]
    %v1052 = vld [vmem:[#allocation2 + $0x30] sm:$0xff]
    %v1053 = vld [vmem:[#allocation2 + $0x38] sm:$0xff]
    %v1054 = vld [vmem:[#allocation2 + $0x40] sm:$0xff]
    %v1055 = vld [vmem:[#allocation2 + $0x48] sm:$0xff]
    %v1056 = vld [vmem:[#allocation2 + $0x50] sm:$0xff]
    %v1057 = vld [vmem:[#allocation2 + $0x58] sm:$0xff]
    %v1058 = vld [vmem:[#allocation2 + $0x60] sm:$0xff]
    %v1059 = vld [vmem:[#allocation2 + $0x68] sm:$0xff]
    %v1060 = vld [vmem:[#allocation2 + $0x70] sm:$0xff]
    %v1061 = vld [vmem:[#allocation2 + $0x78] sm:$0xff]
    %v1062 = vld [vmem:[#allocation2 + $0x80] sm:$0xff]
    %v1063 = vld [vmem:[#allocation2 + $0x88] sm:$0xff]
    %v1064 = vld [vmem:[#allocation2 + $0x90] sm:$0xff]
    %v1065 = vld [vmem:[#allocation2 + $0x98] sm:$0xff]
    %v1066 = vld [vmem:[#allocation2 + $0xa0] sm:$0xff]
    %v1067 = vld [vmem:[#allocation2 + $0xa8] sm:$0xff]
    %v1068 = vld [vmem:[#allocation2 + $0xb0] sm:$0xff]
    %v1069 = vld [vmem:[#allocation2 + $0xb8] sm:$0xff]
    %v1070 = vld [vmem:[#allocation2 + $0xc0] sm:$0xff]
    %v1071 = vld [vmem:[#allocation2 + $0xc8] sm:$0xff]
    %v1072 = vld [vmem:[#allocation2 + $0xd0] sm:$0xff]
    %v1073 = vld [vmem:[#allocation2 + $0xd8] sm:$0xff]
    %v1074 = vld [vmem:[#allocation2 + $0xe0] sm:$0xff]
    %v1075 = vld [vmem:[#allocation2 + $0xe8] sm:$0xff]
    %v1076 = vld [vmem:[#allocation2 + $0xf0] sm:$0xff]
    %v1077 = vld [vmem:[#allocation2 + $0xf8] sm:$0xff]
    %v1078 = vld [vmem:[#allocation2 + $0x100] sm:$0xff]
    %v1079 = vld [vmem:[#allocation2 + $0x108] sm:$0xff]
    %v1080 = vld [vmem:[#allocation2 + $0x110] sm:$0xff]
    %v1081 = vld [vmem:[#allocation2 + $0x118] sm:$0xff]
    %v1082 = vld [vmem:[#allocation2 + $0x120] sm:$0xff]
    %v1083 = vld [vmem:[#allocation2 + $0x128] sm:$0xff]
    %v1084 = vld [vmem:[#allocation2 + $0x130] sm:$0xff]
    %v1085 = vld [vmem:[#allocation2 + $0x138] sm:$0xff]
    %v1086 = vld [vmem:[#allocation2 + $0x140] sm:$0xff]
    %v1087 = vld [vmem:[#allocation2 + $0x148] sm:$0xff]
    %v1088 = vld [vmem:[#allocation2 + $0x150] sm:$0xff]
    %v1089 = vld [vmem:[#allocation2 + $0x158] sm:$0xff]
    %v1090 = vld [vmem:[#allocation2 + $0x160] sm:$0xff]
    %v1091 = vld [vmem:[#allocation2 + $0x168] sm:$0xff]
    %v1092 = vld [vmem:[#allocation2 + $0x170] sm:$0xff]
    %v1093 = vld [vmem:[#allocation2 + $0x178] sm:$0xff]
    %v1094 = vld [vmem:[#allocation2 + $0x180] sm:$0xff]
    %v1095 = vld [vmem:[#allocation2 + $0x188] sm:$0xff]
    %v1096 = vld [vmem:[#allocation2 + $0x190] sm:$0xff]
    %v1097 = vld [vmem:[#allocation2 + $0x198] sm:$0xff]
    %v1098 = vld [vmem:[#allocation2 + $0x1a0] sm:$0xff]
    %v1099 = vld [vmem:[#allocation2 + $0x1a8] sm:$0xff]
    %v1100 = vld [vmem:[#allocation2 + $0x1b0] sm:$0xff]
    %v1101 = vld [vmem:[#allocation2 + $0x1b8] sm:$0xff]
    %v1102 = vld [vmem:[#allocation2 + $0x1c0] sm:$0xff]
    %v1103 = vld [vmem:[#allocation2 + $0x1c8] sm:$0xff]
    %v1104 = vld [vmem:[#allocation2 + $0x1d0] sm:$0xff]
    %v1105 = vld [vmem:[#allocation2 + $0x1d8] sm:$0xff]
    %v1106 = vld [vmem:[#allocation2 + $0x1e0] sm:$0xff]
    %v1107 = vld [vmem:[#allocation2 + $0x1e8] sm:$0xff]
    %v1108 = vld [vmem:[#allocation2 + $0x1f0] sm:$0xff]
    %v1109 = vld [vmem:[#allocation2 + $0x1f8] sm:$0xff]
    %v1110 = vld [vmem:[#allocation2 + $0x200] sm:$0xff]
    %v1111 = vld [vmem:[#allocation2 + $0x208] sm:$0xff]
    %v1112 = vld [vmem:[#allocation2 + $0x210] sm:$0xff]
    %v1113 = vld [vmem:[#allocation2 + $0x218] sm:$0xff]
    %v1114 = vld [vmem:[#allocation2 + $0x220] sm:$0xff]
    %v1115 = vld [vmem:[#allocation2 + $0x228] sm:$0xff]
    %v1116 = vld [vmem:[#allocation2 + $0x230] sm:$0xff]
    %v1117 = vld [vmem:[#allocation2 + $0x238] sm:$0xff]
    %v1118 = vld [vmem:[#allocation2 + $0x240] sm:$0x3]
    %v1119 = vld [vmem:[%s2] sm:$0x1]
    %v1121 = vlaneseq
    %v1122 = vshrl.u32 %v1121, 7
    %v1123 = vsub.s32 0, %v1122
    %v1124 = vrot.slane %v1119, %v1123
    %v1126 = vadd.f32 %v1046, %v1124
    %v1127 = vadd.f32 %v1047, %v1124
    %v1128 = vadd.f32 %v1048, %v1124
    %v1129 = vadd.f32 %v1049, %v1124
    %v1130 = vadd.f32 %v1050, %v1124
    %v1131 = vadd.f32 %v1051, %v1124
    %v1132 = vadd.f32 %v1052, %v1124
    %v1133 = vadd.f32 %v1053, %v1124
    %v1134 = vadd.f32 %v1054, %v1124
    %v1135 = vadd.f32 %v1055, %v1124
    %v1136 = vadd.f32 %v1056, %v1124
    %v1137 = vadd.f32 %v1057, %v1124
    %v1138 = vadd.f32 %v1058, %v1124
    %v1139 = vadd.f32 %v1059, %v1124
    %v1140 = vadd.f32 %v1060, %v1124
    %v1141 = vadd.f32 %v1061, %v1124
    %v1142 = vadd.f32 %v1062, %v1124
    %v1143 = vadd.f32 %v1063, %v1124
    %v1144 = vadd.f32 %v1064, %v1124
    %v1145 = vadd.f32 %v1065, %v1124
    %v1146 = vadd.f32 %v1066, %v1124
    %v1147 = vadd.f32 %v1067, %v1124
    %v1148 = vadd.f32 %v1068, %v1124
    %v1149 = vadd.f32 %v1069, %v1124
    %v1150 = vadd.f32 %v1070, %v1124
    %v1151 = vadd.f32 %v1071, %v1124
    %v1152 = vadd.f32 %v1072, %v1124
    %v1153 = vadd.f32 %v1073, %v1124
    %v1154 = vadd.f32 %v1074, %v1124
    %v1155 = vadd.f32 %v1075, %v1124
    %v1156 = vadd.f32 %v1076, %v1124
    %v1157 = vadd.f32 %v1077, %v1124
    %v1158 = vadd.f32 %v1078, %v1124
    %v1159 = vadd.f32 %v1079, %v1124
    %v1160 = vadd.f32 %v1080, %v1124
    %v1161 = vadd.f32 %v1081, %v1124
    %v1162 = vadd.f32 %v1082, %v1124
    %v1163 = vadd.f32 %v1083, %v1124
    %v1164 = vadd.f32 %v1084, %v1124
    %v1165 = vadd.f32 %v1085, %v1124
    %v1166 = vadd.f32 %v1086, %v1124
    %v1167 = vadd.f32 %v1087, %v1124
    %v1168 = vadd.f32 %v1088, %v1124
    %v1169 = vadd.f32 %v1089, %v1124
    %v1170 = vadd.f32 %v1090, %v1124
    %v1171 = vadd.f32 %v1091, %v1124
    %v1172 = vadd.f32 %v1092, %v1124
    %v1173 = vadd.f32 %v1093, %v1124
    %v1174 = vadd.f32 %v1094, %v1124
    %v1175 = vadd.f32 %v1095, %v1124
    %v1176 = vadd.f32 %v1096, %v1124
    %v1177 = vadd.f32 %v1097, %v1124
    %v1178 = vadd.f32 %v1098, %v1124
    %v1179 = vadd.f32 %v1099, %v1124
    %v1180 = vadd.f32 %v1100, %v1124
    %v1181 = vadd.f32 %v1101, %v1124
    %v1182 = vadd.f32 %v1102, %v1124
    %v1183 = vadd.f32 %v1103, %v1124
    %v1184 = vadd.f32 %v1104, %v1124
    %v1185 = vadd.f32 %v1105, %v1124
    %v1186 = vadd.f32 %v1106, %v1124
    %v1187 = vadd.f32 %v1107, %v1124
    %v1188 = vadd.f32 %v1108, %v1124
    %v1189 = vadd.f32 %v1109, %v1124
    %v1190 = vadd.f32 %v1110, %v1124
    %v1191 = vadd.f32 %v1111, %v1124
    %v1192 = vadd.f32 %v1112, %v1124
    %v1193 = vadd.f32 %v1113, %v1124
    %v1194 = vadd.f32 %v1114, %v1124
    %v1195 = vadd.f32 %v1115, %v1124
    %v1196 = vadd.f32 %v1116, %v1124
    %v1197 = vadd.f32 %v1117, %v1124
    %v1198 = vadd.f32 %v1118, %v1124
    %v1199 = vtanh.pop %v1126
    %v1200 = vtanh.pop %v1127
    %v1201 = vtanh.pop %v1128
    %v1202 = vtanh.pop %v1129
    %v1203 = vtanh.pop %v1130
    %v1204 = vtanh.pop %v1131
    %v1205 = vtanh.pop %v1132
    %v1206 = vtanh.pop %v1133
    %v1207 = vtanh.pop %v1134
    %v1208 = vtanh.pop %v1135
    %v1209 = vtanh.pop %v1136
    %v1210 = vtanh.pop %v1137
    %v1211 = vtanh.pop %v1138
    %v1212 = vtanh.pop %v1139
    %v1213 = vtanh.pop %v1140
    %v1214 = vtanh.pop %v1141
    %v1215 = vtanh.pop %v1142
    %v1216 = vtanh.pop %v1143
    %v1217 = vtanh.pop %v1144
    %v1218 = vtanh.pop %v1145
    %v1219 = vtanh.pop %v1146
    %v1220 = vtanh.pop %v1147
    %v1221 = vtanh.pop %v1148
    %v1222 = vtanh.pop %v1149
    %v1223 = vtanh.pop %v1150
    %v1224 = vtanh.pop %v1151
    %v1225 = vtanh.pop %v1152
    %v1226 = vtanh.pop %v1153
    %v1227 = vtanh.pop %v1154
    %v1228 = vtanh.pop %v1155
    %v1229 = vtanh.pop %v1156
    %v1230 = vtanh.pop %v1157
    %v1231 = vtanh.pop %v1158
    %v1232 = vtanh.pop %v1159
    %v1233 = vtanh.pop %v1160
    %v1234 = vtanh.pop %v1161
    %v1235 = vtanh.pop %v1162
    %v1236 = vtanh.pop %v1163
    %v1237 = vtanh.pop %v1164
    %v1238 = vtanh.pop %v1165
    %v1239 = vtanh.pop %v1166
    %v1240 = vtanh.pop %v1167
    %v1241 = vtanh.pop %v1168
    %v1242 = vtanh.pop %v1169
    %v1243 = vtanh.pop %v1170
    %v1244 = vtanh.pop %v1171
    %v1245 = vtanh.pop %v1172
    %v1246 = vtanh.pop %v1173
    %v1247 = vtanh.pop %v1174
    %v1248 = vtanh.pop %v1175
    %v1249 = vtanh.pop %v1176
    %v1250 = vtanh.pop %v1177
    %v1251 = vtanh.pop %v1178
    %v1252 = vtanh.pop %v1179
    %v1253 = vtanh.pop %v1180
    %v1254 = vtanh.pop %v1181
    %v1255 = vtanh.pop %v1182
    %v1256 = vtanh.pop %v1183
    %v1257 = vtanh.pop %v1184
    %v1258 = vtanh.pop %v1185
    %v1259 = vtanh.pop %v1186
    %v1260 = vtanh.pop %v1187
    %v1261 = vtanh.pop %v1188
    %v1262 = vtanh.pop %v1189
    %v1263 = vtanh.pop %v1190
    %v1264 = vtanh.pop %v1191
    %v1265 = vtanh.pop %v1192
    %v1266 = vtanh.pop %v1193
    %v1267 = vtanh.pop %v1194
    %v1268 = vtanh.pop %v1195
    %v1269 = vtanh.pop %v1196
    %v1270 = vtanh.pop %v1197
    %v1271 = vtanh.pop %v1198
    %1272 = vst.msk [vmem:[%s3] sm:$0xff] %vm968, %v1199
    %1273 = vst.msk [vmem:[%s3 + $0x8] sm:$0xff] %vm968, %v1200
    %1274 = vst.msk [vmem:[%s3 + $0x10] sm:$0xff] %vm968, %v1201
    %1275 = vst.msk [vmem:[%s3 + $0x18] sm:$0xff] %vm968, %v1202
    %1276 = vst.msk [vmem:[%s3 + $0x20] sm:$0xff] %vm968, %v1203
    %1277 = vst.msk [vmem:[%s3 + $0x28] sm:$0xff] %vm968, %v1204
    %1278 = vst.msk [vmem:[%s3 + $0x30] sm:$0xff] %vm968, %v1205
    %1279 = vst.msk [vmem:[%s3 + $0x38] sm:$0xff] %vm968, %v1206
    %1280 = vst.msk [vmem:[%s3 + $0x40] sm:$0xff] %vm968, %v1207
    %1281 = vst.msk [vmem:[%s3 + $0x48] sm:$0xff] %vm968, %v1208
    %1282 = vst.msk [vmem:[%s3 + $0x50] sm:$0xff] %vm968, %v1209
    %1283 = vst.msk [vmem:[%s3 + $0x58] sm:$0xff] %vm968, %v1210
    %1284 = vst.msk [vmem:[%s3 + $0x60] sm:$0xff] %vm968, %v1211
    %1285 = vst.msk [vmem:[%s3 + $0x68] sm:$0xff] %vm968, %v1212
    %1286 = vst.msk [vmem:[%s3 + $0x70] sm:$0xff] %vm968, %v1213
    %1287 = vst.msk [vmem:[%s3 + $0x78] sm:$0xff] %vm968, %v1214
    %1288 = vst.msk [vmem:[%s3 + $0x80] sm:$0xff] %vm968, %v1215
    %1289 = vst.msk [vmem:[%s3 + $0x88] sm:$0xff] %vm968, %v1216
    %1290 = vst.msk [vmem:[%s3 + $0x90] sm:$0xff] %vm968, %v1217
    %1291 = vst.msk [vmem:[%s3 + $0x98] sm:$0xff] %vm968, %v1218
    %1292 = vst.msk [vmem:[%s3 + $0xa0] sm:$0xff] %vm968, %v1219
    %1293 = vst.msk [vmem:[%s3 + $0xa8] sm:$0xff] %vm968, %v1220
    %1294 = vst.msk [vmem:[%s3 + $0xb0] sm:$0xff] %vm968, %v1221
    %1295 = vst.msk [vmem:[%s3 + $0xb8] sm:$0xff] %vm968, %v1222
    %1296 = vst.msk [vmem:[%s3 + $0xc0] sm:$0xff] %vm968, %v1223
    %1297 = vst.msk [vmem:[%s3 + $0xc8] sm:$0xff] %vm968, %v1224
    %1298 = vst.msk [vmem:[%s3 + $0xd0] sm:$0xff] %vm968, %v1225
    %1299 = vst.msk [vmem:[%s3 + $0xd8] sm:$0xff] %vm968, %v1226
    %1300 = vst.msk [vmem:[%s3 + $0xe0] sm:$0xff] %vm968, %v1227
    %1301 = vst.msk [vmem:[%s3 + $0xe8] sm:$0xff] %vm968, %v1228
    %1302 = vst.msk [vmem:[%s3 + $0xf0] sm:$0xff] %vm968, %v1229
    %1303 = vst.msk [vmem:[%s3 + $0xf8] sm:$0xff] %vm968, %v1230
    %1304 = vst.msk [vmem:[%s3 + $0x100] sm:$0xff] %vm968, %v1231
    %1305 = vst.msk [vmem:[%s3 + $0x108] sm:$0xff] %vm968, %v1232
    %1306 = vst.msk [vmem:[%s3 + $0x110] sm:$0xff] %vm968, %v1233
    %1307 = vst.msk [vmem:[%s3 + $0x118] sm:$0xff] %vm968, %v1234
    %1308 = vst.msk [vmem:[%s3 + $0x120] sm:$0xff] %vm968, %v1235
    %1309 = vst.msk [vmem:[%s3 + $0x128] sm:$0xff] %vm968, %v1236
    %1310 = vst.msk [vmem:[%s3 + $0x130] sm:$0xff] %vm968, %v1237
    %1311 = vst.msk [vmem:[%s3 + $0x138] sm:$0xff] %vm968, %v1238
    %1312 = vst.msk [vmem:[%s3 + $0x140] sm:$0xff] %vm968, %v1239
    %1313 = vst.msk [vmem:[%s3 + $0x148] sm:$0xff] %vm968, %v1240
    %1314 = vst.msk [vmem:[%s3 + $0x150] sm:$0xff] %vm968, %v1241
    %1315 = vst.msk [vmem:[%s3 + $0x158] sm:$0xff] %vm968, %v1242
    %1316 = vst.msk [vmem:[%s3 + $0x160] sm:$0xff] %vm968, %v1243
    %1317 = vst.msk [vmem:[%s3 + $0x168] sm:$0xff] %vm968, %v1244
    %1318 = vst.msk [vmem:[%s3 + $0x170] sm:$0xff] %vm968, %v1245
    %1319 = vst.msk [vmem:[%s3 + $0x178] sm:$0xff] %vm968, %v1246
    %1320 = vst.msk [vmem:[%s3 + $0x180] sm:$0xff] %vm968, %v1247
    %1321 = vst.msk [vmem:[%s3 + $0x188] sm:$0xff] %vm968, %v1248
    %1322 = vst.msk [vmem:[%s3 + $0x190] sm:$0xff] %vm968, %v1249
    %1323 = vst.msk [vmem:[%s3 + $0x198] sm:$0xff] %vm968, %v1250
    %1324 = vst.msk [vmem:[%s3 + $0x1a0] sm:$0xff] %vm968, %v1251
    %1325 = vst.msk [vmem:[%s3 + $0x1a8] sm:$0xff] %vm968, %v1252
    %1326 = vst.msk [vmem:[%s3 + $0x1b0] sm:$0xff] %vm968, %v1253
    %1327 = vst.msk [vmem:[%s3 + $0x1b8] sm:$0xff] %vm968, %v1254
    %1328 = vst.msk [vmem:[%s3 + $0x1c0] sm:$0xff] %vm968, %v1255
    %1329 = vst.msk [vmem:[%s3 + $0x1c8] sm:$0xff] %vm968, %v1256
    %1330 = vst.msk [vmem:[%s3 + $0x1d0] sm:$0xff] %vm968, %v1257
    %1331 = vst.msk [vmem:[%s3 + $0x1d8] sm:$0xff] %vm968, %v1258
    %1332 = vst.msk [vmem:[%s3 + $0x1e0] sm:$0xff] %vm968, %v1259
    %1333 = vst.msk [vmem:[%s3 + $0x1e8] sm:$0xff] %vm968, %v1260
    %1334 = vst.msk [vmem:[%s3 + $0x1f0] sm:$0xff] %vm968, %v1261
    %1335 = vst.msk [vmem:[%s3 + $0x1f8] sm:$0xff] %vm968, %v1262
    %1336 = vst.msk [vmem:[%s3 + $0x200] sm:$0xff] %vm968, %v1263
    %1337 = vst.msk [vmem:[%s3 + $0x208] sm:$0xff] %vm968, %v1264
    %1338 = vst.msk [vmem:[%s3 + $0x210] sm:$0xff] %vm968, %v1265
    %1339 = vst.msk [vmem:[%s3 + $0x218] sm:$0xff] %vm968, %v1266
    %1340 = vst.msk [vmem:[%s3 + $0x220] sm:$0xff] %vm968, %v1267
    %1341 = vst.msk [vmem:[%s3 + $0x228] sm:$0xff] %vm968, %v1268
    %1342 = vst.msk [vmem:[%s3 + $0x230] sm:$0xff] %vm968, %v1269
    %1343 = vst.msk [vmem:[%s3 + $0x238] sm:$0xff] %vm968, %v1270
    %1344 = vst.msk [vmem:[%s3 + $0x240] sm:$0x3] %vm1041, %v1271
  $region21: #{_lambda_.47} parent=0 // pred_fallthru
    _
  // Predicated region
  $region22: #{_lambda_.47} parent=0 // pred_check
    _
  $region23: #{_lambda_.47} parent=0 // pred_check_branch
    %1346 = sbr.rel (0) target = $region25
  $region24: #{_lambda_.47} parent=0 // pred_region
    _
  $region25: #{_lambda_.47} parent=0 // pred_fallthru
    _
  // Predicated region
  $region26: #{_lambda_.47} parent=0 // pred_check
    _
  $region27: #{_lambda_.47} parent=0 // pred_check_branch
    %1348 = sbr.rel (0) target = $region29
  $region28: #{_lambda_.47} parent=0 // pred_region
    _
  $region29: #{_lambda_.47} parent=0 // pred_fallthru
    _

</llo_original>
